<compile_context>
chip_gen: v6e
topology: v6e:2x2x1
jax: 0.10.0
libtpu: 0.0.40
codegen_flags: <defaults>
</compile_context>

<pallas_src>
import functools

import jax
import jax.numpy as jnp
import numpy as np
from jax import lax
from jax.experimental import pallas as pl
from jax.experimental.pallas import tpu as pltpu


def mhsa_kernel(x_ref, w_ref, eh_ref, ew_ref, idxh_ref, idxw_ref, exph_ref, expw_ref,
                o_ref, *, H, W, heads, dim, bt):
    S = H * W
    C = heads * dim
    rows = bt * S

    x = x_ref[0]            # [rows, C]        bf16
    w = w_ref[...]          # [C, 3C]          bf16 (dim^-0.5 folded into q columns)
    eh_bd = eh_ref[...]     # [C, heads*H]     bf16 block-diagonal rel-h embeddings
    ew_bd = ew_ref[...]     # [C, heads*W]     bf16 block-diagonal rel-w embeddings
    idx_h = idxh_ref[...]   # [rows, H]        i32: (H-1 + hk - hq(row)) % H
    idx_w = idxw_ref[...]   # [rows, W]        i32: (W-1 + wk - wq(row)) % W
    exp_h = exph_ref[...]   # [H, S]           f32 one-hot: [h == sk // W]
    exp_w = expw_ref[...]   # [W, S]           f32 one-hot: [w == sk %  W]

    # Fused q/k/v projection for every head & every batch row: one wide MXU matmul.
    qkv = jnp.dot(x, w, preferred_element_type=jnp.float32)          # [rows, 3C] f32

    # Cast once (scale already folded into the q weights in the wrapper).
    q_all = qkv[:, 0 * C:1 * C].astype(jnp.bfloat16)
    k_all = qkv[:, 1 * C:2 * C].astype(jnp.bfloat16)
    v_all = qkv[:, 2 * C:3 * C].astype(jnp.bfloat16)

    # Head-fused relative-position projections (K = C matmuls, f32 accumulation):
    #   ph_all[:, n*H + h] = q_n . emb_h[h]   pw_all[:, n*W + w] = q_n . emb_w[w]
    ph_all = jnp.dot(q_all, eh_bd, preferred_element_type=jnp.float32)   # [rows, heads*H]
    pw_all = jnp.dot(q_all, ew_bd, preferred_element_type=jnp.float32)   # [rows, heads*W]

    # Hoisted, head-independent gather masks in the reduced domains.
    mask_h = [idx_h == m for m in range(H)]
    mask_w = [idx_w == m for m in range(W)]

    for n in range(heads):                                  # static unrolled head loop
        lo = n * dim
        q_n = q_all[:, lo:lo + dim]                         # [rows, dim] bf16
        k_n = k_all[:, lo:lo + dim]
        v_n = v_all[:, lo:lo + dim]
        ph_n = ph_all[:, n * H:(n + 1) * H]                 # [rows, H] f32
        pw_n = pw_all[:, n * W:(n + 1) * W]                 # [rows, W] f32

        # Reduced-domain torus gather:
        #   tmp_h[row, hk] = ph_n[row, (H-1 + hk - hq(row)) % H]   (and same for w)
        tmp_h = jnp.where(mask_h[0], ph_n[:, 0:1], 0.0)
        for m in range(1, H):
            tmp_h = tmp_h + jnp.where(mask_h[m], ph_n[:, m:m + 1], 0.0)
        tmp_w = jnp.where(mask_w[0], pw_n[:, 0:1], 0.0)
        for m in range(1, W):
            tmp_w = tmp_w + jnp.where(mask_w[m], pw_n[:, m:m + 1], 0.0)

        # Expand to all S keys with constant one-hot MXU matmuls (exact: one-hot rows).
        bias_n = (jnp.dot(tmp_h, exp_h, preferred_element_type=jnp.float32) +
                  jnp.dot(tmp_w, exp_w, preferred_element_type=jnp.float32))   # [rows, S]

        for b in range(bt):                                 # static per-batch-item loop
            r0 = b * S
            q_nb = q_n[r0:r0 + S, :]
            k_nb = k_n[r0:r0 + S, :]
            v_nb = v_n[r0:r0 + S, :]

            # content logits q k^T (MXU, bf16 in / f32 acc) + relative bias
            logits = lax.dot_general(q_nb, k_nb, (((1,), (1,)), ((), ())),
                                     preferred_element_type=jnp.float32)       # [S, S]
            logits = logits + bias_n[r0:r0 + S, :]

            # softmax over all keys (f32 math, approx reciprocal on the idle EUP)
            logits = logits - jnp.max(logits, axis=-1, keepdims=True)
            p = jnp.exp(logits)
            p = p * pl.reciprocal(jnp.sum(p, axis=-1, keepdims=True), approx=True)

            out_nb = jnp.dot(p.astype(jnp.bfloat16), v_nb,
                             preferred_element_type=jnp.float32)               # [S, dim]
            # direct store into this head's channel slice — no lane concatenation
            o_ref[0, r0:r0 + S, lo:lo + dim] = out_nb.astype(o_ref.dtype)


def _pick_batch_block(B, S):
    """Largest divisor of B giving >= ~128 rows per step, keeping >= 2 grid steps if possible."""
    target = max(1, (128 + S - 1) // S)
    divisors = [d for d in range(1, B + 1) if B % d == 0]
    cands = [d for d in divisors if d <= target] or [1]
    bt = max(cands)
    if B // bt < 2:
        two_step = [d for d in cands if B // d >= 2]
        if two_step:
            bt = max(two_step)
    return bt


def mhsa_pallas(x, wq, wk, wv, emb_h, emb_w):
    """x: [B, C, H, W] (NCHW, like PyTorch). Returns [B, C, H, W] float32."""
    B, C, H, W = x.shape
    _, heads, dim = wq.shape
    assert heads * dim == C
    S = H * W
    scale = float(dim) ** (-0.5)

    bt = _pick_batch_block(B, S)
    G = B // bt
    rows = bt * S

    # ---------- trace-time layout plumbing & constants (all tiny) ----------
    xf = jnp.transpose(x, (0, 2, 3, 1)).reshape(G, rows, C).astype(jnp.bfloat16)

    # fused weight [C, 3C]: columns = [q heads | k heads | v heads], head-major n*dim+d;
    # dim^-0.5 folded into the q columns in f32 BEFORE the bf16 cast.
    w_fused = jnp.stack([wq * scale, wk, wv], axis=1).reshape(C, 3 * heads * dim)
    w_fused = w_fused.astype(jnp.bfloat16)

    # block-diagonal rel-pos embeddings: Eh_bd[n*dim + d, n*H + h] = emb_h[h, d]
    eye_h = jnp.eye(heads, dtype=emb_h.dtype)
    eh_bd = jnp.kron(eye_h, emb_h.T).astype(jnp.bfloat16)          # [C, heads*H]
    ew_bd = jnp.kron(eye_h, emb_w.T).astype(jnp.bfloat16)          # [C, heads*W]

    # reduced-domain torus relative indices (compile-time constants, no in-kernel div/mod)
    s_idx = np.arange(rows) % S
    hq_pos = s_idx // W
    wq_pos = s_idx % W
    idx_h = ((H - 1 + np.arange(H)[None, :] - hq_pos[:, None]) % H).astype(np.int32)
    idx_w = ((W - 1 + np.arange(W)[None, :] - wq_pos[:, None]) % W).astype(np.int32)

    # one-hot expansion matrices (reduced domain -> all S keys)
    exp_h = (np.arange(S)[None, :] // W == np.arange(H)[:, None]).astype(np.float32)
    exp_w = (np.arange(S)[None, :] % W == np.arange(W)[:, None]).astype(np.float32)

    kernel = functools.partial(mhsa_kernel, H=H, W=W, heads=heads, dim=dim, bt=bt)
    const = lambda g: (0, 0)
    out = pl.pallas_call(
        kernel,
        out_shape=jax.ShapeDtypeStruct((G, rows, C), jnp.bfloat16),
        grid_spec=pltpu.PrefetchScalarGridSpec(
            num_scalar_prefetch=0,
            grid=(G,),
            in_specs=[
                pl.BlockSpec((1, rows, C), lambda g: (g, 0, 0)),
                pl.BlockSpec((C, 3 * C), const),           # weights stay VMEM-resident
                pl.BlockSpec((C, heads * H), const),
                pl.BlockSpec((C, heads * W), const),
                pl.BlockSpec((rows, H), const),
                pl.BlockSpec((rows, W), const),
                pl.BlockSpec((H, S), const),
                pl.BlockSpec((W, S), const),
            ],
            out_specs=pl.BlockSpec((1, rows, C), lambda g: (g, 0, 0)),
        ),
        # TODO(synk): on v7x, switch to CORE_PARALLEL semantics (or an explicit leading
        # core axis) if plain "parallel" does not shard the batch axis across both TCs.
        compiler_params=pltpu.CompilerParams(dimension_semantics=("parallel",)),
    )(xf, w_fused, eh_bd, ew_bd,
      jnp.asarray(idx_h), jnp.asarray(idx_w),
      jnp.asarray(exp_h), jnp.asarray(exp_w))

    # [G, bt*S, C] -> [B, H, W, C] -> [B, C, H, W]   (== fold_heads + .permute(0, 3, 1, 2))
    out = out.reshape(B, H, W, heads * dim)
    return jnp.transpose(out, (0, 3, 1, 2)).astype(jnp.float32)


# ---------------- pure-JAX reference (literal port of the PyTorch module) ----------------

def _rel_to_abs(x):
    bs, heads, length, _ = x.shape
    col_pad = jnp.zeros((bs, heads, length, 1), x.dtype)
    x = jnp.concatenate([x, col_pad], axis=3)
    flat_x = x.reshape(bs, heads, -1)
    flat_pad = jnp.zeros((bs, heads, length - 1), x.dtype)
    flat_x = jnp.concatenate([flat_x, flat_pad], axis=2)
    final = flat_x.reshape(bs, heads, length + 1, 2 * length - 1)
    return final[:, :, :length, length - 1:]


def _relative_logits_1d(q, rel_k, transpose_mask):
    bs, heads, h, w, dim = q.shape
    rel_logits = jnp.einsum('bhxyd,md->bhxym', q, rel_k)
    rel_logits = rel_logits.reshape(bs, heads * h, w, 2 * w - 1)
    rel_logits = _rel_to_abs(rel_logits)
    rel_logits = rel_logits.reshape(bs, heads, h, w, w)
    rel_logits = rel_logits[:, :, :, None, :, :]
    rel_logits = jnp.tile(rel_logits, (1, 1, 1, h, 1, 1))
    return jnp.transpose(rel_logits, transpose_mask)


def mhsa_reference(x, wq, wk, wv, emb_h, emb_w):
    B, C, H, W = x.shape
    _, N, dim = wq.shape
    xp = jnp.transpose(x, (0, 2, 3, 1))
    q = jnp.einsum('bhwc,cnp->bnhwp', xp, wq)
    k = jnp.einsum('bhwc,cnp->bnhwp', xp, wk)
    v = jnp.einsum('bhwc,cnp->bnhwp', xp, wv)
    q = q * dim ** (-0.5)
    logits = jnp.einsum('bnhwd,bnpqd->bnhwpq', q, k)
    rel_w = _relative_logits_1d(
        q, jnp.concatenate([emb_w, emb_w[:-1]], axis=0), (0, 1, 2, 4, 3, 5))
    rel_h = _relative_logits_1d(
        jnp.transpose(q, (0, 1, 3, 2, 4)),
        jnp.concatenate([emb_h, emb_h[:-1]], axis=0), (0, 1, 4, 2, 5, 3))
    logits = logits + rel_h + rel_w
    weights = logits.reshape(B, N, H, W, H * W)
    weights = jax.nn.softmax(weights, axis=-1)
    weights = weights.reshape(B, N, H, W, H, W)
    attn = jnp.einsum('bnhwpq,bnpqd->bhwnd', weights, v)
    attn = attn.reshape(B, H, W, N * dim)
    return jnp.transpose(attn, (0, 3, 1, 2))


if __name__ == "__main__":
    B, C, H, W = 4, 32, 8, 8
    heads = 4
    dim = C // heads  # proj_factor=1

    key = jax.random.PRNGKey(0)
    kx, kq, kk, kv, kh, kw = jax.random.split(key, 6)
    x = jax.random.normal(kx, (B, C, H, W), dtype=jnp.float32)
    # GroupPointWise weights: [in_channels, heads, proj_channels // heads], std=0.01
    wq = 0.01 * jax.random.normal(kq, (C, heads, dim), dtype=jnp.float32)
    wk = 0.01 * jax.random.normal(kk, (C, heads, dim), dtype=jnp.float32)
    wv = 0.01 * jax.random.normal(kv, (C, heads, dim), dtype=jnp.float32)
    # RelPosSelfAttention embeddings: [W, dim], [H, dim], std = dim ** -0.5
    emb_w = (dim ** -0.5) * jax.random.normal(kw, (W, dim), dtype=jnp.float32)
    emb_h = (dim ** -0.5) * jax.random.normal(kh, (H, dim), dtype=jnp.float32)

    out = mhsa_pallas(x, wq, wk, wv, emb_h, emb_w)
    out = jax.block_until_ready(out)

    ref = mhsa_reference(x, wq, wk, wv, emb_h, emb_w)
    # bf16 matmuls / bf16 output + approx reciprocal => looser tolerance than pure f32.
    np.testing.assert_allclose(np.asarray(out), np.asarray(ref), rtol=2e-2, atol=2e-3)
    assert out.shape == (B, C, H, W)

    print("KERNEL_OK")
</pallas_src>

<mosaic_0001>
module attributes {stable_mosaic.version = 11 : i64} {
  func.func @mhsa_kernel(%arg0: i32, %arg1: memref<1x128x32xbf16, #tpu.memory_space<vmem>>, %arg2: memref<32x96xbf16, #tpu.memory_space<vmem>>, %arg3: memref<32x32xbf16, #tpu.memory_space<vmem>>, %arg4: memref<32x32xbf16, #tpu.memory_space<vmem>>, %arg5: memref<128x8xi32, #tpu.memory_space<vmem>>, %arg6: memref<128x8xi32, #tpu.memory_space<vmem>>, %arg7: memref<8x64xf32, #tpu.memory_space<vmem>>, %arg8: memref<8x64xf32, #tpu.memory_space<vmem>>, %arg9: memref<1x128x32xbf16, #tpu.memory_space<vmem>>) attributes {dimension_semantics = [#tpu.dimension_semantics<parallel>], iteration_bounds = array<i64: 2>, scalar_prefetch = 0 : i64, scratch_operands = 0 : i64, tpu.core_type = #tpu.core_type<tc>, window_params = [{transform_indices = @transform_0, window_bounds = array<i64: 1, 128, 32>}, {pipeline_mode = #tpu.pipeline_mode<synchronous>, transform_indices = @transform_1, window_bounds = array<i64: 32, 96>}, {pipeline_mode = #tpu.pipeline_mode<synchronous>, transform_indices = @transform_2, window_bounds = array<i64: 32, 32>}, {pipeline_mode = #tpu.pipeline_mode<synchronous>, transform_indices = @transform_3, window_bounds = array<i64: 32, 32>}, {pipeline_mode = #tpu.pipeline_mode<synchronous>, transform_indices = @transform_4, window_bounds = array<i64: 128, 8>}, {pipeline_mode = #tpu.pipeline_mode<synchronous>, transform_indices = @transform_5, window_bounds = array<i64: 128, 8>}, {pipeline_mode = #tpu.pipeline_mode<synchronous>, transform_indices = @transform_6, window_bounds = array<i64: 8, 64>}, {pipeline_mode = #tpu.pipeline_mode<synchronous>, transform_indices = @transform_7, window_bounds = array<i64: 8, 64>}, {transform_indices = @transform_8, window_bounds = array<i64: 1, 128, 32>}]} {
    %c0 = arith.constant 0 : index
    %c0_0 = arith.constant 0 : index
    %c0_1 = arith.constant 0 : index
    %0 = vector.load %arg1[%c0, %c0_0, %c0_1] : memref<1x128x32xbf16, #tpu.memory_space<vmem>>, vector<1x128x32xbf16>
    %1 = vector.shape_cast %0 : vector<1x128x32xbf16> to vector<128x32xbf16>
    %c0_2 = arith.constant 0 : index
    %c0_3 = arith.constant 0 : index
    %2 = vector.load %arg2[%c0_2, %c0_3] : memref<32x96xbf16, #tpu.memory_space<vmem>>, vector<32x96xbf16>
    %c0_4 = arith.constant 0 : index
    %c0_5 = arith.constant 0 : index
    %3 = vector.load %arg3[%c0_4, %c0_5] : memref<32x32xbf16, #tpu.memory_space<vmem>>, vector<32x32xbf16>
    %c0_6 = arith.constant 0 : index
    %c0_7 = arith.constant 0 : index
    %4 = vector.load %arg4[%c0_6, %c0_7] : memref<32x32xbf16, #tpu.memory_space<vmem>>, vector<32x32xbf16>
    %c0_8 = arith.constant 0 : index
    %c0_9 = arith.constant 0 : index
    %5 = vector.load %arg5[%c0_8, %c0_9] : memref<128x8xi32, #tpu.memory_space<vmem>>, vector<128x8xi32>
    %c0_10 = arith.constant 0 : index
    %c0_11 = arith.constant 0 : index
    %6 = vector.load %arg6[%c0_10, %c0_11] : memref<128x8xi32, #tpu.memory_space<vmem>>, vector<128x8xi32>
    %c0_12 = arith.constant 0 : index
    %c0_13 = arith.constant 0 : index
    %7 = vector.load %arg7[%c0_12, %c0_13] : memref<8x64xf32, #tpu.memory_space<vmem>>, vector<8x64xf32>
    %c0_14 = arith.constant 0 : index
    %c0_15 = arith.constant 0 : index
    %8 = vector.load %arg8[%c0_14, %c0_15] : memref<8x64xf32, #tpu.memory_space<vmem>>, vector<8x64xf32>
    %cst = arith.constant dense<0.000000e+00> : vector<128x96xf32>
    %9 = tpu.matmul %1, %2, %cst {dimension_numbers = #tpu.dot_dimension_numbers<[1], [0], [0], [1], [0, 0, 1, 1], [], []>} : vector<128x32xbf16>, vector<32x96xbf16>, vector<128x96xf32> -> vector<128x96xf32>
    %10 = vector.extract_strided_slice %9 {offsets = [0, 0], sizes = [128, 32], strides = [1, 1]} : vector<128x96xf32> to vector<128x32xf32>
    %11 = arith.truncf %10 : vector<128x32xf32> to vector<128x32xbf16>
    %12 = vector.extract_strided_slice %9 {offsets = [0, 32], sizes = [128, 32], strides = [1, 1]} : vector<128x96xf32> to vector<128x32xf32>
    %13 = arith.truncf %12 : vector<128x32xf32> to vector<128x32xbf16>
    %14 = vector.extract_strided_slice %9 {offsets = [0, 64], sizes = [128, 32], strides = [1, 1]} : vector<128x96xf32> to vector<128x32xf32>
    %15 = arith.truncf %14 : vector<128x32xf32> to vector<128x32xbf16>
    %cst_16 = arith.constant dense<0.000000e+00> : vector<128x32xf32>
    %16 = tpu.matmul %11, %3, %cst_16 {dimension_numbers = #tpu.dot_dimension_numbers<[1], [0], [0], [1], [0, 0, 1, 1], [], []>} : vector<128x32xbf16>, vector<32x32xbf16>, vector<128x32xf32> -> vector<128x32xf32>
    %cst_17 = arith.constant dense<0.000000e+00> : vector<128x32xf32>
    %17 = tpu.matmul %11, %4, %cst_17 {dimension_numbers = #tpu.dot_dimension_numbers<[1], [0], [0], [1], [0, 0, 1, 1], [], []>} : vector<128x32xbf16>, vector<32x32xbf16>, vector<128x32xf32> -> vector<128x32xf32>
    %c0_i32 = arith.constant 0 : i32
    %18 = vector.broadcast %c0_i32 : i32 to vector<128x8xi32>
    %19 = arith.cmpi eq, %5, %18 : vector<128x8xi32>
    %c1_i32 = arith.constant 1 : i32
    %20 = vector.broadcast %c1_i32 : i32 to vector<128x8xi32>
    %21 = arith.cmpi eq, %5, %20 : vector<128x8xi32>
    %c2_i32 = arith.constant 2 : i32
    %22 = vector.broadcast %c2_i32 : i32 to vector<128x8xi32>
    %23 = arith.cmpi eq, %5, %22 : vector<128x8xi32>
    %c3_i32 = arith.constant 3 : i32
    %24 = vector.broadcast %c3_i32 : i32 to vector<128x8xi32>
    %25 = arith.cmpi eq, %5, %24 : vector<128x8xi32>
    %c4_i32 = arith.constant 4 : i32
    %26 = vector.broadcast %c4_i32 : i32 to vector<128x8xi32>
    %27 = arith.cmpi eq, %5, %26 : vector<128x8xi32>
    %c5_i32 = arith.constant 5 : i32
    %28 = vector.broadcast %c5_i32 : i32 to vector<128x8xi32>
    %29 = arith.cmpi eq, %5, %28 : vector<128x8xi32>
    %c6_i32 = arith.constant 6 : i32
    %30 = vector.broadcast %c6_i32 : i32 to vector<128x8xi32>
    %31 = arith.cmpi eq, %5, %30 : vector<128x8xi32>
    %c7_i32 = arith.constant 7 : i32
    %32 = vector.broadcast %c7_i32 : i32 to vector<128x8xi32>
    %33 = arith.cmpi eq, %5, %32 : vector<128x8xi32>
    %c0_i32_18 = arith.constant 0 : i32
    %34 = vector.broadcast %c0_i32_18 : i32 to vector<128x8xi32>
    %35 = arith.cmpi eq, %6, %34 : vector<128x8xi32>
    %c1_i32_19 = arith.constant 1 : i32
    %36 = vector.broadcast %c1_i32_19 : i32 to vector<128x8xi32>
    %37 = arith.cmpi eq, %6, %36 : vector<128x8xi32>
    %c2_i32_20 = arith.constant 2 : i32
    %38 = vector.broadcast %c2_i32_20 : i32 to vector<128x8xi32>
    %39 = arith.cmpi eq, %6, %38 : vector<128x8xi32>
    %c3_i32_21 = arith.constant 3 : i32
    %40 = vector.broadcast %c3_i32_21 : i32 to vector<128x8xi32>
    %41 = arith.cmpi eq, %6, %40 : vector<128x8xi32>
    %c4_i32_22 = arith.constant 4 : i32
    %42 = vector.broadcast %c4_i32_22 : i32 to vector<128x8xi32>
    %43 = arith.cmpi eq, %6, %42 : vector<128x8xi32>
    %c5_i32_23 = arith.constant 5 : i32
    %44 = vector.broadcast %c5_i32_23 : i32 to vector<128x8xi32>
    %45 = arith.cmpi eq, %6, %44 : vector<128x8xi32>
    %c6_i32_24 = arith.constant 6 : i32
    %46 = vector.broadcast %c6_i32_24 : i32 to vector<128x8xi32>
    %47 = arith.cmpi eq, %6, %46 : vector<128x8xi32>
    %c7_i32_25 = arith.constant 7 : i32
    %48 = vector.broadcast %c7_i32_25 : i32 to vector<128x8xi32>
    %49 = arith.cmpi eq, %6, %48 : vector<128x8xi32>
    %50 = vector.extract_strided_slice %11 {offsets = [0, 0], sizes = [128, 8], strides = [1, 1]} : vector<128x32xbf16> to vector<128x8xbf16>
    %51 = vector.extract_strided_slice %13 {offsets = [0, 0], sizes = [128, 8], strides = [1, 1]} : vector<128x32xbf16> to vector<128x8xbf16>
    %52 = vector.extract_strided_slice %15 {offsets = [0, 0], sizes = [128, 8], strides = [1, 1]} : vector<128x32xbf16> to vector<128x8xbf16>
    %53 = vector.extract_strided_slice %16 {offsets = [0, 0], sizes = [128, 8], strides = [1, 1]} : vector<128x32xf32> to vector<128x8xf32>
    %54 = vector.extract_strided_slice %17 {offsets = [0, 0], sizes = [128, 8], strides = [1, 1]} : vector<128x32xf32> to vector<128x8xf32>
    %55 = vector.extract_strided_slice %53 {offsets = [0, 0], sizes = [128, 1], strides = [1, 1]} : vector<128x8xf32> to vector<128x1xf32>
    %cst_26 = arith.constant 0.000000e+00 : f32
    %56 = vector.shape_cast %55 : vector<128x1xf32> to vector<128x1xf32>
    %57 = vector.broadcast %56 : vector<128x1xf32> to vector<128x8xf32>
    %58 = vector.broadcast %cst_26 : f32 to vector<128x8xf32>
    %59 = arith.select %19, %57, %58 : vector<128x8xi1>, vector<128x8xf32>
    %60 = vector.extract_strided_slice %53 {offsets = [0, 1], sizes = [128, 1], strides = [1, 1]} : vector<128x8xf32> to vector<128x1xf32>
    %cst_27 = arith.constant 0.000000e+00 : f32
    %61 = vector.shape_cast %60 : vector<128x1xf32> to vector<128x1xf32>
    %62 = vector.broadcast %61 : vector<128x1xf32> to vector<128x8xf32>
    %63 = vector.broadcast %cst_27 : f32 to vector<128x8xf32>
    %64 = arith.select %21, %62, %63 : vector<128x8xi1>, vector<128x8xf32>
    %65 = arith.addf %59, %64 : vector<128x8xf32>
    %66 = vector.extract_strided_slice %53 {offsets = [0, 2], sizes = [128, 1], strides = [1, 1]} : vector<128x8xf32> to vector<128x1xf32>
    %cst_28 = arith.constant 0.000000e+00 : f32
    %67 = vector.shape_cast %66 : vector<128x1xf32> to vector<128x1xf32>
    %68 = vector.broadcast %67 : vector<128x1xf32> to vector<128x8xf32>
    %69 = vector.broadcast %cst_28 : f32 to vector<128x8xf32>
    %70 = arith.select %23, %68, %69 : vector<128x8xi1>, vector<128x8xf32>
    %71 = arith.addf %65, %70 : vector<128x8xf32>
    %72 = vector.extract_strided_slice %53 {offsets = [0, 3], sizes = [128, 1], strides = [1, 1]} : vector<128x8xf32> to vector<128x1xf32>
    %cst_29 = arith.constant 0.000000e+00 : f32
    %73 = vector.shape_cast %72 : vector<128x1xf32> to vector<128x1xf32>
    %74 = vector.broadcast %73 : vector<128x1xf32> to vector<128x8xf32>
    %75 = vector.broadcast %cst_29 : f32 to vector<128x8xf32>
    %76 = arith.select %25, %74, %75 : vector<128x8xi1>, vector<128x8xf32>
    %77 = arith.addf %71, %76 : vector<128x8xf32>
    %78 = vector.extract_strided_slice %53 {offsets = [0, 4], sizes = [128, 1], strides = [1, 1]} : vector<128x8xf32> to vector<128x1xf32>
    %cst_30 = arith.constant 0.000000e+00 : f32
    %79 = vector.shape_cast %78 : vector<128x1xf32> to vector<128x1xf32>
    %80 = vector.broadcast %79 : vector<128x1xf32> to vector<128x8xf32>
    %81 = vector.broadcast %cst_30 : f32 to vector<128x8xf32>
    %82 = arith.select %27, %80, %81 : vector<128x8xi1>, vector<128x8xf32>
    %83 = arith.addf %77, %82 : vector<128x8xf32>
    %84 = vector.extract_strided_slice %53 {offsets = [0, 5], sizes = [128, 1], strides = [1, 1]} : vector<128x8xf32> to vector<128x1xf32>
    %cst_31 = arith.constant 0.000000e+00 : f32
    %85 = vector.shape_cast %84 : vector<128x1xf32> to vector<128x1xf32>
    %86 = vector.broadcast %85 : vector<128x1xf32> to vector<128x8xf32>
    %87 = vector.broadcast %cst_31 : f32 to vector<128x8xf32>
    %88 = arith.select %29, %86, %87 : vector<128x8xi1>, vector<128x8xf32>
    %89 = arith.addf %83, %88 : vector<128x8xf32>
    %90 = vector.extract_strided_slice %53 {offsets = [0, 6], sizes = [128, 1], strides = [1, 1]} : vector<128x8xf32> to vector<128x1xf32>
    %cst_32 = arith.constant 0.000000e+00 : f32
    %91 = vector.shape_cast %90 : vector<128x1xf32> to vector<128x1xf32>
    %92 = vector.broadcast %91 : vector<128x1xf32> to vector<128x8xf32>
    %93 = vector.broadcast %cst_32 : f32 to vector<128x8xf32>
    %94 = arith.select %31, %92, %93 : vector<128x8xi1>, vector<128x8xf32>
    %95 = arith.addf %89, %94 : vector<128x8xf32>
    %96 = vector.extract_strided_slice %53 {offsets = [0, 7], sizes = [128, 1], strides = [1, 1]} : vector<128x8xf32> to vector<128x1xf32>
    %cst_33 = arith.constant 0.000000e+00 : f32
    %97 = vector.shape_cast %96 : vector<128x1xf32> to vector<128x1xf32>
    %98 = vector.broadcast %97 : vector<128x1xf32> to vector<128x8xf32>
    %99 = vector.broadcast %cst_33 : f32 to vector<128x8xf32>
    %100 = arith.select %33, %98, %99 : vector<128x8xi1>, vector<128x8xf32>
    %101 = arith.addf %95, %100 : vector<128x8xf32>
    %102 = vector.extract_strided_slice %54 {offsets = [0, 0], sizes = [128, 1], strides = [1, 1]} : vector<128x8xf32> to vector<128x1xf32>
    %cst_34 = arith.constant 0.000000e+00 : f32
    %103 = vector.shape_cast %102 : vector<128x1xf32> to vector<128x1xf32>
    %104 = vector.broadcast %103 : vector<128x1xf32> to vector<128x8xf32>
    %105 = vector.broadcast %cst_34 : f32 to vector<128x8xf32>
    %106 = arith.select %35, %104, %105 : vector<128x8xi1>, vector<128x8xf32>
    %107 = vector.extract_strided_slice %54 {offsets = [0, 1], sizes = [128, 1], strides = [1, 1]} : vector<128x8xf32> to vector<128x1xf32>
    %cst_35 = arith.constant 0.000000e+00 : f32
    %108 = vector.shape_cast %107 : vector<128x1xf32> to vector<128x1xf32>
    %109 = vector.broadcast %108 : vector<128x1xf32> to vector<128x8xf32>
    %110 = vector.broadcast %cst_35 : f32 to vector<128x8xf32>
    %111 = arith.select %37, %109, %110 : vector<128x8xi1>, vector<128x8xf32>
    %112 = arith.addf %106, %111 : vector<128x8xf32>
    %113 = vector.extract_strided_slice %54 {offsets = [0, 2], sizes = [128, 1], strides = [1, 1]} : vector<128x8xf32> to vector<128x1xf32>
    %cst_36 = arith.constant 0.000000e+00 : f32
    %114 = vector.shape_cast %113 : vector<128x1xf32> to vector<128x1xf32>
    %115 = vector.broadcast %114 : vector<128x1xf32> to vector<128x8xf32>
    %116 = vector.broadcast %cst_36 : f32 to vector<128x8xf32>
    %117 = arith.select %39, %115, %116 : vector<128x8xi1>, vector<128x8xf32>
    %118 = arith.addf %112, %117 : vector<128x8xf32>
    %119 = vector.extract_strided_slice %54 {offsets = [0, 3], sizes = [128, 1], strides = [1, 1]} : vector<128x8xf32> to vector<128x1xf32>
    %cst_37 = arith.constant 0.000000e+00 : f32
    %120 = vector.shape_cast %119 : vector<128x1xf32> to vector<128x1xf32>
    %121 = vector.broadcast %120 : vector<128x1xf32> to vector<128x8xf32>
    %122 = vector.broadcast %cst_37 : f32 to vector<128x8xf32>
    %123 = arith.select %41, %121, %122 : vector<128x8xi1>, vector<128x8xf32>
    %124 = arith.addf %118, %123 : vector<128x8xf32>
    %125 = vector.extract_strided_slice %54 {offsets = [0, 4], sizes = [128, 1], strides = [1, 1]} : vector<128x8xf32> to vector<128x1xf32>
    %cst_38 = arith.constant 0.000000e+00 : f32
    %126 = vector.shape_cast %125 : vector<128x1xf32> to vector<128x1xf32>
    %127 = vector.broadcast %126 : vector<128x1xf32> to vector<128x8xf32>
    %128 = vector.broadcast %cst_38 : f32 to vector<128x8xf32>
    %129 = arith.select %43, %127, %128 : vector<128x8xi1>, vector<128x8xf32>
    %130 = arith.addf %124, %129 : vector<128x8xf32>
    %131 = vector.extract_strided_slice %54 {offsets = [0, 5], sizes = [128, 1], strides = [1, 1]} : vector<128x8xf32> to vector<128x1xf32>
    %cst_39 = arith.constant 0.000000e+00 : f32
    %132 = vector.shape_cast %131 : vector<128x1xf32> to vector<128x1xf32>
    %133 = vector.broadcast %132 : vector<128x1xf32> to vector<128x8xf32>
    %134 = vector.broadcast %cst_39 : f32 to vector<128x8xf32>
    %135 = arith.select %45, %133, %134 : vector<128x8xi1>, vector<128x8xf32>
    %136 = arith.addf %130, %135 : vector<128x8xf32>
    %137 = vector.extract_strided_slice %54 {offsets = [0, 6], sizes = [128, 1], strides = [1, 1]} : vector<128x8xf32> to vector<128x1xf32>
    %cst_40 = arith.constant 0.000000e+00 : f32
    %138 = vector.shape_cast %137 : vector<128x1xf32> to vector<128x1xf32>
    %139 = vector.broadcast %138 : vector<128x1xf32> to vector<128x8xf32>
    %140 = vector.broadcast %cst_40 : f32 to vector<128x8xf32>
    %141 = arith.select %47, %139, %140 : vector<128x8xi1>, vector<128x8xf32>
    %142 = arith.addf %136, %141 : vector<128x8xf32>
    %143 = vector.extract_strided_slice %54 {offsets = [0, 7], sizes = [128, 1], strides = [1, 1]} : vector<128x8xf32> to vector<128x1xf32>
    %cst_41 = arith.constant 0.000000e+00 : f32
    %144 = vector.shape_cast %143 : vector<128x1xf32> to vector<128x1xf32>
    %145 = vector.broadcast %144 : vector<128x1xf32> to vector<128x8xf32>
    %146 = vector.broadcast %cst_41 : f32 to vector<128x8xf32>
    %147 = arith.select %49, %145, %146 : vector<128x8xi1>, vector<128x8xf32>
    %148 = arith.addf %142, %147 : vector<128x8xf32>
    %cst_42 = arith.constant dense<0.000000e+00> : vector<128x64xf32>
    %149 = tpu.matmul %101, %7, %cst_42 {dimension_numbers = #tpu.dot_dimension_numbers<[1], [0], [0], [1], [0, 0, 1, 1], [], []>} : vector<128x8xf32>, vector<8x64xf32>, vector<128x64xf32> -> vector<128x64xf32>
    %cst_43 = arith.constant dense<0.000000e+00> : vector<128x64xf32>
    %150 = tpu.matmul %148, %8, %cst_43 {dimension_numbers = #tpu.dot_dimension_numbers<[1], [0], [0], [1], [0, 0, 1, 1], [], []>} : vector<128x8xf32>, vector<8x64xf32>, vector<128x64xf32> -> vector<128x64xf32>
    %151 = arith.addf %149, %150 : vector<128x64xf32>
    %152 = vector.extract_strided_slice %50 {offsets = [0, 0], sizes = [64, 8], strides = [1, 1]} : vector<128x8xbf16> to vector<64x8xbf16>
    %153 = vector.extract_strided_slice %51 {offsets = [0, 0], sizes = [64, 8], strides = [1, 1]} : vector<128x8xbf16> to vector<64x8xbf16>
    %154 = vector.extract_strided_slice %52 {offsets = [0, 0], sizes = [64, 8], strides = [1, 1]} : vector<128x8xbf16> to vector<64x8xbf16>
    %cst_44 = arith.constant dense<0.000000e+00> : vector<64x64xf32>
    %155 = tpu.matmul %152, %153, %cst_44 {dimension_numbers = #tpu.dot_dimension_numbers<[1], [1], [0], [0], [0, 0, 1, 0], [], []>} : vector<64x8xbf16>, vector<64x8xbf16>, vector<64x64xf32> -> vector<64x64xf32>
    %156 = vector.extract_strided_slice %151 {offsets = [0, 0], sizes = [64, 64], strides = [1, 1]} : vector<128x64xf32> to vector<64x64xf32>
    %157 = arith.addf %155, %156 : vector<64x64xf32>
    %cst_45 = arith.constant dense<0xFF800000> : vector<64xf32>
    %158 = vector.multi_reduction <maximumf>, %157, %cst_45 [1] : vector<64x64xf32> to vector<64xf32>
    %159 = vector.shape_cast %158 : vector<64xf32> to vector<64x1xf32>
    %160 = vector.broadcast %159 : vector<64x1xf32> to vector<64x64xf32>
    %161 = arith.subf %157, %160 : vector<64x64xf32>
    %162 = math.exp %161 : vector<64x64xf32>
    %cst_46 = arith.constant dense<0.000000e+00> : vector<64xf32>
    %163 = vector.multi_reduction <add>, %162, %cst_46 [1] : vector<64x64xf32> to vector<64xf32>
    %164 = vector.shape_cast %163 : vector<64xf32> to vector<64x1xf32>
    %165 = tpu.reciprocal %164 {approx = true} : vector<64x1xf32> -> vector<64x1xf32>
    %166 = vector.broadcast %165 : vector<64x1xf32> to vector<64x64xf32>
    %167 = arith.mulf %162, %166 : vector<64x64xf32>
    %168 = arith.truncf %167 : vector<64x64xf32> to vector<64x64xbf16>
    %cst_47 = arith.constant dense<0.000000e+00> : vector<64x8xf32>
    %169 = tpu.matmul %168, %154, %cst_47 {dimension_numbers = #tpu.dot_dimension_numbers<[1], [0], [0], [1], [0, 0, 1, 1], [], []>} : vector<64x64xbf16>, vector<64x8xbf16>, vector<64x8xf32> -> vector<64x8xf32>
    %170 = arith.truncf %169 : vector<64x8xf32> to vector<64x8xbf16>
    %c0_48 = arith.constant 0 : index
    %c0_49 = arith.constant 0 : index
    %c0_50 = arith.constant 0 : index
    %171 = vector.load %arg9[%c0_48, %c0_49, %c0_50] : memref<1x128x32xbf16, #tpu.memory_space<vmem>>, vector<1x64x8xbf16>
    %172 = vector.shape_cast %171 : vector<1x64x8xbf16> to vector<64x8xbf16>
    %173 = vector.shape_cast %170 : vector<64x8xbf16> to vector<1x64x8xbf16>
    tpu.vector_store %arg9[%c0_48, %c0_49, %c0_50], %173 {strides = array<i32>} : memref<1x128x32xbf16, #tpu.memory_space<vmem>>, vector<1x64x8xbf16>,
    %174 = vector.extract_strided_slice %50 {offsets = [64, 0], sizes = [64, 8], strides = [1, 1]} : vector<128x8xbf16> to vector<64x8xbf16>
    %175 = vector.extract_strided_slice %51 {offsets = [64, 0], sizes = [64, 8], strides = [1, 1]} : vector<128x8xbf16> to vector<64x8xbf16>
    %176 = vector.extract_strided_slice %52 {offsets = [64, 0], sizes = [64, 8], strides = [1, 1]} : vector<128x8xbf16> to vector<64x8xbf16>
    %cst_51 = arith.constant dense<0.000000e+00> : vector<64x64xf32>
    %177 = tpu.matmul %174, %175, %cst_51 {dimension_numbers = #tpu.dot_dimension_numbers<[1], [1], [0], [0], [0, 0, 1, 0], [], []>} : vector<64x8xbf16>, vector<64x8xbf16>, vector<64x64xf32> -> vector<64x64xf32>
    %178 = vector.extract_strided_slice %151 {offsets = [64, 0], sizes = [64, 64], strides = [1, 1]} : vector<128x64xf32> to vector<64x64xf32>
    %179 = arith.addf %177, %178 : vector<64x64xf32>
    %cst_52 = arith.constant dense<0xFF800000> : vector<64xf32>
    %180 = vector.multi_reduction <maximumf>, %179, %cst_52 [1] : vector<64x64xf32> to vector<64xf32>
    %181 = vector.shape_cast %180 : vector<64xf32> to vector<64x1xf32>
    %182 = vector.broadcast %181 : vector<64x1xf32> to vector<64x64xf32>
    %183 = arith.subf %179, %182 : vector<64x64xf32>
    %184 = math.exp %183 : vector<64x64xf32>
    %cst_53 = arith.constant dense<0.000000e+00> : vector<64xf32>
    %185 = vector.multi_reduction <add>, %184, %cst_53 [1] : vector<64x64xf32> to vector<64xf32>
    %186 = vector.shape_cast %185 : vector<64xf32> to vector<64x1xf32>
    %187 = tpu.reciprocal %186 {approx = true} : vector<64x1xf32> -> vector<64x1xf32>
    %188 = vector.broadcast %187 : vector<64x1xf32> to vector<64x64xf32>
    %189 = arith.mulf %184, %188 : vector<64x64xf32>
    %190 = arith.truncf %189 : vector<64x64xf32> to vector<64x64xbf16>
    %cst_54 = arith.constant dense<0.000000e+00> : vector<64x8xf32>
    %191 = tpu.matmul %190, %176, %cst_54 {dimension_numbers = #tpu.dot_dimension_numbers<[1], [0], [0], [1], [0, 0, 1, 1], [], []>} : vector<64x64xbf16>, vector<64x8xbf16>, vector<64x8xf32> -> vector<64x8xf32>
    %192 = arith.truncf %191 : vector<64x8xf32> to vector<64x8xbf16>
    %c0_55 = arith.constant 0 : index
    %c64 = arith.constant 64 : index
    %c0_56 = arith.constant 0 : index
    %193 = vector.load %arg9[%c0_55, %c64, %c0_56] : memref<1x128x32xbf16, #tpu.memory_space<vmem>>, vector<1x64x8xbf16>
    %194 = vector.shape_cast %193 : vector<1x64x8xbf16> to vector<64x8xbf16>
    %195 = vector.shape_cast %192 : vector<64x8xbf16> to vector<1x64x8xbf16>
    tpu.vector_store %arg9[%c0_55, %c64, %c0_56], %195 {strides = array<i32>} : memref<1x128x32xbf16, #tpu.memory_space<vmem>>, vector<1x64x8xbf16>,
    %196 = vector.extract_strided_slice %11 {offsets = [0, 8], sizes = [128, 8], strides = [1, 1]} : vector<128x32xbf16> to vector<128x8xbf16>
    %197 = vector.extract_strided_slice %13 {offsets = [0, 8], sizes = [128, 8], strides = [1, 1]} : vector<128x32xbf16> to vector<128x8xbf16>
    %198 = vector.extract_strided_slice %15 {offsets = [0, 8], sizes = [128, 8], strides = [1, 1]} : vector<128x32xbf16> to vector<128x8xbf16>
    %199 = vector.extract_strided_slice %16 {offsets = [0, 8], sizes = [128, 8], strides = [1, 1]} : vector<128x32xf32> to vector<128x8xf32>
    %200 = vector.extract_strided_slice %17 {offsets = [0, 8], sizes = [128, 8], strides = [1, 1]} : vector<128x32xf32> to vector<128x8xf32>
    %201 = vector.extract_strided_slice %199 {offsets = [0, 0], sizes = [128, 1], strides = [1, 1]} : vector<128x8xf32> to vector<128x1xf32>
    %cst_57 = arith.constant 0.000000e+00 : f32
    %202 = vector.shape_cast %201 : vector<128x1xf32> to vector<128x1xf32>
    %203 = vector.broadcast %202 : vector<128x1xf32> to vector<128x8xf32>
    %204 = vector.broadcast %cst_57 : f32 to vector<128x8xf32>
    %205 = arith.select %19, %203, %204 : vector<128x8xi1>, vector<128x8xf32>
    %206 = vector.extract_strided_slice %199 {offsets = [0, 1], sizes = [128, 1], strides = [1, 1]} : vector<128x8xf32> to vector<128x1xf32>
    %cst_58 = arith.constant 0.000000e+00 : f32
    %207 = vector.shape_cast %206 : vector<128x1xf32> to vector<128x1xf32>
    %208 = vector.broadcast %207 : vector<128x1xf32> to vector<128x8xf32>
    %209 = vector.broadcast %cst_58 : f32 to vector<128x8xf32>
    %210 = arith.select %21, %208, %209 : vector<128x8xi1>, vector<128x8xf32>
    %211 = arith.addf %205, %210 : vector<128x8xf32>
    %212 = vector.extract_strided_slice %199 {offsets = [0, 2], sizes = [128, 1], strides = [1, 1]} : vector<128x8xf32> to vector<128x1xf32>
    %cst_59 = arith.constant 0.000000e+00 : f32
    %213 = vector.shape_cast %212 : vector<128x1xf32> to vector<128x1xf32>
    %214 = vector.broadcast %213 : vector<128x1xf32> to vector<128x8xf32>
    %215 = vector.broadcast %cst_59 : f32 to vector<128x8xf32>
    %216 = arith.select %23, %214, %215 : vector<128x8xi1>, vector<128x8xf32>
    %217 = arith.addf %211, %216 : vector<128x8xf32>
    %218 = vector.extract_strided_slice %199 {offsets = [0, 3], sizes = [128, 1], strides = [1, 1]} : vector<128x8xf32> to vector<128x1xf32>
    %cst_60 = arith.constant 0.000000e+00 : f32
    %219 = vector.shape_cast %218 : vector<128x1xf32> to vector<128x1xf32>
    %220 = vector.broadcast %219 : vector<128x1xf32> to vector<128x8xf32>
    %221 = vector.broadcast %cst_60 : f32 to vector<128x8xf32>
    %222 = arith.select %25, %220, %221 : vector<128x8xi1>, vector<128x8xf32>
    %223 = arith.addf %217, %222 : vector<128x8xf32>
    %224 = vector.extract_strided_slice %199 {offsets = [0, 4], sizes = [128, 1], strides = [1, 1]} : vector<128x8xf32> to vector<128x1xf32>
    %cst_61 = arith.constant 0.000000e+00 : f32
    %225 = vector.shape_cast %224 : vector<128x1xf32> to vector<128x1xf32>
    %226 = vector.broadcast %225 : vector<128x1xf32> to vector<128x8xf32>
    %227 = vector.broadcast %cst_61 : f32 to vector<128x8xf32>
    %228 = arith.select %27, %226, %227 : vector<128x8xi1>, vector<128x8xf32>
    %229 = arith.addf %223, %228 : vector<128x8xf32>
    %230 = vector.extract_strided_slice %199 {offsets = [0, 5], sizes = [128, 1], strides = [1, 1]} : vector<128x8xf32> to vector<128x1xf32>
    %cst_62 = arith.constant 0.000000e+00 : f32
    %231 = vector.shape_cast %230 : vector<128x1xf32> to vector<128x1xf32>
    %232 = vector.broadcast %231 : vector<128x1xf32> to vector<128x8xf32>
    %233 = vector.broadcast %cst_62 : f32 to vector<128x8xf32>
    %234 = arith.select %29, %232, %233 : vector<128x8xi1>, vector<128x8xf32>
    %235 = arith.addf %229, %234 : vector<128x8xf32>
    %236 = vector.extract_strided_slice %199 {offsets = [0, 6], sizes = [128, 1], strides = [1, 1]} : vector<128x8xf32> to vector<128x1xf32>
    %cst_63 = arith.constant 0.000000e+00 : f32
    %237 = vector.shape_cast %236 : vector<128x1xf32> to vector<128x1xf32>
    %238 = vector.broadcast %237 : vector<128x1xf32> to vector<128x8xf32>
    %239 = vector.broadcast %cst_63 : f32 to vector<128x8xf32>
    %240 = arith.select %31, %238, %239 : vector<128x8xi1>, vector<128x8xf32>
    %241 = arith.addf %235, %240 : vector<128x8xf32>
    %242 = vector.extract_strided_slice %199 {offsets = [0, 7], sizes = [128, 1], strides = [1, 1]} : vector<128x8xf32> to vector<128x1xf32>
    %cst_64 = arith.constant 0.000000e+00 : f32
    %243 = vector.shape_cast %242 : vector<128x1xf32> to vector<128x1xf32>
    %244 = vector.broadcast %243 : vector<128x1xf32> to vector<128x8xf32>
    %245 = vector.broadcast %cst_64 : f32 to vector<128x8xf32>
    %246 = arith.select %33, %244, %245 : vector<128x8xi1>, vector<128x8xf32>
    %247 = arith.addf %241, %246 : vector<128x8xf32>
    %248 = vector.extract_strided_slice %200 {offsets = [0, 0], sizes = [128, 1], strides = [1, 1]} : vector<128x8xf32> to vector<128x1xf32>
    %cst_65 = arith.constant 0.000000e+00 : f32
    %249 = vector.shape_cast %248 : vector<128x1xf32> to vector<128x1xf32>
    %250 = vector.broadcast %249 : vector<128x1xf32> to vector<128x8xf32>
    %251 = vector.broadcast %cst_65 : f32 to vector<128x8xf32>
    %252 = arith.select %35, %250, %251 : vector<128x8xi1>, vector<128x8xf32>
    %253 = vector.extract_strided_slice %200 {offsets = [0, 1], sizes = [128, 1], strides = [1, 1]} : vector<128x8xf32> to vector<128x1xf32>
    %cst_66 = arith.constant 0.000000e+00 : f32
    %254 = vector.shape_cast %253 : vector<128x1xf32> to vector<128x1xf32>
    %255 = vector.broadcast %254 : vector<128x1xf32> to vector<128x8xf32>
    %256 = vector.broadcast %cst_66 : f32 to vector<128x8xf32>
    %257 = arith.select %37, %255, %256 : vector<128x8xi1>, vector<128x8xf32>
    %258 = arith.addf %252, %257 : vector<128x8xf32>
    %259 = vector.extract_strided_slice %200 {offsets = [0, 2], sizes = [128, 1], strides = [1, 1]} : vector<128x8xf32> to vector<128x1xf32>
    %cst_67 = arith.constant 0.000000e+00 : f32
    %260 = vector.shape_cast %259 : vector<128x1xf32> to vector<128x1xf32>
    %261 = vector.broadcast %260 : vector<128x1xf32> to vector<128x8xf32>
    %262 = vector.broadcast %cst_67 : f32 to vector<128x8xf32>
    %263 = arith.select %39, %261, %262 : vector<128x8xi1>, vector<128x8xf32>
    %264 = arith.addf %258, %263 : vector<128x8xf32>
    %265 = vector.extract_strided_slice %200 {offsets = [0, 3], sizes = [128, 1], strides = [1, 1]} : vector<128x8xf32> to vector<128x1xf32>
    %cst_68 = arith.constant 0.000000e+00 : f32
    %266 = vector.shape_cast %265 : vector<128x1xf32> to vector<128x1xf32>
    %267 = vector.broadcast %266 : vector<128x1xf32> to vector<128x8xf32>
    %268 = vector.broadcast %cst_68 : f32 to vector<128x8xf32>
    %269 = arith.select %41, %267, %268 : vector<128x8xi1>, vector<128x8xf32>
    %270 = arith.addf %264, %269 : vector<128x8xf32>
    %271 = vector.extract_strided_slice %200 {offsets = [0, 4], sizes = [128, 1], strides = [1, 1]} : vector<128x8xf32> to vector<128x1xf32>
    %cst_69 = arith.constant 0.000000e+00 : f32
    %272 = vector.shape_cast %271 : vector<128x1xf32> to vector<128x1xf32>
    %273 = vector.broadcast %272 : vector<128x1xf32> to vector<128x8xf32>
    %274 = vector.broadcast %cst_69 : f32 to vector<128x8xf32>
    %275 = arith.select %43, %273, %274 : vector<128x8xi1>, vector<128x8xf32>
    %276 = arith.addf %270, %275 : vector<128x8xf32>
    %277 = vector.extract_strided_slice %200 {offsets = [0, 5], sizes = [128, 1], strides = [1, 1]} : vector<128x8xf32> to vector<128x1xf32>
    %cst_70 = arith.constant 0.000000e+00 : f32
    %278 = vector.shape_cast %277 : vector<128x1xf32> to vector<128x1xf32>
    %279 = vector.broadcast %278 : vector<128x1xf32> to vector<128x8xf32>
    %280 = vector.broadcast %cst_70 : f32 to vector<128x8xf32>
    %281 = arith.select %45, %279, %280 : vector<128x8xi1>, vector<128x8xf32>
    %282 = arith.addf %276, %281 : vector<128x8xf32>
    %283 = vector.extract_strided_slice %200 {offsets = [0, 6], sizes = [128, 1], strides = [1, 1]} : vector<128x8xf32> to vector<128x1xf32>
    %cst_71 = arith.constant 0.000000e+00 : f32
    %284 = vector.shape_cast %283 : vector<128x1xf32> to vector<128x1xf32>
    %285 = vector.broadcast %284 : vector<128x1xf32> to vector<128x8xf32>
    %286 = vector.broadcast %cst_71 : f32 to vector<128x8xf32>
    %287 = arith.select %47, %285, %286 : vector<128x8xi1>, vector<128x8xf32>
    %288 = arith.addf %282, %287 : vector<128x8xf32>
    %289 = vector.extract_strided_slice %200 {offsets = [0, 7], sizes = [128, 1], strides = [1, 1]} : vector<128x8xf32> to vector<128x1xf32>
    %cst_72 = arith.constant 0.000000e+00 : f32
    %290 = vector.shape_cast %289 : vector<128x1xf32> to vector<128x1xf32>
    %291 = vector.broadcast %290 : vector<128x1xf32> to vector<128x8xf32>
    %292 = vector.broadcast %cst_72 : f32 to vector<128x8xf32>
    %293 = arith.select %49, %291, %292 : vector<128x8xi1>, vector<128x8xf32>
    %294 = arith.addf %288, %293 : vector<128x8xf32>
    %cst_73 = arith.constant dense<0.000000e+00> : vector<128x64xf32>
    %295 = tpu.matmul %247, %7, %cst_73 {dimension_numbers = #tpu.dot_dimension_numbers<[1], [0], [0], [1], [0, 0, 1, 1], [], []>} : vector<128x8xf32>, vector<8x64xf32>, vector<128x64xf32> -> vector<128x64xf32>
    %cst_74 = arith.constant dense<0.000000e+00> : vector<128x64xf32>
    %296 = tpu.matmul %294, %8, %cst_74 {dimension_numbers = #tpu.dot_dimension_numbers<[1], [0], [0], [1], [0, 0, 1, 1], [], []>} : vector<128x8xf32>, vector<8x64xf32>, vector<128x64xf32> -> vector<128x64xf32>
    %297 = arith.addf %295, %296 : vector<128x64xf32>
    %298 = vector.extract_strided_slice %196 {offsets = [0, 0], sizes = [64, 8], strides = [1, 1]} : vector<128x8xbf16> to vector<64x8xbf16>
    %299 = vector.extract_strided_slice %197 {offsets = [0, 0], sizes = [64, 8], strides = [1, 1]} : vector<128x8xbf16> to vector<64x8xbf16>
    %300 = vector.extract_strided_slice %198 {offsets = [0, 0], sizes = [64, 8], strides = [1, 1]} : vector<128x8xbf16> to vector<64x8xbf16>
    %cst_75 = arith.constant dense<0.000000e+00> : vector<64x64xf32>
    %301 = tpu.matmul %298, %299, %cst_75 {dimension_numbers = #tpu.dot_dimension_numbers<[1], [1], [0], [0], [0, 0, 1, 0], [], []>} : vector<64x8xbf16>, vector<64x8xbf16>, vector<64x64xf32> -> vector<64x64xf32>
    %302 = vector.extract_strided_slice %297 {offsets = [0, 0], sizes = [64, 64], strides = [1, 1]} : vector<128x64xf32> to vector<64x64xf32>
    %303 = arith.addf %301, %302 : vector<64x64xf32>
    %cst_76 = arith.constant dense<0xFF800000> : vector<64xf32>
    %304 = vector.multi_reduction <maximumf>, %303, %cst_76 [1] : vector<64x64xf32> to vector<64xf32>
    %305 = vector.shape_cast %304 : vector<64xf32> to vector<64x1xf32>
    %306 = vector.broadcast %305 : vector<64x1xf32> to vector<64x64xf32>
    %307 = arith.subf %303, %306 : vector<64x64xf32>
    %308 = math.exp %307 : vector<64x64xf32>
    %cst_77 = arith.constant dense<0.000000e+00> : vector<64xf32>
    %309 = vector.multi_reduction <add>, %308, %cst_77 [1] : vector<64x64xf32> to vector<64xf32>
    %310 = vector.shape_cast %309 : vector<64xf32> to vector<64x1xf32>
    %311 = tpu.reciprocal %310 {approx = true} : vector<64x1xf32> -> vector<64x1xf32>
    %312 = vector.broadcast %311 : vector<64x1xf32> to vector<64x64xf32>
    %313 = arith.mulf %308, %312 : vector<64x64xf32>
    %314 = arith.truncf %313 : vector<64x64xf32> to vector<64x64xbf16>
    %cst_78 = arith.constant dense<0.000000e+00> : vector<64x8xf32>
    %315 = tpu.matmul %314, %300, %cst_78 {dimension_numbers = #tpu.dot_dimension_numbers<[1], [0], [0], [1], [0, 0, 1, 1], [], []>} : vector<64x64xbf16>, vector<64x8xbf16>, vector<64x8xf32> -> vector<64x8xf32>
    %316 = arith.truncf %315 : vector<64x8xf32> to vector<64x8xbf16>
    %c0_79 = arith.constant 0 : index
    %c0_80 = arith.constant 0 : index
    %c8 = arith.constant 8 : index
    %317 = vector.load %arg9[%c0_79, %c0_80, %c8] : memref<1x128x32xbf16, #tpu.memory_space<vmem>>, vector<1x64x8xbf16>
    %318 = vector.shape_cast %317 : vector<1x64x8xbf16> to vector<64x8xbf16>
    %319 = vector.shape_cast %316 : vector<64x8xbf16> to vector<1x64x8xbf16>
    tpu.vector_store %arg9[%c0_79, %c0_80, %c8], %319 {strides = array<i32>} : memref<1x128x32xbf16, #tpu.memory_space<vmem>>, vector<1x64x8xbf16>,
    %320 = vector.extract_strided_slice %196 {offsets = [64, 0], sizes = [64, 8], strides = [1, 1]} : vector<128x8xbf16> to vector<64x8xbf16>
    %321 = vector.extract_strided_slice %197 {offsets = [64, 0], sizes = [64, 8], strides = [1, 1]} : vector<128x8xbf16> to vector<64x8xbf16>
    %322 = vector.extract_strided_slice %198 {offsets = [64, 0], sizes = [64, 8], strides = [1, 1]} : vector<128x8xbf16> to vector<64x8xbf16>
    %cst_81 = arith.constant dense<0.000000e+00> : vector<64x64xf32>
    %323 = tpu.matmul %320, %321, %cst_81 {dimension_numbers = #tpu.dot_dimension_numbers<[1], [1], [0], [0], [0, 0, 1, 0], [], []>} : vector<64x8xbf16>, vector<64x8xbf16>, vector<64x64xf32> -> vector<64x64xf32>
    %324 = vector.extract_strided_slice %297 {offsets = [64, 0], sizes = [64, 64], strides = [1, 1]} : vector<128x64xf32> to vector<64x64xf32>
    %325 = arith.addf %323, %324 : vector<64x64xf32>
    %cst_82 = arith.constant dense<0xFF800000> : vector<64xf32>
    %326 = vector.multi_reduction <maximumf>, %325, %cst_82 [1] : vector<64x64xf32> to vector<64xf32>
    %327 = vector.shape_cast %326 : vector<64xf32> to vector<64x1xf32>
    %328 = vector.broadcast %327 : vector<64x1xf32> to vector<64x64xf32>
    %329 = arith.subf %325, %328 : vector<64x64xf32>
    %330 = math.exp %329 : vector<64x64xf32>
    %cst_83 = arith.constant dense<0.000000e+00> : vector<64xf32>
    %331 = vector.multi_reduction <add>, %330, %cst_83 [1] : vector<64x64xf32> to vector<64xf32>
    %332 = vector.shape_cast %331 : vector<64xf32> to vector<64x1xf32>
    %333 = tpu.reciprocal %332 {approx = true} : vector<64x1xf32> -> vector<64x1xf32>
    %334 = vector.broadcast %333 : vector<64x1xf32> to vector<64x64xf32>
    %335 = arith.mulf %330, %334 : vector<64x64xf32>
    %336 = arith.truncf %335 : vector<64x64xf32> to vector<64x64xbf16>
    %cst_84 = arith.constant dense<0.000000e+00> : vector<64x8xf32>
    %337 = tpu.matmul %336, %322, %cst_84 {dimension_numbers = #tpu.dot_dimension_numbers<[1], [0], [0], [1], [0, 0, 1, 1], [], []>} : vector<64x64xbf16>, vector<64x8xbf16>, vector<64x8xf32> -> vector<64x8xf32>
    %338 = arith.truncf %337 : vector<64x8xf32> to vector<64x8xbf16>
    %c0_85 = arith.constant 0 : index
    %c64_86 = arith.constant 64 : index
    %c8_87 = arith.constant 8 : index
    %339 = vector.load %arg9[%c0_85, %c64_86, %c8_87] : memref<1x128x32xbf16, #tpu.memory_space<vmem>>, vector<1x64x8xbf16>
    %340 = vector.shape_cast %339 : vector<1x64x8xbf16> to vector<64x8xbf16>
    %341 = vector.shape_cast %338 : vector<64x8xbf16> to vector<1x64x8xbf16>
    tpu.vector_store %arg9[%c0_85, %c64_86, %c8_87], %341 {strides = array<i32>} : memref<1x128x32xbf16, #tpu.memory_space<vmem>>, vector<1x64x8xbf16>,
    %342 = vector.extract_strided_slice %11 {offsets = [0, 16], sizes = [128, 8], strides = [1, 1]} : vector<128x32xbf16> to vector<128x8xbf16>
    %343 = vector.extract_strided_slice %13 {offsets = [0, 16], sizes = [128, 8], strides = [1, 1]} : vector<128x32xbf16> to vector<128x8xbf16>
    %344 = vector.extract_strided_slice %15 {offsets = [0, 16], sizes = [128, 8], strides = [1, 1]} : vector<128x32xbf16> to vector<128x8xbf16>
    %345 = vector.extract_strided_slice %16 {offsets = [0, 16], sizes = [128, 8], strides = [1, 1]} : vector<128x32xf32> to vector<128x8xf32>
    %346 = vector.extract_strided_slice %17 {offsets = [0, 16], sizes = [128, 8], strides = [1, 1]} : vector<128x32xf32> to vector<128x8xf32>
    %347 = vector.extract_strided_slice %345 {offsets = [0, 0], sizes = [128, 1], strides = [1, 1]} : vector<128x8xf32> to vector<128x1xf32>
    %cst_88 = arith.constant 0.000000e+00 : f32
    %348 = vector.shape_cast %347 : vector<128x1xf32> to vector<128x1xf32>
    %349 = vector.broadcast %348 : vector<128x1xf32> to vector<128x8xf32>
    %350 = vector.broadcast %cst_88 : f32 to vector<128x8xf32>
    %351 = arith.select %19, %349, %350 : vector<128x8xi1>, vector<128x8xf32>
    %352 = vector.extract_strided_slice %345 {offsets = [0, 1], sizes = [128, 1], strides = [1, 1]} : vector<128x8xf32> to vector<128x1xf32>
    %cst_89 = arith.constant 0.000000e+00 : f32
    %353 = vector.shape_cast %352 : vector<128x1xf32> to vector<128x1xf32>
    %354 = vector.broadcast %353 : vector<128x1xf32> to vector<128x8xf32>
    %355 = vector.broadcast %cst_89 : f32 to vector<128x8xf32>
    %356 = arith.select %21, %354, %355 : vector<128x8xi1>, vector<128x8xf32>
    %357 = arith.addf %351, %356 : vector<128x8xf32>
    %358 = vector.extract_strided_slice %345 {offsets = [0, 2], sizes = [128, 1], strides = [1, 1]} : vector<128x8xf32> to vector<128x1xf32>
    %cst_90 = arith.constant 0.000000e+00 : f32
    %359 = vector.shape_cast %358 : vector<128x1xf32> to vector<128x1xf32>
    %360 = vector.broadcast %359 : vector<128x1xf32> to vector<128x8xf32>
    %361 = vector.broadcast %cst_90 : f32 to vector<128x8xf32>
    %362 = arith.select %23, %360, %361 : vector<128x8xi1>, vector<128x8xf32>
    %363 = arith.addf %357, %362 : vector<128x8xf32>
    %364 = vector.extract_strided_slice %345 {offsets = [0, 3], sizes = [128, 1], strides = [1, 1]} : vector<128x8xf32> to vector<128x1xf32>
    %cst_91 = arith.constant 0.000000e+00 : f32
    %365 = vector.shape_cast %364 : vector<128x1xf32> to vector<128x1xf32>
    %366 = vector.broadcast %365 : vector<128x1xf32> to vector<128x8xf32>
    %367 = vector.broadcast %cst_91 : f32 to vector<128x8xf32>
    %368 = arith.select %25, %366, %367 : vector<128x8xi1>, vector<128x8xf32>
    %369 = arith.addf %363, %368 : vector<128x8xf32>
    %370 = vector.extract_strided_slice %345 {offsets = [0, 4], sizes = [128, 1], strides = [1, 1]} : vector<128x8xf32> to vector<128x1xf32>
    %cst_92 = arith.constant 0.000000e+00 : f32
    %371 = vector.shape_cast %370 : vector<128x1xf32> to vector<128x1xf32>
    %372 = vector.broadcast %371 : vector<128x1xf32> to vector<128x8xf32>
    %373 = vector.broadcast %cst_92 : f32 to vector<128x8xf32>
    %374 = arith.select %27, %372, %373 : vector<128x8xi1>, vector<128x8xf32>
    %375 = arith.addf %369, %374 : vector<128x8xf32>
    %376 = vector.extract_strided_slice %345 {offsets = [0, 5], sizes = [128, 1], strides = [1, 1]} : vector<128x8xf32> to vector<128x1xf32>
    %cst_93 = arith.constant 0.000000e+00 : f32
    %377 = vector.shape_cast %376 : vector<128x1xf32> to vector<128x1xf32>
    %378 = vector.broadcast %377 : vector<128x1xf32> to vector<128x8xf32>
    %379 = vector.broadcast %cst_93 : f32 to vector<128x8xf32>
    %380 = arith.select %29, %378, %379 : vector<128x8xi1>, vector<128x8xf32>
    %381 = arith.addf %375, %380 : vector<128x8xf32>
    %382 = vector.extract_strided_slice %345 {offsets = [0, 6], sizes = [128, 1], strides = [1, 1]} : vector<128x8xf32> to vector<128x1xf32>
    %cst_94 = arith.constant 0.000000e+00 : f32
    %383 = vector.shape_cast %382 : vector<128x1xf32> to vector<128x1xf32>
    %384 = vector.broadcast %383 : vector<128x1xf32> to vector<128x8xf32>
    %385 = vector.broadcast %cst_94 : f32 to vector<128x8xf32>
    %386 = arith.select %31, %384, %385 : vector<128x8xi1>, vector<128x8xf32>
    %387 = arith.addf %381, %386 : vector<128x8xf32>
    %388 = vector.extract_strided_slice %345 {offsets = [0, 7], sizes = [128, 1], strides = [1, 1]} : vector<128x8xf32> to vector<128x1xf32>
    %cst_95 = arith.constant 0.000000e+00 : f32
    %389 = vector.shape_cast %388 : vector<128x1xf32> to vector<128x1xf32>
    %390 = vector.broadcast %389 : vector<128x1xf32> to vector<128x8xf32>
    %391 = vector.broadcast %cst_95 : f32 to vector<128x8xf32>
    %392 = arith.select %33, %390, %391 : vector<128x8xi1>, vector<128x8xf32>
    %393 = arith.addf %387, %392 : vector<128x8xf32>
    %394 = vector.extract_strided_slice %346 {offsets = [0, 0], sizes = [128, 1], strides = [1, 1]} : vector<128x8xf32> to vector<128x1xf32>
    %cst_96 = arith.constant 0.000000e+00 : f32
    %395 = vector.shape_cast %394 : vector<128x1xf32> to vector<128x1xf32>
    %396 = vector.broadcast %395 : vector<128x1xf32> to vector<128x8xf32>
    %397 = vector.broadcast %cst_96 : f32 to vector<128x8xf32>
    %398 = arith.select %35, %396, %397 : vector<128x8xi1>, vector<128x8xf32>
    %399 = vector.extract_strided_slice %346 {offsets = [0, 1], sizes = [128, 1], strides = [1, 1]} : vector<128x8xf32> to vector<128x1xf32>
    %cst_97 = arith.constant 0.000000e+00 : f32
    %400 = vector.shape_cast %399 : vector<128x1xf32> to vector<128x1xf32>
    %401 = vector.broadcast %400 : vector<128x1xf32> to vector<128x8xf32>
    %402 = vector.broadcast %cst_97 : f32 to vector<128x8xf32>
    %403 = arith.select %37, %401, %402 : vector<128x8xi1>, vector<128x8xf32>
    %404 = arith.addf %398, %403 : vector<128x8xf32>
    %405 = vector.extract_strided_slice %346 {offsets = [0, 2], sizes = [128, 1], strides = [1, 1]} : vector<128x8xf32> to vector<128x1xf32>
    %cst_98 = arith.constant 0.000000e+00 : f32
    %406 = vector.shape_cast %405 : vector<128x1xf32> to vector<128x1xf32>
    %407 = vector.broadcast %406 : vector<128x1xf32> to vector<128x8xf32>
    %408 = vector.broadcast %cst_98 : f32 to vector<128x8xf32>
    %409 = arith.select %39, %407, %408 : vector<128x8xi1>, vector<128x8xf32>
    %410 = arith.addf %404, %409 : vector<128x8xf32>
    %411 = vector.extract_strided_slice %346 {offsets = [0, 3], sizes = [128, 1], strides = [1, 1]} : vector<128x8xf32> to vector<128x1xf32>
    %cst_99 = arith.constant 0.000000e+00 : f32
    %412 = vector.shape_cast %411 : vector<128x1xf32> to vector<128x1xf32>
    %413 = vector.broadcast %412 : vector<128x1xf32> to vector<128x8xf32>
    %414 = vector.broadcast %cst_99 : f32 to vector<128x8xf32>
    %415 = arith.select %41, %413, %414 : vector<128x8xi1>, vector<128x8xf32>
    %416 = arith.addf %410, %415 : vector<128x8xf32>
    %417 = vector.extract_strided_slice %346 {offsets = [0, 4], sizes = [128, 1], strides = [1, 1]} : vector<128x8xf32> to vector<128x1xf32>
    %cst_100 = arith.constant 0.000000e+00 : f32
    %418 = vector.shape_cast %417 : vector<128x1xf32> to vector<128x1xf32>
    %419 = vector.broadcast %418 : vector<128x1xf32> to vector<128x8xf32>
    %420 = vector.broadcast %cst_100 : f32 to vector<128x8xf32>
    %421 = arith.select %43, %419, %420 : vector<128x8xi1>, vector<128x8xf32>
    %422 = arith.addf %416, %421 : vector<128x8xf32>
    %423 = vector.extract_strided_slice %346 {offsets = [0, 5], sizes = [128, 1], strides = [1, 1]} : vector<128x8xf32> to vector<128x1xf32>
    %cst_101 = arith.constant 0.000000e+00 : f32
    %424 = vector.shape_cast %423 : vector<128x1xf32> to vector<128x1xf32>
    %425 = vector.broadcast %424 : vector<128x1xf32> to vector<128x8xf32>
    %426 = vector.broadcast %cst_101 : f32 to vector<128x8xf32>
    %427 = arith.select %45, %425, %426 : vector<128x8xi1>, vector<128x8xf32>
    %428 = arith.addf %422, %427 : vector<128x8xf32>
    %429 = vector.extract_strided_slice %346 {offsets = [0, 6], sizes = [128, 1], strides = [1, 1]} : vector<128x8xf32> to vector<128x1xf32>
    %cst_102 = arith.constant 0.000000e+00 : f32
    %430 = vector.shape_cast %429 : vector<128x1xf32> to vector<128x1xf32>
    %431 = vector.broadcast %430 : vector<128x1xf32> to vector<128x8xf32>
    %432 = vector.broadcast %cst_102 : f32 to vector<128x8xf32>
    %433 = arith.select %47, %431, %432 : vector<128x8xi1>, vector<128x8xf32>
    %434 = arith.addf %428, %433 : vector<128x8xf32>
    %435 = vector.extract_strided_slice %346 {offsets = [0, 7], sizes = [128, 1], strides = [1, 1]} : vector<128x8xf32> to vector<128x1xf32>
    %cst_103 = arith.constant 0.000000e+00 : f32
    %436 = vector.shape_cast %435 : vector<128x1xf32> to vector<128x1xf32>
    %437 = vector.broadcast %436 : vector<128x1xf32> to vector<128x8xf32>
    %438 = vector.broadcast %cst_103 : f32 to vector<128x8xf32>
    %439 = arith.select %49, %437, %438 : vector<128x8xi1>, vector<128x8xf32>
    %440 = arith.addf %434, %439 : vector<128x8xf32>
    %cst_104 = arith.constant dense<0.000000e+00> : vector<128x64xf32>
    %441 = tpu.matmul %393, %7, %cst_104 {dimension_numbers = #tpu.dot_dimension_numbers<[1], [0], [0], [1], [0, 0, 1, 1], [], []>} : vector<128x8xf32>, vector<8x64xf32>, vector<128x64xf32> -> vector<128x64xf32>
    %cst_105 = arith.constant dense<0.000000e+00> : vector<128x64xf32>
    %442 = tpu.matmul %440, %8, %cst_105 {dimension_numbers = #tpu.dot_dimension_numbers<[1], [0], [0], [1], [0, 0, 1, 1], [], []>} : vector<128x8xf32>, vector<8x64xf32>, vector<128x64xf32> -> vector<128x64xf32>
    %443 = arith.addf %441, %442 : vector<128x64xf32>
    %444 = vector.extract_strided_slice %342 {offsets = [0, 0], sizes = [64, 8], strides = [1, 1]} : vector<128x8xbf16> to vector<64x8xbf16>
    %445 = vector.extract_strided_slice %343 {offsets = [0, 0], sizes = [64, 8], strides = [1, 1]} : vector<128x8xbf16> to vector<64x8xbf16>
    %446 = vector.extract_strided_slice %344 {offsets = [0, 0], sizes = [64, 8], strides = [1, 1]} : vector<128x8xbf16> to vector<64x8xbf16>
    %cst_106 = arith.constant dense<0.000000e+00> : vector<64x64xf32>
    %447 = tpu.matmul %444, %445, %cst_106 {dimension_numbers = #tpu.dot_dimension_numbers<[1], [1], [0], [0], [0, 0, 1, 0], [], []>} : vector<64x8xbf16>, vector<64x8xbf16>, vector<64x64xf32> -> vector<64x64xf32>
    %448 = vector.extract_strided_slice %443 {offsets = [0, 0], sizes = [64, 64], strides = [1, 1]} : vector<128x64xf32> to vector<64x64xf32>
    %449 = arith.addf %447, %448 : vector<64x64xf32>
    %cst_107 = arith.constant dense<0xFF800000> : vector<64xf32>
    %450 = vector.multi_reduction <maximumf>, %449, %cst_107 [1] : vector<64x64xf32> to vector<64xf32>
    %451 = vector.shape_cast %450 : vector<64xf32> to vector<64x1xf32>
    %452 = vector.broadcast %451 : vector<64x1xf32> to vector<64x64xf32>
    %453 = arith.subf %449, %452 : vector<64x64xf32>
    %454 = math.exp %453 : vector<64x64xf32>
    %cst_108 = arith.constant dense<0.000000e+00> : vector<64xf32>
    %455 = vector.multi_reduction <add>, %454, %cst_108 [1] : vector<64x64xf32> to vector<64xf32>
    %456 = vector.shape_cast %455 : vector<64xf32> to vector<64x1xf32>
    %457 = tpu.reciprocal %456 {approx = true} : vector<64x1xf32> -> vector<64x1xf32>
    %458 = vector.broadcast %457 : vector<64x1xf32> to vector<64x64xf32>
    %459 = arith.mulf %454, %458 : vector<64x64xf32>
    %460 = arith.truncf %459 : vector<64x64xf32> to vector<64x64xbf16>
    %cst_109 = arith.constant dense<0.000000e+00> : vector<64x8xf32>
    %461 = tpu.matmul %460, %446, %cst_109 {dimension_numbers = #tpu.dot_dimension_numbers<[1], [0], [0], [1], [0, 0, 1, 1], [], []>} : vector<64x64xbf16>, vector<64x8xbf16>, vector<64x8xf32> -> vector<64x8xf32>
    %462 = arith.truncf %461 : vector<64x8xf32> to vector<64x8xbf16>
    %c0_110 = arith.constant 0 : index
    %c0_111 = arith.constant 0 : index
    %c16 = arith.constant 16 : index
    %463 = vector.load %arg9[%c0_110, %c0_111, %c16] : memref<1x128x32xbf16, #tpu.memory_space<vmem>>, vector<1x64x8xbf16>
    %464 = vector.shape_cast %463 : vector<1x64x8xbf16> to vector<64x8xbf16>
    %465 = vector.shape_cast %462 : vector<64x8xbf16> to vector<1x64x8xbf16>
    tpu.vector_store %arg9[%c0_110, %c0_111, %c16], %465 {strides = array<i32>} : memref<1x128x32xbf16, #tpu.memory_space<vmem>>, vector<1x64x8xbf16>,
    %466 = vector.extract_strided_slice %342 {offsets = [64, 0], sizes = [64, 8], strides = [1, 1]} : vector<128x8xbf16> to vector<64x8xbf16>
    %467 = vector.extract_strided_slice %343 {offsets = [64, 0], sizes = [64, 8], strides = [1, 1]} : vector<128x8xbf16> to vector<64x8xbf16>
    %468 = vector.extract_strided_slice %344 {offsets = [64, 0], sizes = [64, 8], strides = [1, 1]} : vector<128x8xbf16> to vector<64x8xbf16>
    %cst_112 = arith.constant dense<0.000000e+00> : vector<64x64xf32>
    %469 = tpu.matmul %466, %467, %cst_112 {dimension_numbers = #tpu.dot_dimension_numbers<[1], [1], [0], [0], [0, 0, 1, 0], [], []>} : vector<64x8xbf16>, vector<64x8xbf16>, vector<64x64xf32> -> vector<64x64xf32>
    %470 = vector.extract_strided_slice %443 {offsets = [64, 0], sizes = [64, 64], strides = [1, 1]} : vector<128x64xf32> to vector<64x64xf32>
    %471 = arith.addf %469, %470 : vector<64x64xf32>
    %cst_113 = arith.constant dense<0xFF800000> : vector<64xf32>
    %472 = vector.multi_reduction <maximumf>, %471, %cst_113 [1] : vector<64x64xf32> to vector<64xf32>
    %473 = vector.shape_cast %472 : vector<64xf32> to vector<64x1xf32>
    %474 = vector.broadcast %473 : vector<64x1xf32> to vector<64x64xf32>
    %475 = arith.subf %471, %474 : vector<64x64xf32>
    %476 = math.exp %475 : vector<64x64xf32>
    %cst_114 = arith.constant dense<0.000000e+00> : vector<64xf32>
    %477 = vector.multi_reduction <add>, %476, %cst_114 [1] : vector<64x64xf32> to vector<64xf32>
    %478 = vector.shape_cast %477 : vector<64xf32> to vector<64x1xf32>
    %479 = tpu.reciprocal %478 {approx = true} : vector<64x1xf32> -> vector<64x1xf32>
    %480 = vector.broadcast %479 : vector<64x1xf32> to vector<64x64xf32>
    %481 = arith.mulf %476, %480 : vector<64x64xf32>
    %482 = arith.truncf %481 : vector<64x64xf32> to vector<64x64xbf16>
    %cst_115 = arith.constant dense<0.000000e+00> : vector<64x8xf32>
    %483 = tpu.matmul %482, %468, %cst_115 {dimension_numbers = #tpu.dot_dimension_numbers<[1], [0], [0], [1], [0, 0, 1, 1], [], []>} : vector<64x64xbf16>, vector<64x8xbf16>, vector<64x8xf32> -> vector<64x8xf32>
    %484 = arith.truncf %483 : vector<64x8xf32> to vector<64x8xbf16>
    %c0_116 = arith.constant 0 : index
    %c64_117 = arith.constant 64 : index
    %c16_118 = arith.constant 16 : index
    %485 = vector.load %arg9[%c0_116, %c64_117, %c16_118] : memref<1x128x32xbf16, #tpu.memory_space<vmem>>, vector<1x64x8xbf16>
    %486 = vector.shape_cast %485 : vector<1x64x8xbf16> to vector<64x8xbf16>
    %487 = vector.shape_cast %484 : vector<64x8xbf16> to vector<1x64x8xbf16>
    tpu.vector_store %arg9[%c0_116, %c64_117, %c16_118], %487 {strides = array<i32>} : memref<1x128x32xbf16, #tpu.memory_space<vmem>>, vector<1x64x8xbf16>,
    %488 = vector.extract_strided_slice %11 {offsets = [0, 24], sizes = [128, 8], strides = [1, 1]} : vector<128x32xbf16> to vector<128x8xbf16>
    %489 = vector.extract_strided_slice %13 {offsets = [0, 24], sizes = [128, 8], strides = [1, 1]} : vector<128x32xbf16> to vector<128x8xbf16>
    %490 = vector.extract_strided_slice %15 {offsets = [0, 24], sizes = [128, 8], strides = [1, 1]} : vector<128x32xbf16> to vector<128x8xbf16>
    %491 = vector.extract_strided_slice %16 {offsets = [0, 24], sizes = [128, 8], strides = [1, 1]} : vector<128x32xf32> to vector<128x8xf32>
    %492 = vector.extract_strided_slice %17 {offsets = [0, 24], sizes = [128, 8], strides = [1, 1]} : vector<128x32xf32> to vector<128x8xf32>
    %493 = vector.extract_strided_slice %491 {offsets = [0, 0], sizes = [128, 1], strides = [1, 1]} : vector<128x8xf32> to vector<128x1xf32>
    %cst_119 = arith.constant 0.000000e+00 : f32
    %494 = vector.shape_cast %493 : vector<128x1xf32> to vector<128x1xf32>
    %495 = vector.broadcast %494 : vector<128x1xf32> to vector<128x8xf32>
    %496 = vector.broadcast %cst_119 : f32 to vector<128x8xf32>
    %497 = arith.select %19, %495, %496 : vector<128x8xi1>, vector<128x8xf32>
    %498 = vector.extract_strided_slice %491 {offsets = [0, 1], sizes = [128, 1], strides = [1, 1]} : vector<128x8xf32> to vector<128x1xf32>
    %cst_120 = arith.constant 0.000000e+00 : f32
    %499 = vector.shape_cast %498 : vector<128x1xf32> to vector<128x1xf32>
    %500 = vector.broadcast %499 : vector<128x1xf32> to vector<128x8xf32>
    %501 = vector.broadcast %cst_120 : f32 to vector<128x8xf32>
    %502 = arith.select %21, %500, %501 : vector<128x8xi1>, vector<128x8xf32>
    %503 = arith.addf %497, %502 : vector<128x8xf32>
    %504 = vector.extract_strided_slice %491 {offsets = [0, 2], sizes = [128, 1], strides = [1, 1]} : vector<128x8xf32> to vector<128x1xf32>
    %cst_121 = arith.constant 0.000000e+00 : f32
    %505 = vector.shape_cast %504 : vector<128x1xf32> to vector<128x1xf32>
    %506 = vector.broadcast %505 : vector<128x1xf32> to vector<128x8xf32>
    %507 = vector.broadcast %cst_121 : f32 to vector<128x8xf32>
    %508 = arith.select %23, %506, %507 : vector<128x8xi1>, vector<128x8xf32>
    %509 = arith.addf %503, %508 : vector<128x8xf32>
    %510 = vector.extract_strided_slice %491 {offsets = [0, 3], sizes = [128, 1], strides = [1, 1]} : vector<128x8xf32> to vector<128x1xf32>
    %cst_122 = arith.constant 0.000000e+00 : f32
    %511 = vector.shape_cast %510 : vector<128x1xf32> to vector<128x1xf32>
    %512 = vector.broadcast %511 : vector<128x1xf32> to vector<128x8xf32>
    %513 = vector.broadcast %cst_122 : f32 to vector<128x8xf32>
    %514 = arith.select %25, %512, %513 : vector<128x8xi1>, vector<128x8xf32>
    %515 = arith.addf %509, %514 : vector<128x8xf32>
    %516 = vector.extract_strided_slice %491 {offsets = [0, 4], sizes = [128, 1], strides = [1, 1]} : vector<128x8xf32> to vector<128x1xf32>
    %cst_123 = arith.constant 0.000000e+00 : f32
    %517 = vector.shape_cast %516 : vector<128x1xf32> to vector<128x1xf32>
    %518 = vector.broadcast %517 : vector<128x1xf32> to vector<128x8xf32>
    %519 = vector.broadcast %cst_123 : f32 to vector<128x8xf32>
    %520 = arith.select %27, %518, %519 : vector<128x8xi1>, vector<128x8xf32>
    %521 = arith.addf %515, %520 : vector<128x8xf32>
    %522 = vector.extract_strided_slice %491 {offsets = [0, 5], sizes = [128, 1], strides = [1, 1]} : vector<128x8xf32> to vector<128x1xf32>
    %cst_124 = arith.constant 0.000000e+00 : f32
    %523 = vector.shape_cast %522 : vector<128x1xf32> to vector<128x1xf32>
    %524 = vector.broadcast %523 : vector<128x1xf32> to vector<128x8xf32>
    %525 = vector.broadcast %cst_124 : f32 to vector<128x8xf32>
    %526 = arith.select %29, %524, %525 : vector<128x8xi1>, vector<128x8xf32>
    %527 = arith.addf %521, %526 : vector<128x8xf32>
    %528 = vector.extract_strided_slice %491 {offsets = [0, 6], sizes = [128, 1], strides = [1, 1]} : vector<128x8xf32> to vector<128x1xf32>
    %cst_125 = arith.constant 0.000000e+00 : f32
    %529 = vector.shape_cast %528 : vector<128x1xf32> to vector<128x1xf32>
    %530 = vector.broadcast %529 : vector<128x1xf32> to vector<128x8xf32>
    %531 = vector.broadcast %cst_125 : f32 to vector<128x8xf32>
    %532 = arith.select %31, %530, %531 : vector<128x8xi1>, vector<128x8xf32>
    %533 = arith.addf %527, %532 : vector<128x8xf32>
    %534 = vector.extract_strided_slice %491 {offsets = [0, 7], sizes = [128, 1], strides = [1, 1]} : vector<128x8xf32> to vector<128x1xf32>
    %cst_126 = arith.constant 0.000000e+00 : f32
    %535 = vector.shape_cast %534 : vector<128x1xf32> to vector<128x1xf32>
    %536 = vector.broadcast %535 : vector<128x1xf32> to vector<128x8xf32>
    %537 = vector.broadcast %cst_126 : f32 to vector<128x8xf32>
    %538 = arith.select %33, %536, %537 : vector<128x8xi1>, vector<128x8xf32>
    %539 = arith.addf %533, %538 : vector<128x8xf32>
    %540 = vector.extract_strided_slice %492 {offsets = [0, 0], sizes = [128, 1], strides = [1, 1]} : vector<128x8xf32> to vector<128x1xf32>
    %cst_127 = arith.constant 0.000000e+00 : f32
    %541 = vector.shape_cast %540 : vector<128x1xf32> to vector<128x1xf32>
    %542 = vector.broadcast %541 : vector<128x1xf32> to vector<128x8xf32>
    %543 = vector.broadcast %cst_127 : f32 to vector<128x8xf32>
    %544 = arith.select %35, %542, %543 : vector<128x8xi1>, vector<128x8xf32>
    %545 = vector.extract_strided_slice %492 {offsets = [0, 1], sizes = [128, 1], strides = [1, 1]} : vector<128x8xf32> to vector<128x1xf32>
    %cst_128 = arith.constant 0.000000e+00 : f32
    %546 = vector.shape_cast %545 : vector<128x1xf32> to vector<128x1xf32>
    %547 = vector.broadcast %546 : vector<128x1xf32> to vector<128x8xf32>
    %548 = vector.broadcast %cst_128 : f32 to vector<128x8xf32>
    %549 = arith.select %37, %547, %548 : vector<128x8xi1>, vector<128x8xf32>
    %550 = arith.addf %544, %549 : vector<128x8xf32>
    %551 = vector.extract_strided_slice %492 {offsets = [0, 2], sizes = [128, 1], strides = [1, 1]} : vector<128x8xf32> to vector<128x1xf32>
    %cst_129 = arith.constant 0.000000e+00 : f32
    %552 = vector.shape_cast %551 : vector<128x1xf32> to vector<128x1xf32>
    %553 = vector.broadcast %552 : vector<128x1xf32> to vector<128x8xf32>
    %554 = vector.broadcast %cst_129 : f32 to vector<128x8xf32>
    %555 = arith.select %39, %553, %554 : vector<128x8xi1>, vector<128x8xf32>
    %556 = arith.addf %550, %555 : vector<128x8xf32>
    %557 = vector.extract_strided_slice %492 {offsets = [0, 3], sizes = [128, 1], strides = [1, 1]} : vector<128x8xf32> to vector<128x1xf32>
    %cst_130 = arith.constant 0.000000e+00 : f32
    %558 = vector.shape_cast %557 : vector<128x1xf32> to vector<128x1xf32>
    %559 = vector.broadcast %558 : vector<128x1xf32> to vector<128x8xf32>
    %560 = vector.broadcast %cst_130 : f32 to vector<128x8xf32>
    %561 = arith.select %41, %559, %560 : vector<128x8xi1>, vector<128x8xf32>
    %562 = arith.addf %556, %561 : vector<128x8xf32>
    %563 = vector.extract_strided_slice %492 {offsets = [0, 4], sizes = [128, 1], strides = [1, 1]} : vector<128x8xf32> to vector<128x1xf32>
    %cst_131 = arith.constant 0.000000e+00 : f32
    %564 = vector.shape_cast %563 : vector<128x1xf32> to vector<128x1xf32>
    %565 = vector.broadcast %564 : vector<128x1xf32> to vector<128x8xf32>
    %566 = vector.broadcast %cst_131 : f32 to vector<128x8xf32>
    %567 = arith.select %43, %565, %566 : vector<128x8xi1>, vector<128x8xf32>
    %568 = arith.addf %562, %567 : vector<128x8xf32>
    %569 = vector.extract_strided_slice %492 {offsets = [0, 5], sizes = [128, 1], strides = [1, 1]} : vector<128x8xf32> to vector<128x1xf32>
    %cst_132 = arith.constant 0.000000e+00 : f32
    %570 = vector.shape_cast %569 : vector<128x1xf32> to vector<128x1xf32>
    %571 = vector.broadcast %570 : vector<128x1xf32> to vector<128x8xf32>
    %572 = vector.broadcast %cst_132 : f32 to vector<128x8xf32>
    %573 = arith.select %45, %571, %572 : vector<128x8xi1>, vector<128x8xf32>
    %574 = arith.addf %568, %573 : vector<128x8xf32>
    %575 = vector.extract_strided_slice %492 {offsets = [0, 6], sizes = [128, 1], strides = [1, 1]} : vector<128x8xf32> to vector<128x1xf32>
    %cst_133 = arith.constant 0.000000e+00 : f32
    %576 = vector.shape_cast %575 : vector<128x1xf32> to vector<128x1xf32>
    %577 = vector.broadcast %576 : vector<128x1xf32> to vector<128x8xf32>
    %578 = vector.broadcast %cst_133 : f32 to vector<128x8xf32>
    %579 = arith.select %47, %577, %578 : vector<128x8xi1>, vector<128x8xf32>
    %580 = arith.addf %574, %579 : vector<128x8xf32>
    %581 = vector.extract_strided_slice %492 {offsets = [0, 7], sizes = [128, 1], strides = [1, 1]} : vector<128x8xf32> to vector<128x1xf32>
    %cst_134 = arith.constant 0.000000e+00 : f32
    %582 = vector.shape_cast %581 : vector<128x1xf32> to vector<128x1xf32>
    %583 = vector.broadcast %582 : vector<128x1xf32> to vector<128x8xf32>
    %584 = vector.broadcast %cst_134 : f32 to vector<128x8xf32>
    %585 = arith.select %49, %583, %584 : vector<128x8xi1>, vector<128x8xf32>
    %586 = arith.addf %580, %585 : vector<128x8xf32>
    %cst_135 = arith.constant dense<0.000000e+00> : vector<128x64xf32>
    %587 = tpu.matmul %539, %7, %cst_135 {dimension_numbers = #tpu.dot_dimension_numbers<[1], [0], [0], [1], [0, 0, 1, 1], [], []>} : vector<128x8xf32>, vector<8x64xf32>, vector<128x64xf32> -> vector<128x64xf32>
    %cst_136 = arith.constant dense<0.000000e+00> : vector<128x64xf32>
    %588 = tpu.matmul %586, %8, %cst_136 {dimension_numbers = #tpu.dot_dimension_numbers<[1], [0], [0], [1], [0, 0, 1, 1], [], []>} : vector<128x8xf32>, vector<8x64xf32>, vector<128x64xf32> -> vector<128x64xf32>
    %589 = arith.addf %587, %588 : vector<128x64xf32>
    %590 = vector.extract_strided_slice %488 {offsets = [0, 0], sizes = [64, 8], strides = [1, 1]} : vector<128x8xbf16> to vector<64x8xbf16>
    %591 = vector.extract_strided_slice %489 {offsets = [0, 0], sizes = [64, 8], strides = [1, 1]} : vector<128x8xbf16> to vector<64x8xbf16>
    %592 = vector.extract_strided_slice %490 {offsets = [0, 0], sizes = [64, 8], strides = [1, 1]} : vector<128x8xbf16> to vector<64x8xbf16>
    %cst_137 = arith.constant dense<0.000000e+00> : vector<64x64xf32>
    %593 = tpu.matmul %590, %591, %cst_137 {dimension_numbers = #tpu.dot_dimension_numbers<[1], [1], [0], [0], [0, 0, 1, 0], [], []>} : vector<64x8xbf16>, vector<64x8xbf16>, vector<64x64xf32> -> vector<64x64xf32>
    %594 = vector.extract_strided_slice %589 {offsets = [0, 0], sizes = [64, 64], strides = [1, 1]} : vector<128x64xf32> to vector<64x64xf32>
    %595 = arith.addf %593, %594 : vector<64x64xf32>
    %cst_138 = arith.constant dense<0xFF800000> : vector<64xf32>
    %596 = vector.multi_reduction <maximumf>, %595, %cst_138 [1] : vector<64x64xf32> to vector<64xf32>
    %597 = vector.shape_cast %596 : vector<64xf32> to vector<64x1xf32>
    %598 = vector.broadcast %597 : vector<64x1xf32> to vector<64x64xf32>
    %599 = arith.subf %595, %598 : vector<64x64xf32>
    %600 = math.exp %599 : vector<64x64xf32>
    %cst_139 = arith.constant dense<0.000000e+00> : vector<64xf32>
    %601 = vector.multi_reduction <add>, %600, %cst_139 [1] : vector<64x64xf32> to vector<64xf32>
    %602 = vector.shape_cast %601 : vector<64xf32> to vector<64x1xf32>
    %603 = tpu.reciprocal %602 {approx = true} : vector<64x1xf32> -> vector<64x1xf32>
    %604 = vector.broadcast %603 : vector<64x1xf32> to vector<64x64xf32>
    %605 = arith.mulf %600, %604 : vector<64x64xf32>
    %606 = arith.truncf %605 : vector<64x64xf32> to vector<64x64xbf16>
    %cst_140 = arith.constant dense<0.000000e+00> : vector<64x8xf32>
    %607 = tpu.matmul %606, %592, %cst_140 {dimension_numbers = #tpu.dot_dimension_numbers<[1], [0], [0], [1], [0, 0, 1, 1], [], []>} : vector<64x64xbf16>, vector<64x8xbf16>, vector<64x8xf32> -> vector<64x8xf32>
    %608 = arith.truncf %607 : vector<64x8xf32> to vector<64x8xbf16>
    %c0_141 = arith.constant 0 : index
    %c0_142 = arith.constant 0 : index
    %c24 = arith.constant 24 : index
    %609 = vector.load %arg9[%c0_141, %c0_142, %c24] : memref<1x128x32xbf16, #tpu.memory_space<vmem>>, vector<1x64x8xbf16>
    %610 = vector.shape_cast %609 : vector<1x64x8xbf16> to vector<64x8xbf16>
    %611 = vector.shape_cast %608 : vector<64x8xbf16> to vector<1x64x8xbf16>
    tpu.vector_store %arg9[%c0_141, %c0_142, %c24], %611 {strides = array<i32>} : memref<1x128x32xbf16, #tpu.memory_space<vmem>>, vector<1x64x8xbf16>,
    %612 = vector.extract_strided_slice %488 {offsets = [64, 0], sizes = [64, 8], strides = [1, 1]} : vector<128x8xbf16> to vector<64x8xbf16>
    %613 = vector.extract_strided_slice %489 {offsets = [64, 0], sizes = [64, 8], strides = [1, 1]} : vector<128x8xbf16> to vector<64x8xbf16>
    %614 = vector.extract_strided_slice %490 {offsets = [64, 0], sizes = [64, 8], strides = [1, 1]} : vector<128x8xbf16> to vector<64x8xbf16>
    %cst_143 = arith.constant dense<0.000000e+00> : vector<64x64xf32>
    %615 = tpu.matmul %612, %613, %cst_143 {dimension_numbers = #tpu.dot_dimension_numbers<[1], [1], [0], [0], [0, 0, 1, 0], [], []>} : vector<64x8xbf16>, vector<64x8xbf16>, vector<64x64xf32> -> vector<64x64xf32>
    %616 = vector.extract_strided_slice %589 {offsets = [64, 0], sizes = [64, 64], strides = [1, 1]} : vector<128x64xf32> to vector<64x64xf32>
    %617 = arith.addf %615, %616 : vector<64x64xf32>
    %cst_144 = arith.constant dense<0xFF800000> : vector<64xf32>
    %618 = vector.multi_reduction <maximumf>, %617, %cst_144 [1] : vector<64x64xf32> to vector<64xf32>
    %619 = vector.shape_cast %618 : vector<64xf32> to vector<64x1xf32>
    %620 = vector.broadcast %619 : vector<64x1xf32> to vector<64x64xf32>
    %621 = arith.subf %617, %620 : vector<64x64xf32>
    %622 = math.exp %621 : vector<64x64xf32>
    %cst_145 = arith.constant dense<0.000000e+00> : vector<64xf32>
    %623 = vector.multi_reduction <add>, %622, %cst_145 [1] : vector<64x64xf32> to vector<64xf32>
    %624 = vector.shape_cast %623 : vector<64xf32> to vector<64x1xf32>
    %625 = tpu.reciprocal %624 {approx = true} : vector<64x1xf32> -> vector<64x1xf32>
    %626 = vector.broadcast %625 : vector<64x1xf32> to vector<64x64xf32>
    %627 = arith.mulf %622, %626 : vector<64x64xf32>
    %628 = arith.truncf %627 : vector<64x64xf32> to vector<64x64xbf16>
    %cst_146 = arith.constant dense<0.000000e+00> : vector<64x8xf32>
    %629 = tpu.matmul %628, %614, %cst_146 {dimension_numbers = #tpu.dot_dimension_numbers<[1], [0], [0], [1], [0, 0, 1, 1], [], []>} : vector<64x64xbf16>, vector<64x8xbf16>, vector<64x8xf32> -> vector<64x8xf32>
    %630 = arith.truncf %629 : vector<64x8xf32> to vector<64x8xbf16>
    %c0_147 = arith.constant 0 : index
    %c64_148 = arith.constant 64 : index
    %c24_149 = arith.constant 24 : index
    %631 = vector.load %arg9[%c0_147, %c64_148, %c24_149] : memref<1x128x32xbf16, #tpu.memory_space<vmem>>, vector<1x64x8xbf16>
    %632 = vector.shape_cast %631 : vector<1x64x8xbf16> to vector<64x8xbf16>
    %633 = vector.shape_cast %630 : vector<64x8xbf16> to vector<1x64x8xbf16>
    tpu.vector_store %arg9[%c0_147, %c64_148, %c24_149], %633 {strides = array<i32>} : memref<1x128x32xbf16, #tpu.memory_space<vmem>>, vector<1x64x8xbf16>,
    return
  }
  func.func @transform_0(%arg0: i32) -> (i32, i32, i32) {
    %c0_i32 = arith.constant 0 : i32
    %c0_i32_0 = arith.constant 0 : i32
    %c0_i32_1 = arith.constant 0 : i32
    return %arg0, %c0_i32, %c0_i32_0 : i32, i32, i32
  }
  func.func @transform_1(%arg0: i32) -> (i32, i32) {
    %c0_i32 = arith.constant 0 : i32
    %c0_i32_0 = arith.constant 0 : i32
    %c0_i32_1 = arith.constant 0 : i32
    return %c0_i32, %c0_i32_0 : i32, i32
  }
  func.func @transform_2(%arg0: i32) -> (i32, i32) {
    %c0_i32 = arith.constant 0 : i32
    %c0_i32_0 = arith.constant 0 : i32
    %c0_i32_1 = arith.constant 0 : i32
    return %c0_i32, %c0_i32_0 : i32, i32
  }
  func.func @transform_3(%arg0: i32) -> (i32, i32) {
    %c0_i32 = arith.constant 0 : i32
    %c0_i32_0 = arith.constant 0 : i32
    %c0_i32_1 = arith.constant 0 : i32
    return %c0_i32, %c0_i32_0 : i32, i32
  }
  func.func @transform_4(%arg0: i32) -> (i32, i32) {
    %c0_i32 = arith.constant 0 : i32
    %c0_i32_0 = arith.constant 0 : i32
    %c0_i32_1 = arith.constant 0 : i32
    return %c0_i32, %c0_i32_0 : i32, i32
  }
  func.func @transform_5(%arg0: i32) -> (i32, i32) {
    %c0_i32 = arith.constant 0 : i32
    %c0_i32_0 = arith.constant 0 : i32
    %c0_i32_1 = arith.constant 0 : i32
    return %c0_i32, %c0_i32_0 : i32, i32
  }
  func.func @transform_6(%arg0: i32) -> (i32, i32) {
    %c0_i32 = arith.constant 0 : i32
    %c0_i32_0 = arith.constant 0 : i32
    %c0_i32_1 = arith.constant 0 : i32
    return %c0_i32, %c0_i32_0 : i32, i32
  }
  func.func @transform_7(%arg0: i32) -> (i32, i32) {
    %c0_i32 = arith.constant 0 : i32
    %c0_i32_0 = arith.constant 0 : i32
    %c0_i32_1 = arith.constant 0 : i32
    return %c0_i32, %c0_i32_0 : i32, i32
  }
  func.func @transform_8(%arg0: i32) -> (i32, i32, i32) {
    %c0_i32 = arith.constant 0 : i32
    %c0_i32_0 = arith.constant 0 : i32
    %c0_i32_1 = arith.constant 0 : i32
    return %arg0, %c0_i32, %c0_i32_0 : i32, i32, i32
  }
}

</mosaic_0001>

<llo_original>
// kernel: tpu_custom_call.1
$region0: #{tpu_custom_call.1}
  #allocation0 [shape = 'u32[]', space=smem, size = 0x4, offset = 0x4, fixed_abs, tag = 'smem constant byte address 0x4 - core index']
  #allocation1 [shape = 'u32[144,128]{1,0:T(1,128)}', space=vmem, size = 0x12000, scoped, tag = 'internal scratch']
  %s0 = inlined_call_operand.vmem [shape: bf16[2,128,32], index: 0, kind: input, shape index: {}]
  %s1 = inlined_call_operand.vmem [shape: bf16[32,96], index: 1, kind: input, shape index: {}]
  %s2 = inlined_call_operand.vmem [shape: bf16[32,32], index: 2, kind: input, shape index: {}]
  %s3 = inlined_call_operand.vmem [shape: bf16[32,32], index: 3, kind: input, shape index: {}]
  %s4 = inlined_call_operand.vmem [shape: s32[128,8], index: 4, kind: input, shape index: {}]
  %s5 = inlined_call_operand.vmem [shape: s32[128,8], index: 5, kind: input, shape index: {}]
  %s6 = inlined_call_operand.vmem [shape: f32[8,64], index: 6, kind: input, shape index: {}]
  %s7 = inlined_call_operand.vmem [shape: f32[8,64], index: 7, kind: input, shape index: {}]
  %s8 = inlined_call_operand.vmem [shape: bf16[2,128,32], index: 8, kind: output, shape index: {}]
  %s9 = sld [smem:[#allocation0]]
  $region65: #{tpu_custom_call.1} parent=0
    _
  %s11 = ssub.s32 1, %s9
  %s12 = scalar_select 0, %s11, %s9
  loop: start=0, step=1, limit=4
  $region2: #{tpu_custom_call.1} parent=0 // loop_pre_header
    _
  $region3: #{tpu_custom_call.1} parent=0 // loop_header
    %s14 = sphi 0, %s18
    %p15 = scmp.ge.s32.totalorder %s14, 4
    %s24 = sphi 0, %s26
    %s27 = sphi 0, %s24
    %s28 = sphi 0, %s27
    %s44 = sphi 0, %s28
    %s48 = sphi 0, %s48
    %s50 = sphi 0, %s48
    %s51 = sphi 0, %s50
    %s65 = sphi 0, %s51
    %s69 = sphi 0, %s69
    %s71 = sphi 0, %s69
    %s72 = sphi 0, %s71
    %s86 = sphi 0, %s72
    %s90 = sphi 0, %s90
    %s92 = sphi 0, %s90
    %s93 = sphi 0, %s92
    %s107 = sphi 0, %s93
    %s111 = sphi 0, %s111
    %s113 = sphi 0, %s111
    %s114 = sphi 0, %s113
    %s128 = sphi 0, %s114
    %s132 = sphi 0, %s132
    %s134 = sphi 0, %s132
    %s135 = sphi 0, %s134
    %s149 = sphi 0, %s135
    %s153 = sphi 0, %s153
    %s155 = sphi 0, %s153
    %s156 = sphi 0, %s155
    %s170 = sphi 0, %s156
    %s174 = sphi 0, %s174
    %s176 = sphi 0, %s174
    %s177 = sphi 0, %s176
    %s191 = sphi 0, %s177
    %s197 = sphi 0, %s199
    %s200 = sphi 0, %s197
    %s201 = sphi 0, %s200
    %s217 = sphi 0, %s201
  $region4: #{tpu_custom_call.1} parent=0 // loop_header_branch
    %17 = sbr.rel (%p15) target = $region8
  $region5: #{tpu_custom_call.1} parent=0 // loop_body
    %s19 = ssub.s32 %s14, 1
    %s20 = ssub.s32 %s14, 2
    %s21 = sadd.s32 %s14, 1
    %s22 = ssub.s32 %s14, %s21
    %p23 = scmp.eq.s32.totalorder %s22, 0
    %s25 = sadd.s32 %s24, 1
    %s26 = scalar_select %p23, %s24, %s25
    %p29 = pneg %p23
    %p30 = scmp.eq.s32.totalorder %s14, 1
    %p31 = por %p29, %p30
    %p32 = scmp.ne.s32.totalorder %s24, %s27
    %p33 = scmp.eq.s32.totalorder %s14, 0
    %p34 = por %p32, %p33
    %p35 = scmp.ne.s32.totalorder %s24, %s27
    %p36 = scmp.eq.s32.totalorder %s19, 1
    %p37 = por %p35, %p36
    %p38 = scmp.ne.s32.totalorder %s27, %s28
    %p39 = scmp.eq.s32.totalorder %s19, 0
    %p40 = por %p38, %p39
    %p41 = scmp.ne.s32.totalorder %s27, %s28
    %p42 = scmp.eq.s32.totalorder %s20, 1
    %p43 = por %p41, %p42
    %p45 = scmp.ne.s32.totalorder %s28, %s44
    %p46 = scmp.eq.s32.totalorder %s20, 0
    %p47 = por %p45, %p46
    %s49 = sadd.s32 %s48, 1
    %p52 = scmp.eq.s32.totalorder %s14, 1
    %p53 = scmp.ne.s32.totalorder %s48, %s50
    %p54 = scmp.eq.s32.totalorder %s14, 0
    %p55 = por %p53, %p54
    %p56 = scmp.ne.s32.totalorder %s48, %s50
    %p57 = scmp.eq.s32.totalorder %s19, 1
    %p58 = por %p56, %p57
    %p59 = scmp.ne.s32.totalorder %s50, %s51
    %p60 = scmp.eq.s32.totalorder %s19, 0
    %p61 = por %p59, %p60
    %p62 = scmp.ne.s32.totalorder %s50, %s51
    %p63 = scmp.eq.s32.totalorder %s20, 1
    %p64 = por %p62, %p63
    %p66 = scmp.ne.s32.totalorder %s51, %s65
    %p67 = scmp.eq.s32.totalorder %s20, 0
    %p68 = por %p66, %p67
    %s70 = sadd.s32 %s69, 1
    %p73 = scmp.eq.s32.totalorder %s14, 1
    %p74 = scmp.ne.s32.totalorder %s69, %s71
    %p75 = scmp.eq.s32.totalorder %s14, 0
    %p76 = por %p74, %p75
    %p77 = scmp.ne.s32.totalorder %s69, %s71
    %p78 = scmp.eq.s32.totalorder %s19, 1
    %p79 = por %p77, %p78
    %p80 = scmp.ne.s32.totalorder %s71, %s72
    %p81 = scmp.eq.s32.totalorder %s19, 0
    %p82 = por %p80, %p81
    %p83 = scmp.ne.s32.totalorder %s71, %s72
    %p84 = scmp.eq.s32.totalorder %s20, 1
    %p85 = por %p83, %p84
    %p87 = scmp.ne.s32.totalorder %s72, %s86
    %p88 = scmp.eq.s32.totalorder %s20, 0
    %p89 = por %p87, %p88
    %s91 = sadd.s32 %s90, 1
    %p94 = scmp.eq.s32.totalorder %s14, 1
    %p95 = scmp.ne.s32.totalorder %s90, %s92
    %p96 = scmp.eq.s32.totalorder %s14, 0
    %p97 = por %p95, %p96
    %p98 = scmp.ne.s32.totalorder %s90, %s92
    %p99 = scmp.eq.s32.totalorder %s19, 1
    %p100 = por %p98, %p99
    %p101 = scmp.ne.s32.totalorder %s92, %s93
    %p102 = scmp.eq.s32.totalorder %s19, 0
    %p103 = por %p101, %p102
    %p104 = scmp.ne.s32.totalorder %s92, %s93
    %p105 = scmp.eq.s32.totalorder %s20, 1
    %p106 = por %p104, %p105
    %p108 = scmp.ne.s32.totalorder %s93, %s107
    %p109 = scmp.eq.s32.totalorder %s20, 0
    %p110 = por %p108, %p109
    %s112 = sadd.s32 %s111, 1
    %p115 = scmp.eq.s32.totalorder %s14, 1
    %p116 = scmp.ne.s32.totalorder %s111, %s113
    %p117 = scmp.eq.s32.totalorder %s14, 0
    %p118 = por %p116, %p117
    %p119 = scmp.ne.s32.totalorder %s111, %s113
    %p120 = scmp.eq.s32.totalorder %s19, 1
    %p121 = por %p119, %p120
    %p122 = scmp.ne.s32.totalorder %s113, %s114
    %p123 = scmp.eq.s32.totalorder %s19, 0
    %p124 = por %p122, %p123
    %p125 = scmp.ne.s32.totalorder %s113, %s114
    %p126 = scmp.eq.s32.totalorder %s20, 1
    %p127 = por %p125, %p126
    %p129 = scmp.ne.s32.totalorder %s114, %s128
    %p130 = scmp.eq.s32.totalorder %s20, 0
    %p131 = por %p129, %p130
    %s133 = sadd.s32 %s132, 1
    %p136 = scmp.eq.s32.totalorder %s14, 1
    %p137 = scmp.ne.s32.totalorder %s132, %s134
    %p138 = scmp.eq.s32.totalorder %s14, 0
    %p139 = por %p137, %p138
    %p140 = scmp.ne.s32.totalorder %s132, %s134
    %p141 = scmp.eq.s32.totalorder %s19, 1
    %p142 = por %p140, %p141
    %p143 = scmp.ne.s32.totalorder %s134, %s135
    %p144 = scmp.eq.s32.totalorder %s19, 0
    %p145 = por %p143, %p144
    %p146 = scmp.ne.s32.totalorder %s134, %s135
    %p147 = scmp.eq.s32.totalorder %s20, 1
    %p148 = por %p146, %p147
    %p150 = scmp.ne.s32.totalorder %s135, %s149
    %p151 = scmp.eq.s32.totalorder %s20, 0
    %p152 = por %p150, %p151
    %s154 = sadd.s32 %s153, 1
    %p157 = scmp.eq.s32.totalorder %s14, 1
    %p158 = scmp.ne.s32.totalorder %s153, %s155
    %p159 = scmp.eq.s32.totalorder %s14, 0
    %p160 = por %p158, %p159
    %p161 = scmp.ne.s32.totalorder %s153, %s155
    %p162 = scmp.eq.s32.totalorder %s19, 1
    %p163 = por %p161, %p162
    %p164 = scmp.ne.s32.totalorder %s155, %s156
    %p165 = scmp.eq.s32.totalorder %s19, 0
    %p166 = por %p164, %p165
    %p167 = scmp.ne.s32.totalorder %s155, %s156
    %p168 = scmp.eq.s32.totalorder %s20, 1
    %p169 = por %p167, %p168
    %p171 = scmp.ne.s32.totalorder %s156, %s170
    %p172 = scmp.eq.s32.totalorder %s20, 0
    %p173 = por %p171, %p172
    %s175 = sadd.s32 %s174, 1
    %p178 = scmp.eq.s32.totalorder %s14, 1
    %p179 = scmp.ne.s32.totalorder %s174, %s176
    %p180 = scmp.eq.s32.totalorder %s14, 0
    %p181 = por %p179, %p180
    %p182 = scmp.ne.s32.totalorder %s174, %s176
    %p183 = scmp.eq.s32.totalorder %s19, 1
    %p184 = por %p182, %p183
    %p185 = scmp.ne.s32.totalorder %s176, %s177
    %p186 = scmp.eq.s32.totalorder %s19, 0
    %p187 = por %p185, %p186
    %p188 = scmp.ne.s32.totalorder %s176, %s177
    %p189 = scmp.eq.s32.totalorder %s20, 1
    %p190 = por %p188, %p189
    %p192 = scmp.ne.s32.totalorder %s177, %s191
    %p193 = scmp.eq.s32.totalorder %s20, 0
    %p194 = por %p192, %p193
    %s195 = ssub.s32 %s14, %s21
    %p196 = scmp.eq.s32.totalorder %s195, 0
    %s198 = sadd.s32 %s197, 1
    %s199 = scalar_select %p196, %s197, %s198
    %p202 = pneg %p196
    %p203 = scmp.eq.s32.totalorder %s14, 1
    %p204 = por %p202, %p203
    %p205 = scmp.ne.s32.totalorder %s197, %s200
    %p206 = scmp.eq.s32.totalorder %s14, 0
    %p207 = por %p205, %p206
    %p208 = scmp.ne.s32.totalorder %s197, %s200
    %p209 = scmp.eq.s32.totalorder %s19, 1
    %p210 = por %p208, %p209
    %p211 = scmp.ne.s32.totalorder %s200, %s201
    %p212 = scmp.eq.s32.totalorder %s19, 0
    %p213 = por %p211, %p212
    %p214 = scmp.ne.s32.totalorder %s200, %s201
    %p215 = scmp.eq.s32.totalorder %s20, 1
    %p216 = por %p214, %p215
    %p218 = scmp.ne.s32.totalorder %s201, %s217
    %p219 = scmp.eq.s32.totalorder %s20, 0
    %p220 = por %p218, %p219
    %p221 = scmp.le.s32.totalorder 1, %s14
    %p222 = scmp.lt.s32.totalorder %s14, 3
    %p223 = pnand %p221, %p222
    %p224 = pneg %p223
    // Predicated region
    $region9: #{tpu_custom_call.1} parent=5 // pred_check
      _
    $region10: #{tpu_custom_call.1} parent=5 // pred_check_branch
      %226 = sbr.rel (%p223) target = $region12
    $region11: #{tpu_custom_call.1} parent=5 // pred_region
      %s227 = ssub.s32 %s14, 1
      // Predicated region
      $region13: #{tpu_custom_call.1} parent=11 // pred_check
        %p228 = pneg %p61
      $region14: #{tpu_custom_call.1} parent=11 // pred_check_branch
        %230 = sbr.rel (%p228) target = $region16
      $region15: #{tpu_custom_call.1} parent=11 // pred_region
        _
      $region16: #{tpu_custom_call.1} parent=11 // pred_fallthru
        _
      // Predicated region
      $region17: #{tpu_custom_call.1} parent=11 // pred_check
        %p231 = pneg %p82
      $region18: #{tpu_custom_call.1} parent=11 // pred_check_branch
        %233 = sbr.rel (%p231) target = $region20
      $region19: #{tpu_custom_call.1} parent=11 // pred_region
        _
      $region20: #{tpu_custom_call.1} parent=11 // pred_fallthru
        _
      // Predicated region
      $region21: #{tpu_custom_call.1} parent=11 // pred_check
        %p234 = pneg %p103
      $region22: #{tpu_custom_call.1} parent=11 // pred_check_branch
        %236 = sbr.rel (%p234) target = $region24
      $region23: #{tpu_custom_call.1} parent=11 // pred_region
        _
      $region24: #{tpu_custom_call.1} parent=11 // pred_fallthru
        _
      // Predicated region
      $region25: #{tpu_custom_call.1} parent=11 // pred_check
        %p237 = pneg %p124
      $region26: #{tpu_custom_call.1} parent=11 // pred_check_branch
        %239 = sbr.rel (%p237) target = $region28
      $region27: #{tpu_custom_call.1} parent=11 // pred_region
        _
      $region28: #{tpu_custom_call.1} parent=11 // pred_fallthru
        _
      // Predicated region
      $region29: #{tpu_custom_call.1} parent=11 // pred_check
        %p240 = pneg %p145
      $region30: #{tpu_custom_call.1} parent=11 // pred_check_branch
        %242 = sbr.rel (%p240) target = $region32
      $region31: #{tpu_custom_call.1} parent=11 // pred_region
        _
      $region32: #{tpu_custom_call.1} parent=11 // pred_fallthru
        _
      // Predicated region
      $region33: #{tpu_custom_call.1} parent=11 // pred_check
        %p243 = pneg %p166
      $region34: #{tpu_custom_call.1} parent=11 // pred_check_branch
        %245 = sbr.rel (%p243) target = $region36
      $region35: #{tpu_custom_call.1} parent=11 // pred_region
        _
      $region36: #{tpu_custom_call.1} parent=11 // pred_fallthru
        _
      // Predicated region
      $region37: #{tpu_custom_call.1} parent=11 // pred_check
        %p246 = pneg %p187
      $region38: #{tpu_custom_call.1} parent=11 // pred_check_branch
        %248 = sbr.rel (%p246) target = $region40
      $region39: #{tpu_custom_call.1} parent=11 // pred_region
        _
      $region40: #{tpu_custom_call.1} parent=11 // pred_fallthru
        _
    $region12: #{tpu_custom_call.1} parent=5 // pred_fallthru
      _
    %p249 = scmp.lt.s32.totalorder %s14, 2
    // Predicated region
    $region41: #{tpu_custom_call.1} parent=5 // pred_check
      %p250 = pneg %p249
    $region42: #{tpu_custom_call.1} parent=5 // pred_check_branch
      %252 = sbr.rel (%p250) target = $region44
    $region43: #{tpu_custom_call.1} parent=5 // pred_region
      // Predicated region
      $region45: #{tpu_custom_call.1} parent=43 // pred_check
        %p253 = pneg %p34
      $region46: #{tpu_custom_call.1} parent=43 // pred_check_branch
        %255 = sbr.rel (%p253) target = $region48
      $region47: #{tpu_custom_call.1} parent=43 // pred_region
        %p256 = scmp.lt.s32.totalorder %s14, 1
        %s257 = scalar_select %p256, %s14, 1
        %s258 = smul.addr %s257, 16
        %s259 = smul.addr %s258, 4
        %s260 = scalar_lea.vmem %s0, %s259
      $region48: #{tpu_custom_call.1} parent=43 // pred_fallthru
        _
    $region44: #{tpu_custom_call.1} parent=5 // pred_fallthru
      _
    %p261 = scmp.le.s32.totalorder 1, %s14
    %p262 = scmp.lt.s32.totalorder %s14, 3
    %p263 = pnand %p261, %p262
    %p264 = pneg %p263
    // Predicated region
    $region49: #{tpu_custom_call.1} parent=5 // pred_check
      _
    $region50: #{tpu_custom_call.1} parent=5 // pred_check_branch
      %266 = sbr.rel (%p263) target = $region52
    $region51: #{tpu_custom_call.1} parent=5 // pred_region
      %s267 = ssub.s32 %s14, 1
      %p268 = scmp.lt.s32.totalorder %s19, 1
      %s269 = scalar_select %p268, %s19, 1
      %s270 = smul.addr %s269, 16
      %s271 = smul.addr %s270, 4
      %s272 = scalar_lea.vmem %s0, %s271
      %p273 = pneg %p40
      %p274 = pneg %p37
      %p275 = pneg %p61
      %p276 = pneg %p58
      %p277 = pneg %p82
      %p278 = pneg %p79
      %p279 = pneg %p103
      %p280 = pneg %p100
      %p281 = pneg %p124
      %p282 = pneg %p121
      %p283 = pneg %p145
      %p284 = pneg %p142
      %p285 = pneg %p166
      %p286 = pneg %p163
      %p287 = pneg %p187
      %p288 = pneg %p184
      %p289 = pneg %p213
      %p290 = pneg %p210
      %p291 = scmp.lt.s32.totalorder %s19, 1
      %s292 = scalar_select %p291, %s19, 1
      %s293 = smul.addr %s292, 16
      %s294 = smul.addr %s293, 4
      %s295 = scalar_lea.vmem %s8, %s294
      %p296 = scmp.lt.s32.totalorder %s19, 1
      %s297 = scalar_select %p296, %s19, 1
      %s298 = smul.addr %s297, 16
      %s299 = smul.addr %s298, 4
      %s300 = scalar_lea.vmem %s0, %s299
      %p301 = scmp.lt.s32.totalorder %s19, 1
      %s302 = scalar_select %p301, %s19, 1
      %s303 = smul.addr %s302, 16
      %s304 = smul.addr %s303, 4
      %s305 = scalar_lea.vmem %s8, %s304
      %v307 = vld [vmem:[%s300] sm:$0xf]
      %v308 = vld [vmem:[%s300 + $0x4] sm:$0xf]
      %v309 = vld [vmem:[%s300 + $0x8] sm:$0xf]
      %v310 = vld [vmem:[%s300 + $0xc] sm:$0xf]
      %v311 = vld [vmem:[%s300 + $0x10] sm:$0xf]
      %v312 = vld [vmem:[%s300 + $0x14] sm:$0xf]
      %v313 = vld [vmem:[%s300 + $0x18] sm:$0xf]
      %v314 = vld [vmem:[%s300 + $0x1c] sm:$0xf]
      %v315 = vld [vmem:[%s300 + $0x20] sm:$0xf]
      %v316 = vld [vmem:[%s300 + $0x24] sm:$0xf]
      %v317 = vld [vmem:[%s300 + $0x28] sm:$0xf]
      %v318 = vld [vmem:[%s300 + $0x2c] sm:$0xf]
      %v319 = vld [vmem:[%s300 + $0x30] sm:$0xf]
      %v320 = vld [vmem:[%s300 + $0x34] sm:$0xf]
      %v321 = vld [vmem:[%s300 + $0x38] sm:$0xf]
      %v322 = vld [vmem:[%s300 + $0x3c] sm:$0xf]
      %v323 = vld [vmem:[%s1] sm:$0xf]
      %v324 = vld [vmem:[%s1 + $0x4] sm:$0xf]
      %v325 = vld [vmem:[%s1 + $0x8] sm:$0xf]
      %v326 = vld [vmem:[%s1 + $0xc] sm:$0xf]
      %v327 = vld [vmem:[%s2] sm:$0xf]
      %v328 = vld [vmem:[%s2 + $0x4] sm:$0xf]
      %v329 = vld [vmem:[%s2 + $0x8] sm:$0xf]
      %v330 = vld [vmem:[%s2 + $0xc] sm:$0xf]
      %v331 = vld [vmem:[%s3] sm:$0xf]
      %v332 = vld [vmem:[%s3 + $0x4] sm:$0xf]
      %v333 = vld [vmem:[%s3 + $0x8] sm:$0xf]
      %v334 = vld [vmem:[%s3 + $0xc] sm:$0xf]
      %v335 = vld [vmem:[%s4] sm:$0xff]
      %v336 = vld [vmem:[%s4 + $0x8] sm:$0xff]
      %v337 = vld [vmem:[%s4 + $0x10] sm:$0xff]
      %v338 = vld [vmem:[%s4 + $0x18] sm:$0xff]
      %v339 = vld [vmem:[%s4 + $0x20] sm:$0xff]
      %v340 = vld [vmem:[%s4 + $0x28] sm:$0xff]
      %v341 = vld [vmem:[%s4 + $0x30] sm:$0xff]
      %v342 = vld [vmem:[%s4 + $0x38] sm:$0xff]
      %v343 = vld [vmem:[%s4 + $0x40] sm:$0xff]
      %v344 = vld [vmem:[%s4 + $0x48] sm:$0xff]
      %v345 = vld [vmem:[%s4 + $0x50] sm:$0xff]
      %v346 = vld [vmem:[%s4 + $0x58] sm:$0xff]
      %v347 = vld [vmem:[%s4 + $0x60] sm:$0xff]
      %v348 = vld [vmem:[%s4 + $0x68] sm:$0xff]
      %v349 = vld [vmem:[%s4 + $0x70] sm:$0xff]
      %v350 = vld [vmem:[%s4 + $0x78] sm:$0xff]
      %v351 = vld [vmem:[%s5] sm:$0xff]
      %v352 = vld [vmem:[%s5 + $0x8] sm:$0xff]
      %v353 = vld [vmem:[%s5 + $0x10] sm:$0xff]
      %v354 = vld [vmem:[%s5 + $0x18] sm:$0xff]
      %v355 = vld [vmem:[%s5 + $0x20] sm:$0xff]
      %v356 = vld [vmem:[%s5 + $0x28] sm:$0xff]
      %v357 = vld [vmem:[%s5 + $0x30] sm:$0xff]
      %v358 = vld [vmem:[%s5 + $0x38] sm:$0xff]
      %v359 = vld [vmem:[%s5 + $0x40] sm:$0xff]
      %v360 = vld [vmem:[%s5 + $0x48] sm:$0xff]
      %v361 = vld [vmem:[%s5 + $0x50] sm:$0xff]
      %v362 = vld [vmem:[%s5 + $0x58] sm:$0xff]
      %v363 = vld [vmem:[%s5 + $0x60] sm:$0xff]
      %v364 = vld [vmem:[%s5 + $0x68] sm:$0xff]
      %v365 = vld [vmem:[%s5 + $0x70] sm:$0xff]
      %v366 = vld [vmem:[%s5 + $0x78] sm:$0xff]
      %v367 = vld [vmem:[%s6] sm:$0xff]
      %v368 = vld [vmem:[%s7] sm:$0xff]
      %v385 = vunpack.c.l.b16 %v307
      %v386 = vunpack.c.l.b16 %v308
      %v387 = vunpack.c.l.b16 %v309
      %v388 = vunpack.c.l.b16 %v310
      %v389 = vunpack.c.l.b16 %v311
      %v390 = vunpack.c.l.b16 %v312
      %v391 = vunpack.c.l.b16 %v313
      %v392 = vunpack.c.l.b16 %v314
      %v393 = vunpack.c.l.b16 %v315
      %v394 = vunpack.c.l.b16 %v316
      %v395 = vunpack.c.l.b16 %v317
      %v396 = vunpack.c.l.b16 %v318
      %v397 = vunpack.c.l.b16 %v319
      %v398 = vunpack.c.l.b16 %v320
      %v399 = vunpack.c.l.b16 %v321
      %v400 = vunpack.c.l.b16 %v322
      %v401 = vpack.c.b16 %v386, %v385
      %v402 = vpack.c.b16 %v388, %v387
      %v403 = vpack.c.b16 %v390, %v389
      %v404 = vpack.c.b16 %v392, %v391
      %v405 = vpack.c.b16 %v394, %v393
      %v406 = vpack.c.b16 %v396, %v395
      %v407 = vpack.c.b16 %v398, %v397
      %v408 = vpack.c.b16 %v400, %v399
      %v413 = vunpack.c.l.b16 %v323
      %v414 = vunpack.c.l.b16 %v324
      %v415 = vunpack.c.l.b16 %v325
      %v416 = vunpack.c.l.b16 %v326
      %v417 = vpack.c.b16 %v414, %v413
      %v418 = vpack.c.b16 %v416, %v415
      %vm421 = vcmask 261120
      %v423 = vsel %vm421, %v401, 0
      %v426 = vsel %vm421, %v402, 0
      %v429 = vsel %vm421, %v403, 0
      %v432 = vsel %vm421, %v404, 0
      %v435 = vsel %vm421, %v405, 0
      %v438 = vsel %vm421, %v406, 0
      %v441 = vsel %vm421, %v407, 0
      %v444 = vsel %vm421, %v408, 0
      %446 = vmatprep.subr.bf16.mxu0 0
      %447 = vmatpush1.bf16.msra.mxu0 0
      %448 = vmatprep.subr.bf16.mxu0 0
      %449 = vmatpush1.bf16.msra.mxu0 0
      %450 = vmatprep.subr.bf16.mxu0 0
      %451 = vmatpush1.bf16.msra.mxu0 0
      %452 = vmatprep.subr.bf16.mxu0 0
      %453 = vmatpush1.bf16.msra.mxu0 0
      %454 = vmatprep.subr.bf16.mxu0 0
      %455 = vmatpush1.bf16.msra.mxu0 0
      %456 = vmatprep.subr.bf16.mxu0 0
      %457 = vmatpush1.bf16.msra.mxu0 0
      %458 = vmatprep.subr.bf16.mxu0 0
      %459 = vmatpush1.bf16.msra.mxu0 %v418
      %460 = vmatprep.subr.bf16.mxu0 0
      %461 = vmatpush1.bf16.msra.mxu0 %v417
      %462 = vmatprep.subr.bf16.mxu0 0
      %463 = vmatpush2.bf16.msra.mxu0 0
      %464 = vmatprep.subr.bf16.mxu0 0
      %465 = vmatpush2.bf16.msra.mxu0 0
      %466 = vmatprep.subr.bf16.mxu0 0
      %467 = vmatpush2.bf16.msra.mxu0 0
      %468 = vmatprep.subr.bf16.mxu0 0
      %469 = vmatpush2.bf16.msra.mxu0 0
      %470 = vmatprep.subr.bf16.mxu0 0
      %471 = vmatpush2.bf16.msra.mxu0 0
      %472 = vmatprep.subr.bf16.mxu0 0
      %473 = vmatpush2.bf16.msra.mxu0 0
      %474 = vmatprep.subr.bf16.mxu0 0
      %475 = vmatpush2.bf16.msra.mxu0 0
      %476 = vmatprep.subr.bf16.mxu0 0
      %477 = vmatpush2.bf16.msra.mxu0 0
      %478 = vmatprep.mubr.bf16.mxu0 0
      %479 = vmatmul.mubr.bf16.gmra.mxu0 %v423
      %v480 = vpop.f32.mrf.mxu0
      %v481 = vadd.f32 0.0, %v480
      %v482 = vpop.f32.mrf.mxu0
      %v483 = vpop.f32.mrf.mxu0
      %v484 = vadd.f32 0.0, %v483
      %v485 = vpop.f32.mrf.mxu0
      %486 = vmatprep.mubr.bf16.mxu0 0
      %487 = vmatmul.mubr.bf16.gmra.mxu0 %v426
      %v488 = vpop.f32.mrf.mxu0
      %v489 = vadd.f32 0.0, %v488
      %v490 = vpop.f32.mrf.mxu0
      %v491 = vpop.f32.mrf.mxu0
      %v492 = vadd.f32 0.0, %v491
      %v493 = vpop.f32.mrf.mxu0
      %494 = vmatprep.mubr.bf16.mxu0 0
      %495 = vmatmul.mubr.bf16.gmra.mxu0 %v429
      %v496 = vpop.f32.mrf.mxu0
      %v497 = vadd.f32 0.0, %v496
      %v498 = vpop.f32.mrf.mxu0
      %v499 = vpop.f32.mrf.mxu0
      %v500 = vadd.f32 0.0, %v499
      %v501 = vpop.f32.mrf.mxu0
      %502 = vmatprep.mubr.bf16.mxu0 0
      %503 = vmatmul.mubr.bf16.gmra.mxu0 %v432
      %v504 = vpop.f32.mrf.mxu0
      %v505 = vadd.f32 0.0, %v504
      %v506 = vpop.f32.mrf.mxu0
      %v507 = vpop.f32.mrf.mxu0
      %v508 = vadd.f32 0.0, %v507
      %v509 = vpop.f32.mrf.mxu0
      %510 = vmatprep.mubr.bf16.mxu0 0
      %511 = vmatmul.mubr.bf16.gmra.mxu0 %v435
      %v512 = vpop.f32.mrf.mxu0
      %v513 = vadd.f32 0.0, %v512
      %v514 = vpop.f32.mrf.mxu0
      %v515 = vpop.f32.mrf.mxu0
      %v516 = vadd.f32 0.0, %v515
      %v517 = vpop.f32.mrf.mxu0
      %518 = vmatprep.mubr.bf16.mxu0 0
      %519 = vmatmul.mubr.bf16.gmra.mxu0 %v438
      %v520 = vpop.f32.mrf.mxu0
      %v521 = vadd.f32 0.0, %v520
      %v522 = vpop.f32.mrf.mxu0
      %v523 = vpop.f32.mrf.mxu0
      %v524 = vadd.f32 0.0, %v523
      %v525 = vpop.f32.mrf.mxu0
      %526 = vmatprep.mubr.bf16.mxu0 0
      %527 = vmatmul.mubr.bf16.gmra.mxu0 %v441
      %v528 = vpop.f32.mrf.mxu0
      %v529 = vadd.f32 0.0, %v528
      %v530 = vpop.f32.mrf.mxu0
      %v531 = vpop.f32.mrf.mxu0
      %v532 = vadd.f32 0.0, %v531
      %v533 = vpop.f32.mrf.mxu0
      %534 = vmatprep.mubr.bf16.mxu0 0
      %535 = vmatmul.mubr.bf16.gmra.mxu0 %v444
      %v536 = vpop.f32.mrf.mxu0
      %v537 = vadd.f32 0.0, %v536
      %v538 = vpop.f32.mrf.mxu0
      %v539 = vpop.f32.mrf.mxu0
      %v540 = vadd.f32 0.0, %v539
      %v541 = vpop.f32.mrf.mxu0
      %542 = vdwg.mxu0
      %v543 = vpack.c.bf16 %v484, %v481
      %v544 = vpack.c.bf16 %v492, %v489
      %v545 = vpack.c.bf16 %v500, %v497
      %v546 = vpack.c.bf16 %v508, %v505
      %v547 = vpack.c.bf16 %v516, %v513
      %v548 = vpack.c.bf16 %v524, %v521
      %v549 = vpack.c.bf16 %v532, %v529
      %v550 = vpack.c.bf16 %v540, %v537
      %v555 = vunpack.c.l.b16 %v327
      %v556 = vunpack.c.l.b16 %v328
      %v557 = vunpack.c.l.b16 %v329
      %v558 = vunpack.c.l.b16 %v330
      %v559 = vpack.c.b16 %v556, %v555
      %v560 = vpack.c.b16 %v558, %v557
      %v564 = vsel %vm421, %v543, 0
      %v567 = vsel %vm421, %v544, 0
      %v570 = vsel %vm421, %v545, 0
      %v573 = vsel %vm421, %v546, 0
      %v576 = vsel %vm421, %v547, 0
      %v579 = vsel %vm421, %v548, 0
      %v582 = vsel %vm421, %v549, 0
      %v585 = vsel %vm421, %v550, 0
      %587 = vmatprep.subr.bf16.mxu0 0
      %588 = vmatpush1.bf16.msra.mxu0 0
      %589 = vmatprep.subr.bf16.mxu0 0
      %590 = vmatpush1.bf16.msra.mxu0 0
      %591 = vmatprep.subr.bf16.mxu0 0
      %592 = vmatpush1.bf16.msra.mxu0 0
      %593 = vmatprep.subr.bf16.mxu0 0
      %594 = vmatpush1.bf16.msra.mxu0 0
      %595 = vmatprep.subr.bf16.mxu0 0
      %596 = vmatpush1.bf16.msra.mxu0 0
      %597 = vmatprep.subr.bf16.mxu0 0
      %598 = vmatpush1.bf16.msra.mxu0 0
      %599 = vmatprep.subr.bf16.mxu0 0
      %600 = vmatpush1.bf16.msra.mxu0 %v560
      %601 = vmatprep.subr.bf16.mxu0 0
      %602 = vmatpush1.bf16.msra.mxu0 %v559
      %603 = vmatprep.subr.bf16.mxu0 0
      %604 = vmatpush2.bf16.msra.mxu0 0
      %605 = vmatprep.subr.bf16.mxu0 0
      %606 = vmatpush2.bf16.msra.mxu0 0
      %607 = vmatprep.subr.bf16.mxu0 0
      %608 = vmatpush2.bf16.msra.mxu0 0
      %609 = vmatprep.subr.bf16.mxu0 0
      %610 = vmatpush2.bf16.msra.mxu0 0
      %611 = vmatprep.subr.bf16.mxu0 0
      %612 = vmatpush2.bf16.msra.mxu0 0
      %613 = vmatprep.subr.bf16.mxu0 0
      %614 = vmatpush2.bf16.msra.mxu0 0
      %615 = vmatprep.subr.bf16.mxu0 0
      %616 = vmatpush2.bf16.msra.mxu0 0
      %617 = vmatprep.subr.bf16.mxu0 0
      %618 = vmatpush2.bf16.msra.mxu0 0
      %619 = vmatprep.mubr.bf16.mxu0 0
      %620 = vmatmul.mubr.bf16.gmra.mxu0 %v564
      %v621 = vpop.f32.mrf.mxu0
      %v622 = vadd.f32 0.0, %v621
      %v623 = vpop.f32.mrf.mxu0
      %v624 = vpop.f32.mrf.mxu0
      %v625 = vadd.f32 0.0, %v624
      %v626 = vpop.f32.mrf.mxu0
      %627 = vmatprep.mubr.bf16.mxu0 0
      %628 = vmatmul.mubr.bf16.gmra.mxu0 %v567
      %v629 = vpop.f32.mrf.mxu0
      %v630 = vadd.f32 0.0, %v629
      %v631 = vpop.f32.mrf.mxu0
      %v632 = vpop.f32.mrf.mxu0
      %v633 = vadd.f32 0.0, %v632
      %v634 = vpop.f32.mrf.mxu0
      %635 = vmatprep.mubr.bf16.mxu0 0
      %636 = vmatmul.mubr.bf16.gmra.mxu0 %v570
      %v637 = vpop.f32.mrf.mxu0
      %v638 = vadd.f32 0.0, %v637
      %v639 = vpop.f32.mrf.mxu0
      %v640 = vpop.f32.mrf.mxu0
      %v641 = vadd.f32 0.0, %v640
      %v642 = vpop.f32.mrf.mxu0
      %643 = vmatprep.mubr.bf16.mxu0 0
      %644 = vmatmul.mubr.bf16.gmra.mxu0 %v573
      %v645 = vpop.f32.mrf.mxu0
      %v646 = vadd.f32 0.0, %v645
      %v647 = vpop.f32.mrf.mxu0
      %v648 = vpop.f32.mrf.mxu0
      %v649 = vadd.f32 0.0, %v648
      %v650 = vpop.f32.mrf.mxu0
      %651 = vmatprep.mubr.bf16.mxu0 0
      %652 = vmatmul.mubr.bf16.gmra.mxu0 %v576
      %v653 = vpop.f32.mrf.mxu0
      %v654 = vadd.f32 0.0, %v653
      %v655 = vpop.f32.mrf.mxu0
      %v656 = vpop.f32.mrf.mxu0
      %v657 = vadd.f32 0.0, %v656
      %v658 = vpop.f32.mrf.mxu0
      %659 = vmatprep.mubr.bf16.mxu0 0
      %660 = vmatmul.mubr.bf16.gmra.mxu0 %v579
      %v661 = vpop.f32.mrf.mxu0
      %v662 = vadd.f32 0.0, %v661
      %v663 = vpop.f32.mrf.mxu0
      %v664 = vpop.f32.mrf.mxu0
      %v665 = vadd.f32 0.0, %v664
      %v666 = vpop.f32.mrf.mxu0
      %667 = vmatprep.mubr.bf16.mxu0 0
      %668 = vmatmul.mubr.bf16.gmra.mxu0 %v582
      %v669 = vpop.f32.mrf.mxu0
      %v670 = vadd.f32 0.0, %v669
      %v671 = vpop.f32.mrf.mxu0
      %v672 = vpop.f32.mrf.mxu0
      %v673 = vadd.f32 0.0, %v672
      %v674 = vpop.f32.mrf.mxu0
      %675 = vmatprep.mubr.bf16.mxu0 0
      %676 = vmatmul.mubr.bf16.gmra.mxu0 %v585
      %v677 = vpop.f32.mrf.mxu0
      %v678 = vadd.f32 0.0, %v677
      %v679 = vpop.f32.mrf.mxu0
      %v680 = vpop.f32.mrf.mxu0
      %v681 = vadd.f32 0.0, %v680
      %v682 = vpop.f32.mrf.mxu0
      %683 = vdwg.mxu0
      %v688 = vunpack.c.l.b16 %v331
      %v689 = vunpack.c.l.b16 %v332
      %v690 = vunpack.c.l.b16 %v333
      %v691 = vunpack.c.l.b16 %v334
      %v692 = vpack.c.b16 %v689, %v688
      %v693 = vpack.c.b16 %v691, %v690
      %696 = vmatprep.subr.bf16.mxu0 0
      %697 = vmatpush1.bf16.msra.mxu0 0
      %698 = vmatprep.subr.bf16.mxu0 0
      %699 = vmatpush1.bf16.msra.mxu0 0
      %700 = vmatprep.subr.bf16.mxu0 0
      %701 = vmatpush1.bf16.msra.mxu0 0
      %702 = vmatprep.subr.bf16.mxu0 0
      %703 = vmatpush1.bf16.msra.mxu0 0
      %704 = vmatprep.subr.bf16.mxu0 0
      %705 = vmatpush1.bf16.msra.mxu0 0
      %706 = vmatprep.subr.bf16.mxu0 0
      %707 = vmatpush1.bf16.msra.mxu0 0
      %708 = vmatprep.subr.bf16.mxu0 0
      %709 = vmatpush1.bf16.msra.mxu0 %v693
      %710 = vmatprep.subr.bf16.mxu0 0
      %711 = vmatpush1.bf16.msra.mxu0 %v692
      %712 = vmatprep.subr.bf16.mxu0 0
      %713 = vmatpush2.bf16.msra.mxu0 0
      %714 = vmatprep.subr.bf16.mxu0 0
      %715 = vmatpush2.bf16.msra.mxu0 0
      %716 = vmatprep.subr.bf16.mxu0 0
      %717 = vmatpush2.bf16.msra.mxu0 0
      %718 = vmatprep.subr.bf16.mxu0 0
      %719 = vmatpush2.bf16.msra.mxu0 0
      %720 = vmatprep.subr.bf16.mxu0 0
      %721 = vmatpush2.bf16.msra.mxu0 0
      %722 = vmatprep.subr.bf16.mxu0 0
      %723 = vmatpush2.bf16.msra.mxu0 0
      %724 = vmatprep.subr.bf16.mxu0 0
      %725 = vmatpush2.bf16.msra.mxu0 0
      %726 = vmatprep.subr.bf16.mxu0 0
      %727 = vmatpush2.bf16.msra.mxu0 0
      %728 = vmatprep.mubr.bf16.mxu0 0
      %729 = vmatmul.mubr.bf16.gmra.mxu0 %v564
      %v730 = vpop.f32.mrf.mxu0
      %v731 = vadd.f32 0.0, %v730
      %v732 = vpop.f32.mrf.mxu0
      %v733 = vpop.f32.mrf.mxu0
      %v734 = vadd.f32 0.0, %v733
      %v735 = vpop.f32.mrf.mxu0
      %736 = vmatprep.mubr.bf16.mxu0 0
      %737 = vmatmul.mubr.bf16.gmra.mxu0 %v567
      %v738 = vpop.f32.mrf.mxu0
      %v739 = vadd.f32 0.0, %v738
      %v740 = vpop.f32.mrf.mxu0
      %v741 = vpop.f32.mrf.mxu0
      %v742 = vadd.f32 0.0, %v741
      %v743 = vpop.f32.mrf.mxu0
      %744 = vmatprep.mubr.bf16.mxu0 0
      %745 = vmatmul.mubr.bf16.gmra.mxu0 %v570
      %v746 = vpop.f32.mrf.mxu0
      %v747 = vadd.f32 0.0, %v746
      %v748 = vpop.f32.mrf.mxu0
      %v749 = vpop.f32.mrf.mxu0
      %v750 = vadd.f32 0.0, %v749
      %v751 = vpop.f32.mrf.mxu0
      %752 = vmatprep.mubr.bf16.mxu0 0
      %753 = vmatmul.mubr.bf16.gmra.mxu0 %v573
      %v754 = vpop.f32.mrf.mxu0
      %v755 = vadd.f32 0.0, %v754
      %v756 = vpop.f32.mrf.mxu0
      %v757 = vpop.f32.mrf.mxu0
      %v758 = vadd.f32 0.0, %v757
      %v759 = vpop.f32.mrf.mxu0
      %760 = vmatprep.mubr.bf16.mxu0 0
      %761 = vmatmul.mubr.bf16.gmra.mxu0 %v576
      %v762 = vpop.f32.mrf.mxu0
      %v763 = vadd.f32 0.0, %v762
      %v764 = vpop.f32.mrf.mxu0
      %v765 = vpop.f32.mrf.mxu0
      %v766 = vadd.f32 0.0, %v765
      %v767 = vpop.f32.mrf.mxu0
      %768 = vmatprep.mubr.bf16.mxu0 0
      %769 = vmatmul.mubr.bf16.gmra.mxu0 %v579
      %v770 = vpop.f32.mrf.mxu0
      %v771 = vadd.f32 0.0, %v770
      %v772 = vpop.f32.mrf.mxu0
      %v773 = vpop.f32.mrf.mxu0
      %v774 = vadd.f32 0.0, %v773
      %v775 = vpop.f32.mrf.mxu0
      %776 = vmatprep.mubr.bf16.mxu0 0
      %777 = vmatmul.mubr.bf16.gmra.mxu0 %v582
      %v778 = vpop.f32.mrf.mxu0
      %v779 = vadd.f32 0.0, %v778
      %v780 = vpop.f32.mrf.mxu0
      %v781 = vpop.f32.mrf.mxu0
      %v782 = vadd.f32 0.0, %v781
      %v783 = vpop.f32.mrf.mxu0
      %784 = vmatprep.mubr.bf16.mxu0 0
      %785 = vmatmul.mubr.bf16.gmra.mxu0 %v585
      %v786 = vpop.f32.mrf.mxu0
      %v787 = vadd.f32 0.0, %v786
      %v788 = vpop.f32.mrf.mxu0
      %v789 = vpop.f32.mrf.mxu0
      %v790 = vadd.f32 0.0, %v789
      %v791 = vpop.f32.mrf.mxu0
      %792 = vdwg.mxu0
      %vm793 = vcmp.eq.s32.totalorder %v335, 0
      %vm794 = vcmp.eq.s32.totalorder %v336, 0
      %vm795 = vcmp.eq.s32.totalorder %v337, 0
      %vm796 = vcmp.eq.s32.totalorder %v338, 0
      %vm797 = vcmp.eq.s32.totalorder %v339, 0
      %vm798 = vcmp.eq.s32.totalorder %v340, 0
      %vm799 = vcmp.eq.s32.totalorder %v341, 0
      %vm800 = vcmp.eq.s32.totalorder %v342, 0
      %vm801 = vcmp.eq.s32.totalorder %v343, 0
      %vm802 = vcmp.eq.s32.totalorder %v344, 0
      %vm803 = vcmp.eq.s32.totalorder %v345, 0
      %vm804 = vcmp.eq.s32.totalorder %v346, 0
      %vm805 = vcmp.eq.s32.totalorder %v347, 0
      %vm806 = vcmp.eq.s32.totalorder %v348, 0
      %vm807 = vcmp.eq.s32.totalorder %v349, 0
      %vm808 = vcmp.eq.s32.totalorder %v350, 0
      %vm809 = vcmp.eq.s32.totalorder %v335, 1
      %vm810 = vcmp.eq.s32.totalorder %v336, 1
      %vm811 = vcmp.eq.s32.totalorder %v337, 1
      %vm812 = vcmp.eq.s32.totalorder %v338, 1
      %vm813 = vcmp.eq.s32.totalorder %v339, 1
      %vm814 = vcmp.eq.s32.totalorder %v340, 1
      %vm815 = vcmp.eq.s32.totalorder %v341, 1
      %vm816 = vcmp.eq.s32.totalorder %v342, 1
      %vm817 = vcmp.eq.s32.totalorder %v343, 1
      %vm818 = vcmp.eq.s32.totalorder %v344, 1
      %vm819 = vcmp.eq.s32.totalorder %v345, 1
      %vm820 = vcmp.eq.s32.totalorder %v346, 1
      %vm821 = vcmp.eq.s32.totalorder %v347, 1
      %vm822 = vcmp.eq.s32.totalorder %v348, 1
      %vm823 = vcmp.eq.s32.totalorder %v349, 1
      %vm824 = vcmp.eq.s32.totalorder %v350, 1
      %vm825 = vcmp.eq.s32.totalorder %v335, 2
      %vm826 = vcmp.eq.s32.totalorder %v336, 2
      %vm827 = vcmp.eq.s32.totalorder %v337, 2
      %vm828 = vcmp.eq.s32.totalorder %v338, 2
      %vm829 = vcmp.eq.s32.totalorder %v339, 2
      %vm830 = vcmp.eq.s32.totalorder %v340, 2
      %vm831 = vcmp.eq.s32.totalorder %v341, 2
      %vm832 = vcmp.eq.s32.totalorder %v342, 2
      %vm833 = vcmp.eq.s32.totalorder %v343, 2
      %vm834 = vcmp.eq.s32.totalorder %v344, 2
      %vm835 = vcmp.eq.s32.totalorder %v345, 2
      %vm836 = vcmp.eq.s32.totalorder %v346, 2
      %vm837 = vcmp.eq.s32.totalorder %v347, 2
      %vm838 = vcmp.eq.s32.totalorder %v348, 2
      %vm839 = vcmp.eq.s32.totalorder %v349, 2
      %vm840 = vcmp.eq.s32.totalorder %v350, 2
      %vm841 = vcmp.eq.s32.totalorder %v335, 3
      %vm842 = vcmp.eq.s32.totalorder %v336, 3
      %vm843 = vcmp.eq.s32.totalorder %v337, 3
      %vm844 = vcmp.eq.s32.totalorder %v338, 3
      %vm845 = vcmp.eq.s32.totalorder %v339, 3
      %vm846 = vcmp.eq.s32.totalorder %v340, 3
      %vm847 = vcmp.eq.s32.totalorder %v341, 3
      %vm848 = vcmp.eq.s32.totalorder %v342, 3
      %vm849 = vcmp.eq.s32.totalorder %v343, 3
      %vm850 = vcmp.eq.s32.totalorder %v344, 3
      %vm851 = vcmp.eq.s32.totalorder %v345, 3
      %vm852 = vcmp.eq.s32.totalorder %v346, 3
      %vm853 = vcmp.eq.s32.totalorder %v347, 3
      %vm854 = vcmp.eq.s32.totalorder %v348, 3
      %vm855 = vcmp.eq.s32.totalorder %v349, 3
      %vm856 = vcmp.eq.s32.totalorder %v350, 3
      %vm857 = vcmp.eq.s32.totalorder %v335, 4
      %vm858 = vcmp.eq.s32.totalorder %v336, 4
      %vm859 = vcmp.eq.s32.totalorder %v337, 4
      %vm860 = vcmp.eq.s32.totalorder %v338, 4
      %vm861 = vcmp.eq.s32.totalorder %v339, 4
      %vm862 = vcmp.eq.s32.totalorder %v340, 4
      %vm863 = vcmp.eq.s32.totalorder %v341, 4
      %vm864 = vcmp.eq.s32.totalorder %v342, 4
      %vm865 = vcmp.eq.s32.totalorder %v343, 4
      %vm866 = vcmp.eq.s32.totalorder %v344, 4
      %vm867 = vcmp.eq.s32.totalorder %v345, 4
      %vm868 = vcmp.eq.s32.totalorder %v346, 4
      %vm869 = vcmp.eq.s32.totalorder %v347, 4
      %vm870 = vcmp.eq.s32.totalorder %v348, 4
      %vm871 = vcmp.eq.s32.totalorder %v349, 4
      %vm872 = vcmp.eq.s32.totalorder %v350, 4
      %vm873 = vcmp.eq.s32.totalorder %v335, 5
      %vm874 = vcmp.eq.s32.totalorder %v336, 5
      %vm875 = vcmp.eq.s32.totalorder %v337, 5
      %vm876 = vcmp.eq.s32.totalorder %v338, 5
      %vm877 = vcmp.eq.s32.totalorder %v339, 5
      %vm878 = vcmp.eq.s32.totalorder %v340, 5
      %vm879 = vcmp.eq.s32.totalorder %v341, 5
      %vm880 = vcmp.eq.s32.totalorder %v342, 5
      %vm881 = vcmp.eq.s32.totalorder %v343, 5
      %vm882 = vcmp.eq.s32.totalorder %v344, 5
      %vm883 = vcmp.eq.s32.totalorder %v345, 5
      %vm884 = vcmp.eq.s32.totalorder %v346, 5
      %vm885 = vcmp.eq.s32.totalorder %v347, 5
      %vm886 = vcmp.eq.s32.totalorder %v348, 5
      %vm887 = vcmp.eq.s32.totalorder %v349, 5
      %vm888 = vcmp.eq.s32.totalorder %v350, 5
      %vm889 = vcmp.eq.s32.totalorder %v335, 6
      %vm890 = vcmp.eq.s32.totalorder %v336, 6
      %vm891 = vcmp.eq.s32.totalorder %v337, 6
      %vm892 = vcmp.eq.s32.totalorder %v338, 6
      %vm893 = vcmp.eq.s32.totalorder %v339, 6
      %vm894 = vcmp.eq.s32.totalorder %v340, 6
      %vm895 = vcmp.eq.s32.totalorder %v341, 6
      %vm896 = vcmp.eq.s32.totalorder %v342, 6
      %vm897 = vcmp.eq.s32.totalorder %v343, 6
      %vm898 = vcmp.eq.s32.totalorder %v344, 6
      %vm899 = vcmp.eq.s32.totalorder %v345, 6
      %vm900 = vcmp.eq.s32.totalorder %v346, 6
      %vm901 = vcmp.eq.s32.totalorder %v347, 6
      %vm902 = vcmp.eq.s32.totalorder %v348, 6
      %vm903 = vcmp.eq.s32.totalorder %v349, 6
      %vm904 = vcmp.eq.s32.totalorder %v350, 6
      %vm905 = vcmp.eq.s32.totalorder %v335, 7
      %vm906 = vcmp.eq.s32.totalorder %v336, 7
      %vm907 = vcmp.eq.s32.totalorder %v337, 7
      %vm908 = vcmp.eq.s32.totalorder %v338, 7
      %vm909 = vcmp.eq.s32.totalorder %v339, 7
      %vm910 = vcmp.eq.s32.totalorder %v340, 7
      %vm911 = vcmp.eq.s32.totalorder %v341, 7
      %vm912 = vcmp.eq.s32.totalorder %v342, 7
      %vm913 = vcmp.eq.s32.totalorder %v343, 7
      %vm914 = vcmp.eq.s32.totalorder %v344, 7
      %vm915 = vcmp.eq.s32.totalorder %v345, 7
      %vm916 = vcmp.eq.s32.totalorder %v346, 7
      %vm917 = vcmp.eq.s32.totalorder %v347, 7
      %vm918 = vcmp.eq.s32.totalorder %v348, 7
      %vm919 = vcmp.eq.s32.totalorder %v349, 7
      %vm920 = vcmp.eq.s32.totalorder %v350, 7
      %vm921 = vcmp.eq.s32.totalorder %v351, 0
      %vm922 = vcmp.eq.s32.totalorder %v352, 0
      %vm923 = vcmp.eq.s32.totalorder %v353, 0
      %vm924 = vcmp.eq.s32.totalorder %v354, 0
      %vm925 = vcmp.eq.s32.totalorder %v355, 0
      %vm926 = vcmp.eq.s32.totalorder %v356, 0
      %vm927 = vcmp.eq.s32.totalorder %v357, 0
      %vm928 = vcmp.eq.s32.totalorder %v358, 0
      %vm929 = vcmp.eq.s32.totalorder %v359, 0
      %vm930 = vcmp.eq.s32.totalorder %v360, 0
      %vm931 = vcmp.eq.s32.totalorder %v361, 0
      %vm932 = vcmp.eq.s32.totalorder %v362, 0
      %vm933 = vcmp.eq.s32.totalorder %v363, 0
      %vm934 = vcmp.eq.s32.totalorder %v364, 0
      %vm935 = vcmp.eq.s32.totalorder %v365, 0
      %vm936 = vcmp.eq.s32.totalorder %v366, 0
      %vm937 = vcmp.eq.s32.totalorder %v351, 1
      %vm938 = vcmp.eq.s32.totalorder %v352, 1
      %vm939 = vcmp.eq.s32.totalorder %v353, 1
      %vm940 = vcmp.eq.s32.totalorder %v354, 1
      %vm941 = vcmp.eq.s32.totalorder %v355, 1
      %vm942 = vcmp.eq.s32.totalorder %v356, 1
      %vm943 = vcmp.eq.s32.totalorder %v357, 1
      %vm944 = vcmp.eq.s32.totalorder %v358, 1
      %vm945 = vcmp.eq.s32.totalorder %v359, 1
      %vm946 = vcmp.eq.s32.totalorder %v360, 1
      %vm947 = vcmp.eq.s32.totalorder %v361, 1
      %vm948 = vcmp.eq.s32.totalorder %v362, 1
      %vm949 = vcmp.eq.s32.totalorder %v363, 1
      %vm950 = vcmp.eq.s32.totalorder %v364, 1
      %vm951 = vcmp.eq.s32.totalorder %v365, 1
      %vm952 = vcmp.eq.s32.totalorder %v366, 1
      %vm953 = vcmp.eq.s32.totalorder %v351, 2
      %vm954 = vcmp.eq.s32.totalorder %v352, 2
      %vm955 = vcmp.eq.s32.totalorder %v353, 2
      %vm956 = vcmp.eq.s32.totalorder %v354, 2
      %vm957 = vcmp.eq.s32.totalorder %v355, 2
      %vm958 = vcmp.eq.s32.totalorder %v356, 2
      %vm959 = vcmp.eq.s32.totalorder %v357, 2
      %vm960 = vcmp.eq.s32.totalorder %v358, 2
      %vm961 = vcmp.eq.s32.totalorder %v359, 2
      %vm962 = vcmp.eq.s32.totalorder %v360, 2
      %vm963 = vcmp.eq.s32.totalorder %v361, 2
      %vm964 = vcmp.eq.s32.totalorder %v362, 2
      %vm965 = vcmp.eq.s32.totalorder %v363, 2
      %vm966 = vcmp.eq.s32.totalorder %v364, 2
      %vm967 = vcmp.eq.s32.totalorder %v365, 2
      %vm968 = vcmp.eq.s32.totalorder %v366, 2
      %vm969 = vcmp.eq.s32.totalorder %v351, 3
      %vm970 = vcmp.eq.s32.totalorder %v352, 3
      %vm971 = vcmp.eq.s32.totalorder %v353, 3
      %vm972 = vcmp.eq.s32.totalorder %v354, 3
      %vm973 = vcmp.eq.s32.totalorder %v355, 3
      %vm974 = vcmp.eq.s32.totalorder %v356, 3
      %vm975 = vcmp.eq.s32.totalorder %v357, 3
      %vm976 = vcmp.eq.s32.totalorder %v358, 3
      %vm977 = vcmp.eq.s32.totalorder %v359, 3
      %vm978 = vcmp.eq.s32.totalorder %v360, 3
      %vm979 = vcmp.eq.s32.totalorder %v361, 3
      %vm980 = vcmp.eq.s32.totalorder %v362, 3
      %vm981 = vcmp.eq.s32.totalorder %v363, 3
      %vm982 = vcmp.eq.s32.totalorder %v364, 3
      %vm983 = vcmp.eq.s32.totalorder %v365, 3
      %vm984 = vcmp.eq.s32.totalorder %v366, 3
      %vm985 = vcmp.eq.s32.totalorder %v351, 4
      %vm986 = vcmp.eq.s32.totalorder %v352, 4
      %vm987 = vcmp.eq.s32.totalorder %v353, 4
      %vm988 = vcmp.eq.s32.totalorder %v354, 4
      %vm989 = vcmp.eq.s32.totalorder %v355, 4
      %vm990 = vcmp.eq.s32.totalorder %v356, 4
      %vm991 = vcmp.eq.s32.totalorder %v357, 4
      %vm992 = vcmp.eq.s32.totalorder %v358, 4
      %vm993 = vcmp.eq.s32.totalorder %v359, 4
      %vm994 = vcmp.eq.s32.totalorder %v360, 4
      %vm995 = vcmp.eq.s32.totalorder %v361, 4
      %vm996 = vcmp.eq.s32.totalorder %v362, 4
      %vm997 = vcmp.eq.s32.totalorder %v363, 4
      %vm998 = vcmp.eq.s32.totalorder %v364, 4
      %vm999 = vcmp.eq.s32.totalorder %v365, 4
      %vm1000 = vcmp.eq.s32.totalorder %v366, 4
      %vm1001 = vcmp.eq.s32.totalorder %v351, 5
      %vm1002 = vcmp.eq.s32.totalorder %v352, 5
      %vm1003 = vcmp.eq.s32.totalorder %v353, 5
      %vm1004 = vcmp.eq.s32.totalorder %v354, 5
      %vm1005 = vcmp.eq.s32.totalorder %v355, 5
      %vm1006 = vcmp.eq.s32.totalorder %v356, 5
      %vm1007 = vcmp.eq.s32.totalorder %v357, 5
      %vm1008 = vcmp.eq.s32.totalorder %v358, 5
      %vm1009 = vcmp.eq.s32.totalorder %v359, 5
      %vm1010 = vcmp.eq.s32.totalorder %v360, 5
      %vm1011 = vcmp.eq.s32.totalorder %v361, 5
      %vm1012 = vcmp.eq.s32.totalorder %v362, 5
      %vm1013 = vcmp.eq.s32.totalorder %v363, 5
      %vm1014 = vcmp.eq.s32.totalorder %v364, 5
      %vm1015 = vcmp.eq.s32.totalorder %v365, 5
      %vm1016 = vcmp.eq.s32.totalorder %v366, 5
      %vm1017 = vcmp.eq.s32.totalorder %v351, 6
      %vm1018 = vcmp.eq.s32.totalorder %v352, 6
      %vm1019 = vcmp.eq.s32.totalorder %v353, 6
      %vm1020 = vcmp.eq.s32.totalorder %v354, 6
      %vm1021 = vcmp.eq.s32.totalorder %v355, 6
      %vm1022 = vcmp.eq.s32.totalorder %v356, 6
      %vm1023 = vcmp.eq.s32.totalorder %v357, 6
      %vm1024 = vcmp.eq.s32.totalorder %v358, 6
      %vm1025 = vcmp.eq.s32.totalorder %v359, 6
      %vm1026 = vcmp.eq.s32.totalorder %v360, 6
      %vm1027 = vcmp.eq.s32.totalorder %v361, 6
      %vm1028 = vcmp.eq.s32.totalorder %v362, 6
      %vm1029 = vcmp.eq.s32.totalorder %v363, 6
      %vm1030 = vcmp.eq.s32.totalorder %v364, 6
      %vm1031 = vcmp.eq.s32.totalorder %v365, 6
      %vm1032 = vcmp.eq.s32.totalorder %v366, 6
      %vm1033 = vcmp.eq.s32.totalorder %v351, 7
      %vm1034 = vcmp.eq.s32.totalorder %v352, 7
      %vm1035 = vcmp.eq.s32.totalorder %v353, 7
      %vm1036 = vcmp.eq.s32.totalorder %v354, 7
      %vm1037 = vcmp.eq.s32.totalorder %v355, 7
      %vm1038 = vcmp.eq.s32.totalorder %v356, 7
      %vm1039 = vcmp.eq.s32.totalorder %v357, 7
      %vm1040 = vcmp.eq.s32.totalorder %v358, 7
      %vm1041 = vcmp.eq.s32.totalorder %v359, 7
      %vm1042 = vcmp.eq.s32.totalorder %v360, 7
      %vm1043 = vcmp.eq.s32.totalorder %v361, 7
      %vm1044 = vcmp.eq.s32.totalorder %v362, 7
      %vm1045 = vcmp.eq.s32.totalorder %v363, 7
      %vm1046 = vcmp.eq.s32.totalorder %v364, 7
      %vm1047 = vcmp.eq.s32.totalorder %v365, 7
      %vm1048 = vcmp.eq.s32.totalorder %v366, 7
      %1050 = vset.pattern.permute.xlu0 0
      %1051 = vperm.xlu0 %1050, %v622
      %v1052 = vpop.permute.xlu0 %1051
      %1055 = vset.pattern.permute.xlu0 0
      %1056 = vperm.xlu0 %1055, %v625
      %v1057 = vpop.permute.xlu0 %1056
      %1060 = vset.pattern.permute.xlu0 0
      %1061 = vperm.xlu0 %1060, %v630
      %v1062 = vpop.permute.xlu0 %1061
      %1065 = vset.pattern.permute.xlu0 0
      %1066 = vperm.xlu0 %1065, %v633
      %v1067 = vpop.permute.xlu0 %1066
      %1070 = vset.pattern.permute.xlu0 0
      %1071 = vperm.xlu0 %1070, %v638
      %v1072 = vpop.permute.xlu0 %1071
      %1075 = vset.pattern.permute.xlu0 0
      %1076 = vperm.xlu0 %1075, %v641
      %v1077 = vpop.permute.xlu0 %1076
      %1080 = vset.pattern.permute.xlu0 0
      %1081 = vperm.xlu0 %1080, %v646
      %v1082 = vpop.permute.xlu0 %1081
      %1085 = vset.pattern.permute.xlu0 0
      %1086 = vperm.xlu0 %1085, %v649
      %v1087 = vpop.permute.xlu0 %1086
      %1090 = vset.pattern.permute.xlu0 0
      %1091 = vperm.xlu0 %1090, %v654
      %v1092 = vpop.permute.xlu0 %1091
      %1095 = vset.pattern.permute.xlu0 0
      %1096 = vperm.xlu0 %1095, %v657
      %v1097 = vpop.permute.xlu0 %1096
      %1100 = vset.pattern.permute.xlu0 0
      %1101 = vperm.xlu0 %1100, %v662
      %v1102 = vpop.permute.xlu0 %1101
      %1105 = vset.pattern.permute.xlu0 0
      %1106 = vperm.xlu0 %1105, %v665
      %v1107 = vpop.permute.xlu0 %1106
      %1110 = vset.pattern.permute.xlu0 0
      %1111 = vperm.xlu0 %1110, %v670
      %v1112 = vpop.permute.xlu0 %1111
      %1115 = vset.pattern.permute.xlu0 0
      %1116 = vperm.xlu0 %1115, %v673
      %v1117 = vpop.permute.xlu0 %1116
      %1120 = vset.pattern.permute.xlu0 0
      %1121 = vperm.xlu0 %1120, %v678
      %v1122 = vpop.permute.xlu0 %1121
      %1125 = vset.pattern.permute.xlu0 0
      %1126 = vperm.xlu0 %1125, %v681
      %v1127 = vpop.permute.xlu0 %1126
      %v1129 = vsel %vm793, %v1052, 0.0
      %v1130 = vsel %vm794, %v1057, 0.0
      %v1131 = vsel %vm795, %v1062, 0.0
      %v1132 = vsel %vm796, %v1067, 0.0
      %v1133 = vsel %vm797, %v1072, 0.0
      %v1134 = vsel %vm798, %v1077, 0.0
      %v1135 = vsel %vm799, %v1082, 0.0
      %v1136 = vsel %vm800, %v1087, 0.0
      %v1137 = vsel %vm801, %v1092, 0.0
      %v1138 = vsel %vm802, %v1097, 0.0
      %v1139 = vsel %vm803, %v1102, 0.0
      %v1140 = vsel %vm804, %v1107, 0.0
      %v1141 = vsel %vm805, %v1112, 0.0
      %v1142 = vsel %vm806, %v1117, 0.0
      %v1143 = vsel %vm807, %v1122, 0.0
      %v1144 = vsel %vm808, %v1127, 0.0
      %1145 = vset.pattern.permute.xlu0 1
      %1146 = vperm.xlu0 %1145, %v622
      %v1147 = vpop.permute.xlu0 %1146
      %1149 = vset.pattern.permute.xlu0 1
      %1150 = vperm.xlu0 %1149, %v625
      %v1151 = vpop.permute.xlu0 %1150
      %1153 = vset.pattern.permute.xlu0 1
      %1154 = vperm.xlu0 %1153, %v630
      %v1155 = vpop.permute.xlu0 %1154
      %1157 = vset.pattern.permute.xlu0 1
      %1158 = vperm.xlu0 %1157, %v633
      %v1159 = vpop.permute.xlu0 %1158
      %1161 = vset.pattern.permute.xlu0 1
      %1162 = vperm.xlu0 %1161, %v638
      %v1163 = vpop.permute.xlu0 %1162
      %1165 = vset.pattern.permute.xlu0 1
      %1166 = vperm.xlu0 %1165, %v641
      %v1167 = vpop.permute.xlu0 %1166
      %1169 = vset.pattern.permute.xlu0 1
      %1170 = vperm.xlu0 %1169, %v646
      %v1171 = vpop.permute.xlu0 %1170
      %1173 = vset.pattern.permute.xlu0 1
      %1174 = vperm.xlu0 %1173, %v649
      %v1175 = vpop.permute.xlu0 %1174
      %1177 = vset.pattern.permute.xlu0 1
      %1178 = vperm.xlu0 %1177, %v654
      %v1179 = vpop.permute.xlu0 %1178
      %1181 = vset.pattern.permute.xlu0 1
      %1182 = vperm.xlu0 %1181, %v657
      %v1183 = vpop.permute.xlu0 %1182
      %1185 = vset.pattern.permute.xlu0 1
      %1186 = vperm.xlu0 %1185, %v662
      %v1187 = vpop.permute.xlu0 %1186
      %1189 = vset.pattern.permute.xlu0 1
      %1190 = vperm.xlu0 %1189, %v665
      %v1191 = vpop.permute.xlu0 %1190
      %1193 = vset.pattern.permute.xlu0 1
      %1194 = vperm.xlu0 %1193, %v670
      %v1195 = vpop.permute.xlu0 %1194
      %1197 = vset.pattern.permute.xlu0 1
      %1198 = vperm.xlu0 %1197, %v673
      %v1199 = vpop.permute.xlu0 %1198
      %1201 = vset.pattern.permute.xlu0 1
      %1202 = vperm.xlu0 %1201, %v678
      %v1203 = vpop.permute.xlu0 %1202
      %1205 = vset.pattern.permute.xlu0 1
      %1206 = vperm.xlu0 %1205, %v681
      %v1207 = vpop.permute.xlu0 %1206
      %v1209 = vsel %vm809, %v1147, 0.0
      %v1210 = vsel %vm810, %v1151, 0.0
      %v1211 = vsel %vm811, %v1155, 0.0
      %v1212 = vsel %vm812, %v1159, 0.0
      %v1213 = vsel %vm813, %v1163, 0.0
      %v1214 = vsel %vm814, %v1167, 0.0
      %v1215 = vsel %vm815, %v1171, 0.0
      %v1216 = vsel %vm816, %v1175, 0.0
      %v1217 = vsel %vm817, %v1179, 0.0
      %v1218 = vsel %vm818, %v1183, 0.0
      %v1219 = vsel %vm819, %v1187, 0.0
      %v1220 = vsel %vm820, %v1191, 0.0
      %v1221 = vsel %vm821, %v1195, 0.0
      %v1222 = vsel %vm822, %v1199, 0.0
      %v1223 = vsel %vm823, %v1203, 0.0
      %v1224 = vsel %vm824, %v1207, 0.0
      %v1225 = vadd.f32 %v1129, %v1209
      %v1226 = vadd.f32 %v1130, %v1210
      %v1227 = vadd.f32 %v1131, %v1211
      %v1228 = vadd.f32 %v1132, %v1212
      %v1229 = vadd.f32 %v1133, %v1213
      %v1230 = vadd.f32 %v1134, %v1214
      %v1231 = vadd.f32 %v1135, %v1215
      %v1232 = vadd.f32 %v1136, %v1216
      %v1233 = vadd.f32 %v1137, %v1217
      %v1234 = vadd.f32 %v1138, %v1218
      %v1235 = vadd.f32 %v1139, %v1219
      %v1236 = vadd.f32 %v1140, %v1220
      %v1237 = vadd.f32 %v1141, %v1221
      %v1238 = vadd.f32 %v1142, %v1222
      %v1239 = vadd.f32 %v1143, %v1223
      %v1240 = vadd.f32 %v1144, %v1224
      %1241 = vset.pattern.permute.xlu0 2
      %1242 = vperm.xlu0 %1241, %v622
      %v1243 = vpop.permute.xlu0 %1242
      %1245 = vset.pattern.permute.xlu0 2
      %1246 = vperm.xlu0 %1245, %v625
      %v1247 = vpop.permute.xlu0 %1246
      %1249 = vset.pattern.permute.xlu0 2
      %1250 = vperm.xlu0 %1249, %v630
      %v1251 = vpop.permute.xlu0 %1250
      %1253 = vset.pattern.permute.xlu0 2
      %1254 = vperm.xlu0 %1253, %v633
      %v1255 = vpop.permute.xlu0 %1254
      %1257 = vset.pattern.permute.xlu0 2
      %1258 = vperm.xlu0 %1257, %v638
      %v1259 = vpop.permute.xlu0 %1258
      %1261 = vset.pattern.permute.xlu0 2
      %1262 = vperm.xlu0 %1261, %v641
      %v1263 = vpop.permute.xlu0 %1262
      %1265 = vset.pattern.permute.xlu0 2
      %1266 = vperm.xlu0 %1265, %v646
      %v1267 = vpop.permute.xlu0 %1266
      %1269 = vset.pattern.permute.xlu0 2
      %1270 = vperm.xlu0 %1269, %v649
      %v1271 = vpop.permute.xlu0 %1270
      %1273 = vset.pattern.permute.xlu0 2
      %1274 = vperm.xlu0 %1273, %v654
      %v1275 = vpop.permute.xlu0 %1274
      %1277 = vset.pattern.permute.xlu0 2
      %1278 = vperm.xlu0 %1277, %v657
      %v1279 = vpop.permute.xlu0 %1278
      %1281 = vset.pattern.permute.xlu0 2
      %1282 = vperm.xlu0 %1281, %v662
      %v1283 = vpop.permute.xlu0 %1282
      %1285 = vset.pattern.permute.xlu0 2
      %1286 = vperm.xlu0 %1285, %v665
      %v1287 = vpop.permute.xlu0 %1286
      %1289 = vset.pattern.permute.xlu0 2
      %1290 = vperm.xlu0 %1289, %v670
      %v1291 = vpop.permute.xlu0 %1290
      %1293 = vset.pattern.permute.xlu0 2
      %1294 = vperm.xlu0 %1293, %v673
      %v1295 = vpop.permute.xlu0 %1294
      %1297 = vset.pattern.permute.xlu0 2
      %1298 = vperm.xlu0 %1297, %v678
      %v1299 = vpop.permute.xlu0 %1298
      %1301 = vset.pattern.permute.xlu0 2
      %1302 = vperm.xlu0 %1301, %v681
      %v1303 = vpop.permute.xlu0 %1302
      %v1305 = vsel %vm825, %v1243, 0.0
      %v1306 = vsel %vm826, %v1247, 0.0
      %v1307 = vsel %vm827, %v1251, 0.0
      %v1308 = vsel %vm828, %v1255, 0.0
      %v1309 = vsel %vm829, %v1259, 0.0
      %v1310 = vsel %vm830, %v1263, 0.0
      %v1311 = vsel %vm831, %v1267, 0.0
      %v1312 = vsel %vm832, %v1271, 0.0
      %v1313 = vsel %vm833, %v1275, 0.0
      %v1314 = vsel %vm834, %v1279, 0.0
      %v1315 = vsel %vm835, %v1283, 0.0
      %v1316 = vsel %vm836, %v1287, 0.0
      %v1317 = vsel %vm837, %v1291, 0.0
      %v1318 = vsel %vm838, %v1295, 0.0
      %v1319 = vsel %vm839, %v1299, 0.0
      %v1320 = vsel %vm840, %v1303, 0.0
      %v1321 = vadd.f32 %v1225, %v1305
      %v1322 = vadd.f32 %v1226, %v1306
      %v1323 = vadd.f32 %v1227, %v1307
      %v1324 = vadd.f32 %v1228, %v1308
      %v1325 = vadd.f32 %v1229, %v1309
      %v1326 = vadd.f32 %v1230, %v1310
      %v1327 = vadd.f32 %v1231, %v1311
      %v1328 = vadd.f32 %v1232, %v1312
      %v1329 = vadd.f32 %v1233, %v1313
      %v1330 = vadd.f32 %v1234, %v1314
      %v1331 = vadd.f32 %v1235, %v1315
      %v1332 = vadd.f32 %v1236, %v1316
      %v1333 = vadd.f32 %v1237, %v1317
      %v1334 = vadd.f32 %v1238, %v1318
      %v1335 = vadd.f32 %v1239, %v1319
      %v1336 = vadd.f32 %v1240, %v1320
      %1337 = vset.pattern.permute.xlu0 3
      %1338 = vperm.xlu0 %1337, %v622
      %v1339 = vpop.permute.xlu0 %1338
      %1341 = vset.pattern.permute.xlu0 3
      %1342 = vperm.xlu0 %1341, %v625
      %v1343 = vpop.permute.xlu0 %1342
      %1345 = vset.pattern.permute.xlu0 3
      %1346 = vperm.xlu0 %1345, %v630
      %v1347 = vpop.permute.xlu0 %1346
      %1349 = vset.pattern.permute.xlu0 3
      %1350 = vperm.xlu0 %1349, %v633
      %v1351 = vpop.permute.xlu0 %1350
      %1353 = vset.pattern.permute.xlu0 3
      %1354 = vperm.xlu0 %1353, %v638
      %v1355 = vpop.permute.xlu0 %1354
      %1357 = vset.pattern.permute.xlu0 3
      %1358 = vperm.xlu0 %1357, %v641
      %v1359 = vpop.permute.xlu0 %1358
      %1361 = vset.pattern.permute.xlu0 3
      %1362 = vperm.xlu0 %1361, %v646
      %v1363 = vpop.permute.xlu0 %1362
      %1365 = vset.pattern.permute.xlu0 3
      %1366 = vperm.xlu0 %1365, %v649
      %v1367 = vpop.permute.xlu0 %1366
      %1369 = vset.pattern.permute.xlu0 3
      %1370 = vperm.xlu0 %1369, %v654
      %v1371 = vpop.permute.xlu0 %1370
      %1373 = vset.pattern.permute.xlu0 3
      %1374 = vperm.xlu0 %1373, %v657
      %v1375 = vpop.permute.xlu0 %1374
      %1377 = vset.pattern.permute.xlu0 3
      %1378 = vperm.xlu0 %1377, %v662
      %v1379 = vpop.permute.xlu0 %1378
      %1381 = vset.pattern.permute.xlu0 3
      %1382 = vperm.xlu0 %1381, %v665
      %v1383 = vpop.permute.xlu0 %1382
      %1385 = vset.pattern.permute.xlu0 3
      %1386 = vperm.xlu0 %1385, %v670
      %v1387 = vpop.permute.xlu0 %1386
      %1389 = vset.pattern.permute.xlu0 3
      %1390 = vperm.xlu0 %1389, %v673
      %v1391 = vpop.permute.xlu0 %1390
      %1393 = vset.pattern.permute.xlu0 3
      %1394 = vperm.xlu0 %1393, %v678
      %v1395 = vpop.permute.xlu0 %1394
      %1397 = vset.pattern.permute.xlu0 3
      %1398 = vperm.xlu0 %1397, %v681
      %v1399 = vpop.permute.xlu0 %1398
      %v1401 = vsel %vm841, %v1339, 0.0
      %v1402 = vsel %vm842, %v1343, 0.0
      %v1403 = vsel %vm843, %v1347, 0.0
      %v1404 = vsel %vm844, %v1351, 0.0
      %v1405 = vsel %vm845, %v1355, 0.0
      %v1406 = vsel %vm846, %v1359, 0.0
      %v1407 = vsel %vm847, %v1363, 0.0
      %v1408 = vsel %vm848, %v1367, 0.0
      %v1409 = vsel %vm849, %v1371, 0.0
      %v1410 = vsel %vm850, %v1375, 0.0
      %v1411 = vsel %vm851, %v1379, 0.0
      %v1412 = vsel %vm852, %v1383, 0.0
      %v1413 = vsel %vm853, %v1387, 0.0
      %v1414 = vsel %vm854, %v1391, 0.0
      %v1415 = vsel %vm855, %v1395, 0.0
      %v1416 = vsel %vm856, %v1399, 0.0
      %v1417 = vadd.f32 %v1321, %v1401
      %v1418 = vadd.f32 %v1322, %v1402
      %v1419 = vadd.f32 %v1323, %v1403
      %v1420 = vadd.f32 %v1324, %v1404
      %v1421 = vadd.f32 %v1325, %v1405
      %v1422 = vadd.f32 %v1326, %v1406
      %v1423 = vadd.f32 %v1327, %v1407
      %v1424 = vadd.f32 %v1328, %v1408
      %v1425 = vadd.f32 %v1329, %v1409
      %v1426 = vadd.f32 %v1330, %v1410
      %v1427 = vadd.f32 %v1331, %v1411
      %v1428 = vadd.f32 %v1332, %v1412
      %v1429 = vadd.f32 %v1333, %v1413
      %v1430 = vadd.f32 %v1334, %v1414
      %v1431 = vadd.f32 %v1335, %v1415
      %v1432 = vadd.f32 %v1336, %v1416
      %1433 = vset.pattern.permute.xlu0 4
      %1434 = vperm.xlu0 %1433, %v622
      %v1435 = vpop.permute.xlu0 %1434
      %1437 = vset.pattern.permute.xlu0 4
      %1438 = vperm.xlu0 %1437, %v625
      %v1439 = vpop.permute.xlu0 %1438
      %1441 = vset.pattern.permute.xlu0 4
      %1442 = vperm.xlu0 %1441, %v630
      %v1443 = vpop.permute.xlu0 %1442
      %1445 = vset.pattern.permute.xlu0 4
      %1446 = vperm.xlu0 %1445, %v633
      %v1447 = vpop.permute.xlu0 %1446
      %1449 = vset.pattern.permute.xlu0 4
      %1450 = vperm.xlu0 %1449, %v638
      %v1451 = vpop.permute.xlu0 %1450
      %1453 = vset.pattern.permute.xlu0 4
      %1454 = vperm.xlu0 %1453, %v641
      %v1455 = vpop.permute.xlu0 %1454
      %1457 = vset.pattern.permute.xlu0 4
      %1458 = vperm.xlu0 %1457, %v646
      %v1459 = vpop.permute.xlu0 %1458
      %1461 = vset.pattern.permute.xlu0 4
      %1462 = vperm.xlu0 %1461, %v649
      %v1463 = vpop.permute.xlu0 %1462
      %1465 = vset.pattern.permute.xlu0 4
      %1466 = vperm.xlu0 %1465, %v654
      %v1467 = vpop.permute.xlu0 %1466
      %1469 = vset.pattern.permute.xlu0 4
      %1470 = vperm.xlu0 %1469, %v657
      %v1471 = vpop.permute.xlu0 %1470
      %1473 = vset.pattern.permute.xlu0 4
      %1474 = vperm.xlu0 %1473, %v662
      %v1475 = vpop.permute.xlu0 %1474
      %1477 = vset.pattern.permute.xlu0 4
      %1478 = vperm.xlu0 %1477, %v665
      %v1479 = vpop.permute.xlu0 %1478
      %1481 = vset.pattern.permute.xlu0 4
      %1482 = vperm.xlu0 %1481, %v670
      %v1483 = vpop.permute.xlu0 %1482
      %1485 = vset.pattern.permute.xlu0 4
      %1486 = vperm.xlu0 %1485, %v673
      %v1487 = vpop.permute.xlu0 %1486
      %1489 = vset.pattern.permute.xlu0 4
      %1490 = vperm.xlu0 %1489, %v678
      %v1491 = vpop.permute.xlu0 %1490
      %1493 = vset.pattern.permute.xlu0 4
      %1494 = vperm.xlu0 %1493, %v681
      %v1495 = vpop.permute.xlu0 %1494
      %v1497 = vsel %vm857, %v1435, 0.0
      %v1498 = vsel %vm858, %v1439, 0.0
      %v1499 = vsel %vm859, %v1443, 0.0
      %v1500 = vsel %vm860, %v1447, 0.0
      %v1501 = vsel %vm861, %v1451, 0.0
      %v1502 = vsel %vm862, %v1455, 0.0
      %v1503 = vsel %vm863, %v1459, 0.0
      %v1504 = vsel %vm864, %v1463, 0.0
      %v1505 = vsel %vm865, %v1467, 0.0
      %v1506 = vsel %vm866, %v1471, 0.0
      %v1507 = vsel %vm867, %v1475, 0.0
      %v1508 = vsel %vm868, %v1479, 0.0
      %v1509 = vsel %vm869, %v1483, 0.0
      %v1510 = vsel %vm870, %v1487, 0.0
      %v1511 = vsel %vm871, %v1491, 0.0
      %v1512 = vsel %vm872, %v1495, 0.0
      %v1513 = vadd.f32 %v1417, %v1497
      %v1514 = vadd.f32 %v1418, %v1498
      %v1515 = vadd.f32 %v1419, %v1499
      %v1516 = vadd.f32 %v1420, %v1500
      %v1517 = vadd.f32 %v1421, %v1501
      %v1518 = vadd.f32 %v1422, %v1502
      %v1519 = vadd.f32 %v1423, %v1503
      %v1520 = vadd.f32 %v1424, %v1504
      %v1521 = vadd.f32 %v1425, %v1505
      %v1522 = vadd.f32 %v1426, %v1506
      %v1523 = vadd.f32 %v1427, %v1507
      %v1524 = vadd.f32 %v1428, %v1508
      %v1525 = vadd.f32 %v1429, %v1509
      %v1526 = vadd.f32 %v1430, %v1510
      %v1527 = vadd.f32 %v1431, %v1511
      %v1528 = vadd.f32 %v1432, %v1512
      %1529 = vset.pattern.permute.xlu0 5
      %1530 = vperm.xlu0 %1529, %v622
      %v1531 = vpop.permute.xlu0 %1530
      %1533 = vset.pattern.permute.xlu0 5
      %1534 = vperm.xlu0 %1533, %v625
      %v1535 = vpop.permute.xlu0 %1534
      %1537 = vset.pattern.permute.xlu0 5
      %1538 = vperm.xlu0 %1537, %v630
      %v1539 = vpop.permute.xlu0 %1538
      %1541 = vset.pattern.permute.xlu0 5
      %1542 = vperm.xlu0 %1541, %v633
      %v1543 = vpop.permute.xlu0 %1542
      %1545 = vset.pattern.permute.xlu0 5
      %1546 = vperm.xlu0 %1545, %v638
      %v1547 = vpop.permute.xlu0 %1546
      %1549 = vset.pattern.permute.xlu0 5
      %1550 = vperm.xlu0 %1549, %v641
      %v1551 = vpop.permute.xlu0 %1550
      %1553 = vset.pattern.permute.xlu0 5
      %1554 = vperm.xlu0 %1553, %v646
      %v1555 = vpop.permute.xlu0 %1554
      %1557 = vset.pattern.permute.xlu0 5
      %1558 = vperm.xlu0 %1557, %v649
      %v1559 = vpop.permute.xlu0 %1558
      %1561 = vset.pattern.permute.xlu0 5
      %1562 = vperm.xlu0 %1561, %v654
      %v1563 = vpop.permute.xlu0 %1562
      %1565 = vset.pattern.permute.xlu0 5
      %1566 = vperm.xlu0 %1565, %v657
      %v1567 = vpop.permute.xlu0 %1566
      %1569 = vset.pattern.permute.xlu0 5
      %1570 = vperm.xlu0 %1569, %v662
      %v1571 = vpop.permute.xlu0 %1570
      %1573 = vset.pattern.permute.xlu0 5
      %1574 = vperm.xlu0 %1573, %v665
      %v1575 = vpop.permute.xlu0 %1574
      %1577 = vset.pattern.permute.xlu0 5
      %1578 = vperm.xlu0 %1577, %v670
      %v1579 = vpop.permute.xlu0 %1578
      %1581 = vset.pattern.permute.xlu0 5
      %1582 = vperm.xlu0 %1581, %v673
      %v1583 = vpop.permute.xlu0 %1582
      %1585 = vset.pattern.permute.xlu0 5
      %1586 = vperm.xlu0 %1585, %v678
      %v1587 = vpop.permute.xlu0 %1586
      %1589 = vset.pattern.permute.xlu0 5
      %1590 = vperm.xlu0 %1589, %v681
      %v1591 = vpop.permute.xlu0 %1590
      %v1593 = vsel %vm873, %v1531, 0.0
      %v1594 = vsel %vm874, %v1535, 0.0
      %v1595 = vsel %vm875, %v1539, 0.0
      %v1596 = vsel %vm876, %v1543, 0.0
      %v1597 = vsel %vm877, %v1547, 0.0
      %v1598 = vsel %vm878, %v1551, 0.0
      %v1599 = vsel %vm879, %v1555, 0.0
      %v1600 = vsel %vm880, %v1559, 0.0
      %v1601 = vsel %vm881, %v1563, 0.0
      %v1602 = vsel %vm882, %v1567, 0.0
      %v1603 = vsel %vm883, %v1571, 0.0
      %v1604 = vsel %vm884, %v1575, 0.0
      %v1605 = vsel %vm885, %v1579, 0.0
      %v1606 = vsel %vm886, %v1583, 0.0
      %v1607 = vsel %vm887, %v1587, 0.0
      %v1608 = vsel %vm888, %v1591, 0.0
      %v1609 = vadd.f32 %v1513, %v1593
      %v1610 = vadd.f32 %v1514, %v1594
      %v1611 = vadd.f32 %v1515, %v1595
      %v1612 = vadd.f32 %v1516, %v1596
      %v1613 = vadd.f32 %v1517, %v1597
      %v1614 = vadd.f32 %v1518, %v1598
      %v1615 = vadd.f32 %v1519, %v1599
      %v1616 = vadd.f32 %v1520, %v1600
      %v1617 = vadd.f32 %v1521, %v1601
      %v1618 = vadd.f32 %v1522, %v1602
      %v1619 = vadd.f32 %v1523, %v1603
      %v1620 = vadd.f32 %v1524, %v1604
      %v1621 = vadd.f32 %v1525, %v1605
      %v1622 = vadd.f32 %v1526, %v1606
      %v1623 = vadd.f32 %v1527, %v1607
      %v1624 = vadd.f32 %v1528, %v1608
      %1625 = vset.pattern.permute.xlu0 6
      %1626 = vperm.xlu0 %1625, %v622
      %v1627 = vpop.permute.xlu0 %1626
      %1629 = vset.pattern.permute.xlu0 6
      %1630 = vperm.xlu0 %1629, %v625
      %v1631 = vpop.permute.xlu0 %1630
      %1633 = vset.pattern.permute.xlu0 6
      %1634 = vperm.xlu0 %1633, %v630
      %v1635 = vpop.permute.xlu0 %1634
      %1637 = vset.pattern.permute.xlu0 6
      %1638 = vperm.xlu0 %1637, %v633
      %v1639 = vpop.permute.xlu0 %1638
      %1641 = vset.pattern.permute.xlu0 6
      %1642 = vperm.xlu0 %1641, %v638
      %v1643 = vpop.permute.xlu0 %1642
      %1645 = vset.pattern.permute.xlu0 6
      %1646 = vperm.xlu0 %1645, %v641
      %v1647 = vpop.permute.xlu0 %1646
      %1649 = vset.pattern.permute.xlu0 6
      %1650 = vperm.xlu0 %1649, %v646
      %v1651 = vpop.permute.xlu0 %1650
      %1653 = vset.pattern.permute.xlu0 6
      %1654 = vperm.xlu0 %1653, %v649
      %v1655 = vpop.permute.xlu0 %1654
      %1657 = vset.pattern.permute.xlu0 6
      %1658 = vperm.xlu0 %1657, %v654
      %v1659 = vpop.permute.xlu0 %1658
      %1661 = vset.pattern.permute.xlu0 6
      %1662 = vperm.xlu0 %1661, %v657
      %v1663 = vpop.permute.xlu0 %1662
      %1665 = vset.pattern.permute.xlu0 6
      %1666 = vperm.xlu0 %1665, %v662
      %v1667 = vpop.permute.xlu0 %1666
      %1669 = vset.pattern.permute.xlu0 6
      %1670 = vperm.xlu0 %1669, %v665
      %v1671 = vpop.permute.xlu0 %1670
      %1673 = vset.pattern.permute.xlu0 6
      %1674 = vperm.xlu0 %1673, %v670
      %v1675 = vpop.permute.xlu0 %1674
      %1677 = vset.pattern.permute.xlu0 6
      %1678 = vperm.xlu0 %1677, %v673
      %v1679 = vpop.permute.xlu0 %1678
      %1681 = vset.pattern.permute.xlu0 6
      %1682 = vperm.xlu0 %1681, %v678
      %v1683 = vpop.permute.xlu0 %1682
      %1685 = vset.pattern.permute.xlu0 6
      %1686 = vperm.xlu0 %1685, %v681
      %v1687 = vpop.permute.xlu0 %1686
      %v1689 = vsel %vm889, %v1627, 0.0
      %v1690 = vsel %vm890, %v1631, 0.0
      %v1691 = vsel %vm891, %v1635, 0.0
      %v1692 = vsel %vm892, %v1639, 0.0
      %v1693 = vsel %vm893, %v1643, 0.0
      %v1694 = vsel %vm894, %v1647, 0.0
      %v1695 = vsel %vm895, %v1651, 0.0
      %v1696 = vsel %vm896, %v1655, 0.0
      %v1697 = vsel %vm897, %v1659, 0.0
      %v1698 = vsel %vm898, %v1663, 0.0
      %v1699 = vsel %vm899, %v1667, 0.0
      %v1700 = vsel %vm900, %v1671, 0.0
      %v1701 = vsel %vm901, %v1675, 0.0
      %v1702 = vsel %vm902, %v1679, 0.0
      %v1703 = vsel %vm903, %v1683, 0.0
      %v1704 = vsel %vm904, %v1687, 0.0
      %v1705 = vadd.f32 %v1609, %v1689
      %v1706 = vadd.f32 %v1610, %v1690
      %v1707 = vadd.f32 %v1611, %v1691
      %v1708 = vadd.f32 %v1612, %v1692
      %v1709 = vadd.f32 %v1613, %v1693
      %v1710 = vadd.f32 %v1614, %v1694
      %v1711 = vadd.f32 %v1615, %v1695
      %v1712 = vadd.f32 %v1616, %v1696
      %v1713 = vadd.f32 %v1617, %v1697
      %v1714 = vadd.f32 %v1618, %v1698
      %v1715 = vadd.f32 %v1619, %v1699
      %v1716 = vadd.f32 %v1620, %v1700
      %v1717 = vadd.f32 %v1621, %v1701
      %v1718 = vadd.f32 %v1622, %v1702
      %v1719 = vadd.f32 %v1623, %v1703
      %v1720 = vadd.f32 %v1624, %v1704
      %1721 = vset.pattern.permute.xlu0 7
      %1722 = vperm.xlu0 %1721, %v622
      %v1723 = vpop.permute.xlu0 %1722
      %1725 = vset.pattern.permute.xlu0 7
      %1726 = vperm.xlu0 %1725, %v625
      %v1727 = vpop.permute.xlu0 %1726
      %1729 = vset.pattern.permute.xlu0 7
      %1730 = vperm.xlu0 %1729, %v630
      %v1731 = vpop.permute.xlu0 %1730
      %1733 = vset.pattern.permute.xlu0 7
      %1734 = vperm.xlu0 %1733, %v633
      %v1735 = vpop.permute.xlu0 %1734
      %1737 = vset.pattern.permute.xlu0 7
      %1738 = vperm.xlu0 %1737, %v638
      %v1739 = vpop.permute.xlu0 %1738
      %1741 = vset.pattern.permute.xlu0 7
      %1742 = vperm.xlu0 %1741, %v641
      %v1743 = vpop.permute.xlu0 %1742
      %1745 = vset.pattern.permute.xlu0 7
      %1746 = vperm.xlu0 %1745, %v646
      %v1747 = vpop.permute.xlu0 %1746
      %1749 = vset.pattern.permute.xlu0 7
      %1750 = vperm.xlu0 %1749, %v649
      %v1751 = vpop.permute.xlu0 %1750
      %1753 = vset.pattern.permute.xlu0 7
      %1754 = vperm.xlu0 %1753, %v654
      %v1755 = vpop.permute.xlu0 %1754
      %1757 = vset.pattern.permute.xlu0 7
      %1758 = vperm.xlu0 %1757, %v657
      %v1759 = vpop.permute.xlu0 %1758
      %1761 = vset.pattern.permute.xlu0 7
      %1762 = vperm.xlu0 %1761, %v662
      %v1763 = vpop.permute.xlu0 %1762
      %1765 = vset.pattern.permute.xlu0 7
      %1766 = vperm.xlu0 %1765, %v665
      %v1767 = vpop.permute.xlu0 %1766
      %1769 = vset.pattern.permute.xlu0 7
      %1770 = vperm.xlu0 %1769, %v670
      %v1771 = vpop.permute.xlu0 %1770
      %1773 = vset.pattern.permute.xlu0 7
      %1774 = vperm.xlu0 %1773, %v673
      %v1775 = vpop.permute.xlu0 %1774
      %1777 = vset.pattern.permute.xlu0 7
      %1778 = vperm.xlu0 %1777, %v678
      %v1779 = vpop.permute.xlu0 %1778
      %1781 = vset.pattern.permute.xlu0 7
      %1782 = vperm.xlu0 %1781, %v681
      %v1783 = vpop.permute.xlu0 %1782
      %v1785 = vsel %vm905, %v1723, 0.0
      %v1786 = vsel %vm906, %v1727, 0.0
      %v1787 = vsel %vm907, %v1731, 0.0
      %v1788 = vsel %vm908, %v1735, 0.0
      %v1789 = vsel %vm909, %v1739, 0.0
      %v1790 = vsel %vm910, %v1743, 0.0
      %v1791 = vsel %vm911, %v1747, 0.0
      %v1792 = vsel %vm912, %v1751, 0.0
      %v1793 = vsel %vm913, %v1755, 0.0
      %v1794 = vsel %vm914, %v1759, 0.0
      %v1795 = vsel %vm915, %v1763, 0.0
      %v1796 = vsel %vm916, %v1767, 0.0
      %v1797 = vsel %vm917, %v1771, 0.0
      %v1798 = vsel %vm918, %v1775, 0.0
      %v1799 = vsel %vm919, %v1779, 0.0
      %v1800 = vsel %vm920, %v1783, 0.0
      %v1801 = vadd.f32 %v1705, %v1785
      %v1802 = vadd.f32 %v1706, %v1786
      %v1803 = vadd.f32 %v1707, %v1787
      %v1804 = vadd.f32 %v1708, %v1788
      %v1805 = vadd.f32 %v1709, %v1789
      %v1806 = vadd.f32 %v1710, %v1790
      %v1807 = vadd.f32 %v1711, %v1791
      %v1808 = vadd.f32 %v1712, %v1792
      %v1809 = vadd.f32 %v1713, %v1793
      %v1810 = vadd.f32 %v1714, %v1794
      %v1811 = vadd.f32 %v1715, %v1795
      %v1812 = vadd.f32 %v1716, %v1796
      %v1813 = vadd.f32 %v1717, %v1797
      %v1814 = vadd.f32 %v1718, %v1798
      %v1815 = vadd.f32 %v1719, %v1799
      %v1816 = vadd.f32 %v1720, %v1800
      %1818 = vset.pattern.permute.xlu0 0
      %1819 = vperm.xlu0 %1818, %v731
      %v1820 = vpop.permute.xlu0 %1819
      %1823 = vset.pattern.permute.xlu0 0
      %1824 = vperm.xlu0 %1823, %v734
      %v1825 = vpop.permute.xlu0 %1824
      %1828 = vset.pattern.permute.xlu0 0
      %1829 = vperm.xlu0 %1828, %v739
      %v1830 = vpop.permute.xlu0 %1829
      %1833 = vset.pattern.permute.xlu0 0
      %1834 = vperm.xlu0 %1833, %v742
      %v1835 = vpop.permute.xlu0 %1834
      %1838 = vset.pattern.permute.xlu0 0
      %1839 = vperm.xlu0 %1838, %v747
      %v1840 = vpop.permute.xlu0 %1839
      %1843 = vset.pattern.permute.xlu0 0
      %1844 = vperm.xlu0 %1843, %v750
      %v1845 = vpop.permute.xlu0 %1844
      %1848 = vset.pattern.permute.xlu0 0
      %1849 = vperm.xlu0 %1848, %v755
      %v1850 = vpop.permute.xlu0 %1849
      %1853 = vset.pattern.permute.xlu0 0
      %1854 = vperm.xlu0 %1853, %v758
      %v1855 = vpop.permute.xlu0 %1854
      %1858 = vset.pattern.permute.xlu0 0
      %1859 = vperm.xlu0 %1858, %v763
      %v1860 = vpop.permute.xlu0 %1859
      %1863 = vset.pattern.permute.xlu0 0
      %1864 = vperm.xlu0 %1863, %v766
      %v1865 = vpop.permute.xlu0 %1864
      %1868 = vset.pattern.permute.xlu0 0
      %1869 = vperm.xlu0 %1868, %v771
      %v1870 = vpop.permute.xlu0 %1869
      %1873 = vset.pattern.permute.xlu0 0
      %1874 = vperm.xlu0 %1873, %v774
      %v1875 = vpop.permute.xlu0 %1874
      %1878 = vset.pattern.permute.xlu0 0
      %1879 = vperm.xlu0 %1878, %v779
      %v1880 = vpop.permute.xlu0 %1879
      %1883 = vset.pattern.permute.xlu0 0
      %1884 = vperm.xlu0 %1883, %v782
      %v1885 = vpop.permute.xlu0 %1884
      %1888 = vset.pattern.permute.xlu0 0
      %1889 = vperm.xlu0 %1888, %v787
      %v1890 = vpop.permute.xlu0 %1889
      %1893 = vset.pattern.permute.xlu0 0
      %1894 = vperm.xlu0 %1893, %v790
      %v1895 = vpop.permute.xlu0 %1894
      %v1897 = vsel %vm921, %v1820, 0.0
      %v1898 = vsel %vm922, %v1825, 0.0
      %v1899 = vsel %vm923, %v1830, 0.0
      %v1900 = vsel %vm924, %v1835, 0.0
      %v1901 = vsel %vm925, %v1840, 0.0
      %v1902 = vsel %vm926, %v1845, 0.0
      %v1903 = vsel %vm927, %v1850, 0.0
      %v1904 = vsel %vm928, %v1855, 0.0
      %v1905 = vsel %vm929, %v1860, 0.0
      %v1906 = vsel %vm930, %v1865, 0.0
      %v1907 = vsel %vm931, %v1870, 0.0
      %v1908 = vsel %vm932, %v1875, 0.0
      %v1909 = vsel %vm933, %v1880, 0.0
      %v1910 = vsel %vm934, %v1885, 0.0
      %v1911 = vsel %vm935, %v1890, 0.0
      %v1912 = vsel %vm936, %v1895, 0.0
      %1913 = vset.pattern.permute.xlu0 1
      %1914 = vperm.xlu0 %1913, %v731
      %v1915 = vpop.permute.xlu0 %1914
      %1917 = vset.pattern.permute.xlu0 1
      %1918 = vperm.xlu0 %1917, %v734
      %v1919 = vpop.permute.xlu0 %1918
      %1921 = vset.pattern.permute.xlu0 1
      %1922 = vperm.xlu0 %1921, %v739
      %v1923 = vpop.permute.xlu0 %1922
      %1925 = vset.pattern.permute.xlu0 1
      %1926 = vperm.xlu0 %1925, %v742
      %v1927 = vpop.permute.xlu0 %1926
      %1929 = vset.pattern.permute.xlu0 1
      %1930 = vperm.xlu0 %1929, %v747
      %v1931 = vpop.permute.xlu0 %1930
      %1933 = vset.pattern.permute.xlu0 1
      %1934 = vperm.xlu0 %1933, %v750
      %v1935 = vpop.permute.xlu0 %1934
      %1937 = vset.pattern.permute.xlu0 1
      %1938 = vperm.xlu0 %1937, %v755
      %v1939 = vpop.permute.xlu0 %1938
      %1941 = vset.pattern.permute.xlu0 1
      %1942 = vperm.xlu0 %1941, %v758
      %v1943 = vpop.permute.xlu0 %1942
      %1945 = vset.pattern.permute.xlu0 1
      %1946 = vperm.xlu0 %1945, %v763
      %v1947 = vpop.permute.xlu0 %1946
      %1949 = vset.pattern.permute.xlu0 1
      %1950 = vperm.xlu0 %1949, %v766
      %v1951 = vpop.permute.xlu0 %1950
      %1953 = vset.pattern.permute.xlu0 1
      %1954 = vperm.xlu0 %1953, %v771
      %v1955 = vpop.permute.xlu0 %1954
      %1957 = vset.pattern.permute.xlu0 1
      %1958 = vperm.xlu0 %1957, %v774
      %v1959 = vpop.permute.xlu0 %1958
      %1961 = vset.pattern.permute.xlu0 1
      %1962 = vperm.xlu0 %1961, %v779
      %v1963 = vpop.permute.xlu0 %1962
      %1965 = vset.pattern.permute.xlu0 1
      %1966 = vperm.xlu0 %1965, %v782
      %v1967 = vpop.permute.xlu0 %1966
      %1969 = vset.pattern.permute.xlu0 1
      %1970 = vperm.xlu0 %1969, %v787
      %v1971 = vpop.permute.xlu0 %1970
      %1973 = vset.pattern.permute.xlu0 1
      %1974 = vperm.xlu0 %1973, %v790
      %v1975 = vpop.permute.xlu0 %1974
      %v1977 = vsel %vm937, %v1915, 0.0
      %v1978 = vsel %vm938, %v1919, 0.0
      %v1979 = vsel %vm939, %v1923, 0.0
      %v1980 = vsel %vm940, %v1927, 0.0
      %v1981 = vsel %vm941, %v1931, 0.0
      %v1982 = vsel %vm942, %v1935, 0.0
      %v1983 = vsel %vm943, %v1939, 0.0
      %v1984 = vsel %vm944, %v1943, 0.0
      %v1985 = vsel %vm945, %v1947, 0.0
      %v1986 = vsel %vm946, %v1951, 0.0
      %v1987 = vsel %vm947, %v1955, 0.0
      %v1988 = vsel %vm948, %v1959, 0.0
      %v1989 = vsel %vm949, %v1963, 0.0
      %v1990 = vsel %vm950, %v1967, 0.0
      %v1991 = vsel %vm951, %v1971, 0.0
      %v1992 = vsel %vm952, %v1975, 0.0
      %v1993 = vadd.f32 %v1897, %v1977
      %v1994 = vadd.f32 %v1898, %v1978
      %v1995 = vadd.f32 %v1899, %v1979
      %v1996 = vadd.f32 %v1900, %v1980
      %v1997 = vadd.f32 %v1901, %v1981
      %v1998 = vadd.f32 %v1902, %v1982
      %v1999 = vadd.f32 %v1903, %v1983
      %v2000 = vadd.f32 %v1904, %v1984
      %v2001 = vadd.f32 %v1905, %v1985
      %v2002 = vadd.f32 %v1906, %v1986
      %v2003 = vadd.f32 %v1907, %v1987
      %v2004 = vadd.f32 %v1908, %v1988
      %v2005 = vadd.f32 %v1909, %v1989
      %v2006 = vadd.f32 %v1910, %v1990
      %v2007 = vadd.f32 %v1911, %v1991
      %v2008 = vadd.f32 %v1912, %v1992
      %2009 = vset.pattern.permute.xlu0 2
      %2010 = vperm.xlu0 %2009, %v731
      %v2011 = vpop.permute.xlu0 %2010
      %2013 = vset.pattern.permute.xlu0 2
      %2014 = vperm.xlu0 %2013, %v734
      %v2015 = vpop.permute.xlu0 %2014
      %2017 = vset.pattern.permute.xlu0 2
      %2018 = vperm.xlu0 %2017, %v739
      %v2019 = vpop.permute.xlu0 %2018
      %2021 = vset.pattern.permute.xlu0 2
      %2022 = vperm.xlu0 %2021, %v742
      %v2023 = vpop.permute.xlu0 %2022
      %2025 = vset.pattern.permute.xlu0 2
      %2026 = vperm.xlu0 %2025, %v747
      %v2027 = vpop.permute.xlu0 %2026
      %2029 = vset.pattern.permute.xlu0 2
      %2030 = vperm.xlu0 %2029, %v750
      %v2031 = vpop.permute.xlu0 %2030
      %2033 = vset.pattern.permute.xlu0 2
      %2034 = vperm.xlu0 %2033, %v755
      %v2035 = vpop.permute.xlu0 %2034
      %2037 = vset.pattern.permute.xlu0 2
      %2038 = vperm.xlu0 %2037, %v758
      %v2039 = vpop.permute.xlu0 %2038
      %2041 = vset.pattern.permute.xlu0 2
      %2042 = vperm.xlu0 %2041, %v763
      %v2043 = vpop.permute.xlu0 %2042
      %2045 = vset.pattern.permute.xlu0 2
      %2046 = vperm.xlu0 %2045, %v766
      %v2047 = vpop.permute.xlu0 %2046
      %2049 = vset.pattern.permute.xlu0 2
      %2050 = vperm.xlu0 %2049, %v771
      %v2051 = vpop.permute.xlu0 %2050
      %2053 = vset.pattern.permute.xlu0 2
      %2054 = vperm.xlu0 %2053, %v774
      %v2055 = vpop.permute.xlu0 %2054
      %2057 = vset.pattern.permute.xlu0 2
      %2058 = vperm.xlu0 %2057, %v779
      %v2059 = vpop.permute.xlu0 %2058
      %2061 = vset.pattern.permute.xlu0 2
      %2062 = vperm.xlu0 %2061, %v782
      %v2063 = vpop.permute.xlu0 %2062
      %2065 = vset.pattern.permute.xlu0 2
      %2066 = vperm.xlu0 %2065, %v787
      %v2067 = vpop.permute.xlu0 %2066
      %2069 = vset.pattern.permute.xlu0 2
      %2070 = vperm.xlu0 %2069, %v790
      %v2071 = vpop.permute.xlu0 %2070
      %v2073 = vsel %vm953, %v2011, 0.0
      %v2074 = vsel %vm954, %v2015, 0.0
      %v2075 = vsel %vm955, %v2019, 0.0
      %v2076 = vsel %vm956, %v2023, 0.0
      %v2077 = vsel %vm957, %v2027, 0.0
      %v2078 = vsel %vm958, %v2031, 0.0
      %v2079 = vsel %vm959, %v2035, 0.0
      %v2080 = vsel %vm960, %v2039, 0.0
      %v2081 = vsel %vm961, %v2043, 0.0
      %v2082 = vsel %vm962, %v2047, 0.0
      %v2083 = vsel %vm963, %v2051, 0.0
      %v2084 = vsel %vm964, %v2055, 0.0
      %v2085 = vsel %vm965, %v2059, 0.0
      %v2086 = vsel %vm966, %v2063, 0.0
      %v2087 = vsel %vm967, %v2067, 0.0
      %v2088 = vsel %vm968, %v2071, 0.0
      %v2089 = vadd.f32 %v1993, %v2073
      %v2090 = vadd.f32 %v1994, %v2074
      %v2091 = vadd.f32 %v1995, %v2075
      %v2092 = vadd.f32 %v1996, %v2076
      %v2093 = vadd.f32 %v1997, %v2077
      %v2094 = vadd.f32 %v1998, %v2078
      %v2095 = vadd.f32 %v1999, %v2079
      %v2096 = vadd.f32 %v2000, %v2080
      %v2097 = vadd.f32 %v2001, %v2081
      %v2098 = vadd.f32 %v2002, %v2082
      %v2099 = vadd.f32 %v2003, %v2083
      %v2100 = vadd.f32 %v2004, %v2084
      %v2101 = vadd.f32 %v2005, %v2085
      %v2102 = vadd.f32 %v2006, %v2086
      %v2103 = vadd.f32 %v2007, %v2087
      %v2104 = vadd.f32 %v2008, %v2088
      %2105 = vset.pattern.permute.xlu0 3
      %2106 = vperm.xlu0 %2105, %v731
      %v2107 = vpop.permute.xlu0 %2106
      %2109 = vset.pattern.permute.xlu0 3
      %2110 = vperm.xlu0 %2109, %v734
      %v2111 = vpop.permute.xlu0 %2110
      %2113 = vset.pattern.permute.xlu0 3
      %2114 = vperm.xlu0 %2113, %v739
      %v2115 = vpop.permute.xlu0 %2114
      %2117 = vset.pattern.permute.xlu0 3
      %2118 = vperm.xlu0 %2117, %v742
      %v2119 = vpop.permute.xlu0 %2118
      %2121 = vset.pattern.permute.xlu0 3
      %2122 = vperm.xlu0 %2121, %v747
      %v2123 = vpop.permute.xlu0 %2122
      %2125 = vset.pattern.permute.xlu0 3
      %2126 = vperm.xlu0 %2125, %v750
      %v2127 = vpop.permute.xlu0 %2126
      %2129 = vset.pattern.permute.xlu0 3
      %2130 = vperm.xlu0 %2129, %v755
      %v2131 = vpop.permute.xlu0 %2130
      %2133 = vset.pattern.permute.xlu0 3
      %2134 = vperm.xlu0 %2133, %v758
      %v2135 = vpop.permute.xlu0 %2134
      %2137 = vset.pattern.permute.xlu0 3
      %2138 = vperm.xlu0 %2137, %v763
      %v2139 = vpop.permute.xlu0 %2138
      %2141 = vset.pattern.permute.xlu0 3
      %2142 = vperm.xlu0 %2141, %v766
      %v2143 = vpop.permute.xlu0 %2142
      %2145 = vset.pattern.permute.xlu0 3
      %2146 = vperm.xlu0 %2145, %v771
      %v2147 = vpop.permute.xlu0 %2146
      %2149 = vset.pattern.permute.xlu0 3
      %2150 = vperm.xlu0 %2149, %v774
      %v2151 = vpop.permute.xlu0 %2150
      %2153 = vset.pattern.permute.xlu0 3
      %2154 = vperm.xlu0 %2153, %v779
      %v2155 = vpop.permute.xlu0 %2154
      %2157 = vset.pattern.permute.xlu0 3
      %2158 = vperm.xlu0 %2157, %v782
      %v2159 = vpop.permute.xlu0 %2158
      %2161 = vset.pattern.permute.xlu0 3
      %2162 = vperm.xlu0 %2161, %v787
      %v2163 = vpop.permute.xlu0 %2162
      %2165 = vset.pattern.permute.xlu0 3
      %2166 = vperm.xlu0 %2165, %v790
      %v2167 = vpop.permute.xlu0 %2166
      %v2169 = vsel %vm969, %v2107, 0.0
      %v2170 = vsel %vm970, %v2111, 0.0
      %v2171 = vsel %vm971, %v2115, 0.0
      %v2172 = vsel %vm972, %v2119, 0.0
      %v2173 = vsel %vm973, %v2123, 0.0
      %v2174 = vsel %vm974, %v2127, 0.0
      %v2175 = vsel %vm975, %v2131, 0.0
      %v2176 = vsel %vm976, %v2135, 0.0
      %v2177 = vsel %vm977, %v2139, 0.0
      %v2178 = vsel %vm978, %v2143, 0.0
      %v2179 = vsel %vm979, %v2147, 0.0
      %v2180 = vsel %vm980, %v2151, 0.0
      %v2181 = vsel %vm981, %v2155, 0.0
      %v2182 = vsel %vm982, %v2159, 0.0
      %v2183 = vsel %vm983, %v2163, 0.0
      %v2184 = vsel %vm984, %v2167, 0.0
      %v2185 = vadd.f32 %v2089, %v2169
      %v2186 = vadd.f32 %v2090, %v2170
      %v2187 = vadd.f32 %v2091, %v2171
      %v2188 = vadd.f32 %v2092, %v2172
      %v2189 = vadd.f32 %v2093, %v2173
      %v2190 = vadd.f32 %v2094, %v2174
      %v2191 = vadd.f32 %v2095, %v2175
      %v2192 = vadd.f32 %v2096, %v2176
      %v2193 = vadd.f32 %v2097, %v2177
      %v2194 = vadd.f32 %v2098, %v2178
      %v2195 = vadd.f32 %v2099, %v2179
      %v2196 = vadd.f32 %v2100, %v2180
      %v2197 = vadd.f32 %v2101, %v2181
      %v2198 = vadd.f32 %v2102, %v2182
      %v2199 = vadd.f32 %v2103, %v2183
      %v2200 = vadd.f32 %v2104, %v2184
      %2201 = vset.pattern.permute.xlu0 4
      %2202 = vperm.xlu0 %2201, %v731
      %v2203 = vpop.permute.xlu0 %2202
      %2205 = vset.pattern.permute.xlu0 4
      %2206 = vperm.xlu0 %2205, %v734
      %v2207 = vpop.permute.xlu0 %2206
      %2209 = vset.pattern.permute.xlu0 4
      %2210 = vperm.xlu0 %2209, %v739
      %v2211 = vpop.permute.xlu0 %2210
      %2213 = vset.pattern.permute.xlu0 4
      %2214 = vperm.xlu0 %2213, %v742
      %v2215 = vpop.permute.xlu0 %2214
      %2217 = vset.pattern.permute.xlu0 4
      %2218 = vperm.xlu0 %2217, %v747
      %v2219 = vpop.permute.xlu0 %2218
      %2221 = vset.pattern.permute.xlu0 4
      %2222 = vperm.xlu0 %2221, %v750
      %v2223 = vpop.permute.xlu0 %2222
      %2225 = vset.pattern.permute.xlu0 4
      %2226 = vperm.xlu0 %2225, %v755
      %v2227 = vpop.permute.xlu0 %2226
      %2229 = vset.pattern.permute.xlu0 4
      %2230 = vperm.xlu0 %2229, %v758
      %v2231 = vpop.permute.xlu0 %2230
      %2233 = vset.pattern.permute.xlu0 4
      %2234 = vperm.xlu0 %2233, %v763
      %v2235 = vpop.permute.xlu0 %2234
      %2237 = vset.pattern.permute.xlu0 4
      %2238 = vperm.xlu0 %2237, %v766
      %v2239 = vpop.permute.xlu0 %2238
      %2241 = vset.pattern.permute.xlu0 4
      %2242 = vperm.xlu0 %2241, %v771
      %v2243 = vpop.permute.xlu0 %2242
      %2245 = vset.pattern.permute.xlu0 4
      %2246 = vperm.xlu0 %2245, %v774
      %v2247 = vpop.permute.xlu0 %2246
      %2249 = vset.pattern.permute.xlu0 4
      %2250 = vperm.xlu0 %2249, %v779
      %v2251 = vpop.permute.xlu0 %2250
      %2253 = vset.pattern.permute.xlu0 4
      %2254 = vperm.xlu0 %2253, %v782
      %v2255 = vpop.permute.xlu0 %2254
      %2257 = vset.pattern.permute.xlu0 4
      %2258 = vperm.xlu0 %2257, %v787
      %v2259 = vpop.permute.xlu0 %2258
      %2261 = vset.pattern.permute.xlu0 4
      %2262 = vperm.xlu0 %2261, %v790
      %v2263 = vpop.permute.xlu0 %2262
      %v2265 = vsel %vm985, %v2203, 0.0
      %v2266 = vsel %vm986, %v2207, 0.0
      %v2267 = vsel %vm987, %v2211, 0.0
      %v2268 = vsel %vm988, %v2215, 0.0
      %v2269 = vsel %vm989, %v2219, 0.0
      %v2270 = vsel %vm990, %v2223, 0.0
      %v2271 = vsel %vm991, %v2227, 0.0
      %v2272 = vsel %vm992, %v2231, 0.0
      %v2273 = vsel %vm993, %v2235, 0.0
      %v2274 = vsel %vm994, %v2239, 0.0
      %v2275 = vsel %vm995, %v2243, 0.0
      %v2276 = vsel %vm996, %v2247, 0.0
      %v2277 = vsel %vm997, %v2251, 0.0
      %v2278 = vsel %vm998, %v2255, 0.0
      %v2279 = vsel %vm999, %v2259, 0.0
      %v2280 = vsel %vm1000, %v2263, 0.0
      %v2281 = vadd.f32 %v2185, %v2265
      %v2282 = vadd.f32 %v2186, %v2266
      %v2283 = vadd.f32 %v2187, %v2267
      %v2284 = vadd.f32 %v2188, %v2268
      %v2285 = vadd.f32 %v2189, %v2269
      %v2286 = vadd.f32 %v2190, %v2270
      %v2287 = vadd.f32 %v2191, %v2271
      %v2288 = vadd.f32 %v2192, %v2272
      %v2289 = vadd.f32 %v2193, %v2273
      %v2290 = vadd.f32 %v2194, %v2274
      %v2291 = vadd.f32 %v2195, %v2275
      %v2292 = vadd.f32 %v2196, %v2276
      %v2293 = vadd.f32 %v2197, %v2277
      %v2294 = vadd.f32 %v2198, %v2278
      %v2295 = vadd.f32 %v2199, %v2279
      %v2296 = vadd.f32 %v2200, %v2280
      %2297 = vset.pattern.permute.xlu0 5
      %2298 = vperm.xlu0 %2297, %v731
      %v2299 = vpop.permute.xlu0 %2298
      %2301 = vset.pattern.permute.xlu0 5
      %2302 = vperm.xlu0 %2301, %v734
      %v2303 = vpop.permute.xlu0 %2302
      %2305 = vset.pattern.permute.xlu0 5
      %2306 = vperm.xlu0 %2305, %v739
      %v2307 = vpop.permute.xlu0 %2306
      %2309 = vset.pattern.permute.xlu0 5
      %2310 = vperm.xlu0 %2309, %v742
      %v2311 = vpop.permute.xlu0 %2310
      %2313 = vset.pattern.permute.xlu0 5
      %2314 = vperm.xlu0 %2313, %v747
      %v2315 = vpop.permute.xlu0 %2314
      %2317 = vset.pattern.permute.xlu0 5
      %2318 = vperm.xlu0 %2317, %v750
      %v2319 = vpop.permute.xlu0 %2318
      %2321 = vset.pattern.permute.xlu0 5
      %2322 = vperm.xlu0 %2321, %v755
      %v2323 = vpop.permute.xlu0 %2322
      %2325 = vset.pattern.permute.xlu0 5
      %2326 = vperm.xlu0 %2325, %v758
      %v2327 = vpop.permute.xlu0 %2326
      %2329 = vset.pattern.permute.xlu0 5
      %2330 = vperm.xlu0 %2329, %v763
      %v2331 = vpop.permute.xlu0 %2330
      %2333 = vset.pattern.permute.xlu0 5
      %2334 = vperm.xlu0 %2333, %v766
      %v2335 = vpop.permute.xlu0 %2334
      %2337 = vset.pattern.permute.xlu0 5
      %2338 = vperm.xlu0 %2337, %v771
      %v2339 = vpop.permute.xlu0 %2338
      %2341 = vset.pattern.permute.xlu0 5
      %2342 = vperm.xlu0 %2341, %v774
      %v2343 = vpop.permute.xlu0 %2342
      %2345 = vset.pattern.permute.xlu0 5
      %2346 = vperm.xlu0 %2345, %v779
      %v2347 = vpop.permute.xlu0 %2346
      %2349 = vset.pattern.permute.xlu0 5
      %2350 = vperm.xlu0 %2349, %v782
      %v2351 = vpop.permute.xlu0 %2350
      %2353 = vset.pattern.permute.xlu0 5
      %2354 = vperm.xlu0 %2353, %v787
      %v2355 = vpop.permute.xlu0 %2354
      %2357 = vset.pattern.permute.xlu0 5
      %2358 = vperm.xlu0 %2357, %v790
      %v2359 = vpop.permute.xlu0 %2358
      %v2361 = vsel %vm1001, %v2299, 0.0
      %v2362 = vsel %vm1002, %v2303, 0.0
      %v2363 = vsel %vm1003, %v2307, 0.0
      %v2364 = vsel %vm1004, %v2311, 0.0
      %v2365 = vsel %vm1005, %v2315, 0.0
      %v2366 = vsel %vm1006, %v2319, 0.0
      %v2367 = vsel %vm1007, %v2323, 0.0
      %v2368 = vsel %vm1008, %v2327, 0.0
      %v2369 = vsel %vm1009, %v2331, 0.0
      %v2370 = vsel %vm1010, %v2335, 0.0
      %v2371 = vsel %vm1011, %v2339, 0.0
      %v2372 = vsel %vm1012, %v2343, 0.0
      %v2373 = vsel %vm1013, %v2347, 0.0
      %v2374 = vsel %vm1014, %v2351, 0.0
      %v2375 = vsel %vm1015, %v2355, 0.0
      %v2376 = vsel %vm1016, %v2359, 0.0
      %v2377 = vadd.f32 %v2281, %v2361
      %v2378 = vadd.f32 %v2282, %v2362
      %v2379 = vadd.f32 %v2283, %v2363
      %v2380 = vadd.f32 %v2284, %v2364
      %v2381 = vadd.f32 %v2285, %v2365
      %v2382 = vadd.f32 %v2286, %v2366
      %v2383 = vadd.f32 %v2287, %v2367
      %v2384 = vadd.f32 %v2288, %v2368
      %v2385 = vadd.f32 %v2289, %v2369
      %v2386 = vadd.f32 %v2290, %v2370
      %v2387 = vadd.f32 %v2291, %v2371
      %v2388 = vadd.f32 %v2292, %v2372
      %v2389 = vadd.f32 %v2293, %v2373
      %v2390 = vadd.f32 %v2294, %v2374
      %v2391 = vadd.f32 %v2295, %v2375
      %v2392 = vadd.f32 %v2296, %v2376
      %2393 = vset.pattern.permute.xlu0 6
      %2394 = vperm.xlu0 %2393, %v731
      %v2395 = vpop.permute.xlu0 %2394
      %2397 = vset.pattern.permute.xlu0 6
      %2398 = vperm.xlu0 %2397, %v734
      %v2399 = vpop.permute.xlu0 %2398
      %2401 = vset.pattern.permute.xlu0 6
      %2402 = vperm.xlu0 %2401, %v739
      %v2403 = vpop.permute.xlu0 %2402
      %2405 = vset.pattern.permute.xlu0 6
      %2406 = vperm.xlu0 %2405, %v742
      %v2407 = vpop.permute.xlu0 %2406
      %2409 = vset.pattern.permute.xlu0 6
      %2410 = vperm.xlu0 %2409, %v747
      %v2411 = vpop.permute.xlu0 %2410
      %2413 = vset.pattern.permute.xlu0 6
      %2414 = vperm.xlu0 %2413, %v750
      %v2415 = vpop.permute.xlu0 %2414
      %2417 = vset.pattern.permute.xlu0 6
      %2418 = vperm.xlu0 %2417, %v755
      %v2419 = vpop.permute.xlu0 %2418
      %2421 = vset.pattern.permute.xlu0 6
      %2422 = vperm.xlu0 %2421, %v758
      %v2423 = vpop.permute.xlu0 %2422
      %2425 = vset.pattern.permute.xlu0 6
      %2426 = vperm.xlu0 %2425, %v763
      %v2427 = vpop.permute.xlu0 %2426
      %2429 = vset.pattern.permute.xlu0 6
      %2430 = vperm.xlu0 %2429, %v766
      %v2431 = vpop.permute.xlu0 %2430
      %2433 = vset.pattern.permute.xlu0 6
      %2434 = vperm.xlu0 %2433, %v771
      %v2435 = vpop.permute.xlu0 %2434
      %2437 = vset.pattern.permute.xlu0 6
      %2438 = vperm.xlu0 %2437, %v774
      %v2439 = vpop.permute.xlu0 %2438
      %2441 = vset.pattern.permute.xlu0 6
      %2442 = vperm.xlu0 %2441, %v779
      %v2443 = vpop.permute.xlu0 %2442
      %2445 = vset.pattern.permute.xlu0 6
      %2446 = vperm.xlu0 %2445, %v782
      %v2447 = vpop.permute.xlu0 %2446
      %2449 = vset.pattern.permute.xlu0 6
      %2450 = vperm.xlu0 %2449, %v787
      %v2451 = vpop.permute.xlu0 %2450
      %2453 = vset.pattern.permute.xlu0 6
      %2454 = vperm.xlu0 %2453, %v790
      %v2455 = vpop.permute.xlu0 %2454
      %v2457 = vsel %vm1017, %v2395, 0.0
      %v2458 = vsel %vm1018, %v2399, 0.0
      %v2459 = vsel %vm1019, %v2403, 0.0
      %v2460 = vsel %vm1020, %v2407, 0.0
      %v2461 = vsel %vm1021, %v2411, 0.0
      %v2462 = vsel %vm1022, %v2415, 0.0
      %v2463 = vsel %vm1023, %v2419, 0.0
      %v2464 = vsel %vm1024, %v2423, 0.0
      %v2465 = vsel %vm1025, %v2427, 0.0
      %v2466 = vsel %vm1026, %v2431, 0.0
      %v2467 = vsel %vm1027, %v2435, 0.0
      %v2468 = vsel %vm1028, %v2439, 0.0
      %v2469 = vsel %vm1029, %v2443, 0.0
      %v2470 = vsel %vm1030, %v2447, 0.0
      %v2471 = vsel %vm1031, %v2451, 0.0
      %v2472 = vsel %vm1032, %v2455, 0.0
      %v2473 = vadd.f32 %v2377, %v2457
      %v2474 = vadd.f32 %v2378, %v2458
      %v2475 = vadd.f32 %v2379, %v2459
      %v2476 = vadd.f32 %v2380, %v2460
      %v2477 = vadd.f32 %v2381, %v2461
      %v2478 = vadd.f32 %v2382, %v2462
      %v2479 = vadd.f32 %v2383, %v2463
      %v2480 = vadd.f32 %v2384, %v2464
      %v2481 = vadd.f32 %v2385, %v2465
      %v2482 = vadd.f32 %v2386, %v2466
      %v2483 = vadd.f32 %v2387, %v2467
      %v2484 = vadd.f32 %v2388, %v2468
      %v2485 = vadd.f32 %v2389, %v2469
      %v2486 = vadd.f32 %v2390, %v2470
      %v2487 = vadd.f32 %v2391, %v2471
      %v2488 = vadd.f32 %v2392, %v2472
      %2489 = vset.pattern.permute.xlu0 7
      %2490 = vperm.xlu0 %2489, %v731
      %v2491 = vpop.permute.xlu0 %2490
      %2493 = vset.pattern.permute.xlu0 7
      %2494 = vperm.xlu0 %2493, %v734
      %v2495 = vpop.permute.xlu0 %2494
      %2497 = vset.pattern.permute.xlu0 7
      %2498 = vperm.xlu0 %2497, %v739
      %v2499 = vpop.permute.xlu0 %2498
      %2501 = vset.pattern.permute.xlu0 7
      %2502 = vperm.xlu0 %2501, %v742
      %v2503 = vpop.permute.xlu0 %2502
      %2505 = vset.pattern.permute.xlu0 7
      %2506 = vperm.xlu0 %2505, %v747
      %v2507 = vpop.permute.xlu0 %2506
      %2509 = vset.pattern.permute.xlu0 7
      %2510 = vperm.xlu0 %2509, %v750
      %v2511 = vpop.permute.xlu0 %2510
      %2513 = vset.pattern.permute.xlu0 7
      %2514 = vperm.xlu0 %2513, %v755
      %v2515 = vpop.permute.xlu0 %2514
      %2517 = vset.pattern.permute.xlu0 7
      %2518 = vperm.xlu0 %2517, %v758
      %v2519 = vpop.permute.xlu0 %2518
      %2521 = vset.pattern.permute.xlu0 7
      %2522 = vperm.xlu0 %2521, %v763
      %v2523 = vpop.permute.xlu0 %2522
      %2525 = vset.pattern.permute.xlu0 7
      %2526 = vperm.xlu0 %2525, %v766
      %v2527 = vpop.permute.xlu0 %2526
      %2529 = vset.pattern.permute.xlu0 7
      %2530 = vperm.xlu0 %2529, %v771
      %v2531 = vpop.permute.xlu0 %2530
      %2533 = vset.pattern.permute.xlu0 7
      %2534 = vperm.xlu0 %2533, %v774
      %v2535 = vpop.permute.xlu0 %2534
      %2537 = vset.pattern.permute.xlu0 7
      %2538 = vperm.xlu0 %2537, %v779
      %v2539 = vpop.permute.xlu0 %2538
      %2541 = vset.pattern.permute.xlu0 7
      %2542 = vperm.xlu0 %2541, %v782
      %v2543 = vpop.permute.xlu0 %2542
      %2545 = vset.pattern.permute.xlu0 7
      %2546 = vperm.xlu0 %2545, %v787
      %v2547 = vpop.permute.xlu0 %2546
      %2549 = vset.pattern.permute.xlu0 7
      %2550 = vperm.xlu0 %2549, %v790
      %v2551 = vpop.permute.xlu0 %2550
      %v2553 = vsel %vm1033, %v2491, 0.0
      %v2554 = vsel %vm1034, %v2495, 0.0
      %v2555 = vsel %vm1035, %v2499, 0.0
      %v2556 = vsel %vm1036, %v2503, 0.0
      %v2557 = vsel %vm1037, %v2507, 0.0
      %v2558 = vsel %vm1038, %v2511, 0.0
      %v2559 = vsel %vm1039, %v2515, 0.0
      %v2560 = vsel %vm1040, %v2519, 0.0
      %v2561 = vsel %vm1041, %v2523, 0.0
      %v2562 = vsel %vm1042, %v2527, 0.0
      %v2563 = vsel %vm1043, %v2531, 0.0
      %v2564 = vsel %vm1044, %v2535, 0.0
      %v2565 = vsel %vm1045, %v2539, 0.0
      %v2566 = vsel %vm1046, %v2543, 0.0
      %v2567 = vsel %vm1047, %v2547, 0.0
      %v2568 = vsel %vm1048, %v2551, 0.0
      %v2569 = vadd.f32 %v2473, %v2553
      %v2570 = vadd.f32 %v2474, %v2554
      %v2571 = vadd.f32 %v2475, %v2555
      %v2572 = vadd.f32 %v2476, %v2556
      %v2573 = vadd.f32 %v2477, %v2557
      %v2574 = vadd.f32 %v2478, %v2558
      %v2575 = vadd.f32 %v2479, %v2559
      %v2576 = vadd.f32 %v2480, %v2560
      %v2577 = vadd.f32 %v2481, %v2561
      %v2578 = vadd.f32 %v2482, %v2562
      %v2579 = vadd.f32 %v2483, %v2563
      %v2580 = vadd.f32 %v2484, %v2564
      %v2581 = vadd.f32 %v2485, %v2565
      %v2582 = vadd.f32 %v2486, %v2566
      %v2583 = vadd.f32 %v2487, %v2567
      %v2584 = vadd.f32 %v2488, %v2568
      %vm2585 = vcmask 64512
      %v2587 = vsel %vm2585, %v2569, 0
      %v2590 = vsel %vm2585, %v2570, 0
      %v2593 = vsel %vm2585, %v2571, 0
      %v2596 = vsel %vm2585, %v2572, 0
      %v2599 = vsel %vm2585, %v2573, 0
      %v2602 = vsel %vm2585, %v2574, 0
      %v2605 = vsel %vm2585, %v2575, 0
      %v2608 = vsel %vm2585, %v2576, 0
      %v2611 = vsel %vm2585, %v2577, 0
      %v2614 = vsel %vm2585, %v2578, 0
      %v2617 = vsel %vm2585, %v2579, 0
      %v2620 = vsel %vm2585, %v2580, 0
      %v2623 = vsel %vm2585, %v2581, 0
      %v2626 = vsel %vm2585, %v2582, 0
      %v2629 = vsel %vm2585, %v2583, 0
      %v2632 = vsel %vm2585, %v2584, 0
      %2634 = vmatprep.subr.mxu0 0.0
      %2635 = vmatpush1.msra.mxu0 0.0
      %2636 = vmatprep.subr.mxu0 0.0
      %2637 = vmatpush1.msra.mxu0 0.0
      %2638 = vmatprep.subr.mxu0 0.0
      %2639 = vmatpush1.msra.mxu0 0.0
      %2640 = vmatprep.subr.mxu0 0.0
      %2641 = vmatpush1.msra.mxu0 0.0
      %2642 = vmatprep.subr.mxu0 0.0
      %2643 = vmatpush1.msra.mxu0 0.0
      %2644 = vmatprep.subr.mxu0 0.0
      %2645 = vmatpush1.msra.mxu0 0.0
      %2646 = vmatprep.subr.mxu0 0.0
      %2647 = vmatpush1.msra.mxu0 0.0
      %2648 = vmatprep.subr.mxu0 0.0
      %2649 = vmatpush1.msra.mxu0 0.0
      %2650 = vmatprep.subr.mxu0 0.0
      %2651 = vmatpush1.msra.mxu0 0.0
      %2652 = vmatprep.subr.mxu0 0.0
      %2653 = vmatpush1.msra.mxu0 0.0
      %2654 = vmatprep.subr.mxu0 0.0
      %2655 = vmatpush1.msra.mxu0 0.0
      %2656 = vmatprep.subr.mxu0 0.0
      %2657 = vmatpush1.msra.mxu0 0.0
      %2658 = vmatprep.subr.mxu0 0.0
      %2659 = vmatpush1.msra.mxu0 0.0
      %2660 = vmatprep.subr.mxu0 0.0
      %2661 = vmatpush1.msra.mxu0 0.0
      %2662 = vmatprep.subr.mxu0 0.0
      %2663 = vmatpush1.msra.mxu0 0.0
      %2664 = vmatprep.subr.mxu0 0.0
      %2665 = vmatpush1.msra.mxu0 %v368
      %2666 = vmatprep.subr.mxu0 0.0
      %2667 = vmatpush2.msra.mxu0 0.0
      %2668 = vmatprep.subr.mxu0 0.0
      %2669 = vmatpush2.msra.mxu0 0.0
      %2670 = vmatprep.subr.mxu0 0.0
      %2671 = vmatpush2.msra.mxu0 0.0
      %2672 = vmatprep.subr.mxu0 0.0
      %2673 = vmatpush2.msra.mxu0 0.0
      %2674 = vmatprep.subr.mxu0 0.0
      %2675 = vmatpush2.msra.mxu0 0.0
      %2676 = vmatprep.subr.mxu0 0.0
      %2677 = vmatpush2.msra.mxu0 0.0
      %2678 = vmatprep.subr.mxu0 0.0
      %2679 = vmatpush2.msra.mxu0 0.0
      %2680 = vmatprep.subr.mxu0 0.0
      %2681 = vmatpush2.msra.mxu0 0.0
      %2682 = vmatprep.subr.mxu0 0.0
      %2683 = vmatpush2.msra.mxu0 0.0
      %2684 = vmatprep.subr.mxu0 0.0
      %2685 = vmatpush2.msra.mxu0 0.0
      %2686 = vmatprep.subr.mxu0 0.0
      %2687 = vmatpush2.msra.mxu0 0.0
      %2688 = vmatprep.subr.mxu0 0.0
      %2689 = vmatpush2.msra.mxu0 0.0
      %2690 = vmatprep.subr.mxu0 0.0
      %2691 = vmatpush2.msra.mxu0 0.0
      %2692 = vmatprep.subr.mxu0 0.0
      %2693 = vmatpush2.msra.mxu0 0.0
      %2694 = vmatprep.subr.mxu0 0.0
      %2695 = vmatpush2.msra.mxu0 0.0
      %2696 = vmatprep.subr.mxu0 0.0
      %2697 = vmatpush2.msra.mxu0 0.0
      %2698 = vmatprep.mubr.f32.mxu0 0.0
      %2699 = vmatmul.mubr.f32.gmra.mxu0 %v2587
      %v2700 = vpop.f32.mrf.mxu0
      %v2701 = vadd.f32 0.0, %v2700
      %v2702 = vpop.f32.mrf.mxu0
      %2703 = vmatprep.mubr.f32.mxu0 0.0
      %2704 = vmatmul.mubr.f32.gmra.mxu0 %v2590
      %v2705 = vpop.f32.mrf.mxu0
      %v2706 = vadd.f32 0.0, %v2705
      %v2707 = vpop.f32.mrf.mxu0
      %2708 = vmatprep.mubr.f32.mxu0 0.0
      %2709 = vmatmul.mubr.f32.gmra.mxu0 %v2593
      %v2710 = vpop.f32.mrf.mxu0
      %v2711 = vadd.f32 0.0, %v2710
      %v2712 = vpop.f32.mrf.mxu0
      %2713 = vmatprep.mubr.f32.mxu0 0.0
      %2714 = vmatmul.mubr.f32.gmra.mxu0 %v2596
      %v2715 = vpop.f32.mrf.mxu0
      %v2716 = vadd.f32 0.0, %v2715
      %v2717 = vpop.f32.mrf.mxu0
      %2718 = vmatprep.mubr.f32.mxu0 0.0
      %2719 = vmatmul.mubr.f32.gmra.mxu0 %v2599
      %v2720 = vpop.f32.mrf.mxu0
      %v2721 = vadd.f32 0.0, %v2720
      %v2722 = vpop.f32.mrf.mxu0
      %2723 = vmatprep.mubr.f32.mxu0 0.0
      %2724 = vmatmul.mubr.f32.gmra.mxu0 %v2602
      %v2725 = vpop.f32.mrf.mxu0
      %v2726 = vadd.f32 0.0, %v2725
      %v2727 = vpop.f32.mrf.mxu0
      %2728 = vmatprep.mubr.f32.mxu0 0.0
      %2729 = vmatmul.mubr.f32.gmra.mxu0 %v2605
      %v2730 = vpop.f32.mrf.mxu0
      %v2731 = vadd.f32 0.0, %v2730
      %v2732 = vpop.f32.mrf.mxu0
      %2733 = vmatprep.mubr.f32.mxu0 0.0
      %2734 = vmatmul.mubr.f32.gmra.mxu0 %v2608
      %v2735 = vpop.f32.mrf.mxu0
      %v2736 = vadd.f32 0.0, %v2735
      %v2737 = vpop.f32.mrf.mxu0
      %2738 = vmatprep.mubr.f32.mxu0 0.0
      %2739 = vmatmul.mubr.f32.gmra.mxu0 %v2611
      %v2740 = vpop.f32.mrf.mxu0
      %v2741 = vadd.f32 0.0, %v2740
      %v2742 = vpop.f32.mrf.mxu0
      %2743 = vmatprep.mubr.f32.mxu0 0.0
      %2744 = vmatmul.mubr.f32.gmra.mxu0 %v2614
      %v2745 = vpop.f32.mrf.mxu0
      %v2746 = vadd.f32 0.0, %v2745
      %v2747 = vpop.f32.mrf.mxu0
      %2748 = vmatprep.mubr.f32.mxu0 0.0
      %2749 = vmatmul.mubr.f32.gmra.mxu0 %v2617
      %v2750 = vpop.f32.mrf.mxu0
      %v2751 = vadd.f32 0.0, %v2750
      %v2752 = vpop.f32.mrf.mxu0
      %2753 = vmatprep.mubr.f32.mxu0 0.0
      %2754 = vmatmul.mubr.f32.gmra.mxu0 %v2620
      %v2755 = vpop.f32.mrf.mxu0
      %v2756 = vadd.f32 0.0, %v2755
      %v2757 = vpop.f32.mrf.mxu0
      %2758 = vmatprep.mubr.f32.mxu0 0.0
      %2759 = vmatmul.mubr.f32.gmra.mxu0 %v2623
      %v2760 = vpop.f32.mrf.mxu0
      %v2761 = vadd.f32 0.0, %v2760
      %v2762 = vpop.f32.mrf.mxu0
      %2763 = vmatprep.mubr.f32.mxu0 0.0
      %2764 = vmatmul.mubr.f32.gmra.mxu0 %v2626
      %v2765 = vpop.f32.mrf.mxu0
      %v2766 = vadd.f32 0.0, %v2765
      %v2767 = vpop.f32.mrf.mxu0
      %2768 = vmatprep.mubr.f32.mxu0 0.0
      %2769 = vmatmul.mubr.f32.gmra.mxu0 %v2629
      %v2770 = vpop.f32.mrf.mxu0
      %v2771 = vadd.f32 0.0, %v2770
      %v2772 = vpop.f32.mrf.mxu0
      %2773 = vmatprep.mubr.f32.mxu0 0.0
      %2774 = vmatmul.mubr.f32.gmra.mxu0 %v2632
      %v2775 = vpop.f32.mrf.mxu0
      %v2776 = vadd.f32 0.0, %v2775
      %v2777 = vpop.f32.mrf.mxu0
      %2778 = vdwg.mxu0
      %v2780 = vsel %vm2585, %v1801, 0
      %v2783 = vsel %vm2585, %v1802, 0
      %v2786 = vsel %vm2585, %v1803, 0
      %v2789 = vsel %vm2585, %v1804, 0
      %v2792 = vsel %vm2585, %v1805, 0
      %v2795 = vsel %vm2585, %v1806, 0
      %v2798 = vsel %vm2585, %v1807, 0
      %v2801 = vsel %vm2585, %v1808, 0
      %v2804 = vsel %vm2585, %v1809, 0
      %v2807 = vsel %vm2585, %v1810, 0
      %v2810 = vsel %vm2585, %v1811, 0
      %v2813 = vsel %vm2585, %v1812, 0
      %v2816 = vsel %vm2585, %v1813, 0
      %v2819 = vsel %vm2585, %v1814, 0
      %v2822 = vsel %vm2585, %v1815, 0
      %v2825 = vsel %vm2585, %v1816, 0
      %2827 = vmatprep.subr.mxu0 0.0
      %2828 = vmatpush1.msra.mxu0 0.0
      %2829 = vmatprep.subr.mxu0 0.0
      %2830 = vmatpush1.msra.mxu0 0.0
      %2831 = vmatprep.subr.mxu0 0.0
      %2832 = vmatpush1.msra.mxu0 0.0
      %2833 = vmatprep.subr.mxu0 0.0
      %2834 = vmatpush1.msra.mxu0 0.0
      %2835 = vmatprep.subr.mxu0 0.0
      %2836 = vmatpush1.msra.mxu0 0.0
      %2837 = vmatprep.subr.mxu0 0.0
      %2838 = vmatpush1.msra.mxu0 0.0
      %2839 = vmatprep.subr.mxu0 0.0
      %2840 = vmatpush1.msra.mxu0 0.0
      %2841 = vmatprep.subr.mxu0 0.0
      %2842 = vmatpush1.msra.mxu0 0.0
      %2843 = vmatprep.subr.mxu0 0.0
      %2844 = vmatpush1.msra.mxu0 0.0
      %2845 = vmatprep.subr.mxu0 0.0
      %2846 = vmatpush1.msra.mxu0 0.0
      %2847 = vmatprep.subr.mxu0 0.0
      %2848 = vmatpush1.msra.mxu0 0.0
      %2849 = vmatprep.subr.mxu0 0.0
      %2850 = vmatpush1.msra.mxu0 0.0
      %2851 = vmatprep.subr.mxu0 0.0
      %2852 = vmatpush1.msra.mxu0 0.0
      %2853 = vmatprep.subr.mxu0 0.0
      %2854 = vmatpush1.msra.mxu0 0.0
      %2855 = vmatprep.subr.mxu0 0.0
      %2856 = vmatpush1.msra.mxu0 0.0
      %2857 = vmatprep.subr.mxu0 0.0
      %2858 = vmatpush1.msra.mxu0 %v367
      %2859 = vmatprep.subr.mxu0 0.0
      %2860 = vmatpush2.msra.mxu0 0.0
      %2861 = vmatprep.subr.mxu0 0.0
      %2862 = vmatpush2.msra.mxu0 0.0
      %2863 = vmatprep.subr.mxu0 0.0
      %2864 = vmatpush2.msra.mxu0 0.0
      %2865 = vmatprep.subr.mxu0 0.0
      %2866 = vmatpush2.msra.mxu0 0.0
      %2867 = vmatprep.subr.mxu0 0.0
      %2868 = vmatpush2.msra.mxu0 0.0
      %2869 = vmatprep.subr.mxu0 0.0
      %2870 = vmatpush2.msra.mxu0 0.0
      %2871 = vmatprep.subr.mxu0 0.0
      %2872 = vmatpush2.msra.mxu0 0.0
      %2873 = vmatprep.subr.mxu0 0.0
      %2874 = vmatpush2.msra.mxu0 0.0
      %2875 = vmatprep.subr.mxu0 0.0
      %2876 = vmatpush2.msra.mxu0 0.0
      %2877 = vmatprep.subr.mxu0 0.0
      %2878 = vmatpush2.msra.mxu0 0.0
      %2879 = vmatprep.subr.mxu0 0.0
      %2880 = vmatpush2.msra.mxu0 0.0
      %2881 = vmatprep.subr.mxu0 0.0
      %2882 = vmatpush2.msra.mxu0 0.0
      %2883 = vmatprep.subr.mxu0 0.0
      %2884 = vmatpush2.msra.mxu0 0.0
      %2885 = vmatprep.subr.mxu0 0.0
      %2886 = vmatpush2.msra.mxu0 0.0
      %2887 = vmatprep.subr.mxu0 0.0
      %2888 = vmatpush2.msra.mxu0 0.0
      %2889 = vmatprep.subr.mxu0 0.0
      %2890 = vmatpush2.msra.mxu0 0.0
      %2891 = vmatprep.mubr.f32.mxu0 0.0
      %2892 = vmatmul.mubr.f32.gmra.mxu0 %v2780
      %v2893 = vpop.f32.mrf.mxu0
      %v2894 = vadd.f32 %v2701, %v2893
      %v2895 = vpop.f32.mrf.mxu0
      %2896 = vmatprep.mubr.f32.mxu0 0.0
      %2897 = vmatmul.mubr.f32.gmra.mxu0 %v2783
      %v2898 = vpop.f32.mrf.mxu0
      %v2899 = vadd.f32 %v2706, %v2898
      %v2900 = vpop.f32.mrf.mxu0
      %2901 = vmatprep.mubr.f32.mxu0 0.0
      %2902 = vmatmul.mubr.f32.gmra.mxu0 %v2786
      %v2903 = vpop.f32.mrf.mxu0
      %v2904 = vadd.f32 %v2711, %v2903
      %v2905 = vpop.f32.mrf.mxu0
      %2906 = vmatprep.mubr.f32.mxu0 0.0
      %2907 = vmatmul.mubr.f32.gmra.mxu0 %v2789
      %v2908 = vpop.f32.mrf.mxu0
      %v2909 = vadd.f32 %v2716, %v2908
      %v2910 = vpop.f32.mrf.mxu0
      %2911 = vmatprep.mubr.f32.mxu0 0.0
      %2912 = vmatmul.mubr.f32.gmra.mxu0 %v2792
      %v2913 = vpop.f32.mrf.mxu0
      %v2914 = vadd.f32 %v2721, %v2913
      %v2915 = vpop.f32.mrf.mxu0
      %2916 = vmatprep.mubr.f32.mxu0 0.0
      %2917 = vmatmul.mubr.f32.gmra.mxu0 %v2795
      %v2918 = vpop.f32.mrf.mxu0
      %v2919 = vadd.f32 %v2726, %v2918
      %v2920 = vpop.f32.mrf.mxu0
      %2921 = vmatprep.mubr.f32.mxu0 0.0
      %2922 = vmatmul.mubr.f32.gmra.mxu0 %v2798
      %v2923 = vpop.f32.mrf.mxu0
      %v2924 = vadd.f32 %v2731, %v2923
      %v2925 = vpop.f32.mrf.mxu0
      %2926 = vmatprep.mubr.f32.mxu0 0.0
      %2927 = vmatmul.mubr.f32.gmra.mxu0 %v2801
      %v2928 = vpop.f32.mrf.mxu0
      %v2929 = vadd.f32 %v2736, %v2928
      %v2930 = vpop.f32.mrf.mxu0
      %2931 = vmatprep.mubr.f32.mxu0 0.0
      %2932 = vmatmul.mubr.f32.gmra.mxu0 %v2804
      %v2933 = vpop.f32.mrf.mxu0
      %v2934 = vadd.f32 %v2741, %v2933
      %v2935 = vpop.f32.mrf.mxu0
      %2936 = vmatprep.mubr.f32.mxu0 0.0
      %2937 = vmatmul.mubr.f32.gmra.mxu0 %v2807
      %v2938 = vpop.f32.mrf.mxu0
      %v2939 = vadd.f32 %v2746, %v2938
      %v2940 = vpop.f32.mrf.mxu0
      %2941 = vmatprep.mubr.f32.mxu0 0.0
      %2942 = vmatmul.mubr.f32.gmra.mxu0 %v2810
      %v2943 = vpop.f32.mrf.mxu0
      %v2944 = vadd.f32 %v2751, %v2943
      %v2945 = vpop.f32.mrf.mxu0
      %2946 = vmatprep.mubr.f32.mxu0 0.0
      %2947 = vmatmul.mubr.f32.gmra.mxu0 %v2813
      %v2948 = vpop.f32.mrf.mxu0
      %v2949 = vadd.f32 %v2756, %v2948
      %v2950 = vpop.f32.mrf.mxu0
      %2951 = vmatprep.mubr.f32.mxu0 0.0
      %2952 = vmatmul.mubr.f32.gmra.mxu0 %v2816
      %v2953 = vpop.f32.mrf.mxu0
      %v2954 = vadd.f32 %v2761, %v2953
      %v2955 = vpop.f32.mrf.mxu0
      %2956 = vmatprep.mubr.f32.mxu0 0.0
      %2957 = vmatmul.mubr.f32.gmra.mxu0 %v2819
      %v2958 = vpop.f32.mrf.mxu0
      %v2959 = vadd.f32 %v2766, %v2958
      %v2960 = vpop.f32.mrf.mxu0
      %2961 = vmatprep.mubr.f32.mxu0 0.0
      %2962 = vmatmul.mubr.f32.gmra.mxu0 %v2822
      %v2963 = vpop.f32.mrf.mxu0
      %v2964 = vadd.f32 %v2771, %v2963
      %v2965 = vpop.f32.mrf.mxu0
      %2966 = vmatprep.mubr.f32.mxu0 0.0
      %2967 = vmatmul.mubr.f32.gmra.mxu0 %v2825
      %v2968 = vpop.f32.mrf.mxu0
      %v2969 = vadd.f32 %v2776, %v2968
      %v2970 = vpop.f32.mrf.mxu0
      %2971 = vdwg.mxu0
      %2976 = vrot.lane.b32.xlu0 %v543, 96
      %v2977 = vpop.permute.xlu0 %2976
      %2978 = vrot.lane.b32.xlu0 %v544, 96
      %v2979 = vpop.permute.xlu0 %2978
      %2980 = vrot.lane.b32.xlu0 %v545, 96
      %v2981 = vpop.permute.xlu0 %2980
      %2982 = vrot.lane.b32.xlu0 %v546, 96
      %v2983 = vpop.permute.xlu0 %2982
      %v2984 = vsel %vm2585, %v543, 0
      %v2986 = vsel %vm2585, %v544, 0
      %v2988 = vsel %vm2585, %v545, 0
      %v2990 = vsel %vm2585, %v546, 0
      %v2993 = vsel %vm2585, %v2977, 0
      %v2996 = vsel %vm2585, %v2979, 0
      %v2999 = vsel %vm2585, %v2981, 0
      %v3002 = vsel %vm2585, %v2983, 0
      %3004 = vmatprep.subr.bf16.mxu0 0
      %3005 = vmatpush1.bf16.xpose.msra.mxu0 0
      %3006 = vmatprep.subr.bf16.mxu0 0
      %3007 = vmatpush1.bf16.xpose.msra.mxu0 0
      %3008 = vmatprep.subr.bf16.mxu0 0
      %3009 = vmatpush1.bf16.xpose.msra.mxu0 0
      %3010 = vmatprep.subr.bf16.mxu0 0
      %3011 = vmatpush1.bf16.xpose.msra.mxu0 0
      %3012 = vmatprep.subr.bf16.mxu0 0
      %3013 = vmatpush1.bf16.xpose.msra.mxu0 %v3002
      %3014 = vmatprep.subr.bf16.mxu0 0
      %3015 = vmatpush1.bf16.xpose.msra.mxu0 %v2999
      %3016 = vmatprep.subr.bf16.mxu0 0
      %3017 = vmatpush1.bf16.xpose.msra.mxu0 %v2996
      %3018 = vmatprep.subr.bf16.mxu0 0
      %3019 = vmatpush1.bf16.xpose.msra.mxu0 %v2993
      %3020 = vmatprep.subr.bf16.mxu0 0
      %3021 = vmatpush2.bf16.xpose.msra.mxu0 0
      %3022 = vmatprep.subr.bf16.mxu0 0
      %3023 = vmatpush2.bf16.xpose.msra.mxu0 0
      %3024 = vmatprep.subr.bf16.mxu0 0
      %3025 = vmatpush2.bf16.xpose.msra.mxu0 0
      %3026 = vmatprep.subr.bf16.mxu0 0
      %3027 = vmatpush2.bf16.xpose.msra.mxu0 0
      %3028 = vmatprep.subr.bf16.mxu0 0
      %3029 = vmatpush2.bf16.xpose.msra.mxu0 0
      %3030 = vmatprep.subr.bf16.mxu0 0
      %3031 = vmatpush2.bf16.xpose.msra.mxu0 0
      %3032 = vmatprep.subr.bf16.mxu0 0
      %3033 = vmatpush2.bf16.xpose.msra.mxu0 0
      %3034 = vmatprep.subr.bf16.mxu0 0
      %3035 = vmatpush2.bf16.xpose.msra.mxu0 0
      %3036 = vmatprep.mubr.bf16.mxu0 0
      %3037 = vmatmul.mubr.bf16.gmra.mxu0 %v2984
      %v3038 = vpop.f32.mrf.mxu0
      %v3039 = vadd.f32 %v2894, %v3038
      %v3040 = vpop.f32.mrf.mxu0
      %v3041 = vpop.f32.mrf.mxu0
      %v3042 = vadd.f32 %v2899, %v3041
      %v3043 = vpop.f32.mrf.mxu0
      %3044 = vmatprep.mubr.bf16.mxu0 0
      %3045 = vmatmul.mubr.bf16.gmra.mxu0 %v2986
      %v3046 = vpop.f32.mrf.mxu0
      %v3047 = vadd.f32 %v2904, %v3046
      %v3048 = vpop.f32.mrf.mxu0
      %v3049 = vpop.f32.mrf.mxu0
      %v3050 = vadd.f32 %v2909, %v3049
      %v3051 = vpop.f32.mrf.mxu0
      %3052 = vmatprep.mubr.bf16.mxu0 0
      %3053 = vmatmul.mubr.bf16.gmra.mxu0 %v2988
      %v3054 = vpop.f32.mrf.mxu0
      %v3055 = vadd.f32 %v2914, %v3054
      %v3056 = vpop.f32.mrf.mxu0
      %v3057 = vpop.f32.mrf.mxu0
      %v3058 = vadd.f32 %v2919, %v3057
      %v3059 = vpop.f32.mrf.mxu0
      %3060 = vmatprep.mubr.bf16.mxu0 0
      %3061 = vmatmul.mubr.bf16.gmra.mxu0 %v2990
      %v3062 = vpop.f32.mrf.mxu0
      %v3063 = vadd.f32 %v2924, %v3062
      %v3064 = vpop.f32.mrf.mxu0
      %v3065 = vpop.f32.mrf.mxu0
      %v3066 = vadd.f32 %v2929, %v3065
      %v3067 = vpop.f32.mrf.mxu0
      %3068 = vdwg.mxu0
      %vm3069 = vcmask 523264
      %v3070 = vsel %vm3069, %v3039, -inf
      %3071 = vmax.xlane.f32.xlu0 %v3070
      %v3072 = vpop.xlane.xlu0 %3071
      %v3073 = vsel %vm3069, %v3042, -inf
      %3074 = vmax.xlane.f32.xlu0 %v3073
      %v3075 = vpop.xlane.xlu0 %3074
      %v3076 = vsel %vm3069, %v3047, -inf
      %3077 = vmax.xlane.f32.xlu0 %v3076
      %v3078 = vpop.xlane.xlu0 %3077
      %v3079 = vsel %vm3069, %v3050, -inf
      %3080 = vmax.xlane.f32.xlu0 %v3079
      %v3081 = vpop.xlane.xlu0 %3080
      %v3082 = vsel %vm3069, %v3055, -inf
      %3083 = vmax.xlane.f32.xlu0 %v3082
      %v3084 = vpop.xlane.xlu0 %3083
      %v3085 = vsel %vm3069, %v3058, -inf
      %3086 = vmax.xlane.f32.xlu0 %v3085
      %v3087 = vpop.xlane.xlu0 %3086
      %v3088 = vsel %vm3069, %v3063, -inf
      %3089 = vmax.xlane.f32.xlu0 %v3088
      %v3090 = vpop.xlane.xlu0 %3089
      %v3091 = vsel %vm3069, %v3066, -inf
      %3092 = vmax.xlane.f32.xlu0 %v3091
      %v3093 = vpop.xlane.xlu0 %3092
      %v3094 = vsub.f32 %v3039, %v3072
      %v3095 = vsub.f32 %v3042, %v3075
      %v3096 = vsub.f32 %v3047, %v3078
      %v3097 = vsub.f32 %v3050, %v3081
      %v3098 = vsub.f32 %v3055, %v3084
      %v3099 = vsub.f32 %v3058, %v3087
      %v3100 = vsub.f32 %v3063, %v3090
      %v3101 = vsub.f32 %v3066, %v3093
      %v3102 = vmul.f32 %v3094, 1.442695
      %v3103 = vpow.pop %v3102
      %v3104 = vmul.f32 %v3095, 1.442695
      %v3105 = vpow.pop %v3104
      %v3106 = vmul.f32 %v3096, 1.442695
      %v3107 = vpow.pop %v3106
      %v3108 = vmul.f32 %v3097, 1.442695
      %v3109 = vpow.pop %v3108
      %v3110 = vmul.f32 %v3098, 1.442695
      %v3111 = vpow.pop %v3110
      %v3112 = vmul.f32 %v3099, 1.442695
      %v3113 = vpow.pop %v3112
      %v3114 = vmul.f32 %v3100, 1.442695
      %v3115 = vpow.pop %v3114
      %v3116 = vmul.f32 %v3101, 1.442695
      %v3117 = vpow.pop %v3116
      %v3118 = vsel %vm3069, %v3103, 0.0
      %3119 = vadd.xlane.f32.xlu0 %v3118
      %v3120 = vpop.xlane.xlu0 %3119
      %v3121 = vsel %vm3069, %v3105, 0.0
      %3122 = vadd.xlane.f32.xlu0 %v3121
      %v3123 = vpop.xlane.xlu0 %3122
      %v3124 = vsel %vm3069, %v3107, 0.0
      %3125 = vadd.xlane.f32.xlu0 %v3124
      %v3126 = vpop.xlane.xlu0 %3125
      %v3127 = vsel %vm3069, %v3109, 0.0
      %3128 = vadd.xlane.f32.xlu0 %v3127
      %v3129 = vpop.xlane.xlu0 %3128
      %v3130 = vsel %vm3069, %v3111, 0.0
      %3131 = vadd.xlane.f32.xlu0 %v3130
      %v3132 = vpop.xlane.xlu0 %3131
      %v3133 = vsel %vm3069, %v3113, 0.0
      %3134 = vadd.xlane.f32.xlu0 %v3133
      %v3135 = vpop.xlane.xlu0 %3134
      %v3136 = vsel %vm3069, %v3115, 0.0
      %3137 = vadd.xlane.f32.xlu0 %v3136
      %v3138 = vpop.xlane.xlu0 %3137
      %v3139 = vsel %vm3069, %v3117, 0.0
      %3140 = vadd.xlane.f32.xlu0 %v3139
      %v3141 = vpop.xlane.xlu0 %3140
      %v3142 = vrcp.pop %v3120
      %v3143 = vrcp.pop %v3123
      %v3144 = vrcp.pop %v3126
      %v3145 = vrcp.pop %v3129
      %v3146 = vrcp.pop %v3132
      %v3147 = vrcp.pop %v3135
      %v3148 = vrcp.pop %v3138
      %v3149 = vrcp.pop %v3141
      %v3150 = vmul.f32 %v3103, %v3142
      %v3151 = vmul.f32 %v3105, %v3143
      %v3152 = vmul.f32 %v3107, %v3144
      %v3153 = vmul.f32 %v3109, %v3145
      %v3154 = vmul.f32 %v3111, %v3146
      %v3155 = vmul.f32 %v3113, %v3147
      %v3156 = vmul.f32 %v3115, %v3148
      %v3157 = vmul.f32 %v3117, %v3149
      %v3158 = vpack.c.bf16 %v3151, %v3150
      %v3159 = vpack.c.bf16 %v3153, %v3152
      %v3160 = vpack.c.bf16 %v3155, %v3154
      %v3161 = vpack.c.bf16 %v3157, %v3156
      %3162 = vrot.lane.b32.xlu0 %v543, 64
      %v3163 = vpop.permute.xlu0 %3162
      %3164 = vrot.lane.b32.xlu0 %v544, 64
      %v3165 = vpop.permute.xlu0 %3164
      %3166 = vrot.lane.b32.xlu0 %v545, 64
      %v3167 = vpop.permute.xlu0 %3166
      %3168 = vrot.lane.b32.xlu0 %v546, 64
      %v3169 = vpop.permute.xlu0 %3168
      %v3175 = vsel %vm3069, %v3158, 0
      %v3178 = vsel %vm3069, %v3159, 0
      %v3181 = vsel %vm3069, %v3160, 0
      %v3184 = vsel %vm3069, %v3161, 0
      %3186 = vmatprep.subr.bf16.mxu0 0
      %3187 = vmatpush1.bf16.msra.mxu0 0
      %3188 = vmatprep.subr.bf16.mxu0 0
      %3189 = vmatpush1.bf16.msra.mxu0 0
      %3190 = vmatprep.subr.bf16.mxu0 0
      %3191 = vmatpush1.bf16.msra.mxu0 0
      %3192 = vmatprep.subr.bf16.mxu0 0
      %3193 = vmatpush1.bf16.msra.mxu0 0
      %3194 = vmatprep.subr.bf16.mxu0 0
      %3195 = vmatpush1.bf16.msra.mxu0 %v3169
      %3196 = vmatprep.subr.bf16.mxu0 0
      %3197 = vmatpush1.bf16.msra.mxu0 %v3167
      %3198 = vmatprep.subr.bf16.mxu0 0
      %3199 = vmatpush1.bf16.msra.mxu0 %v3165
      %3200 = vmatprep.subr.bf16.mxu0 0
      %3201 = vmatpush1.bf16.msra.mxu0 %v3163
      %3202 = vmatprep.subr.bf16.mxu0 0
      %3203 = vmatpush2.bf16.msra.mxu0 0
      %3204 = vmatprep.subr.bf16.mxu0 0
      %3205 = vmatpush2.bf16.msra.mxu0 0
      %3206 = vmatprep.subr.bf16.mxu0 0
      %3207 = vmatpush2.bf16.msra.mxu0 0
      %3208 = vmatprep.subr.bf16.mxu0 0
      %3209 = vmatpush2.bf16.msra.mxu0 0
      %3210 = vmatprep.subr.bf16.mxu0 0
      %3211 = vmatpush2.bf16.msra.mxu0 0
      %3212 = vmatprep.subr.bf16.mxu0 0
      %3213 = vmatpush2.bf16.msra.mxu0 0
      %3214 = vmatprep.subr.bf16.mxu0 0
      %3215 = vmatpush2.bf16.msra.mxu0 0
      %3216 = vmatprep.subr.bf16.mxu0 0
      %3217 = vmatpush2.bf16.msra.mxu0 0
      %3218 = vmatprep.mubr.bf16.mxu0 0
      %3219 = vmatmul.mubr.bf16.gmra.mxu0 %v3175
      %v3220 = vpop.f32.mrf.mxu0
      %v3221 = vadd.f32 0.0, %v3220
      %v3222 = vpop.f32.mrf.mxu0
      %v3223 = vpop.f32.mrf.mxu0
      %v3224 = vadd.f32 0.0, %v3223
      %v3225 = vpop.f32.mrf.mxu0
      %3226 = vmatprep.mubr.bf16.mxu0 0
      %3227 = vmatmul.mubr.bf16.gmra.mxu0 %v3178
      %v3228 = vpop.f32.mrf.mxu0
      %v3229 = vadd.f32 0.0, %v3228
      %v3230 = vpop.f32.mrf.mxu0
      %v3231 = vpop.f32.mrf.mxu0
      %v3232 = vadd.f32 0.0, %v3231
      %v3233 = vpop.f32.mrf.mxu0
      %3234 = vmatprep.mubr.bf16.mxu0 0
      %3235 = vmatmul.mubr.bf16.gmra.mxu0 %v3181
      %v3236 = vpop.f32.mrf.mxu0
      %v3237 = vadd.f32 0.0, %v3236
      %v3238 = vpop.f32.mrf.mxu0
      %v3239 = vpop.f32.mrf.mxu0
      %v3240 = vadd.f32 0.0, %v3239
      %v3241 = vpop.f32.mrf.mxu0
      %3242 = vmatprep.mubr.bf16.mxu0 0
      %3243 = vmatmul.mubr.bf16.gmra.mxu0 %v3184
      %v3244 = vpop.f32.mrf.mxu0
      %v3245 = vadd.f32 0.0, %v3244
      %v3246 = vpop.f32.mrf.mxu0
      %v3247 = vpop.f32.mrf.mxu0
      %v3248 = vadd.f32 0.0, %v3247
      %v3249 = vpop.f32.mrf.mxu0
      %3250 = vdwg.mxu0
      %v3251 = vpack.c.bf16 %v3224, %v3221
      %v3252 = vpack.c.bf16 %v3232, %v3229
      %v3253 = vpack.c.bf16 %v3240, %v3237
      %v3254 = vpack.c.bf16 %v3248, %v3245
      %v3259 = vunpack.c.l.b16 %v3251
      %v3260 = vunpack.c.h.b16 %v3251
      %v3261 = vunpack.c.l.b16 %v3252
      %v3262 = vunpack.c.h.b16 %v3252
      %v3263 = vunpack.c.l.b16 %v3253
      %v3264 = vunpack.c.h.b16 %v3253
      %v3265 = vunpack.c.l.b16 %v3254
      %v3266 = vunpack.c.h.b16 %v3254
      %v3267 = vpack.c.b16 %v3259, %v3259
      %v3268 = vpack.c.b16 %v3260, %v3260
      %v3269 = vpack.c.b16 %v3261, %v3261
      %v3270 = vpack.c.b16 %v3262, %v3262
      %v3271 = vpack.c.b16 %v3263, %v3263
      %v3272 = vpack.c.b16 %v3264, %v3264
      %v3273 = vpack.c.b16 %v3265, %v3265
      %v3274 = vpack.c.b16 %v3266, %v3266
      %vm3283 = vcmask 60416
      %3284 = vst.msk [vmem:[%s305] sm:$0xf] %vm3283, %v3267
      %3285 = vst.msk [vmem:[%s305 + $0x4] sm:$0xf] %vm3283, %v3268
      %3286 = vst.msk [vmem:[%s305 + $0x8] sm:$0xf] %vm3283, %v3269
      %3287 = vst.msk [vmem:[%s305 + $0xc] sm:$0xf] %vm3283, %v3270
      %3288 = vst.msk [vmem:[%s305 + $0x10] sm:$0xf] %vm3283, %v3271
      %3289 = vst.msk [vmem:[%s305 + $0x14] sm:$0xf] %vm3283, %v3272
      %3290 = vst.msk [vmem:[%s305 + $0x18] sm:$0xf] %vm3283, %v3273
      %3291 = vst.msk [vmem:[%s305 + $0x1c] sm:$0xf] %vm3283, %v3274
      %3296 = vrot.lane.b32.xlu0 %v547, 96
      %v3297 = vpop.permute.xlu0 %3296
      %3298 = vrot.lane.b32.xlu0 %v548, 96
      %v3299 = vpop.permute.xlu0 %3298
      %3300 = vrot.lane.b32.xlu0 %v549, 96
      %v3301 = vpop.permute.xlu0 %3300
      %3302 = vrot.lane.b32.xlu0 %v550, 96
      %v3303 = vpop.permute.xlu0 %3302
      %v3304 = vsel %vm2585, %v547, 0
      %v3306 = vsel %vm2585, %v548, 0
      %v3308 = vsel %vm2585, %v549, 0
      %v3310 = vsel %vm2585, %v550, 0
      %v3313 = vsel %vm2585, %v3297, 0
      %v3316 = vsel %vm2585, %v3299, 0
      %v3319 = vsel %vm2585, %v3301, 0
      %v3322 = vsel %vm2585, %v3303, 0
      %3324 = vmatprep.subr.bf16.mxu0 0
      %3325 = vmatpush1.bf16.xpose.msra.mxu0 0
      %3326 = vmatprep.subr.bf16.mxu0 0
      %3327 = vmatpush1.bf16.xpose.msra.mxu0 0
      %3328 = vmatprep.subr.bf16.mxu0 0
      %3329 = vmatpush1.bf16.xpose.msra.mxu0 0
      %3330 = vmatprep.subr.bf16.mxu0 0
      %3331 = vmatpush1.bf16.xpose.msra.mxu0 0
      %3332 = vmatprep.subr.bf16.mxu0 0
      %3333 = vmatpush1.bf16.xpose.msra.mxu0 %v3322
      %3334 = vmatprep.subr.bf16.mxu0 0
      %3335 = vmatpush1.bf16.xpose.msra.mxu0 %v3319
      %3336 = vmatprep.subr.bf16.mxu0 0
      %3337 = vmatpush1.bf16.xpose.msra.mxu0 %v3316
      %3338 = vmatprep.subr.bf16.mxu0 0
      %3339 = vmatpush1.bf16.xpose.msra.mxu0 %v3313
      %3340 = vmatprep.subr.bf16.mxu0 0
      %3341 = vmatpush2.bf16.xpose.msra.mxu0 0
      %3342 = vmatprep.subr.bf16.mxu0 0
      %3343 = vmatpush2.bf16.xpose.msra.mxu0 0
      %3344 = vmatprep.subr.bf16.mxu0 0
      %3345 = vmatpush2.bf16.xpose.msra.mxu0 0
      %3346 = vmatprep.subr.bf16.mxu0 0
      %3347 = vmatpush2.bf16.xpose.msra.mxu0 0
      %3348 = vmatprep.subr.bf16.mxu0 0
      %3349 = vmatpush2.bf16.xpose.msra.mxu0 0
      %3350 = vmatprep.subr.bf16.mxu0 0
      %3351 = vmatpush2.bf16.xpose.msra.mxu0 0
      %3352 = vmatprep.subr.bf16.mxu0 0
      %3353 = vmatpush2.bf16.xpose.msra.mxu0 0
      %3354 = vmatprep.subr.bf16.mxu0 0
      %3355 = vmatpush2.bf16.xpose.msra.mxu0 0
      %3356 = vmatprep.mubr.bf16.mxu0 0
      %3357 = vmatmul.mubr.bf16.gmra.mxu0 %v3304
      %v3358 = vpop.f32.mrf.mxu0
      %v3359 = vadd.f32 %v2934, %v3358
      %v3360 = vpop.f32.mrf.mxu0
      %v3361 = vpop.f32.mrf.mxu0
      %v3362 = vadd.f32 %v2939, %v3361
      %v3363 = vpop.f32.mrf.mxu0
      %3364 = vmatprep.mubr.bf16.mxu0 0
      %3365 = vmatmul.mubr.bf16.gmra.mxu0 %v3306
      %v3366 = vpop.f32.mrf.mxu0
      %v3367 = vadd.f32 %v2944, %v3366
      %v3368 = vpop.f32.mrf.mxu0
      %v3369 = vpop.f32.mrf.mxu0
      %v3370 = vadd.f32 %v2949, %v3369
      %v3371 = vpop.f32.mrf.mxu0
      %3372 = vmatprep.mubr.bf16.mxu0 0
      %3373 = vmatmul.mubr.bf16.gmra.mxu0 %v3308
      %v3374 = vpop.f32.mrf.mxu0
      %v3375 = vadd.f32 %v2954, %v3374
      %v3376 = vpop.f32.mrf.mxu0
      %v3377 = vpop.f32.mrf.mxu0
      %v3378 = vadd.f32 %v2959, %v3377
      %v3379 = vpop.f32.mrf.mxu0
      %3380 = vmatprep.mubr.bf16.mxu0 0
      %3381 = vmatmul.mubr.bf16.gmra.mxu0 %v3310
      %v3382 = vpop.f32.mrf.mxu0
      %v3383 = vadd.f32 %v2964, %v3382
      %v3384 = vpop.f32.mrf.mxu0
      %v3385 = vpop.f32.mrf.mxu0
      %v3386 = vadd.f32 %v2969, %v3385
      %v3387 = vpop.f32.mrf.mxu0
      %3388 = vdwg.mxu0
      %v3389 = vsel %vm3069, %v3359, -inf
      %3390 = vmax.xlane.f32.xlu0 %v3389
      %v3391 = vpop.xlane.xlu0 %3390
      %v3392 = vsel %vm3069, %v3362, -inf
      %3393 = vmax.xlane.f32.xlu0 %v3392
      %v3394 = vpop.xlane.xlu0 %3393
      %v3395 = vsel %vm3069, %v3367, -inf
      %3396 = vmax.xlane.f32.xlu0 %v3395
      %v3397 = vpop.xlane.xlu0 %3396
      %v3398 = vsel %vm3069, %v3370, -inf
      %3399 = vmax.xlane.f32.xlu0 %v3398
      %v3400 = vpop.xlane.xlu0 %3399
      %v3401 = vsel %vm3069, %v3375, -inf
      %3402 = vmax.xlane.f32.xlu0 %v3401
      %v3403 = vpop.xlane.xlu0 %3402
      %v3404 = vsel %vm3069, %v3378, -inf
      %3405 = vmax.xlane.f32.xlu0 %v3404
      %v3406 = vpop.xlane.xlu0 %3405
      %v3407 = vsel %vm3069, %v3383, -inf
      %3408 = vmax.xlane.f32.xlu0 %v3407
      %v3409 = vpop.xlane.xlu0 %3408
      %v3410 = vsel %vm3069, %v3386, -inf
      %3411 = vmax.xlane.f32.xlu0 %v3410
      %v3412 = vpop.xlane.xlu0 %3411
      %v3413 = vsub.f32 %v3359, %v3391
      %v3414 = vsub.f32 %v3362, %v3394
      %v3415 = vsub.f32 %v3367, %v3397
      %v3416 = vsub.f32 %v3370, %v3400
      %v3417 = vsub.f32 %v3375, %v3403
      %v3418 = vsub.f32 %v3378, %v3406
      %v3419 = vsub.f32 %v3383, %v3409
      %v3420 = vsub.f32 %v3386, %v3412
      %v3421 = vmul.f32 %v3413, 1.442695
      %v3422 = vpow.pop %v3421
      %v3423 = vmul.f32 %v3414, 1.442695
      %v3424 = vpow.pop %v3423
      %v3425 = vmul.f32 %v3415, 1.442695
      %v3426 = vpow.pop %v3425
      %v3427 = vmul.f32 %v3416, 1.442695
      %v3428 = vpow.pop %v3427
      %v3429 = vmul.f32 %v3417, 1.442695
      %v3430 = vpow.pop %v3429
      %v3431 = vmul.f32 %v3418, 1.442695
      %v3432 = vpow.pop %v3431
      %v3433 = vmul.f32 %v3419, 1.442695
      %v3434 = vpow.pop %v3433
      %v3435 = vmul.f32 %v3420, 1.442695
      %v3436 = vpow.pop %v3435
      %v3437 = vsel %vm3069, %v3422, 0.0
      %3438 = vadd.xlane.f32.xlu0 %v3437
      %v3439 = vpop.xlane.xlu0 %3438
      %v3440 = vsel %vm3069, %v3424, 0.0
      %3441 = vadd.xlane.f32.xlu0 %v3440
      %v3442 = vpop.xlane.xlu0 %3441
      %v3443 = vsel %vm3069, %v3426, 0.0
      %3444 = vadd.xlane.f32.xlu0 %v3443
      %v3445 = vpop.xlane.xlu0 %3444
      %v3446 = vsel %vm3069, %v3428, 0.0
      %3447 = vadd.xlane.f32.xlu0 %v3446
      %v3448 = vpop.xlane.xlu0 %3447
      %v3449 = vsel %vm3069, %v3430, 0.0
      %3450 = vadd.xlane.f32.xlu0 %v3449
      %v3451 = vpop.xlane.xlu0 %3450
      %v3452 = vsel %vm3069, %v3432, 0.0
      %3453 = vadd.xlane.f32.xlu0 %v3452
      %v3454 = vpop.xlane.xlu0 %3453
      %v3455 = vsel %vm3069, %v3434, 0.0
      %3456 = vadd.xlane.f32.xlu0 %v3455
      %v3457 = vpop.xlane.xlu0 %3456
      %v3458 = vsel %vm3069, %v3436, 0.0
      %3459 = vadd.xlane.f32.xlu0 %v3458
      %v3460 = vpop.xlane.xlu0 %3459
      %v3461 = vrcp.pop %v3439
      %v3462 = vrcp.pop %v3442
      %v3463 = vrcp.pop %v3445
      %v3464 = vrcp.pop %v3448
      %v3465 = vrcp.pop %v3451
      %v3466 = vrcp.pop %v3454
      %v3467 = vrcp.pop %v3457
      %v3468 = vrcp.pop %v3460
      %v3469 = vmul.f32 %v3422, %v3461
      %v3470 = vmul.f32 %v3424, %v3462
      %v3471 = vmul.f32 %v3426, %v3463
      %v3472 = vmul.f32 %v3428, %v3464
      %v3473 = vmul.f32 %v3430, %v3465
      %v3474 = vmul.f32 %v3432, %v3466
      %v3475 = vmul.f32 %v3434, %v3467
      %v3476 = vmul.f32 %v3436, %v3468
      %v3477 = vpack.c.bf16 %v3470, %v3469
      %v3478 = vpack.c.bf16 %v3472, %v3471
      %v3479 = vpack.c.bf16 %v3474, %v3473
      %v3480 = vpack.c.bf16 %v3476, %v3475
      %3481 = vrot.lane.b32.xlu0 %v547, 64
      %v3482 = vpop.permute.xlu0 %3481
      %3483 = vrot.lane.b32.xlu0 %v548, 64
      %v3484 = vpop.permute.xlu0 %3483
      %3485 = vrot.lane.b32.xlu0 %v549, 64
      %v3486 = vpop.permute.xlu0 %3485
      %3487 = vrot.lane.b32.xlu0 %v550, 64
      %v3488 = vpop.permute.xlu0 %3487
      %v3494 = vsel %vm3069, %v3477, 0
      %v3497 = vsel %vm3069, %v3478, 0
      %v3500 = vsel %vm3069, %v3479, 0
      %v3503 = vsel %vm3069, %v3480, 0
      %3505 = vmatprep.subr.bf16.mxu0 0
      %3506 = vmatpush1.bf16.msra.mxu0 0
      %3507 = vmatprep.subr.bf16.mxu0 0
      %3508 = vmatpush1.bf16.msra.mxu0 0
      %3509 = vmatprep.subr.bf16.mxu0 0
      %3510 = vmatpush1.bf16.msra.mxu0 0
      %3511 = vmatprep.subr.bf16.mxu0 0
      %3512 = vmatpush1.bf16.msra.mxu0 0
      %3513 = vmatprep.subr.bf16.mxu0 0
      %3514 = vmatpush1.bf16.msra.mxu0 %v3488
      %3515 = vmatprep.subr.bf16.mxu0 0
      %3516 = vmatpush1.bf16.msra.mxu0 %v3486
      %3517 = vmatprep.subr.bf16.mxu0 0
      %3518 = vmatpush1.bf16.msra.mxu0 %v3484
      %3519 = vmatprep.subr.bf16.mxu0 0
      %3520 = vmatpush1.bf16.msra.mxu0 %v3482
      %3521 = vmatprep.subr.bf16.mxu0 0
      %3522 = vmatpush2.bf16.msra.mxu0 0
      %3523 = vmatprep.subr.bf16.mxu0 0
      %3524 = vmatpush2.bf16.msra.mxu0 0
      %3525 = vmatprep.subr.bf16.mxu0 0
      %3526 = vmatpush2.bf16.msra.mxu0 0
      %3527 = vmatprep.subr.bf16.mxu0 0
      %3528 = vmatpush2.bf16.msra.mxu0 0
      %3529 = vmatprep.subr.bf16.mxu0 0
      %3530 = vmatpush2.bf16.msra.mxu0 0
      %3531 = vmatprep.subr.bf16.mxu0 0
      %3532 = vmatpush2.bf16.msra.mxu0 0
      %3533 = vmatprep.subr.bf16.mxu0 0
      %3534 = vmatpush2.bf16.msra.mxu0 0
      %3535 = vmatprep.subr.bf16.mxu0 0
      %3536 = vmatpush2.bf16.msra.mxu0 0
      %3537 = vmatprep.mubr.bf16.mxu0 0
      %3538 = vmatmul.mubr.bf16.gmra.mxu0 %v3494
      %v3539 = vpop.f32.mrf.mxu0
      %v3540 = vadd.f32 0.0, %v3539
      %v3541 = vpop.f32.mrf.mxu0
      %v3542 = vpop.f32.mrf.mxu0
      %v3543 = vadd.f32 0.0, %v3542
      %v3544 = vpop.f32.mrf.mxu0
      %3545 = vmatprep.mubr.bf16.mxu0 0
      %3546 = vmatmul.mubr.bf16.gmra.mxu0 %v3497
      %v3547 = vpop.f32.mrf.mxu0
      %v3548 = vadd.f32 0.0, %v3547
      %v3549 = vpop.f32.mrf.mxu0
      %v3550 = vpop.f32.mrf.mxu0
      %v3551 = vadd.f32 0.0, %v3550
      %v3552 = vpop.f32.mrf.mxu0
      %3553 = vmatprep.mubr.bf16.mxu0 0
      %3554 = vmatmul.mubr.bf16.gmra.mxu0 %v3500
      %v3555 = vpop.f32.mrf.mxu0
      %v3556 = vadd.f32 0.0, %v3555
      %v3557 = vpop.f32.mrf.mxu0
      %v3558 = vpop.f32.mrf.mxu0
      %v3559 = vadd.f32 0.0, %v3558
      %v3560 = vpop.f32.mrf.mxu0
      %3561 = vmatprep.mubr.bf16.mxu0 0
      %3562 = vmatmul.mubr.bf16.gmra.mxu0 %v3503
      %v3563 = vpop.f32.mrf.mxu0
      %v3564 = vadd.f32 0.0, %v3563
      %v3565 = vpop.f32.mrf.mxu0
      %v3566 = vpop.f32.mrf.mxu0
      %v3567 = vadd.f32 0.0, %v3566
      %v3568 = vpop.f32.mrf.mxu0
      %3569 = vdwg.mxu0
      %v3570 = vpack.c.bf16 %v3543, %v3540
      %v3571 = vpack.c.bf16 %v3551, %v3548
      %v3572 = vpack.c.bf16 %v3559, %v3556
      %v3573 = vpack.c.bf16 %v3567, %v3564
      %v3578 = vunpack.c.l.b16 %v3570
      %v3579 = vunpack.c.h.b16 %v3570
      %v3580 = vunpack.c.l.b16 %v3571
      %v3581 = vunpack.c.h.b16 %v3571
      %v3582 = vunpack.c.l.b16 %v3572
      %v3583 = vunpack.c.h.b16 %v3572
      %v3584 = vunpack.c.l.b16 %v3573
      %v3585 = vunpack.c.h.b16 %v3573
      %v3586 = vpack.c.b16 %v3578, %v3578
      %v3587 = vpack.c.b16 %v3579, %v3579
      %v3588 = vpack.c.b16 %v3580, %v3580
      %v3589 = vpack.c.b16 %v3581, %v3581
      %v3590 = vpack.c.b16 %v3582, %v3582
      %v3591 = vpack.c.b16 %v3583, %v3583
      %v3592 = vpack.c.b16 %v3584, %v3584
      %v3593 = vpack.c.b16 %v3585, %v3585
      %3602 = vst.msk [vmem:[%s305 + $0x20] sm:$0xf] %vm3283, %v3586
      %3603 = vst.msk [vmem:[%s305 + $0x24] sm:$0xf] %vm3283, %v3587
      %3604 = vst.msk [vmem:[%s305 + $0x28] sm:$0xf] %vm3283, %v3588
      %3605 = vst.msk [vmem:[%s305 + $0x2c] sm:$0xf] %vm3283, %v3589
      %3606 = vst.msk [vmem:[%s305 + $0x30] sm:$0xf] %vm3283, %v3590
      %3607 = vst.msk [vmem:[%s305 + $0x34] sm:$0xf] %vm3283, %v3591
      %3608 = vst.msk [vmem:[%s305 + $0x38] sm:$0xf] %vm3283, %v3592
      %3609 = vst.msk [vmem:[%s305 + $0x3c] sm:$0xf] %vm3283, %v3593
      %3610 = vset.pattern.permute.xlu0 8
      %3611 = vperm.xlu0 %3610, %v622
      %v3612 = vpop.permute.xlu0 %3611
      %3614 = vset.pattern.permute.xlu0 8
      %3615 = vperm.xlu0 %3614, %v625
      %v3616 = vpop.permute.xlu0 %3615
      %3618 = vset.pattern.permute.xlu0 8
      %3619 = vperm.xlu0 %3618, %v630
      %v3620 = vpop.permute.xlu0 %3619
      %3622 = vset.pattern.permute.xlu0 8
      %3623 = vperm.xlu0 %3622, %v633
      %v3624 = vpop.permute.xlu0 %3623
      %3626 = vset.pattern.permute.xlu0 8
      %3627 = vperm.xlu0 %3626, %v638
      %v3628 = vpop.permute.xlu0 %3627
      %3630 = vset.pattern.permute.xlu0 8
      %3631 = vperm.xlu0 %3630, %v641
      %v3632 = vpop.permute.xlu0 %3631
      %3634 = vset.pattern.permute.xlu0 8
      %3635 = vperm.xlu0 %3634, %v646
      %v3636 = vpop.permute.xlu0 %3635
      %3638 = vset.pattern.permute.xlu0 8
      %3639 = vperm.xlu0 %3638, %v649
      %v3640 = vpop.permute.xlu0 %3639
      %3642 = vset.pattern.permute.xlu0 8
      %3643 = vperm.xlu0 %3642, %v654
      %v3644 = vpop.permute.xlu0 %3643
      %3646 = vset.pattern.permute.xlu0 8
      %3647 = vperm.xlu0 %3646, %v657
      %v3648 = vpop.permute.xlu0 %3647
      %3650 = vset.pattern.permute.xlu0 8
      %3651 = vperm.xlu0 %3650, %v662
      %v3652 = vpop.permute.xlu0 %3651
      %3654 = vset.pattern.permute.xlu0 8
      %3655 = vperm.xlu0 %3654, %v665
      %v3656 = vpop.permute.xlu0 %3655
      %3658 = vset.pattern.permute.xlu0 8
      %3659 = vperm.xlu0 %3658, %v670
      %v3660 = vpop.permute.xlu0 %3659
      %3662 = vset.pattern.permute.xlu0 8
      %3663 = vperm.xlu0 %3662, %v673
      %v3664 = vpop.permute.xlu0 %3663
      %3666 = vset.pattern.permute.xlu0 8
      %3667 = vperm.xlu0 %3666, %v678
      %v3668 = vpop.permute.xlu0 %3667
      %3670 = vset.pattern.permute.xlu0 8
      %3671 = vperm.xlu0 %3670, %v681
      %v3672 = vpop.permute.xlu0 %3671
      %v3674 = vsel %vm793, %v3612, 0.0
      %v3675 = vsel %vm794, %v3616, 0.0
      %v3676 = vsel %vm795, %v3620, 0.0
      %v3677 = vsel %vm796, %v3624, 0.0
      %v3678 = vsel %vm797, %v3628, 0.0
      %v3679 = vsel %vm798, %v3632, 0.0
      %v3680 = vsel %vm799, %v3636, 0.0
      %v3681 = vsel %vm800, %v3640, 0.0
      %v3682 = vsel %vm801, %v3644, 0.0
      %v3683 = vsel %vm802, %v3648, 0.0
      %v3684 = vsel %vm803, %v3652, 0.0
      %v3685 = vsel %vm804, %v3656, 0.0
      %v3686 = vsel %vm805, %v3660, 0.0
      %v3687 = vsel %vm806, %v3664, 0.0
      %v3688 = vsel %vm807, %v3668, 0.0
      %v3689 = vsel %vm808, %v3672, 0.0
      %3690 = vset.pattern.permute.xlu0 9
      %3691 = vperm.xlu0 %3690, %v622
      %v3692 = vpop.permute.xlu0 %3691
      %3694 = vset.pattern.permute.xlu0 9
      %3695 = vperm.xlu0 %3694, %v625
      %v3696 = vpop.permute.xlu0 %3695
      %3698 = vset.pattern.permute.xlu0 9
      %3699 = vperm.xlu0 %3698, %v630
      %v3700 = vpop.permute.xlu0 %3699
      %3702 = vset.pattern.permute.xlu0 9
      %3703 = vperm.xlu0 %3702, %v633
      %v3704 = vpop.permute.xlu0 %3703
      %3706 = vset.pattern.permute.xlu0 9
      %3707 = vperm.xlu0 %3706, %v638
      %v3708 = vpop.permute.xlu0 %3707
      %3710 = vset.pattern.permute.xlu0 9
      %3711 = vperm.xlu0 %3710, %v641
      %v3712 = vpop.permute.xlu0 %3711
      %3714 = vset.pattern.permute.xlu0 9
      %3715 = vperm.xlu0 %3714, %v646
      %v3716 = vpop.permute.xlu0 %3715
      %3718 = vset.pattern.permute.xlu0 9
      %3719 = vperm.xlu0 %3718, %v649
      %v3720 = vpop.permute.xlu0 %3719
      %3722 = vset.pattern.permute.xlu0 9
      %3723 = vperm.xlu0 %3722, %v654
      %v3724 = vpop.permute.xlu0 %3723
      %3726 = vset.pattern.permute.xlu0 9
      %3727 = vperm.xlu0 %3726, %v657
      %v3728 = vpop.permute.xlu0 %3727
      %3730 = vset.pattern.permute.xlu0 9
      %3731 = vperm.xlu0 %3730, %v662
      %v3732 = vpop.permute.xlu0 %3731
      %3734 = vset.pattern.permute.xlu0 9
      %3735 = vperm.xlu0 %3734, %v665
      %v3736 = vpop.permute.xlu0 %3735
      %3738 = vset.pattern.permute.xlu0 9
      %3739 = vperm.xlu0 %3738, %v670
      %v3740 = vpop.permute.xlu0 %3739
      %3742 = vset.pattern.permute.xlu0 9
      %3743 = vperm.xlu0 %3742, %v673
      %v3744 = vpop.permute.xlu0 %3743
      %3746 = vset.pattern.permute.xlu0 9
      %3747 = vperm.xlu0 %3746, %v678
      %v3748 = vpop.permute.xlu0 %3747
      %3750 = vset.pattern.permute.xlu0 9
      %3751 = vperm.xlu0 %3750, %v681
      %v3752 = vpop.permute.xlu0 %3751
      %v3754 = vsel %vm809, %v3692, 0.0
      %v3755 = vsel %vm810, %v3696, 0.0
      %v3756 = vsel %vm811, %v3700, 0.0
      %v3757 = vsel %vm812, %v3704, 0.0
      %v3758 = vsel %vm813, %v3708, 0.0
      %v3759 = vsel %vm814, %v3712, 0.0
      %v3760 = vsel %vm815, %v3716, 0.0
      %v3761 = vsel %vm816, %v3720, 0.0
      %v3762 = vsel %vm817, %v3724, 0.0
      %v3763 = vsel %vm818, %v3728, 0.0
      %v3764 = vsel %vm819, %v3732, 0.0
      %v3765 = vsel %vm820, %v3736, 0.0
      %v3766 = vsel %vm821, %v3740, 0.0
      %v3767 = vsel %vm822, %v3744, 0.0
      %v3768 = vsel %vm823, %v3748, 0.0
      %v3769 = vsel %vm824, %v3752, 0.0
      %v3770 = vadd.f32 %v3674, %v3754
      %v3771 = vadd.f32 %v3675, %v3755
      %v3772 = vadd.f32 %v3676, %v3756
      %v3773 = vadd.f32 %v3677, %v3757
      %v3774 = vadd.f32 %v3678, %v3758
      %v3775 = vadd.f32 %v3679, %v3759
      %v3776 = vadd.f32 %v3680, %v3760
      %v3777 = vadd.f32 %v3681, %v3761
      %v3778 = vadd.f32 %v3682, %v3762
      %v3779 = vadd.f32 %v3683, %v3763
      %v3780 = vadd.f32 %v3684, %v3764
      %v3781 = vadd.f32 %v3685, %v3765
      %v3782 = vadd.f32 %v3686, %v3766
      %v3783 = vadd.f32 %v3687, %v3767
      %v3784 = vadd.f32 %v3688, %v3768
      %v3785 = vadd.f32 %v3689, %v3769
      %3786 = vset.pattern.permute.xlu0 10
      %3787 = vperm.xlu0 %3786, %v622
      %v3788 = vpop.permute.xlu0 %3787
      %3790 = vset.pattern.permute.xlu0 10
      %3791 = vperm.xlu0 %3790, %v625
      %v3792 = vpop.permute.xlu0 %3791
      %3794 = vset.pattern.permute.xlu0 10
      %3795 = vperm.xlu0 %3794, %v630
      %v3796 = vpop.permute.xlu0 %3795
      %3798 = vset.pattern.permute.xlu0 10
      %3799 = vperm.xlu0 %3798, %v633
      %v3800 = vpop.permute.xlu0 %3799
      %3802 = vset.pattern.permute.xlu0 10
      %3803 = vperm.xlu0 %3802, %v638
      %v3804 = vpop.permute.xlu0 %3803
      %3806 = vset.pattern.permute.xlu0 10
      %3807 = vperm.xlu0 %3806, %v641
      %v3808 = vpop.permute.xlu0 %3807
      %3810 = vset.pattern.permute.xlu0 10
      %3811 = vperm.xlu0 %3810, %v646
      %v3812 = vpop.permute.xlu0 %3811
      %3814 = vset.pattern.permute.xlu0 10
      %3815 = vperm.xlu0 %3814, %v649
      %v3816 = vpop.permute.xlu0 %3815
      %3818 = vset.pattern.permute.xlu0 10
      %3819 = vperm.xlu0 %3818, %v654
      %v3820 = vpop.permute.xlu0 %3819
      %3822 = vset.pattern.permute.xlu0 10
      %3823 = vperm.xlu0 %3822, %v657
      %v3824 = vpop.permute.xlu0 %3823
      %3826 = vset.pattern.permute.xlu0 10
      %3827 = vperm.xlu0 %3826, %v662
      %v3828 = vpop.permute.xlu0 %3827
      %3830 = vset.pattern.permute.xlu0 10
      %3831 = vperm.xlu0 %3830, %v665
      %v3832 = vpop.permute.xlu0 %3831
      %3834 = vset.pattern.permute.xlu0 10
      %3835 = vperm.xlu0 %3834, %v670
      %v3836 = vpop.permute.xlu0 %3835
      %3838 = vset.pattern.permute.xlu0 10
      %3839 = vperm.xlu0 %3838, %v673
      %v3840 = vpop.permute.xlu0 %3839
      %3842 = vset.pattern.permute.xlu0 10
      %3843 = vperm.xlu0 %3842, %v678
      %v3844 = vpop.permute.xlu0 %3843
      %3846 = vset.pattern.permute.xlu0 10
      %3847 = vperm.xlu0 %3846, %v681
      %v3848 = vpop.permute.xlu0 %3847
      %v3850 = vsel %vm825, %v3788, 0.0
      %v3851 = vsel %vm826, %v3792, 0.0
      %v3852 = vsel %vm827, %v3796, 0.0
      %v3853 = vsel %vm828, %v3800, 0.0
      %v3854 = vsel %vm829, %v3804, 0.0
      %v3855 = vsel %vm830, %v3808, 0.0
      %v3856 = vsel %vm831, %v3812, 0.0
      %v3857 = vsel %vm832, %v3816, 0.0
      %v3858 = vsel %vm833, %v3820, 0.0
      %v3859 = vsel %vm834, %v3824, 0.0
      %v3860 = vsel %vm835, %v3828, 0.0
      %v3861 = vsel %vm836, %v3832, 0.0
      %v3862 = vsel %vm837, %v3836, 0.0
      %v3863 = vsel %vm838, %v3840, 0.0
      %v3864 = vsel %vm839, %v3844, 0.0
      %v3865 = vsel %vm840, %v3848, 0.0
      %v3866 = vadd.f32 %v3770, %v3850
      %v3867 = vadd.f32 %v3771, %v3851
      %v3868 = vadd.f32 %v3772, %v3852
      %v3869 = vadd.f32 %v3773, %v3853
      %v3870 = vadd.f32 %v3774, %v3854
      %v3871 = vadd.f32 %v3775, %v3855
      %v3872 = vadd.f32 %v3776, %v3856
      %v3873 = vadd.f32 %v3777, %v3857
      %v3874 = vadd.f32 %v3778, %v3858
      %v3875 = vadd.f32 %v3779, %v3859
      %v3876 = vadd.f32 %v3780, %v3860
      %v3877 = vadd.f32 %v3781, %v3861
      %v3878 = vadd.f32 %v3782, %v3862
      %v3879 = vadd.f32 %v3783, %v3863
      %v3880 = vadd.f32 %v3784, %v3864
      %v3881 = vadd.f32 %v3785, %v3865
      %3882 = vset.pattern.permute.xlu0 11
      %3883 = vperm.xlu0 %3882, %v622
      %v3884 = vpop.permute.xlu0 %3883
      %3886 = vset.pattern.permute.xlu0 11
      %3887 = vperm.xlu0 %3886, %v625
      %v3888 = vpop.permute.xlu0 %3887
      %3890 = vset.pattern.permute.xlu0 11
      %3891 = vperm.xlu0 %3890, %v630
      %v3892 = vpop.permute.xlu0 %3891
      %3894 = vset.pattern.permute.xlu0 11
      %3895 = vperm.xlu0 %3894, %v633
      %v3896 = vpop.permute.xlu0 %3895
      %3898 = vset.pattern.permute.xlu0 11
      %3899 = vperm.xlu0 %3898, %v638
      %v3900 = vpop.permute.xlu0 %3899
      %3902 = vset.pattern.permute.xlu0 11
      %3903 = vperm.xlu0 %3902, %v641
      %v3904 = vpop.permute.xlu0 %3903
      %3906 = vset.pattern.permute.xlu0 11
      %3907 = vperm.xlu0 %3906, %v646
      %v3908 = vpop.permute.xlu0 %3907
      %3910 = vset.pattern.permute.xlu0 11
      %3911 = vperm.xlu0 %3910, %v649
      %v3912 = vpop.permute.xlu0 %3911
      %3914 = vset.pattern.permute.xlu0 11
      %3915 = vperm.xlu0 %3914, %v654
      %v3916 = vpop.permute.xlu0 %3915
      %3918 = vset.pattern.permute.xlu0 11
      %3919 = vperm.xlu0 %3918, %v657
      %v3920 = vpop.permute.xlu0 %3919
      %3922 = vset.pattern.permute.xlu0 11
      %3923 = vperm.xlu0 %3922, %v662
      %v3924 = vpop.permute.xlu0 %3923
      %3926 = vset.pattern.permute.xlu0 11
      %3927 = vperm.xlu0 %3926, %v665
      %v3928 = vpop.permute.xlu0 %3927
      %3930 = vset.pattern.permute.xlu0 11
      %3931 = vperm.xlu0 %3930, %v670
      %v3932 = vpop.permute.xlu0 %3931
      %3934 = vset.pattern.permute.xlu0 11
      %3935 = vperm.xlu0 %3934, %v673
      %v3936 = vpop.permute.xlu0 %3935
      %3938 = vset.pattern.permute.xlu0 11
      %3939 = vperm.xlu0 %3938, %v678
      %v3940 = vpop.permute.xlu0 %3939
      %3942 = vset.pattern.permute.xlu0 11
      %3943 = vperm.xlu0 %3942, %v681
      %v3944 = vpop.permute.xlu0 %3943
      %v3946 = vsel %vm841, %v3884, 0.0
      %v3947 = vsel %vm842, %v3888, 0.0
      %v3948 = vsel %vm843, %v3892, 0.0
      %v3949 = vsel %vm844, %v3896, 0.0
      %v3950 = vsel %vm845, %v3900, 0.0
      %v3951 = vsel %vm846, %v3904, 0.0
      %v3952 = vsel %vm847, %v3908, 0.0
      %v3953 = vsel %vm848, %v3912, 0.0
      %v3954 = vsel %vm849, %v3916, 0.0
      %v3955 = vsel %vm850, %v3920, 0.0
      %v3956 = vsel %vm851, %v3924, 0.0
      %v3957 = vsel %vm852, %v3928, 0.0
      %v3958 = vsel %vm853, %v3932, 0.0
      %v3959 = vsel %vm854, %v3936, 0.0
      %v3960 = vsel %vm855, %v3940, 0.0
      %v3961 = vsel %vm856, %v3944, 0.0
      %v3962 = vadd.f32 %v3866, %v3946
      %v3963 = vadd.f32 %v3867, %v3947
      %v3964 = vadd.f32 %v3868, %v3948
      %v3965 = vadd.f32 %v3869, %v3949
      %v3966 = vadd.f32 %v3870, %v3950
      %v3967 = vadd.f32 %v3871, %v3951
      %v3968 = vadd.f32 %v3872, %v3952
      %v3969 = vadd.f32 %v3873, %v3953
      %v3970 = vadd.f32 %v3874, %v3954
      %v3971 = vadd.f32 %v3875, %v3955
      %v3972 = vadd.f32 %v3876, %v3956
      %v3973 = vadd.f32 %v3877, %v3957
      %v3974 = vadd.f32 %v3878, %v3958
      %v3975 = vadd.f32 %v3879, %v3959
      %v3976 = vadd.f32 %v3880, %v3960
      %v3977 = vadd.f32 %v3881, %v3961
      %3978 = vset.pattern.permute.xlu0 12
      %3979 = vperm.xlu0 %3978, %v622
      %v3980 = vpop.permute.xlu0 %3979
      %3982 = vset.pattern.permute.xlu0 12
      %3983 = vperm.xlu0 %3982, %v625
      %v3984 = vpop.permute.xlu0 %3983
      %3986 = vset.pattern.permute.xlu0 12
      %3987 = vperm.xlu0 %3986, %v630
      %v3988 = vpop.permute.xlu0 %3987
      %3990 = vset.pattern.permute.xlu0 12
      %3991 = vperm.xlu0 %3990, %v633
      %v3992 = vpop.permute.xlu0 %3991
      %3994 = vset.pattern.permute.xlu0 12
      %3995 = vperm.xlu0 %3994, %v638
      %v3996 = vpop.permute.xlu0 %3995
      %3998 = vset.pattern.permute.xlu0 12
      %3999 = vperm.xlu0 %3998, %v641
      %v4000 = vpop.permute.xlu0 %3999
      %4002 = vset.pattern.permute.xlu0 12
      %4003 = vperm.xlu0 %4002, %v646
      %v4004 = vpop.permute.xlu0 %4003
      %4006 = vset.pattern.permute.xlu0 12
      %4007 = vperm.xlu0 %4006, %v649
      %v4008 = vpop.permute.xlu0 %4007
      %4010 = vset.pattern.permute.xlu0 12
      %4011 = vperm.xlu0 %4010, %v654
      %v4012 = vpop.permute.xlu0 %4011
      %4014 = vset.pattern.permute.xlu0 12
      %4015 = vperm.xlu0 %4014, %v657
      %v4016 = vpop.permute.xlu0 %4015
      %4018 = vset.pattern.permute.xlu0 12
      %4019 = vperm.xlu0 %4018, %v662
      %v4020 = vpop.permute.xlu0 %4019
      %4022 = vset.pattern.permute.xlu0 12
      %4023 = vperm.xlu0 %4022, %v665
      %v4024 = vpop.permute.xlu0 %4023
      %4026 = vset.pattern.permute.xlu0 12
      %4027 = vperm.xlu0 %4026, %v670
      %v4028 = vpop.permute.xlu0 %4027
      %4030 = vset.pattern.permute.xlu0 12
      %4031 = vperm.xlu0 %4030, %v673
      %v4032 = vpop.permute.xlu0 %4031
      %4034 = vset.pattern.permute.xlu0 12
      %4035 = vperm.xlu0 %4034, %v678
      %v4036 = vpop.permute.xlu0 %4035
      %4038 = vset.pattern.permute.xlu0 12
      %4039 = vperm.xlu0 %4038, %v681
      %v4040 = vpop.permute.xlu0 %4039
      %v4042 = vsel %vm857, %v3980, 0.0
      %v4043 = vsel %vm858, %v3984, 0.0
      %v4044 = vsel %vm859, %v3988, 0.0
      %v4045 = vsel %vm860, %v3992, 0.0
      %v4046 = vsel %vm861, %v3996, 0.0
      %v4047 = vsel %vm862, %v4000, 0.0
      %v4048 = vsel %vm863, %v4004, 0.0
      %v4049 = vsel %vm864, %v4008, 0.0
      %v4050 = vsel %vm865, %v4012, 0.0
      %v4051 = vsel %vm866, %v4016, 0.0
      %v4052 = vsel %vm867, %v4020, 0.0
      %v4053 = vsel %vm868, %v4024, 0.0
      %v4054 = vsel %vm869, %v4028, 0.0
      %v4055 = vsel %vm870, %v4032, 0.0
      %v4056 = vsel %vm871, %v4036, 0.0
      %v4057 = vsel %vm872, %v4040, 0.0
      %v4058 = vadd.f32 %v3962, %v4042
      %v4059 = vadd.f32 %v3963, %v4043
      %v4060 = vadd.f32 %v3964, %v4044
      %v4061 = vadd.f32 %v3965, %v4045
      %v4062 = vadd.f32 %v3966, %v4046
      %v4063 = vadd.f32 %v3967, %v4047
      %v4064 = vadd.f32 %v3968, %v4048
      %v4065 = vadd.f32 %v3969, %v4049
      %v4066 = vadd.f32 %v3970, %v4050
      %v4067 = vadd.f32 %v3971, %v4051
      %v4068 = vadd.f32 %v3972, %v4052
      %v4069 = vadd.f32 %v3973, %v4053
      %v4070 = vadd.f32 %v3974, %v4054
      %v4071 = vadd.f32 %v3975, %v4055
      %v4072 = vadd.f32 %v3976, %v4056
      %v4073 = vadd.f32 %v3977, %v4057
      %4074 = vset.pattern.permute.xlu0 13
      %4075 = vperm.xlu0 %4074, %v622
      %v4076 = vpop.permute.xlu0 %4075
      %4078 = vset.pattern.permute.xlu0 13
      %4079 = vperm.xlu0 %4078, %v625
      %v4080 = vpop.permute.xlu0 %4079
      %4082 = vset.pattern.permute.xlu0 13
      %4083 = vperm.xlu0 %4082, %v630
      %v4084 = vpop.permute.xlu0 %4083
      %4086 = vset.pattern.permute.xlu0 13
      %4087 = vperm.xlu0 %4086, %v633
      %v4088 = vpop.permute.xlu0 %4087
      %4090 = vset.pattern.permute.xlu0 13
      %4091 = vperm.xlu0 %4090, %v638
      %v4092 = vpop.permute.xlu0 %4091
      %4094 = vset.pattern.permute.xlu0 13
      %4095 = vperm.xlu0 %4094, %v641
      %v4096 = vpop.permute.xlu0 %4095
      %4098 = vset.pattern.permute.xlu0 13
      %4099 = vperm.xlu0 %4098, %v646
      %v4100 = vpop.permute.xlu0 %4099
      %4102 = vset.pattern.permute.xlu0 13
      %4103 = vperm.xlu0 %4102, %v649
      %v4104 = vpop.permute.xlu0 %4103
      %4106 = vset.pattern.permute.xlu0 13
      %4107 = vperm.xlu0 %4106, %v654
      %v4108 = vpop.permute.xlu0 %4107
      %4110 = vset.pattern.permute.xlu0 13
      %4111 = vperm.xlu0 %4110, %v657
      %v4112 = vpop.permute.xlu0 %4111
      %4114 = vset.pattern.permute.xlu0 13
      %4115 = vperm.xlu0 %4114, %v662
      %v4116 = vpop.permute.xlu0 %4115
      %4118 = vset.pattern.permute.xlu0 13
      %4119 = vperm.xlu0 %4118, %v665
      %v4120 = vpop.permute.xlu0 %4119
      %4122 = vset.pattern.permute.xlu0 13
      %4123 = vperm.xlu0 %4122, %v670
      %v4124 = vpop.permute.xlu0 %4123
      %4126 = vset.pattern.permute.xlu0 13
      %4127 = vperm.xlu0 %4126, %v673
      %v4128 = vpop.permute.xlu0 %4127
      %4130 = vset.pattern.permute.xlu0 13
      %4131 = vperm.xlu0 %4130, %v678
      %v4132 = vpop.permute.xlu0 %4131
      %4134 = vset.pattern.permute.xlu0 13
      %4135 = vperm.xlu0 %4134, %v681
      %v4136 = vpop.permute.xlu0 %4135
      %v4138 = vsel %vm873, %v4076, 0.0
      %v4139 = vsel %vm874, %v4080, 0.0
      %v4140 = vsel %vm875, %v4084, 0.0
      %v4141 = vsel %vm876, %v4088, 0.0
      %v4142 = vsel %vm877, %v4092, 0.0
      %v4143 = vsel %vm878, %v4096, 0.0
      %v4144 = vsel %vm879, %v4100, 0.0
      %v4145 = vsel %vm880, %v4104, 0.0
      %v4146 = vsel %vm881, %v4108, 0.0
      %v4147 = vsel %vm882, %v4112, 0.0
      %v4148 = vsel %vm883, %v4116, 0.0
      %v4149 = vsel %vm884, %v4120, 0.0
      %v4150 = vsel %vm885, %v4124, 0.0
      %v4151 = vsel %vm886, %v4128, 0.0
      %v4152 = vsel %vm887, %v4132, 0.0
      %v4153 = vsel %vm888, %v4136, 0.0
      %v4154 = vadd.f32 %v4058, %v4138
      %v4155 = vadd.f32 %v4059, %v4139
      %v4156 = vadd.f32 %v4060, %v4140
      %v4157 = vadd.f32 %v4061, %v4141
      %v4158 = vadd.f32 %v4062, %v4142
      %v4159 = vadd.f32 %v4063, %v4143
      %v4160 = vadd.f32 %v4064, %v4144
      %v4161 = vadd.f32 %v4065, %v4145
      %v4162 = vadd.f32 %v4066, %v4146
      %v4163 = vadd.f32 %v4067, %v4147
      %v4164 = vadd.f32 %v4068, %v4148
      %v4165 = vadd.f32 %v4069, %v4149
      %v4166 = vadd.f32 %v4070, %v4150
      %v4167 = vadd.f32 %v4071, %v4151
      %v4168 = vadd.f32 %v4072, %v4152
      %v4169 = vadd.f32 %v4073, %v4153
      %4170 = vset.pattern.permute.xlu0 14
      %4171 = vperm.xlu0 %4170, %v622
      %v4172 = vpop.permute.xlu0 %4171
      %4174 = vset.pattern.permute.xlu0 14
      %4175 = vperm.xlu0 %4174, %v625
      %v4176 = vpop.permute.xlu0 %4175
      %4178 = vset.pattern.permute.xlu0 14
      %4179 = vperm.xlu0 %4178, %v630
      %v4180 = vpop.permute.xlu0 %4179
      %4182 = vset.pattern.permute.xlu0 14
      %4183 = vperm.xlu0 %4182, %v633
      %v4184 = vpop.permute.xlu0 %4183
      %4186 = vset.pattern.permute.xlu0 14
      %4187 = vperm.xlu0 %4186, %v638
      %v4188 = vpop.permute.xlu0 %4187
      %4190 = vset.pattern.permute.xlu0 14
      %4191 = vperm.xlu0 %4190, %v641
      %v4192 = vpop.permute.xlu0 %4191
      %4194 = vset.pattern.permute.xlu0 14
      %4195 = vperm.xlu0 %4194, %v646
      %v4196 = vpop.permute.xlu0 %4195
      %4198 = vset.pattern.permute.xlu0 14
      %4199 = vperm.xlu0 %4198, %v649
      %v4200 = vpop.permute.xlu0 %4199
      %4202 = vset.pattern.permute.xlu0 14
      %4203 = vperm.xlu0 %4202, %v654
      %v4204 = vpop.permute.xlu0 %4203
      %4206 = vset.pattern.permute.xlu0 14
      %4207 = vperm.xlu0 %4206, %v657
      %v4208 = vpop.permute.xlu0 %4207
      %4210 = vset.pattern.permute.xlu0 14
      %4211 = vperm.xlu0 %4210, %v662
      %v4212 = vpop.permute.xlu0 %4211
      %4214 = vset.pattern.permute.xlu0 14
      %4215 = vperm.xlu0 %4214, %v665
      %v4216 = vpop.permute.xlu0 %4215
      %4218 = vset.pattern.permute.xlu0 14
      %4219 = vperm.xlu0 %4218, %v670
      %v4220 = vpop.permute.xlu0 %4219
      %4222 = vset.pattern.permute.xlu0 14
      %4223 = vperm.xlu0 %4222, %v673
      %v4224 = vpop.permute.xlu0 %4223
      %4226 = vset.pattern.permute.xlu0 14
      %4227 = vperm.xlu0 %4226, %v678
      %v4228 = vpop.permute.xlu0 %4227
      %4230 = vset.pattern.permute.xlu0 14
      %4231 = vperm.xlu0 %4230, %v681
      %v4232 = vpop.permute.xlu0 %4231
      %v4234 = vsel %vm889, %v4172, 0.0
      %v4235 = vsel %vm890, %v4176, 0.0
      %v4236 = vsel %vm891, %v4180, 0.0
      %v4237 = vsel %vm892, %v4184, 0.0
      %v4238 = vsel %vm893, %v4188, 0.0
      %v4239 = vsel %vm894, %v4192, 0.0
      %v4240 = vsel %vm895, %v4196, 0.0
      %v4241 = vsel %vm896, %v4200, 0.0
      %v4242 = vsel %vm897, %v4204, 0.0
      %v4243 = vsel %vm898, %v4208, 0.0
      %v4244 = vsel %vm899, %v4212, 0.0
      %v4245 = vsel %vm900, %v4216, 0.0
      %v4246 = vsel %vm901, %v4220, 0.0
      %v4247 = vsel %vm902, %v4224, 0.0
      %v4248 = vsel %vm903, %v4228, 0.0
      %v4249 = vsel %vm904, %v4232, 0.0
      %v4250 = vadd.f32 %v4154, %v4234
      %v4251 = vadd.f32 %v4155, %v4235
      %v4252 = vadd.f32 %v4156, %v4236
      %v4253 = vadd.f32 %v4157, %v4237
      %v4254 = vadd.f32 %v4158, %v4238
      %v4255 = vadd.f32 %v4159, %v4239
      %v4256 = vadd.f32 %v4160, %v4240
      %v4257 = vadd.f32 %v4161, %v4241
      %v4258 = vadd.f32 %v4162, %v4242
      %v4259 = vadd.f32 %v4163, %v4243
      %v4260 = vadd.f32 %v4164, %v4244
      %v4261 = vadd.f32 %v4165, %v4245
      %v4262 = vadd.f32 %v4166, %v4246
      %v4263 = vadd.f32 %v4167, %v4247
      %v4264 = vadd.f32 %v4168, %v4248
      %v4265 = vadd.f32 %v4169, %v4249
      %4266 = vset.pattern.permute.xlu0 15
      %4267 = vperm.xlu0 %4266, %v622
      %v4268 = vpop.permute.xlu0 %4267
      %4270 = vset.pattern.permute.xlu0 15
      %4271 = vperm.xlu0 %4270, %v625
      %v4272 = vpop.permute.xlu0 %4271
      %4274 = vset.pattern.permute.xlu0 15
      %4275 = vperm.xlu0 %4274, %v630
      %v4276 = vpop.permute.xlu0 %4275
      %4278 = vset.pattern.permute.xlu0 15
      %4279 = vperm.xlu0 %4278, %v633
      %v4280 = vpop.permute.xlu0 %4279
      %4282 = vset.pattern.permute.xlu0 15
      %4283 = vperm.xlu0 %4282, %v638
      %v4284 = vpop.permute.xlu0 %4283
      %4286 = vset.pattern.permute.xlu0 15
      %4287 = vperm.xlu0 %4286, %v641
      %v4288 = vpop.permute.xlu0 %4287
      %4290 = vset.pattern.permute.xlu0 15
      %4291 = vperm.xlu0 %4290, %v646
      %v4292 = vpop.permute.xlu0 %4291
      %4294 = vset.pattern.permute.xlu0 15
      %4295 = vperm.xlu0 %4294, %v649
      %v4296 = vpop.permute.xlu0 %4295
      %4298 = vset.pattern.permute.xlu0 15
      %4299 = vperm.xlu0 %4298, %v654
      %v4300 = vpop.permute.xlu0 %4299
      %4302 = vset.pattern.permute.xlu0 15
      %4303 = vperm.xlu0 %4302, %v657
      %v4304 = vpop.permute.xlu0 %4303
      %4306 = vset.pattern.permute.xlu0 15
      %4307 = vperm.xlu0 %4306, %v662
      %v4308 = vpop.permute.xlu0 %4307
      %4310 = vset.pattern.permute.xlu0 15
      %4311 = vperm.xlu0 %4310, %v665
      %v4312 = vpop.permute.xlu0 %4311
      %4314 = vset.pattern.permute.xlu0 15
      %4315 = vperm.xlu0 %4314, %v670
      %v4316 = vpop.permute.xlu0 %4315
      %4318 = vset.pattern.permute.xlu0 15
      %4319 = vperm.xlu0 %4318, %v673
      %v4320 = vpop.permute.xlu0 %4319
      %4322 = vset.pattern.permute.xlu0 15
      %4323 = vperm.xlu0 %4322, %v678
      %v4324 = vpop.permute.xlu0 %4323
      %4326 = vset.pattern.permute.xlu0 15
      %4327 = vperm.xlu0 %4326, %v681
      %v4328 = vpop.permute.xlu0 %4327
      %v4330 = vsel %vm905, %v4268, 0.0
      %v4331 = vsel %vm906, %v4272, 0.0
      %v4332 = vsel %vm907, %v4276, 0.0
      %v4333 = vsel %vm908, %v4280, 0.0
      %v4334 = vsel %vm909, %v4284, 0.0
      %v4335 = vsel %vm910, %v4288, 0.0
      %v4336 = vsel %vm911, %v4292, 0.0
      %v4337 = vsel %vm912, %v4296, 0.0
      %v4338 = vsel %vm913, %v4300, 0.0
      %v4339 = vsel %vm914, %v4304, 0.0
      %v4340 = vsel %vm915, %v4308, 0.0
      %v4341 = vsel %vm916, %v4312, 0.0
      %v4342 = vsel %vm917, %v4316, 0.0
      %v4343 = vsel %vm918, %v4320, 0.0
      %v4344 = vsel %vm919, %v4324, 0.0
      %v4345 = vsel %vm920, %v4328, 0.0
      %v4346 = vadd.f32 %v4250, %v4330
      %v4347 = vadd.f32 %v4251, %v4331
      %v4348 = vadd.f32 %v4252, %v4332
      %v4349 = vadd.f32 %v4253, %v4333
      %v4350 = vadd.f32 %v4254, %v4334
      %v4351 = vadd.f32 %v4255, %v4335
      %v4352 = vadd.f32 %v4256, %v4336
      %v4353 = vadd.f32 %v4257, %v4337
      %v4354 = vadd.f32 %v4258, %v4338
      %v4355 = vadd.f32 %v4259, %v4339
      %v4356 = vadd.f32 %v4260, %v4340
      %v4357 = vadd.f32 %v4261, %v4341
      %v4358 = vadd.f32 %v4262, %v4342
      %v4359 = vadd.f32 %v4263, %v4343
      %v4360 = vadd.f32 %v4264, %v4344
      %v4361 = vadd.f32 %v4265, %v4345
      %4362 = vset.pattern.permute.xlu0 8
      %4363 = vperm.xlu0 %4362, %v731
      %v4364 = vpop.permute.xlu0 %4363
      %4366 = vset.pattern.permute.xlu0 8
      %4367 = vperm.xlu0 %4366, %v734
      %v4368 = vpop.permute.xlu0 %4367
      %4370 = vset.pattern.permute.xlu0 8
      %4371 = vperm.xlu0 %4370, %v739
      %v4372 = vpop.permute.xlu0 %4371
      %4374 = vset.pattern.permute.xlu0 8
      %4375 = vperm.xlu0 %4374, %v742
      %v4376 = vpop.permute.xlu0 %4375
      %4378 = vset.pattern.permute.xlu0 8
      %4379 = vperm.xlu0 %4378, %v747
      %v4380 = vpop.permute.xlu0 %4379
      %4382 = vset.pattern.permute.xlu0 8
      %4383 = vperm.xlu0 %4382, %v750
      %v4384 = vpop.permute.xlu0 %4383
      %4386 = vset.pattern.permute.xlu0 8
      %4387 = vperm.xlu0 %4386, %v755
      %v4388 = vpop.permute.xlu0 %4387
      %4390 = vset.pattern.permute.xlu0 8
      %4391 = vperm.xlu0 %4390, %v758
      %v4392 = vpop.permute.xlu0 %4391
      %4394 = vset.pattern.permute.xlu0 8
      %4395 = vperm.xlu0 %4394, %v763
      %v4396 = vpop.permute.xlu0 %4395
      %4398 = vset.pattern.permute.xlu0 8
      %4399 = vperm.xlu0 %4398, %v766
      %v4400 = vpop.permute.xlu0 %4399
      %4402 = vset.pattern.permute.xlu0 8
      %4403 = vperm.xlu0 %4402, %v771
      %v4404 = vpop.permute.xlu0 %4403
      %4406 = vset.pattern.permute.xlu0 8
      %4407 = vperm.xlu0 %4406, %v774
      %v4408 = vpop.permute.xlu0 %4407
      %4410 = vset.pattern.permute.xlu0 8
      %4411 = vperm.xlu0 %4410, %v779
      %v4412 = vpop.permute.xlu0 %4411
      %4414 = vset.pattern.permute.xlu0 8
      %4415 = vperm.xlu0 %4414, %v782
      %v4416 = vpop.permute.xlu0 %4415
      %4418 = vset.pattern.permute.xlu0 8
      %4419 = vperm.xlu0 %4418, %v787
      %v4420 = vpop.permute.xlu0 %4419
      %4422 = vset.pattern.permute.xlu0 8
      %4423 = vperm.xlu0 %4422, %v790
      %v4424 = vpop.permute.xlu0 %4423
      %v4426 = vsel %vm921, %v4364, 0.0
      %v4427 = vsel %vm922, %v4368, 0.0
      %v4428 = vsel %vm923, %v4372, 0.0
      %v4429 = vsel %vm924, %v4376, 0.0
      %v4430 = vsel %vm925, %v4380, 0.0
      %v4431 = vsel %vm926, %v4384, 0.0
      %v4432 = vsel %vm927, %v4388, 0.0
      %v4433 = vsel %vm928, %v4392, 0.0
      %v4434 = vsel %vm929, %v4396, 0.0
      %v4435 = vsel %vm930, %v4400, 0.0
      %v4436 = vsel %vm931, %v4404, 0.0
      %v4437 = vsel %vm932, %v4408, 0.0
      %v4438 = vsel %vm933, %v4412, 0.0
      %v4439 = vsel %vm934, %v4416, 0.0
      %v4440 = vsel %vm935, %v4420, 0.0
      %v4441 = vsel %vm936, %v4424, 0.0
      %4442 = vset.pattern.permute.xlu0 9
      %4443 = vperm.xlu0 %4442, %v731
      %v4444 = vpop.permute.xlu0 %4443
      %4446 = vset.pattern.permute.xlu0 9
      %4447 = vperm.xlu0 %4446, %v734
      %v4448 = vpop.permute.xlu0 %4447
      %4450 = vset.pattern.permute.xlu0 9
      %4451 = vperm.xlu0 %4450, %v739
      %v4452 = vpop.permute.xlu0 %4451
      %4454 = vset.pattern.permute.xlu0 9
      %4455 = vperm.xlu0 %4454, %v742
      %v4456 = vpop.permute.xlu0 %4455
      %4458 = vset.pattern.permute.xlu0 9
      %4459 = vperm.xlu0 %4458, %v747
      %v4460 = vpop.permute.xlu0 %4459
      %4462 = vset.pattern.permute.xlu0 9
      %4463 = vperm.xlu0 %4462, %v750
      %v4464 = vpop.permute.xlu0 %4463
      %4466 = vset.pattern.permute.xlu0 9
      %4467 = vperm.xlu0 %4466, %v755
      %v4468 = vpop.permute.xlu0 %4467
      %4470 = vset.pattern.permute.xlu0 9
      %4471 = vperm.xlu0 %4470, %v758
      %v4472 = vpop.permute.xlu0 %4471
      %4474 = vset.pattern.permute.xlu0 9
      %4475 = vperm.xlu0 %4474, %v763
      %v4476 = vpop.permute.xlu0 %4475
      %4478 = vset.pattern.permute.xlu0 9
      %4479 = vperm.xlu0 %4478, %v766
      %v4480 = vpop.permute.xlu0 %4479
      %4482 = vset.pattern.permute.xlu0 9
      %4483 = vperm.xlu0 %4482, %v771
      %v4484 = vpop.permute.xlu0 %4483
      %4486 = vset.pattern.permute.xlu0 9
      %4487 = vperm.xlu0 %4486, %v774
      %v4488 = vpop.permute.xlu0 %4487
      %4490 = vset.pattern.permute.xlu0 9
      %4491 = vperm.xlu0 %4490, %v779
      %v4492 = vpop.permute.xlu0 %4491
      %4494 = vset.pattern.permute.xlu0 9
      %4495 = vperm.xlu0 %4494, %v782
      %v4496 = vpop.permute.xlu0 %4495
      %4498 = vset.pattern.permute.xlu0 9
      %4499 = vperm.xlu0 %4498, %v787
      %v4500 = vpop.permute.xlu0 %4499
      %4502 = vset.pattern.permute.xlu0 9
      %4503 = vperm.xlu0 %4502, %v790
      %v4504 = vpop.permute.xlu0 %4503
      %v4506 = vsel %vm937, %v4444, 0.0
      %v4507 = vsel %vm938, %v4448, 0.0
      %v4508 = vsel %vm939, %v4452, 0.0
      %v4509 = vsel %vm940, %v4456, 0.0
      %v4510 = vsel %vm941, %v4460, 0.0
      %v4511 = vsel %vm942, %v4464, 0.0
      %v4512 = vsel %vm943, %v4468, 0.0
      %v4513 = vsel %vm944, %v4472, 0.0
      %v4514 = vsel %vm945, %v4476, 0.0
      %v4515 = vsel %vm946, %v4480, 0.0
      %v4516 = vsel %vm947, %v4484, 0.0
      %v4517 = vsel %vm948, %v4488, 0.0
      %v4518 = vsel %vm949, %v4492, 0.0
      %v4519 = vsel %vm950, %v4496, 0.0
      %v4520 = vsel %vm951, %v4500, 0.0
      %v4521 = vsel %vm952, %v4504, 0.0
      %v4522 = vadd.f32 %v4426, %v4506
      %v4523 = vadd.f32 %v4427, %v4507
      %v4524 = vadd.f32 %v4428, %v4508
      %v4525 = vadd.f32 %v4429, %v4509
      %v4526 = vadd.f32 %v4430, %v4510
      %v4527 = vadd.f32 %v4431, %v4511
      %v4528 = vadd.f32 %v4432, %v4512
      %v4529 = vadd.f32 %v4433, %v4513
      %v4530 = vadd.f32 %v4434, %v4514
      %v4531 = vadd.f32 %v4435, %v4515
      %v4532 = vadd.f32 %v4436, %v4516
      %v4533 = vadd.f32 %v4437, %v4517
      %v4534 = vadd.f32 %v4438, %v4518
      %v4535 = vadd.f32 %v4439, %v4519
      %v4536 = vadd.f32 %v4440, %v4520
      %v4537 = vadd.f32 %v4441, %v4521
      %4538 = vset.pattern.permute.xlu0 10
      %4539 = vperm.xlu0 %4538, %v731
      %v4540 = vpop.permute.xlu0 %4539
      %4542 = vset.pattern.permute.xlu0 10
      %4543 = vperm.xlu0 %4542, %v734
      %v4544 = vpop.permute.xlu0 %4543
      %4546 = vset.pattern.permute.xlu0 10
      %4547 = vperm.xlu0 %4546, %v739
      %v4548 = vpop.permute.xlu0 %4547
      %4550 = vset.pattern.permute.xlu0 10
      %4551 = vperm.xlu0 %4550, %v742
      %v4552 = vpop.permute.xlu0 %4551
      %4554 = vset.pattern.permute.xlu0 10
      %4555 = vperm.xlu0 %4554, %v747
      %v4556 = vpop.permute.xlu0 %4555
      %4558 = vset.pattern.permute.xlu0 10
      %4559 = vperm.xlu0 %4558, %v750
      %v4560 = vpop.permute.xlu0 %4559
      %4562 = vset.pattern.permute.xlu0 10
      %4563 = vperm.xlu0 %4562, %v755
      %v4564 = vpop.permute.xlu0 %4563
      %4566 = vset.pattern.permute.xlu0 10
      %4567 = vperm.xlu0 %4566, %v758
      %v4568 = vpop.permute.xlu0 %4567
      %4570 = vset.pattern.permute.xlu0 10
      %4571 = vperm.xlu0 %4570, %v763
      %v4572 = vpop.permute.xlu0 %4571
      %4574 = vset.pattern.permute.xlu0 10
      %4575 = vperm.xlu0 %4574, %v766
      %v4576 = vpop.permute.xlu0 %4575
      %4578 = vset.pattern.permute.xlu0 10
      %4579 = vperm.xlu0 %4578, %v771
      %v4580 = vpop.permute.xlu0 %4579
      %4582 = vset.pattern.permute.xlu0 10
      %4583 = vperm.xlu0 %4582, %v774
      %v4584 = vpop.permute.xlu0 %4583
      %4586 = vset.pattern.permute.xlu0 10
      %4587 = vperm.xlu0 %4586, %v779
      %v4588 = vpop.permute.xlu0 %4587
      %4590 = vset.pattern.permute.xlu0 10
      %4591 = vperm.xlu0 %4590, %v782
      %v4592 = vpop.permute.xlu0 %4591
      %4594 = vset.pattern.permute.xlu0 10
      %4595 = vperm.xlu0 %4594, %v787
      %v4596 = vpop.permute.xlu0 %4595
      %4598 = vset.pattern.permute.xlu0 10
      %4599 = vperm.xlu0 %4598, %v790
      %v4600 = vpop.permute.xlu0 %4599
      %v4602 = vsel %vm953, %v4540, 0.0
      %v4603 = vsel %vm954, %v4544, 0.0
      %v4604 = vsel %vm955, %v4548, 0.0
      %v4605 = vsel %vm956, %v4552, 0.0
      %v4606 = vsel %vm957, %v4556, 0.0
      %v4607 = vsel %vm958, %v4560, 0.0
      %v4608 = vsel %vm959, %v4564, 0.0
      %v4609 = vsel %vm960, %v4568, 0.0
      %v4610 = vsel %vm961, %v4572, 0.0
      %v4611 = vsel %vm962, %v4576, 0.0
      %v4612 = vsel %vm963, %v4580, 0.0
      %v4613 = vsel %vm964, %v4584, 0.0
      %v4614 = vsel %vm965, %v4588, 0.0
      %v4615 = vsel %vm966, %v4592, 0.0
      %v4616 = vsel %vm967, %v4596, 0.0
      %v4617 = vsel %vm968, %v4600, 0.0
      %v4618 = vadd.f32 %v4522, %v4602
      %v4619 = vadd.f32 %v4523, %v4603
      %v4620 = vadd.f32 %v4524, %v4604
      %v4621 = vadd.f32 %v4525, %v4605
      %v4622 = vadd.f32 %v4526, %v4606
      %v4623 = vadd.f32 %v4527, %v4607
      %v4624 = vadd.f32 %v4528, %v4608
      %v4625 = vadd.f32 %v4529, %v4609
      %v4626 = vadd.f32 %v4530, %v4610
      %v4627 = vadd.f32 %v4531, %v4611
      %v4628 = vadd.f32 %v4532, %v4612
      %v4629 = vadd.f32 %v4533, %v4613
      %v4630 = vadd.f32 %v4534, %v4614
      %v4631 = vadd.f32 %v4535, %v4615
      %v4632 = vadd.f32 %v4536, %v4616
      %v4633 = vadd.f32 %v4537, %v4617
      %4634 = vset.pattern.permute.xlu0 11
      %4635 = vperm.xlu0 %4634, %v731
      %v4636 = vpop.permute.xlu0 %4635
      %4638 = vset.pattern.permute.xlu0 11
      %4639 = vperm.xlu0 %4638, %v734
      %v4640 = vpop.permute.xlu0 %4639
      %4642 = vset.pattern.permute.xlu0 11
      %4643 = vperm.xlu0 %4642, %v739
      %v4644 = vpop.permute.xlu0 %4643
      %4646 = vset.pattern.permute.xlu0 11
      %4647 = vperm.xlu0 %4646, %v742
      %v4648 = vpop.permute.xlu0 %4647
      %4650 = vset.pattern.permute.xlu0 11
      %4651 = vperm.xlu0 %4650, %v747
      %v4652 = vpop.permute.xlu0 %4651
      %4654 = vset.pattern.permute.xlu0 11
      %4655 = vperm.xlu0 %4654, %v750
      %v4656 = vpop.permute.xlu0 %4655
      %4658 = vset.pattern.permute.xlu0 11
      %4659 = vperm.xlu0 %4658, %v755
      %v4660 = vpop.permute.xlu0 %4659
      %4662 = vset.pattern.permute.xlu0 11
      %4663 = vperm.xlu0 %4662, %v758
      %v4664 = vpop.permute.xlu0 %4663
      %4666 = vset.pattern.permute.xlu0 11
      %4667 = vperm.xlu0 %4666, %v763
      %v4668 = vpop.permute.xlu0 %4667
      %4670 = vset.pattern.permute.xlu0 11
      %4671 = vperm.xlu0 %4670, %v766
      %v4672 = vpop.permute.xlu0 %4671
      %4674 = vset.pattern.permute.xlu0 11
      %4675 = vperm.xlu0 %4674, %v771
      %v4676 = vpop.permute.xlu0 %4675
      %4678 = vset.pattern.permute.xlu0 11
      %4679 = vperm.xlu0 %4678, %v774
      %v4680 = vpop.permute.xlu0 %4679
      %4682 = vset.pattern.permute.xlu0 11
      %4683 = vperm.xlu0 %4682, %v779
      %v4684 = vpop.permute.xlu0 %4683
      %4686 = vset.pattern.permute.xlu0 11
      %4687 = vperm.xlu0 %4686, %v782
      %v4688 = vpop.permute.xlu0 %4687
      %4690 = vset.pattern.permute.xlu0 11
      %4691 = vperm.xlu0 %4690, %v787
      %v4692 = vpop.permute.xlu0 %4691
      %4694 = vset.pattern.permute.xlu0 11
      %4695 = vperm.xlu0 %4694, %v790
      %v4696 = vpop.permute.xlu0 %4695
      %v4698 = vsel %vm969, %v4636, 0.0
      %v4699 = vsel %vm970, %v4640, 0.0
      %v4700 = vsel %vm971, %v4644, 0.0
      %v4701 = vsel %vm972, %v4648, 0.0
      %v4702 = vsel %vm973, %v4652, 0.0
      %v4703 = vsel %vm974, %v4656, 0.0
      %v4704 = vsel %vm975, %v4660, 0.0
      %v4705 = vsel %vm976, %v4664, 0.0
      %v4706 = vsel %vm977, %v4668, 0.0
      %v4707 = vsel %vm978, %v4672, 0.0
      %v4708 = vsel %vm979, %v4676, 0.0
      %v4709 = vsel %vm980, %v4680, 0.0
      %v4710 = vsel %vm981, %v4684, 0.0
      %v4711 = vsel %vm982, %v4688, 0.0
      %v4712 = vsel %vm983, %v4692, 0.0
      %v4713 = vsel %vm984, %v4696, 0.0
      %v4714 = vadd.f32 %v4618, %v4698
      %v4715 = vadd.f32 %v4619, %v4699
      %v4716 = vadd.f32 %v4620, %v4700
      %v4717 = vadd.f32 %v4621, %v4701
      %v4718 = vadd.f32 %v4622, %v4702
      %v4719 = vadd.f32 %v4623, %v4703
      %v4720 = vadd.f32 %v4624, %v4704
      %v4721 = vadd.f32 %v4625, %v4705
      %v4722 = vadd.f32 %v4626, %v4706
      %v4723 = vadd.f32 %v4627, %v4707
      %v4724 = vadd.f32 %v4628, %v4708
      %v4725 = vadd.f32 %v4629, %v4709
      %v4726 = vadd.f32 %v4630, %v4710
      %v4727 = vadd.f32 %v4631, %v4711
      %v4728 = vadd.f32 %v4632, %v4712
      %v4729 = vadd.f32 %v4633, %v4713
      %4730 = vset.pattern.permute.xlu0 12
      %4731 = vperm.xlu0 %4730, %v731
      %v4732 = vpop.permute.xlu0 %4731
      %4734 = vset.pattern.permute.xlu0 12
      %4735 = vperm.xlu0 %4734, %v734
      %v4736 = vpop.permute.xlu0 %4735
      %4738 = vset.pattern.permute.xlu0 12
      %4739 = vperm.xlu0 %4738, %v739
      %v4740 = vpop.permute.xlu0 %4739
      %4742 = vset.pattern.permute.xlu0 12
      %4743 = vperm.xlu0 %4742, %v742
      %v4744 = vpop.permute.xlu0 %4743
      %4746 = vset.pattern.permute.xlu0 12
      %4747 = vperm.xlu0 %4746, %v747
      %v4748 = vpop.permute.xlu0 %4747
      %4750 = vset.pattern.permute.xlu0 12
      %4751 = vperm.xlu0 %4750, %v750
      %v4752 = vpop.permute.xlu0 %4751
      %4754 = vset.pattern.permute.xlu0 12
      %4755 = vperm.xlu0 %4754, %v755
      %v4756 = vpop.permute.xlu0 %4755
      %4758 = vset.pattern.permute.xlu0 12
      %4759 = vperm.xlu0 %4758, %v758
      %v4760 = vpop.permute.xlu0 %4759
      %4762 = vset.pattern.permute.xlu0 12
      %4763 = vperm.xlu0 %4762, %v763
      %v4764 = vpop.permute.xlu0 %4763
      %4766 = vset.pattern.permute.xlu0 12
      %4767 = vperm.xlu0 %4766, %v766
      %v4768 = vpop.permute.xlu0 %4767
      %4770 = vset.pattern.permute.xlu0 12
      %4771 = vperm.xlu0 %4770, %v771
      %v4772 = vpop.permute.xlu0 %4771
      %4774 = vset.pattern.permute.xlu0 12
      %4775 = vperm.xlu0 %4774, %v774
      %v4776 = vpop.permute.xlu0 %4775
      %4778 = vset.pattern.permute.xlu0 12
      %4779 = vperm.xlu0 %4778, %v779
      %v4780 = vpop.permute.xlu0 %4779
      %4782 = vset.pattern.permute.xlu0 12
      %4783 = vperm.xlu0 %4782, %v782
      %v4784 = vpop.permute.xlu0 %4783
      %4786 = vset.pattern.permute.xlu0 12
      %4787 = vperm.xlu0 %4786, %v787
      %v4788 = vpop.permute.xlu0 %4787
      %4790 = vset.pattern.permute.xlu0 12
      %4791 = vperm.xlu0 %4790, %v790
      %v4792 = vpop.permute.xlu0 %4791
      %v4794 = vsel %vm985, %v4732, 0.0
      %v4795 = vsel %vm986, %v4736, 0.0
      %v4796 = vsel %vm987, %v4740, 0.0
      %v4797 = vsel %vm988, %v4744, 0.0
      %v4798 = vsel %vm989, %v4748, 0.0
      %v4799 = vsel %vm990, %v4752, 0.0
      %v4800 = vsel %vm991, %v4756, 0.0
      %v4801 = vsel %vm992, %v4760, 0.0
      %v4802 = vsel %vm993, %v4764, 0.0
      %v4803 = vsel %vm994, %v4768, 0.0
      %v4804 = vsel %vm995, %v4772, 0.0
      %v4805 = vsel %vm996, %v4776, 0.0
      %v4806 = vsel %vm997, %v4780, 0.0
      %v4807 = vsel %vm998, %v4784, 0.0
      %v4808 = vsel %vm999, %v4788, 0.0
      %v4809 = vsel %vm1000, %v4792, 0.0
      %v4810 = vadd.f32 %v4714, %v4794
      %v4811 = vadd.f32 %v4715, %v4795
      %v4812 = vadd.f32 %v4716, %v4796
      %v4813 = vadd.f32 %v4717, %v4797
      %v4814 = vadd.f32 %v4718, %v4798
      %v4815 = vadd.f32 %v4719, %v4799
      %v4816 = vadd.f32 %v4720, %v4800
      %v4817 = vadd.f32 %v4721, %v4801
      %v4818 = vadd.f32 %v4722, %v4802
      %v4819 = vadd.f32 %v4723, %v4803
      %v4820 = vadd.f32 %v4724, %v4804
      %v4821 = vadd.f32 %v4725, %v4805
      %v4822 = vadd.f32 %v4726, %v4806
      %v4823 = vadd.f32 %v4727, %v4807
      %v4824 = vadd.f32 %v4728, %v4808
      %v4825 = vadd.f32 %v4729, %v4809
      %4826 = vset.pattern.permute.xlu0 13
      %4827 = vperm.xlu0 %4826, %v731
      %v4828 = vpop.permute.xlu0 %4827
      %4830 = vset.pattern.permute.xlu0 13
      %4831 = vperm.xlu0 %4830, %v734
      %v4832 = vpop.permute.xlu0 %4831
      %4834 = vset.pattern.permute.xlu0 13
      %4835 = vperm.xlu0 %4834, %v739
      %v4836 = vpop.permute.xlu0 %4835
      %4838 = vset.pattern.permute.xlu0 13
      %4839 = vperm.xlu0 %4838, %v742
      %v4840 = vpop.permute.xlu0 %4839
      %4842 = vset.pattern.permute.xlu0 13
      %4843 = vperm.xlu0 %4842, %v747
      %v4844 = vpop.permute.xlu0 %4843
      %4846 = vset.pattern.permute.xlu0 13
      %4847 = vperm.xlu0 %4846, %v750
      %v4848 = vpop.permute.xlu0 %4847
      %4850 = vset.pattern.permute.xlu0 13
      %4851 = vperm.xlu0 %4850, %v755
      %v4852 = vpop.permute.xlu0 %4851
      %4854 = vset.pattern.permute.xlu0 13
      %4855 = vperm.xlu0 %4854, %v758
      %v4856 = vpop.permute.xlu0 %4855
      %4858 = vset.pattern.permute.xlu0 13
      %4859 = vperm.xlu0 %4858, %v763
      %v4860 = vpop.permute.xlu0 %4859
      %4862 = vset.pattern.permute.xlu0 13
      %4863 = vperm.xlu0 %4862, %v766
      %v4864 = vpop.permute.xlu0 %4863
      %4866 = vset.pattern.permute.xlu0 13
      %4867 = vperm.xlu0 %4866, %v771
      %v4868 = vpop.permute.xlu0 %4867
      %4870 = vset.pattern.permute.xlu0 13
      %4871 = vperm.xlu0 %4870, %v774
      %v4872 = vpop.permute.xlu0 %4871
      %4874 = vset.pattern.permute.xlu0 13
      %4875 = vperm.xlu0 %4874, %v779
      %v4876 = vpop.permute.xlu0 %4875
      %4878 = vset.pattern.permute.xlu0 13
      %4879 = vperm.xlu0 %4878, %v782
      %v4880 = vpop.permute.xlu0 %4879
      %4882 = vset.pattern.permute.xlu0 13
      %4883 = vperm.xlu0 %4882, %v787
      %v4884 = vpop.permute.xlu0 %4883
      %4886 = vset.pattern.permute.xlu0 13
      %4887 = vperm.xlu0 %4886, %v790
      %v4888 = vpop.permute.xlu0 %4887
      %v4890 = vsel %vm1001, %v4828, 0.0
      %v4891 = vsel %vm1002, %v4832, 0.0
      %v4892 = vsel %vm1003, %v4836, 0.0
      %v4893 = vsel %vm1004, %v4840, 0.0
      %v4894 = vsel %vm1005, %v4844, 0.0
      %v4895 = vsel %vm1006, %v4848, 0.0
      %v4896 = vsel %vm1007, %v4852, 0.0
      %v4897 = vsel %vm1008, %v4856, 0.0
      %v4898 = vsel %vm1009, %v4860, 0.0
      %v4899 = vsel %vm1010, %v4864, 0.0
      %v4900 = vsel %vm1011, %v4868, 0.0
      %v4901 = vsel %vm1012, %v4872, 0.0
      %v4902 = vsel %vm1013, %v4876, 0.0
      %v4903 = vsel %vm1014, %v4880, 0.0
      %v4904 = vsel %vm1015, %v4884, 0.0
      %v4905 = vsel %vm1016, %v4888, 0.0
      %v4906 = vadd.f32 %v4810, %v4890
      %v4907 = vadd.f32 %v4811, %v4891
      %v4908 = vadd.f32 %v4812, %v4892
      %v4909 = vadd.f32 %v4813, %v4893
      %v4910 = vadd.f32 %v4814, %v4894
      %v4911 = vadd.f32 %v4815, %v4895
      %v4912 = vadd.f32 %v4816, %v4896
      %v4913 = vadd.f32 %v4817, %v4897
      %v4914 = vadd.f32 %v4818, %v4898
      %v4915 = vadd.f32 %v4819, %v4899
      %v4916 = vadd.f32 %v4820, %v4900
      %v4917 = vadd.f32 %v4821, %v4901
      %v4918 = vadd.f32 %v4822, %v4902
      %v4919 = vadd.f32 %v4823, %v4903
      %v4920 = vadd.f32 %v4824, %v4904
      %v4921 = vadd.f32 %v4825, %v4905
      %4922 = vset.pattern.permute.xlu0 14
      %4923 = vperm.xlu0 %4922, %v731
      %v4924 = vpop.permute.xlu0 %4923
      %4926 = vset.pattern.permute.xlu0 14
      %4927 = vperm.xlu0 %4926, %v734
      %v4928 = vpop.permute.xlu0 %4927
      %4930 = vset.pattern.permute.xlu0 14
      %4931 = vperm.xlu0 %4930, %v739
      %v4932 = vpop.permute.xlu0 %4931
      %4934 = vset.pattern.permute.xlu0 14
      %4935 = vperm.xlu0 %4934, %v742
      %v4936 = vpop.permute.xlu0 %4935
      %4938 = vset.pattern.permute.xlu0 14
      %4939 = vperm.xlu0 %4938, %v747
      %v4940 = vpop.permute.xlu0 %4939
      %4942 = vset.pattern.permute.xlu0 14
      %4943 = vperm.xlu0 %4942, %v750
      %v4944 = vpop.permute.xlu0 %4943
      %4946 = vset.pattern.permute.xlu0 14
      %4947 = vperm.xlu0 %4946, %v755
      %v4948 = vpop.permute.xlu0 %4947
      %4950 = vset.pattern.permute.xlu0 14
      %4951 = vperm.xlu0 %4950, %v758
      %v4952 = vpop.permute.xlu0 %4951
      %4954 = vset.pattern.permute.xlu0 14
      %4955 = vperm.xlu0 %4954, %v763
      %v4956 = vpop.permute.xlu0 %4955
      %4958 = vset.pattern.permute.xlu0 14
      %4959 = vperm.xlu0 %4958, %v766
      %v4960 = vpop.permute.xlu0 %4959
      %4962 = vset.pattern.permute.xlu0 14
      %4963 = vperm.xlu0 %4962, %v771
      %v4964 = vpop.permute.xlu0 %4963
      %4966 = vset.pattern.permute.xlu0 14
      %4967 = vperm.xlu0 %4966, %v774
      %v4968 = vpop.permute.xlu0 %4967
      %4970 = vset.pattern.permute.xlu0 14
      %4971 = vperm.xlu0 %4970, %v779
      %v4972 = vpop.permute.xlu0 %4971
      %4974 = vset.pattern.permute.xlu0 14
      %4975 = vperm.xlu0 %4974, %v782
      %v4976 = vpop.permute.xlu0 %4975
      %4978 = vset.pattern.permute.xlu0 14
      %4979 = vperm.xlu0 %4978, %v787
      %v4980 = vpop.permute.xlu0 %4979
      %4982 = vset.pattern.permute.xlu0 14
      %4983 = vperm.xlu0 %4982, %v790
      %v4984 = vpop.permute.xlu0 %4983
      %v4986 = vsel %vm1017, %v4924, 0.0
      %v4987 = vsel %vm1018, %v4928, 0.0
      %v4988 = vsel %vm1019, %v4932, 0.0
      %v4989 = vsel %vm1020, %v4936, 0.0
      %v4990 = vsel %vm1021, %v4940, 0.0
      %v4991 = vsel %vm1022, %v4944, 0.0
      %v4992 = vsel %vm1023, %v4948, 0.0
      %v4993 = vsel %vm1024, %v4952, 0.0
      %v4994 = vsel %vm1025, %v4956, 0.0
      %v4995 = vsel %vm1026, %v4960, 0.0
      %v4996 = vsel %vm1027, %v4964, 0.0
      %v4997 = vsel %vm1028, %v4968, 0.0
      %v4998 = vsel %vm1029, %v4972, 0.0
      %v4999 = vsel %vm1030, %v4976, 0.0
      %v5000 = vsel %vm1031, %v4980, 0.0
      %v5001 = vsel %vm1032, %v4984, 0.0
      %v5002 = vadd.f32 %v4906, %v4986
      %v5003 = vadd.f32 %v4907, %v4987
      %v5004 = vadd.f32 %v4908, %v4988
      %v5005 = vadd.f32 %v4909, %v4989
      %v5006 = vadd.f32 %v4910, %v4990
      %v5007 = vadd.f32 %v4911, %v4991
      %v5008 = vadd.f32 %v4912, %v4992
      %v5009 = vadd.f32 %v4913, %v4993
      %v5010 = vadd.f32 %v4914, %v4994
      %v5011 = vadd.f32 %v4915, %v4995
      %v5012 = vadd.f32 %v4916, %v4996
      %v5013 = vadd.f32 %v4917, %v4997
      %v5014 = vadd.f32 %v4918, %v4998
      %v5015 = vadd.f32 %v4919, %v4999
      %v5016 = vadd.f32 %v4920, %v5000
      %v5017 = vadd.f32 %v4921, %v5001
      %5018 = vset.pattern.permute.xlu0 15
      %5019 = vperm.xlu0 %5018, %v731
      %v5020 = vpop.permute.xlu0 %5019
      %5022 = vset.pattern.permute.xlu0 15
      %5023 = vperm.xlu0 %5022, %v734
      %v5024 = vpop.permute.xlu0 %5023
      %5026 = vset.pattern.permute.xlu0 15
      %5027 = vperm.xlu0 %5026, %v739
      %v5028 = vpop.permute.xlu0 %5027
      %5030 = vset.pattern.permute.xlu0 15
      %5031 = vperm.xlu0 %5030, %v742
      %v5032 = vpop.permute.xlu0 %5031
      %5034 = vset.pattern.permute.xlu0 15
      %5035 = vperm.xlu0 %5034, %v747
      %v5036 = vpop.permute.xlu0 %5035
      %5038 = vset.pattern.permute.xlu0 15
      %5039 = vperm.xlu0 %5038, %v750
      %v5040 = vpop.permute.xlu0 %5039
      %5042 = vset.pattern.permute.xlu0 15
      %5043 = vperm.xlu0 %5042, %v755
      %v5044 = vpop.permute.xlu0 %5043
      %5046 = vset.pattern.permute.xlu0 15
      %5047 = vperm.xlu0 %5046, %v758
      %v5048 = vpop.permute.xlu0 %5047
      %5050 = vset.pattern.permute.xlu0 15
      %5051 = vperm.xlu0 %5050, %v763
      %v5052 = vpop.permute.xlu0 %5051
      %5054 = vset.pattern.permute.xlu0 15
      %5055 = vperm.xlu0 %5054, %v766
      %v5056 = vpop.permute.xlu0 %5055
      %5058 = vset.pattern.permute.xlu0 15
      %5059 = vperm.xlu0 %5058, %v771
      %v5060 = vpop.permute.xlu0 %5059
      %5062 = vset.pattern.permute.xlu0 15
      %5063 = vperm.xlu0 %5062, %v774
      %v5064 = vpop.permute.xlu0 %5063
      %5066 = vset.pattern.permute.xlu0 15
      %5067 = vperm.xlu0 %5066, %v779
      %v5068 = vpop.permute.xlu0 %5067
      %5070 = vset.pattern.permute.xlu0 15
      %5071 = vperm.xlu0 %5070, %v782
      %v5072 = vpop.permute.xlu0 %5071
      %5074 = vset.pattern.permute.xlu0 15
      %5075 = vperm.xlu0 %5074, %v787
      %v5076 = vpop.permute.xlu0 %5075
      %5078 = vset.pattern.permute.xlu0 15
      %5079 = vperm.xlu0 %5078, %v790
      %v5080 = vpop.permute.xlu0 %5079
      %v5082 = vsel %vm1033, %v5020, 0.0
      %v5083 = vsel %vm1034, %v5024, 0.0
      %v5084 = vsel %vm1035, %v5028, 0.0
      %v5085 = vsel %vm1036, %v5032, 0.0
      %v5086 = vsel %vm1037, %v5036, 0.0
      %v5087 = vsel %vm1038, %v5040, 0.0
      %v5088 = vsel %vm1039, %v5044, 0.0
      %v5089 = vsel %vm1040, %v5048, 0.0
      %v5090 = vsel %vm1041, %v5052, 0.0
      %v5091 = vsel %vm1042, %v5056, 0.0
      %v5092 = vsel %vm1043, %v5060, 0.0
      %v5093 = vsel %vm1044, %v5064, 0.0
      %v5094 = vsel %vm1045, %v5068, 0.0
      %v5095 = vsel %vm1046, %v5072, 0.0
      %v5096 = vsel %vm1047, %v5076, 0.0
      %v5097 = vsel %vm1048, %v5080, 0.0
      %v5098 = vadd.f32 %v5002, %v5082
      %v5099 = vadd.f32 %v5003, %v5083
      %v5100 = vadd.f32 %v5004, %v5084
      %v5101 = vadd.f32 %v5005, %v5085
      %v5102 = vadd.f32 %v5006, %v5086
      %v5103 = vadd.f32 %v5007, %v5087
      %v5104 = vadd.f32 %v5008, %v5088
      %v5105 = vadd.f32 %v5009, %v5089
      %v5106 = vadd.f32 %v5010, %v5090
      %v5107 = vadd.f32 %v5011, %v5091
      %v5108 = vadd.f32 %v5012, %v5092
      %v5109 = vadd.f32 %v5013, %v5093
      %v5110 = vadd.f32 %v5014, %v5094
      %v5111 = vadd.f32 %v5015, %v5095
      %v5112 = vadd.f32 %v5016, %v5096
      %v5113 = vadd.f32 %v5017, %v5097
      %v5115 = vsel %vm2585, %v5098, 0
      %v5118 = vsel %vm2585, %v5099, 0
      %v5121 = vsel %vm2585, %v5100, 0
      %v5124 = vsel %vm2585, %v5101, 0
      %v5127 = vsel %vm2585, %v5102, 0
      %v5130 = vsel %vm2585, %v5103, 0
      %v5133 = vsel %vm2585, %v5104, 0
      %v5136 = vsel %vm2585, %v5105, 0
      %v5139 = vsel %vm2585, %v5106, 0
      %v5142 = vsel %vm2585, %v5107, 0
      %v5145 = vsel %vm2585, %v5108, 0
      %v5148 = vsel %vm2585, %v5109, 0
      %v5151 = vsel %vm2585, %v5110, 0
      %v5154 = vsel %vm2585, %v5111, 0
      %v5157 = vsel %vm2585, %v5112, 0
      %v5160 = vsel %vm2585, %v5113, 0
      %5162 = vmatprep.subr.mxu0 0.0
      %5163 = vmatpush1.msra.mxu0 0.0
      %5164 = vmatprep.subr.mxu0 0.0
      %5165 = vmatpush1.msra.mxu0 0.0
      %5166 = vmatprep.subr.mxu0 0.0
      %5167 = vmatpush1.msra.mxu0 0.0
      %5168 = vmatprep.subr.mxu0 0.0
      %5169 = vmatpush1.msra.mxu0 0.0
      %5170 = vmatprep.subr.mxu0 0.0
      %5171 = vmatpush1.msra.mxu0 0.0
      %5172 = vmatprep.subr.mxu0 0.0
      %5173 = vmatpush1.msra.mxu0 0.0
      %5174 = vmatprep.subr.mxu0 0.0
      %5175 = vmatpush1.msra.mxu0 0.0
      %5176 = vmatprep.subr.mxu0 0.0
      %5177 = vmatpush1.msra.mxu0 0.0
      %5178 = vmatprep.subr.mxu0 0.0
      %5179 = vmatpush1.msra.mxu0 0.0
      %5180 = vmatprep.subr.mxu0 0.0
      %5181 = vmatpush1.msra.mxu0 0.0
      %5182 = vmatprep.subr.mxu0 0.0
      %5183 = vmatpush1.msra.mxu0 0.0
      %5184 = vmatprep.subr.mxu0 0.0
      %5185 = vmatpush1.msra.mxu0 0.0
      %5186 = vmatprep.subr.mxu0 0.0
      %5187 = vmatpush1.msra.mxu0 0.0
      %5188 = vmatprep.subr.mxu0 0.0
      %5189 = vmatpush1.msra.mxu0 0.0
      %5190 = vmatprep.subr.mxu0 0.0
      %5191 = vmatpush1.msra.mxu0 0.0
      %5192 = vmatprep.subr.mxu0 0.0
      %5193 = vmatpush1.msra.mxu0 %v368
      %5194 = vmatprep.subr.mxu0 0.0
      %5195 = vmatpush2.msra.mxu0 0.0
      %5196 = vmatprep.subr.mxu0 0.0
      %5197 = vmatpush2.msra.mxu0 0.0
      %5198 = vmatprep.subr.mxu0 0.0
      %5199 = vmatpush2.msra.mxu0 0.0
      %5200 = vmatprep.subr.mxu0 0.0
      %5201 = vmatpush2.msra.mxu0 0.0
      %5202 = vmatprep.subr.mxu0 0.0
      %5203 = vmatpush2.msra.mxu0 0.0
      %5204 = vmatprep.subr.mxu0 0.0
      %5205 = vmatpush2.msra.mxu0 0.0
      %5206 = vmatprep.subr.mxu0 0.0
      %5207 = vmatpush2.msra.mxu0 0.0
      %5208 = vmatprep.subr.mxu0 0.0
      %5209 = vmatpush2.msra.mxu0 0.0
      %5210 = vmatprep.subr.mxu0 0.0
      %5211 = vmatpush2.msra.mxu0 0.0
      %5212 = vmatprep.subr.mxu0 0.0
      %5213 = vmatpush2.msra.mxu0 0.0
      %5214 = vmatprep.subr.mxu0 0.0
      %5215 = vmatpush2.msra.mxu0 0.0
      %5216 = vmatprep.subr.mxu0 0.0
      %5217 = vmatpush2.msra.mxu0 0.0
      %5218 = vmatprep.subr.mxu0 0.0
      %5219 = vmatpush2.msra.mxu0 0.0
      %5220 = vmatprep.subr.mxu0 0.0
      %5221 = vmatpush2.msra.mxu0 0.0
      %5222 = vmatprep.subr.mxu0 0.0
      %5223 = vmatpush2.msra.mxu0 0.0
      %5224 = vmatprep.subr.mxu0 0.0
      %5225 = vmatpush2.msra.mxu0 0.0
      %5226 = vmatprep.mubr.f32.mxu0 0.0
      %5227 = vmatmul.mubr.f32.gmra.mxu0 %v5115
      %v5228 = vpop.f32.mrf.mxu0
      %v5229 = vadd.f32 0.0, %v5228
      %v5230 = vpop.f32.mrf.mxu0
      %5231 = vmatprep.mubr.f32.mxu0 0.0
      %5232 = vmatmul.mubr.f32.gmra.mxu0 %v5118
      %v5233 = vpop.f32.mrf.mxu0
      %v5234 = vadd.f32 0.0, %v5233
      %v5235 = vpop.f32.mrf.mxu0
      %5236 = vmatprep.mubr.f32.mxu0 0.0
      %5237 = vmatmul.mubr.f32.gmra.mxu0 %v5121
      %v5238 = vpop.f32.mrf.mxu0
      %v5239 = vadd.f32 0.0, %v5238
      %v5240 = vpop.f32.mrf.mxu0
      %5241 = vmatprep.mubr.f32.mxu0 0.0
      %5242 = vmatmul.mubr.f32.gmra.mxu0 %v5124
      %v5243 = vpop.f32.mrf.mxu0
      %v5244 = vadd.f32 0.0, %v5243
      %v5245 = vpop.f32.mrf.mxu0
      %5246 = vmatprep.mubr.f32.mxu0 0.0
      %5247 = vmatmul.mubr.f32.gmra.mxu0 %v5127
      %v5248 = vpop.f32.mrf.mxu0
      %v5249 = vadd.f32 0.0, %v5248
      %v5250 = vpop.f32.mrf.mxu0
      %5251 = vmatprep.mubr.f32.mxu0 0.0
      %5252 = vmatmul.mubr.f32.gmra.mxu0 %v5130
      %v5253 = vpop.f32.mrf.mxu0
      %v5254 = vadd.f32 0.0, %v5253
      %v5255 = vpop.f32.mrf.mxu0
      %5256 = vmatprep.mubr.f32.mxu0 0.0
      %5257 = vmatmul.mubr.f32.gmra.mxu0 %v5133
      %v5258 = vpop.f32.mrf.mxu0
      %v5259 = vadd.f32 0.0, %v5258
      %v5260 = vpop.f32.mrf.mxu0
      %5261 = vmatprep.mubr.f32.mxu0 0.0
      %5262 = vmatmul.mubr.f32.gmra.mxu0 %v5136
      %v5263 = vpop.f32.mrf.mxu0
      %v5264 = vadd.f32 0.0, %v5263
      %v5265 = vpop.f32.mrf.mxu0
      %5266 = vmatprep.mubr.f32.mxu0 0.0
      %5267 = vmatmul.mubr.f32.gmra.mxu0 %v5139
      %v5268 = vpop.f32.mrf.mxu0
      %v5269 = vadd.f32 0.0, %v5268
      %v5270 = vpop.f32.mrf.mxu0
      %5271 = vmatprep.mubr.f32.mxu0 0.0
      %5272 = vmatmul.mubr.f32.gmra.mxu0 %v5142
      %v5273 = vpop.f32.mrf.mxu0
      %v5274 = vadd.f32 0.0, %v5273
      %v5275 = vpop.f32.mrf.mxu0
      %5276 = vmatprep.mubr.f32.mxu0 0.0
      %5277 = vmatmul.mubr.f32.gmra.mxu0 %v5145
      %v5278 = vpop.f32.mrf.mxu0
      %v5279 = vadd.f32 0.0, %v5278
      %v5280 = vpop.f32.mrf.mxu0
      %5281 = vmatprep.mubr.f32.mxu0 0.0
      %5282 = vmatmul.mubr.f32.gmra.mxu0 %v5148
      %v5283 = vpop.f32.mrf.mxu0
      %v5284 = vadd.f32 0.0, %v5283
      %v5285 = vpop.f32.mrf.mxu0
      %5286 = vmatprep.mubr.f32.mxu0 0.0
      %5287 = vmatmul.mubr.f32.gmra.mxu0 %v5151
      %v5288 = vpop.f32.mrf.mxu0
      %v5289 = vadd.f32 0.0, %v5288
      %v5290 = vpop.f32.mrf.mxu0
      %5291 = vmatprep.mubr.f32.mxu0 0.0
      %5292 = vmatmul.mubr.f32.gmra.mxu0 %v5154
      %v5293 = vpop.f32.mrf.mxu0
      %v5294 = vadd.f32 0.0, %v5293
      %v5295 = vpop.f32.mrf.mxu0
      %5296 = vmatprep.mubr.f32.mxu0 0.0
      %5297 = vmatmul.mubr.f32.gmra.mxu0 %v5157
      %v5298 = vpop.f32.mrf.mxu0
      %v5299 = vadd.f32 0.0, %v5298
      %v5300 = vpop.f32.mrf.mxu0
      %5301 = vmatprep.mubr.f32.mxu0 0.0
      %5302 = vmatmul.mubr.f32.gmra.mxu0 %v5160
      %v5303 = vpop.f32.mrf.mxu0
      %v5304 = vadd.f32 0.0, %v5303
      %v5305 = vpop.f32.mrf.mxu0
      %5306 = vdwg.mxu0
      %v5308 = vsel %vm2585, %v4346, 0
      %v5311 = vsel %vm2585, %v4347, 0
      %v5314 = vsel %vm2585, %v4348, 0
      %v5317 = vsel %vm2585, %v4349, 0
      %v5320 = vsel %vm2585, %v4350, 0
      %v5323 = vsel %vm2585, %v4351, 0
      %v5326 = vsel %vm2585, %v4352, 0
      %v5329 = vsel %vm2585, %v4353, 0
      %v5332 = vsel %vm2585, %v4354, 0
      %v5335 = vsel %vm2585, %v4355, 0
      %v5338 = vsel %vm2585, %v4356, 0
      %v5341 = vsel %vm2585, %v4357, 0
      %v5344 = vsel %vm2585, %v4358, 0
      %v5347 = vsel %vm2585, %v4359, 0
      %v5350 = vsel %vm2585, %v4360, 0
      %v5353 = vsel %vm2585, %v4361, 0
      %5355 = vmatprep.subr.mxu0 0.0
      %5356 = vmatpush1.msra.mxu0 0.0
      %5357 = vmatprep.subr.mxu0 0.0
      %5358 = vmatpush1.msra.mxu0 0.0
      %5359 = vmatprep.subr.mxu0 0.0
      %5360 = vmatpush1.msra.mxu0 0.0
      %5361 = vmatprep.subr.mxu0 0.0
      %5362 = vmatpush1.msra.mxu0 0.0
      %5363 = vmatprep.subr.mxu0 0.0
      %5364 = vmatpush1.msra.mxu0 0.0
      %5365 = vmatprep.subr.mxu0 0.0
      %5366 = vmatpush1.msra.mxu0 0.0
      %5367 = vmatprep.subr.mxu0 0.0
      %5368 = vmatpush1.msra.mxu0 0.0
      %5369 = vmatprep.subr.mxu0 0.0
      %5370 = vmatpush1.msra.mxu0 0.0
      %5371 = vmatprep.subr.mxu0 0.0
      %5372 = vmatpush1.msra.mxu0 0.0
      %5373 = vmatprep.subr.mxu0 0.0
      %5374 = vmatpush1.msra.mxu0 0.0
      %5375 = vmatprep.subr.mxu0 0.0
      %5376 = vmatpush1.msra.mxu0 0.0
      %5377 = vmatprep.subr.mxu0 0.0
      %5378 = vmatpush1.msra.mxu0 0.0
      %5379 = vmatprep.subr.mxu0 0.0
      %5380 = vmatpush1.msra.mxu0 0.0
      %5381 = vmatprep.subr.mxu0 0.0
      %5382 = vmatpush1.msra.mxu0 0.0
      %5383 = vmatprep.subr.mxu0 0.0
      %5384 = vmatpush1.msra.mxu0 0.0
      %5385 = vmatprep.subr.mxu0 0.0
      %5386 = vmatpush1.msra.mxu0 %v367
      %5387 = vmatprep.subr.mxu0 0.0
      %5388 = vmatpush2.msra.mxu0 0.0
      %5389 = vmatprep.subr.mxu0 0.0
      %5390 = vmatpush2.msra.mxu0 0.0
      %5391 = vmatprep.subr.mxu0 0.0
      %5392 = vmatpush2.msra.mxu0 0.0
      %5393 = vmatprep.subr.mxu0 0.0
      %5394 = vmatpush2.msra.mxu0 0.0
      %5395 = vmatprep.subr.mxu0 0.0
      %5396 = vmatpush2.msra.mxu0 0.0
      %5397 = vmatprep.subr.mxu0 0.0
      %5398 = vmatpush2.msra.mxu0 0.0
      %5399 = vmatprep.subr.mxu0 0.0
      %5400 = vmatpush2.msra.mxu0 0.0
      %5401 = vmatprep.subr.mxu0 0.0
      %5402 = vmatpush2.msra.mxu0 0.0
      %5403 = vmatprep.subr.mxu0 0.0
      %5404 = vmatpush2.msra.mxu0 0.0
      %5405 = vmatprep.subr.mxu0 0.0
      %5406 = vmatpush2.msra.mxu0 0.0
      %5407 = vmatprep.subr.mxu0 0.0
      %5408 = vmatpush2.msra.mxu0 0.0
      %5409 = vmatprep.subr.mxu0 0.0
      %5410 = vmatpush2.msra.mxu0 0.0
      %5411 = vmatprep.subr.mxu0 0.0
      %5412 = vmatpush2.msra.mxu0 0.0
      %5413 = vmatprep.subr.mxu0 0.0
      %5414 = vmatpush2.msra.mxu0 0.0
      %5415 = vmatprep.subr.mxu0 0.0
      %5416 = vmatpush2.msra.mxu0 0.0
      %5417 = vmatprep.subr.mxu0 0.0
      %5418 = vmatpush2.msra.mxu0 0.0
      %5419 = vmatprep.mubr.f32.mxu0 0.0
      %5420 = vmatmul.mubr.f32.gmra.mxu0 %v5308
      %v5421 = vpop.f32.mrf.mxu0
      %v5422 = vadd.f32 %v5229, %v5421
      %v5423 = vpop.f32.mrf.mxu0
      %5424 = vmatprep.mubr.f32.mxu0 0.0
      %5425 = vmatmul.mubr.f32.gmra.mxu0 %v5311
      %v5426 = vpop.f32.mrf.mxu0
      %v5427 = vadd.f32 %v5234, %v5426
      %v5428 = vpop.f32.mrf.mxu0
      %5429 = vmatprep.mubr.f32.mxu0 0.0
      %5430 = vmatmul.mubr.f32.gmra.mxu0 %v5314
      %v5431 = vpop.f32.mrf.mxu0
      %v5432 = vadd.f32 %v5239, %v5431
      %v5433 = vpop.f32.mrf.mxu0
      %5434 = vmatprep.mubr.f32.mxu0 0.0
      %5435 = vmatmul.mubr.f32.gmra.mxu0 %v5317
      %v5436 = vpop.f32.mrf.mxu0
      %v5437 = vadd.f32 %v5244, %v5436
      %v5438 = vpop.f32.mrf.mxu0
      %5439 = vmatprep.mubr.f32.mxu0 0.0
      %5440 = vmatmul.mubr.f32.gmra.mxu0 %v5320
      %v5441 = vpop.f32.mrf.mxu0
      %v5442 = vadd.f32 %v5249, %v5441
      %v5443 = vpop.f32.mrf.mxu0
      %5444 = vmatprep.mubr.f32.mxu0 0.0
      %5445 = vmatmul.mubr.f32.gmra.mxu0 %v5323
      %v5446 = vpop.f32.mrf.mxu0
      %v5447 = vadd.f32 %v5254, %v5446
      %v5448 = vpop.f32.mrf.mxu0
      %5449 = vmatprep.mubr.f32.mxu0 0.0
      %5450 = vmatmul.mubr.f32.gmra.mxu0 %v5326
      %v5451 = vpop.f32.mrf.mxu0
      %v5452 = vadd.f32 %v5259, %v5451
      %v5453 = vpop.f32.mrf.mxu0
      %5454 = vmatprep.mubr.f32.mxu0 0.0
      %5455 = vmatmul.mubr.f32.gmra.mxu0 %v5329
      %v5456 = vpop.f32.mrf.mxu0
      %v5457 = vadd.f32 %v5264, %v5456
      %v5458 = vpop.f32.mrf.mxu0
      %5459 = vmatprep.mubr.f32.mxu0 0.0
      %5460 = vmatmul.mubr.f32.gmra.mxu0 %v5332
      %v5461 = vpop.f32.mrf.mxu0
      %v5462 = vadd.f32 %v5269, %v5461
      %v5463 = vpop.f32.mrf.mxu0
      %5464 = vmatprep.mubr.f32.mxu0 0.0
      %5465 = vmatmul.mubr.f32.gmra.mxu0 %v5335
      %v5466 = vpop.f32.mrf.mxu0
      %v5467 = vadd.f32 %v5274, %v5466
      %v5468 = vpop.f32.mrf.mxu0
      %5469 = vmatprep.mubr.f32.mxu0 0.0
      %5470 = vmatmul.mubr.f32.gmra.mxu0 %v5338
      %v5471 = vpop.f32.mrf.mxu0
      %v5472 = vadd.f32 %v5279, %v5471
      %v5473 = vpop.f32.mrf.mxu0
      %5474 = vmatprep.mubr.f32.mxu0 0.0
      %5475 = vmatmul.mubr.f32.gmra.mxu0 %v5341
      %v5476 = vpop.f32.mrf.mxu0
      %v5477 = vadd.f32 %v5284, %v5476
      %v5478 = vpop.f32.mrf.mxu0
      %5479 = vmatprep.mubr.f32.mxu0 0.0
      %5480 = vmatmul.mubr.f32.gmra.mxu0 %v5344
      %v5481 = vpop.f32.mrf.mxu0
      %v5482 = vadd.f32 %v5289, %v5481
      %v5483 = vpop.f32.mrf.mxu0
      %5484 = vmatprep.mubr.f32.mxu0 0.0
      %5485 = vmatmul.mubr.f32.gmra.mxu0 %v5347
      %v5486 = vpop.f32.mrf.mxu0
      %v5487 = vadd.f32 %v5294, %v5486
      %v5488 = vpop.f32.mrf.mxu0
      %5489 = vmatprep.mubr.f32.mxu0 0.0
      %5490 = vmatmul.mubr.f32.gmra.mxu0 %v5350
      %v5491 = vpop.f32.mrf.mxu0
      %v5492 = vadd.f32 %v5299, %v5491
      %v5493 = vpop.f32.mrf.mxu0
      %5494 = vmatprep.mubr.f32.mxu0 0.0
      %5495 = vmatmul.mubr.f32.gmra.mxu0 %v5353
      %v5496 = vpop.f32.mrf.mxu0
      %v5497 = vadd.f32 %v5304, %v5496
      %v5498 = vpop.f32.mrf.mxu0
      %5499 = vdwg.mxu0
      %5500 = vrot.lane.b32.xlu0 %v543, 120
      %v5501 = vpop.permute.xlu0 %5500
      %5502 = vrot.lane.b32.xlu0 %v544, 120
      %v5503 = vpop.permute.xlu0 %5502
      %5504 = vrot.lane.b32.xlu0 %v545, 120
      %v5505 = vpop.permute.xlu0 %5504
      %5506 = vrot.lane.b32.xlu0 %v546, 120
      %v5507 = vpop.permute.xlu0 %5506
      %5508 = vrot.lane.b32.xlu0 %v543, 88
      %v5509 = vpop.permute.xlu0 %5508
      %5510 = vrot.lane.b32.xlu0 %v544, 88
      %v5511 = vpop.permute.xlu0 %5510
      %5512 = vrot.lane.b32.xlu0 %v545, 88
      %v5513 = vpop.permute.xlu0 %5512
      %5514 = vrot.lane.b32.xlu0 %v546, 88
      %v5515 = vpop.permute.xlu0 %5514
      %v5517 = vsel %vm2585, %v5501, 0
      %v5520 = vsel %vm2585, %v5503, 0
      %v5523 = vsel %vm2585, %v5505, 0
      %v5526 = vsel %vm2585, %v5507, 0
      %v5529 = vsel %vm2585, %v5509, 0
      %v5532 = vsel %vm2585, %v5511, 0
      %v5535 = vsel %vm2585, %v5513, 0
      %v5538 = vsel %vm2585, %v5515, 0
      %5540 = vmatprep.subr.bf16.mxu0 0
      %5541 = vmatpush1.bf16.xpose.msra.mxu0 0
      %5542 = vmatprep.subr.bf16.mxu0 0
      %5543 = vmatpush1.bf16.xpose.msra.mxu0 0
      %5544 = vmatprep.subr.bf16.mxu0 0
      %5545 = vmatpush1.bf16.xpose.msra.mxu0 0
      %5546 = vmatprep.subr.bf16.mxu0 0
      %5547 = vmatpush1.bf16.xpose.msra.mxu0 0
      %5548 = vmatprep.subr.bf16.mxu0 0
      %5549 = vmatpush1.bf16.xpose.msra.mxu0 %v5538
      %5550 = vmatprep.subr.bf16.mxu0 0
      %5551 = vmatpush1.bf16.xpose.msra.mxu0 %v5535
      %5552 = vmatprep.subr.bf16.mxu0 0
      %5553 = vmatpush1.bf16.xpose.msra.mxu0 %v5532
      %5554 = vmatprep.subr.bf16.mxu0 0
      %5555 = vmatpush1.bf16.xpose.msra.mxu0 %v5529
      %5556 = vmatprep.subr.bf16.mxu0 0
      %5557 = vmatpush2.bf16.xpose.msra.mxu0 0
      %5558 = vmatprep.subr.bf16.mxu0 0
      %5559 = vmatpush2.bf16.xpose.msra.mxu0 0
      %5560 = vmatprep.subr.bf16.mxu0 0
      %5561 = vmatpush2.bf16.xpose.msra.mxu0 0
      %5562 = vmatprep.subr.bf16.mxu0 0
      %5563 = vmatpush2.bf16.xpose.msra.mxu0 0
      %5564 = vmatprep.subr.bf16.mxu0 0
      %5565 = vmatpush2.bf16.xpose.msra.mxu0 0
      %5566 = vmatprep.subr.bf16.mxu0 0
      %5567 = vmatpush2.bf16.xpose.msra.mxu0 0
      %5568 = vmatprep.subr.bf16.mxu0 0
      %5569 = vmatpush2.bf16.xpose.msra.mxu0 0
      %5570 = vmatprep.subr.bf16.mxu0 0
      %5571 = vmatpush2.bf16.xpose.msra.mxu0 0
      %5572 = vmatprep.mubr.bf16.mxu0 0
      %5573 = vmatmul.mubr.bf16.gmra.mxu0 %v5517
      %v5574 = vpop.f32.mrf.mxu0
      %v5575 = vadd.f32 %v5422, %v5574
      %v5576 = vpop.f32.mrf.mxu0
      %v5577 = vpop.f32.mrf.mxu0
      %v5578 = vadd.f32 %v5427, %v5577
      %v5579 = vpop.f32.mrf.mxu0
      %5580 = vmatprep.mubr.bf16.mxu0 0
      %5581 = vmatmul.mubr.bf16.gmra.mxu0 %v5520
      %v5582 = vpop.f32.mrf.mxu0
      %v5583 = vadd.f32 %v5432, %v5582
      %v5584 = vpop.f32.mrf.mxu0
      %v5585 = vpop.f32.mrf.mxu0
      %v5586 = vadd.f32 %v5437, %v5585
      %v5587 = vpop.f32.mrf.mxu0
      %5588 = vmatprep.mubr.bf16.mxu0 0
      %5589 = vmatmul.mubr.bf16.gmra.mxu0 %v5523
      %v5590 = vpop.f32.mrf.mxu0
      %v5591 = vadd.f32 %v5442, %v5590
      %v5592 = vpop.f32.mrf.mxu0
      %v5593 = vpop.f32.mrf.mxu0
      %v5594 = vadd.f32 %v5447, %v5593
      %v5595 = vpop.f32.mrf.mxu0
      %5596 = vmatprep.mubr.bf16.mxu0 0
      %5597 = vmatmul.mubr.bf16.gmra.mxu0 %v5526
      %v5598 = vpop.f32.mrf.mxu0
      %v5599 = vadd.f32 %v5452, %v5598
      %v5600 = vpop.f32.mrf.mxu0
      %v5601 = vpop.f32.mrf.mxu0
      %v5602 = vadd.f32 %v5457, %v5601
      %v5603 = vpop.f32.mrf.mxu0
      %5604 = vdwg.mxu0
      %v5605 = vsel %vm3069, %v5575, -inf
      %5606 = vmax.xlane.f32.xlu0 %v5605
      %v5607 = vpop.xlane.xlu0 %5606
      %v5608 = vsel %vm3069, %v5578, -inf
      %5609 = vmax.xlane.f32.xlu0 %v5608
      %v5610 = vpop.xlane.xlu0 %5609
      %v5611 = vsel %vm3069, %v5583, -inf
      %5612 = vmax.xlane.f32.xlu0 %v5611
      %v5613 = vpop.xlane.xlu0 %5612
      %v5614 = vsel %vm3069, %v5586, -inf
      %5615 = vmax.xlane.f32.xlu0 %v5614
      %v5616 = vpop.xlane.xlu0 %5615
      %v5617 = vsel %vm3069, %v5591, -inf
      %5618 = vmax.xlane.f32.xlu0 %v5617
      %v5619 = vpop.xlane.xlu0 %5618
      %v5620 = vsel %vm3069, %v5594, -inf
      %5621 = vmax.xlane.f32.xlu0 %v5620
      %v5622 = vpop.xlane.xlu0 %5621
      %v5623 = vsel %vm3069, %v5599, -inf
      %5624 = vmax.xlane.f32.xlu0 %v5623
      %v5625 = vpop.xlane.xlu0 %5624
      %v5626 = vsel %vm3069, %v5602, -inf
      %5627 = vmax.xlane.f32.xlu0 %v5626
      %v5628 = vpop.xlane.xlu0 %5627
      %v5629 = vsub.f32 %v5575, %v5607
      %v5630 = vsub.f32 %v5578, %v5610
      %v5631 = vsub.f32 %v5583, %v5613
      %v5632 = vsub.f32 %v5586, %v5616
      %v5633 = vsub.f32 %v5591, %v5619
      %v5634 = vsub.f32 %v5594, %v5622
      %v5635 = vsub.f32 %v5599, %v5625
      %v5636 = vsub.f32 %v5602, %v5628
      %v5637 = vmul.f32 %v5629, 1.442695
      %v5638 = vpow.pop %v5637
      %v5639 = vmul.f32 %v5630, 1.442695
      %v5640 = vpow.pop %v5639
      %v5641 = vmul.f32 %v5631, 1.442695
      %v5642 = vpow.pop %v5641
      %v5643 = vmul.f32 %v5632, 1.442695
      %v5644 = vpow.pop %v5643
      %v5645 = vmul.f32 %v5633, 1.442695
      %v5646 = vpow.pop %v5645
      %v5647 = vmul.f32 %v5634, 1.442695
      %v5648 = vpow.pop %v5647
      %v5649 = vmul.f32 %v5635, 1.442695
      %v5650 = vpow.pop %v5649
      %v5651 = vmul.f32 %v5636, 1.442695
      %v5652 = vpow.pop %v5651
      %v5653 = vsel %vm3069, %v5638, 0.0
      %5654 = vadd.xlane.f32.xlu0 %v5653
      %v5655 = vpop.xlane.xlu0 %5654
      %v5656 = vsel %vm3069, %v5640, 0.0
      %5657 = vadd.xlane.f32.xlu0 %v5656
      %v5658 = vpop.xlane.xlu0 %5657
      %v5659 = vsel %vm3069, %v5642, 0.0
      %5660 = vadd.xlane.f32.xlu0 %v5659
      %v5661 = vpop.xlane.xlu0 %5660
      %v5662 = vsel %vm3069, %v5644, 0.0
      %5663 = vadd.xlane.f32.xlu0 %v5662
      %v5664 = vpop.xlane.xlu0 %5663
      %v5665 = vsel %vm3069, %v5646, 0.0
      %5666 = vadd.xlane.f32.xlu0 %v5665
      %v5667 = vpop.xlane.xlu0 %5666
      %v5668 = vsel %vm3069, %v5648, 0.0
      %5669 = vadd.xlane.f32.xlu0 %v5668
      %v5670 = vpop.xlane.xlu0 %5669
      %v5671 = vsel %vm3069, %v5650, 0.0
      %5672 = vadd.xlane.f32.xlu0 %v5671
      %v5673 = vpop.xlane.xlu0 %5672
      %v5674 = vsel %vm3069, %v5652, 0.0
      %5675 = vadd.xlane.f32.xlu0 %v5674
      %v5676 = vpop.xlane.xlu0 %5675
      %v5677 = vrcp.pop %v5655
      %v5678 = vrcp.pop %v5658
      %v5679 = vrcp.pop %v5661
      %v5680 = vrcp.pop %v5664
      %v5681 = vrcp.pop %v5667
      %v5682 = vrcp.pop %v5670
      %v5683 = vrcp.pop %v5673
      %v5684 = vrcp.pop %v5676
      %v5685 = vmul.f32 %v5638, %v5677
      %v5686 = vmul.f32 %v5640, %v5678
      %v5687 = vmul.f32 %v5642, %v5679
      %v5688 = vmul.f32 %v5644, %v5680
      %v5689 = vmul.f32 %v5646, %v5681
      %v5690 = vmul.f32 %v5648, %v5682
      %v5691 = vmul.f32 %v5650, %v5683
      %v5692 = vmul.f32 %v5652, %v5684
      %v5693 = vpack.c.bf16 %v5686, %v5685
      %v5694 = vpack.c.bf16 %v5688, %v5687
      %v5695 = vpack.c.bf16 %v5690, %v5689
      %v5696 = vpack.c.bf16 %v5692, %v5691
      %5697 = vrot.lane.b32.xlu0 %v543, 56
      %v5698 = vpop.permute.xlu0 %5697
      %5699 = vrot.lane.b32.xlu0 %v544, 56
      %v5700 = vpop.permute.xlu0 %5699
      %5701 = vrot.lane.b32.xlu0 %v545, 56
      %v5702 = vpop.permute.xlu0 %5701
      %5703 = vrot.lane.b32.xlu0 %v546, 56
      %v5704 = vpop.permute.xlu0 %5703
      %v5710 = vsel %vm3069, %v5693, 0
      %v5713 = vsel %vm3069, %v5694, 0
      %v5716 = vsel %vm3069, %v5695, 0
      %v5719 = vsel %vm3069, %v5696, 0
      %5721 = vmatprep.subr.bf16.mxu0 0
      %5722 = vmatpush1.bf16.msra.mxu0 0
      %5723 = vmatprep.subr.bf16.mxu0 0
      %5724 = vmatpush1.bf16.msra.mxu0 0
      %5725 = vmatprep.subr.bf16.mxu0 0
      %5726 = vmatpush1.bf16.msra.mxu0 0
      %5727 = vmatprep.subr.bf16.mxu0 0
      %5728 = vmatpush1.bf16.msra.mxu0 0
      %5729 = vmatprep.subr.bf16.mxu0 0
      %5730 = vmatpush1.bf16.msra.mxu0 %v5704
      %5731 = vmatprep.subr.bf16.mxu0 0
      %5732 = vmatpush1.bf16.msra.mxu0 %v5702
      %5733 = vmatprep.subr.bf16.mxu0 0
      %5734 = vmatpush1.bf16.msra.mxu0 %v5700
      %5735 = vmatprep.subr.bf16.mxu0 0
      %5736 = vmatpush1.bf16.msra.mxu0 %v5698
      %5737 = vmatprep.subr.bf16.mxu0 0
      %5738 = vmatpush2.bf16.msra.mxu0 0
      %5739 = vmatprep.subr.bf16.mxu0 0
      %5740 = vmatpush2.bf16.msra.mxu0 0
      %5741 = vmatprep.subr.bf16.mxu0 0
      %5742 = vmatpush2.bf16.msra.mxu0 0
      %5743 = vmatprep.subr.bf16.mxu0 0
      %5744 = vmatpush2.bf16.msra.mxu0 0
      %5745 = vmatprep.subr.bf16.mxu0 0
      %5746 = vmatpush2.bf16.msra.mxu0 0
      %5747 = vmatprep.subr.bf16.mxu0 0
      %5748 = vmatpush2.bf16.msra.mxu0 0
      %5749 = vmatprep.subr.bf16.mxu0 0
      %5750 = vmatpush2.bf16.msra.mxu0 0
      %5751 = vmatprep.subr.bf16.mxu0 0
      %5752 = vmatpush2.bf16.msra.mxu0 0
      %5753 = vmatprep.mubr.bf16.mxu0 0
      %5754 = vmatmul.mubr.bf16.gmra.mxu0 %v5710
      %v5755 = vpop.f32.mrf.mxu0
      %v5756 = vadd.f32 0.0, %v5755
      %v5757 = vpop.f32.mrf.mxu0
      %v5758 = vpop.f32.mrf.mxu0
      %v5759 = vadd.f32 0.0, %v5758
      %v5760 = vpop.f32.mrf.mxu0
      %5761 = vmatprep.mubr.bf16.mxu0 0
      %5762 = vmatmul.mubr.bf16.gmra.mxu0 %v5713
      %v5763 = vpop.f32.mrf.mxu0
      %v5764 = vadd.f32 0.0, %v5763
      %v5765 = vpop.f32.mrf.mxu0
      %v5766 = vpop.f32.mrf.mxu0
      %v5767 = vadd.f32 0.0, %v5766
      %v5768 = vpop.f32.mrf.mxu0
      %5769 = vmatprep.mubr.bf16.mxu0 0
      %5770 = vmatmul.mubr.bf16.gmra.mxu0 %v5716
      %v5771 = vpop.f32.mrf.mxu0
      %v5772 = vadd.f32 0.0, %v5771
      %v5773 = vpop.f32.mrf.mxu0
      %v5774 = vpop.f32.mrf.mxu0
      %v5775 = vadd.f32 0.0, %v5774
      %v5776 = vpop.f32.mrf.mxu0
      %5777 = vmatprep.mubr.bf16.mxu0 0
      %5778 = vmatmul.mubr.bf16.gmra.mxu0 %v5719
      %v5779 = vpop.f32.mrf.mxu0
      %v5780 = vadd.f32 0.0, %v5779
      %v5781 = vpop.f32.mrf.mxu0
      %v5782 = vpop.f32.mrf.mxu0
      %v5783 = vadd.f32 0.0, %v5782
      %v5784 = vpop.f32.mrf.mxu0
      %5785 = vdwg.mxu0
      %v5786 = vpack.c.bf16 %v5759, %v5756
      %v5787 = vpack.c.bf16 %v5767, %v5764
      %v5788 = vpack.c.bf16 %v5775, %v5772
      %v5789 = vpack.c.bf16 %v5783, %v5780
      %v5794 = vunpack.c.l.b16 %v5786
      %v5795 = vunpack.c.h.b16 %v5786
      %v5796 = vunpack.c.l.b16 %v5787
      %v5797 = vunpack.c.h.b16 %v5787
      %v5798 = vunpack.c.l.b16 %v5788
      %v5799 = vunpack.c.h.b16 %v5788
      %v5800 = vunpack.c.l.b16 %v5789
      %v5801 = vunpack.c.h.b16 %v5789
      %v5802 = vpack.c.b16 %v5794, %v5794
      %v5803 = vpack.c.b16 %v5795, %v5795
      %v5804 = vpack.c.b16 %v5796, %v5796
      %v5805 = vpack.c.b16 %v5797, %v5797
      %v5806 = vpack.c.b16 %v5798, %v5798
      %v5807 = vpack.c.b16 %v5799, %v5799
      %v5808 = vpack.c.b16 %v5800, %v5800
      %v5809 = vpack.c.b16 %v5801, %v5801
      %5810 = vrot.lane.b32.xlu0 %v5802, 8
      %v5811 = vpop.permute.xlu0 %5810
      %5812 = vrot.lane.b32.xlu0 %v5803, 8
      %v5813 = vpop.permute.xlu0 %5812
      %5814 = vrot.lane.b32.xlu0 %v5804, 8
      %v5815 = vpop.permute.xlu0 %5814
      %5816 = vrot.lane.b32.xlu0 %v5805, 8
      %v5817 = vpop.permute.xlu0 %5816
      %5818 = vrot.lane.b32.xlu0 %v5806, 8
      %v5819 = vpop.permute.xlu0 %5818
      %5820 = vrot.lane.b32.xlu0 %v5807, 8
      %v5821 = vpop.permute.xlu0 %5820
      %5822 = vrot.lane.b32.xlu0 %v5808, 8
      %v5823 = vpop.permute.xlu0 %5822
      %5824 = vrot.lane.b32.xlu0 %v5809, 8
      %v5825 = vpop.permute.xlu0 %5824
      %vm5834 = vcmask 126016
      %5835 = vst.msk [vmem:[%s305] sm:$0xf] %vm5834, %v5811
      %5836 = vst.msk [vmem:[%s305 + $0x4] sm:$0xf] %vm5834, %v5813
      %5837 = vst.msk [vmem:[%s305 + $0x8] sm:$0xf] %vm5834, %v5815
      %5838 = vst.msk [vmem:[%s305 + $0xc] sm:$0xf] %vm5834, %v5817
      %5839 = vst.msk [vmem:[%s305 + $0x10] sm:$0xf] %vm5834, %v5819
      %5840 = vst.msk [vmem:[%s305 + $0x14] sm:$0xf] %vm5834, %v5821
      %5841 = vst.msk [vmem:[%s305 + $0x18] sm:$0xf] %vm5834, %v5823
      %5842 = vst.msk [vmem:[%s305 + $0x1c] sm:$0xf] %vm5834, %v5825
      %5843 = vrot.lane.b32.xlu0 %v547, 120
      %v5844 = vpop.permute.xlu0 %5843
      %5845 = vrot.lane.b32.xlu0 %v548, 120
      %v5846 = vpop.permute.xlu0 %5845
      %5847 = vrot.lane.b32.xlu0 %v549, 120
      %v5848 = vpop.permute.xlu0 %5847
      %5849 = vrot.lane.b32.xlu0 %v550, 120
      %v5850 = vpop.permute.xlu0 %5849
      %5851 = vrot.lane.b32.xlu0 %v547, 88
      %v5852 = vpop.permute.xlu0 %5851
      %5853 = vrot.lane.b32.xlu0 %v548, 88
      %v5854 = vpop.permute.xlu0 %5853
      %5855 = vrot.lane.b32.xlu0 %v549, 88
      %v5856 = vpop.permute.xlu0 %5855
      %5857 = vrot.lane.b32.xlu0 %v550, 88
      %v5858 = vpop.permute.xlu0 %5857
      %v5860 = vsel %vm2585, %v5844, 0
      %v5863 = vsel %vm2585, %v5846, 0
      %v5866 = vsel %vm2585, %v5848, 0
      %v5869 = vsel %vm2585, %v5850, 0
      %v5872 = vsel %vm2585, %v5852, 0
      %v5875 = vsel %vm2585, %v5854, 0
      %v5878 = vsel %vm2585, %v5856, 0
      %v5881 = vsel %vm2585, %v5858, 0
      %5883 = vmatprep.subr.bf16.mxu0 0
      %5884 = vmatpush1.bf16.xpose.msra.mxu0 0
      %5885 = vmatprep.subr.bf16.mxu0 0
      %5886 = vmatpush1.bf16.xpose.msra.mxu0 0
      %5887 = vmatprep.subr.bf16.mxu0 0
      %5888 = vmatpush1.bf16.xpose.msra.mxu0 0
      %5889 = vmatprep.subr.bf16.mxu0 0
      %5890 = vmatpush1.bf16.xpose.msra.mxu0 0
      %5891 = vmatprep.subr.bf16.mxu0 0
      %5892 = vmatpush1.bf16.xpose.msra.mxu0 %v5881
      %5893 = vmatprep.subr.bf16.mxu0 0
      %5894 = vmatpush1.bf16.xpose.msra.mxu0 %v5878
      %5895 = vmatprep.subr.bf16.mxu0 0
      %5896 = vmatpush1.bf16.xpose.msra.mxu0 %v5875
      %5897 = vmatprep.subr.bf16.mxu0 0
      %5898 = vmatpush1.bf16.xpose.msra.mxu0 %v5872
      %5899 = vmatprep.subr.bf16.mxu0 0
      %5900 = vmatpush2.bf16.xpose.msra.mxu0 0
      %5901 = vmatprep.subr.bf16.mxu0 0
      %5902 = vmatpush2.bf16.xpose.msra.mxu0 0
      %5903 = vmatprep.subr.bf16.mxu0 0
      %5904 = vmatpush2.bf16.xpose.msra.mxu0 0
      %5905 = vmatprep.subr.bf16.mxu0 0
      %5906 = vmatpush2.bf16.xpose.msra.mxu0 0
      %5907 = vmatprep.subr.bf16.mxu0 0
      %5908 = vmatpush2.bf16.xpose.msra.mxu0 0
      %5909 = vmatprep.subr.bf16.mxu0 0
      %5910 = vmatpush2.bf16.xpose.msra.mxu0 0
      %5911 = vmatprep.subr.bf16.mxu0 0
      %5912 = vmatpush2.bf16.xpose.msra.mxu0 0
      %5913 = vmatprep.subr.bf16.mxu0 0
      %5914 = vmatpush2.bf16.xpose.msra.mxu0 0
      %5915 = vmatprep.mubr.bf16.mxu0 0
      %5916 = vmatmul.mubr.bf16.gmra.mxu0 %v5860
      %v5917 = vpop.f32.mrf.mxu0
      %v5918 = vadd.f32 %v5462, %v5917
      %v5919 = vpop.f32.mrf.mxu0
      %v5920 = vpop.f32.mrf.mxu0
      %v5921 = vadd.f32 %v5467, %v5920
      %v5922 = vpop.f32.mrf.mxu0
      %5923 = vmatprep.mubr.bf16.mxu0 0
      %5924 = vmatmul.mubr.bf16.gmra.mxu0 %v5863
      %v5925 = vpop.f32.mrf.mxu0
      %v5926 = vadd.f32 %v5472, %v5925
      %v5927 = vpop.f32.mrf.mxu0
      %v5928 = vpop.f32.mrf.mxu0
      %v5929 = vadd.f32 %v5477, %v5928
      %v5930 = vpop.f32.mrf.mxu0
      %5931 = vmatprep.mubr.bf16.mxu0 0
      %5932 = vmatmul.mubr.bf16.gmra.mxu0 %v5866
      %v5933 = vpop.f32.mrf.mxu0
      %v5934 = vadd.f32 %v5482, %v5933
      %v5935 = vpop.f32.mrf.mxu0
      %v5936 = vpop.f32.mrf.mxu0
      %v5937 = vadd.f32 %v5487, %v5936
      %v5938 = vpop.f32.mrf.mxu0
      %5939 = vmatprep.mubr.bf16.mxu0 0
      %5940 = vmatmul.mubr.bf16.gmra.mxu0 %v5869
      %v5941 = vpop.f32.mrf.mxu0
      %v5942 = vadd.f32 %v5492, %v5941
      %v5943 = vpop.f32.mrf.mxu0
      %v5944 = vpop.f32.mrf.mxu0
      %v5945 = vadd.f32 %v5497, %v5944
      %v5946 = vpop.f32.mrf.mxu0
      %5947 = vdwg.mxu0
      %v5948 = vsel %vm3069, %v5918, -inf
      %5949 = vmax.xlane.f32.xlu0 %v5948
      %v5950 = vpop.xlane.xlu0 %5949
      %v5951 = vsel %vm3069, %v5921, -inf
      %5952 = vmax.xlane.f32.xlu0 %v5951
      %v5953 = vpop.xlane.xlu0 %5952
      %v5954 = vsel %vm3069, %v5926, -inf
      %5955 = vmax.xlane.f32.xlu0 %v5954
      %v5956 = vpop.xlane.xlu0 %5955
      %v5957 = vsel %vm3069, %v5929, -inf
      %5958 = vmax.xlane.f32.xlu0 %v5957
      %v5959 = vpop.xlane.xlu0 %5958
      %v5960 = vsel %vm3069, %v5934, -inf
      %5961 = vmax.xlane.f32.xlu0 %v5960
      %v5962 = vpop.xlane.xlu0 %5961
      %v5963 = vsel %vm3069, %v5937, -inf
      %5964 = vmax.xlane.f32.xlu0 %v5963
      %v5965 = vpop.xlane.xlu0 %5964
      %v5966 = vsel %vm3069, %v5942, -inf
      %5967 = vmax.xlane.f32.xlu0 %v5966
      %v5968 = vpop.xlane.xlu0 %5967
      %v5969 = vsel %vm3069, %v5945, -inf
      %5970 = vmax.xlane.f32.xlu0 %v5969
      %v5971 = vpop.xlane.xlu0 %5970
      %v5972 = vsub.f32 %v5918, %v5950
      %v5973 = vsub.f32 %v5921, %v5953
      %v5974 = vsub.f32 %v5926, %v5956
      %v5975 = vsub.f32 %v5929, %v5959
      %v5976 = vsub.f32 %v5934, %v5962
      %v5977 = vsub.f32 %v5937, %v5965
      %v5978 = vsub.f32 %v5942, %v5968
      %v5979 = vsub.f32 %v5945, %v5971
      %v5980 = vmul.f32 %v5972, 1.442695
      %v5981 = vpow.pop %v5980
      %v5982 = vmul.f32 %v5973, 1.442695
      %v5983 = vpow.pop %v5982
      %v5984 = vmul.f32 %v5974, 1.442695
      %v5985 = vpow.pop %v5984
      %v5986 = vmul.f32 %v5975, 1.442695
      %v5987 = vpow.pop %v5986
      %v5988 = vmul.f32 %v5976, 1.442695
      %v5989 = vpow.pop %v5988
      %v5990 = vmul.f32 %v5977, 1.442695
      %v5991 = vpow.pop %v5990
      %v5992 = vmul.f32 %v5978, 1.442695
      %v5993 = vpow.pop %v5992
      %v5994 = vmul.f32 %v5979, 1.442695
      %v5995 = vpow.pop %v5994
      %v5996 = vsel %vm3069, %v5981, 0.0
      %5997 = vadd.xlane.f32.xlu0 %v5996
      %v5998 = vpop.xlane.xlu0 %5997
      %v5999 = vsel %vm3069, %v5983, 0.0
      %6000 = vadd.xlane.f32.xlu0 %v5999
      %v6001 = vpop.xlane.xlu0 %6000
      %v6002 = vsel %vm3069, %v5985, 0.0
      %6003 = vadd.xlane.f32.xlu0 %v6002
      %v6004 = vpop.xlane.xlu0 %6003
      %v6005 = vsel %vm3069, %v5987, 0.0
      %6006 = vadd.xlane.f32.xlu0 %v6005
      %v6007 = vpop.xlane.xlu0 %6006
      %v6008 = vsel %vm3069, %v5989, 0.0
      %6009 = vadd.xlane.f32.xlu0 %v6008
      %v6010 = vpop.xlane.xlu0 %6009
      %v6011 = vsel %vm3069, %v5991, 0.0
      %6012 = vadd.xlane.f32.xlu0 %v6011
      %v6013 = vpop.xlane.xlu0 %6012
      %v6014 = vsel %vm3069, %v5993, 0.0
      %6015 = vadd.xlane.f32.xlu0 %v6014
      %v6016 = vpop.xlane.xlu0 %6015
      %v6017 = vsel %vm3069, %v5995, 0.0
      %6018 = vadd.xlane.f32.xlu0 %v6017
      %v6019 = vpop.xlane.xlu0 %6018
      %v6020 = vrcp.pop %v5998
      %v6021 = vrcp.pop %v6001
      %v6022 = vrcp.pop %v6004
      %v6023 = vrcp.pop %v6007
      %v6024 = vrcp.pop %v6010
      %v6025 = vrcp.pop %v6013
      %v6026 = vrcp.pop %v6016
      %v6027 = vrcp.pop %v6019
      %v6028 = vmul.f32 %v5981, %v6020
      %v6029 = vmul.f32 %v5983, %v6021
      %v6030 = vmul.f32 %v5985, %v6022
      %v6031 = vmul.f32 %v5987, %v6023
      %v6032 = vmul.f32 %v5989, %v6024
      %v6033 = vmul.f32 %v5991, %v6025
      %v6034 = vmul.f32 %v5993, %v6026
      %v6035 = vmul.f32 %v5995, %v6027
      %v6036 = vpack.c.bf16 %v6029, %v6028
      %v6037 = vpack.c.bf16 %v6031, %v6030
      %v6038 = vpack.c.bf16 %v6033, %v6032
      %v6039 = vpack.c.bf16 %v6035, %v6034
      %6040 = vrot.lane.b32.xlu0 %v547, 56
      %v6041 = vpop.permute.xlu0 %6040
      %6042 = vrot.lane.b32.xlu0 %v548, 56
      %v6043 = vpop.permute.xlu0 %6042
      %6044 = vrot.lane.b32.xlu0 %v549, 56
      %v6045 = vpop.permute.xlu0 %6044
      %6046 = vrot.lane.b32.xlu0 %v550, 56
      %v6047 = vpop.permute.xlu0 %6046
      %v6053 = vsel %vm3069, %v6036, 0
      %v6056 = vsel %vm3069, %v6037, 0
      %v6059 = vsel %vm3069, %v6038, 0
      %v6062 = vsel %vm3069, %v6039, 0
      %6064 = vmatprep.subr.bf16.mxu0 0
      %6065 = vmatpush1.bf16.msra.mxu0 0
      %6066 = vmatprep.subr.bf16.mxu0 0
      %6067 = vmatpush1.bf16.msra.mxu0 0
      %6068 = vmatprep.subr.bf16.mxu0 0
      %6069 = vmatpush1.bf16.msra.mxu0 0
      %6070 = vmatprep.subr.bf16.mxu0 0
      %6071 = vmatpush1.bf16.msra.mxu0 0
      %6072 = vmatprep.subr.bf16.mxu0 0
      %6073 = vmatpush1.bf16.msra.mxu0 %v6047
      %6074 = vmatprep.subr.bf16.mxu0 0
      %6075 = vmatpush1.bf16.msra.mxu0 %v6045
      %6076 = vmatprep.subr.bf16.mxu0 0
      %6077 = vmatpush1.bf16.msra.mxu0 %v6043
      %6078 = vmatprep.subr.bf16.mxu0 0
      %6079 = vmatpush1.bf16.msra.mxu0 %v6041
      %6080 = vmatprep.subr.bf16.mxu0 0
      %6081 = vmatpush2.bf16.msra.mxu0 0
      %6082 = vmatprep.subr.bf16.mxu0 0
      %6083 = vmatpush2.bf16.msra.mxu0 0
      %6084 = vmatprep.subr.bf16.mxu0 0
      %6085 = vmatpush2.bf16.msra.mxu0 0
      %6086 = vmatprep.subr.bf16.mxu0 0
      %6087 = vmatpush2.bf16.msra.mxu0 0
      %6088 = vmatprep.subr.bf16.mxu0 0
      %6089 = vmatpush2.bf16.msra.mxu0 0
      %6090 = vmatprep.subr.bf16.mxu0 0
      %6091 = vmatpush2.bf16.msra.mxu0 0
      %6092 = vmatprep.subr.bf16.mxu0 0
      %6093 = vmatpush2.bf16.msra.mxu0 0
      %6094 = vmatprep.subr.bf16.mxu0 0
      %6095 = vmatpush2.bf16.msra.mxu0 0
      %6096 = vmatprep.mubr.bf16.mxu0 0
      %6097 = vmatmul.mubr.bf16.gmra.mxu0 %v6053
      %v6098 = vpop.f32.mrf.mxu0
      %v6099 = vadd.f32 0.0, %v6098
      %v6100 = vpop.f32.mrf.mxu0
      %v6101 = vpop.f32.mrf.mxu0
      %v6102 = vadd.f32 0.0, %v6101
      %v6103 = vpop.f32.mrf.mxu0
      %6104 = vmatprep.mubr.bf16.mxu0 0
      %6105 = vmatmul.mubr.bf16.gmra.mxu0 %v6056
      %v6106 = vpop.f32.mrf.mxu0
      %v6107 = vadd.f32 0.0, %v6106
      %v6108 = vpop.f32.mrf.mxu0
      %v6109 = vpop.f32.mrf.mxu0
      %v6110 = vadd.f32 0.0, %v6109
      %v6111 = vpop.f32.mrf.mxu0
      %6112 = vmatprep.mubr.bf16.mxu0 0
      %6113 = vmatmul.mubr.bf16.gmra.mxu0 %v6059
      %v6114 = vpop.f32.mrf.mxu0
      %v6115 = vadd.f32 0.0, %v6114
      %v6116 = vpop.f32.mrf.mxu0
      %v6117 = vpop.f32.mrf.mxu0
      %v6118 = vadd.f32 0.0, %v6117
      %v6119 = vpop.f32.mrf.mxu0
      %6120 = vmatprep.mubr.bf16.mxu0 0
      %6121 = vmatmul.mubr.bf16.gmra.mxu0 %v6062
      %v6122 = vpop.f32.mrf.mxu0
      %v6123 = vadd.f32 0.0, %v6122
      %v6124 = vpop.f32.mrf.mxu0
      %v6125 = vpop.f32.mrf.mxu0
      %v6126 = vadd.f32 0.0, %v6125
      %v6127 = vpop.f32.mrf.mxu0
      %6128 = vdwg.mxu0
      %v6129 = vpack.c.bf16 %v6102, %v6099
      %v6130 = vpack.c.bf16 %v6110, %v6107
      %v6131 = vpack.c.bf16 %v6118, %v6115
      %v6132 = vpack.c.bf16 %v6126, %v6123
      %v6137 = vunpack.c.l.b16 %v6129
      %v6138 = vunpack.c.h.b16 %v6129
      %v6139 = vunpack.c.l.b16 %v6130
      %v6140 = vunpack.c.h.b16 %v6130
      %v6141 = vunpack.c.l.b16 %v6131
      %v6142 = vunpack.c.h.b16 %v6131
      %v6143 = vunpack.c.l.b16 %v6132
      %v6144 = vunpack.c.h.b16 %v6132
      %v6145 = vpack.c.b16 %v6137, %v6137
      %v6146 = vpack.c.b16 %v6138, %v6138
      %v6147 = vpack.c.b16 %v6139, %v6139
      %v6148 = vpack.c.b16 %v6140, %v6140
      %v6149 = vpack.c.b16 %v6141, %v6141
      %v6150 = vpack.c.b16 %v6142, %v6142
      %v6151 = vpack.c.b16 %v6143, %v6143
      %v6152 = vpack.c.b16 %v6144, %v6144
      %6153 = vrot.lane.b32.xlu0 %v6145, 8
      %v6154 = vpop.permute.xlu0 %6153
      %6155 = vrot.lane.b32.xlu0 %v6146, 8
      %v6156 = vpop.permute.xlu0 %6155
      %6157 = vrot.lane.b32.xlu0 %v6147, 8
      %v6158 = vpop.permute.xlu0 %6157
      %6159 = vrot.lane.b32.xlu0 %v6148, 8
      %v6160 = vpop.permute.xlu0 %6159
      %6161 = vrot.lane.b32.xlu0 %v6149, 8
      %v6162 = vpop.permute.xlu0 %6161
      %6163 = vrot.lane.b32.xlu0 %v6150, 8
      %v6164 = vpop.permute.xlu0 %6163
      %6165 = vrot.lane.b32.xlu0 %v6151, 8
      %v6166 = vpop.permute.xlu0 %6165
      %6167 = vrot.lane.b32.xlu0 %v6152, 8
      %v6168 = vpop.permute.xlu0 %6167
      %6177 = vst.msk [vmem:[%s305 + $0x20] sm:$0xf] %vm5834, %v6154
      %6178 = vst.msk [vmem:[%s305 + $0x24] sm:$0xf] %vm5834, %v6156
      %6179 = vst.msk [vmem:[%s305 + $0x28] sm:$0xf] %vm5834, %v6158
      %6180 = vst.msk [vmem:[%s305 + $0x2c] sm:$0xf] %vm5834, %v6160
      %6181 = vst.msk [vmem:[%s305 + $0x30] sm:$0xf] %vm5834, %v6162
      %6182 = vst.msk [vmem:[%s305 + $0x34] sm:$0xf] %vm5834, %v6164
      %6183 = vst.msk [vmem:[%s305 + $0x38] sm:$0xf] %vm5834, %v6166
      %6184 = vst.msk [vmem:[%s305 + $0x3c] sm:$0xf] %vm5834, %v6168
      %6185 = vset.pattern.permute.xlu0 16
      %6186 = vperm.xlu0 %6185, %v622
      %v6187 = vpop.permute.xlu0 %6186
      %6189 = vset.pattern.permute.xlu0 16
      %6190 = vperm.xlu0 %6189, %v625
      %v6191 = vpop.permute.xlu0 %6190
      %6193 = vset.pattern.permute.xlu0 16
      %6194 = vperm.xlu0 %6193, %v630
      %v6195 = vpop.permute.xlu0 %6194
      %6197 = vset.pattern.permute.xlu0 16
      %6198 = vperm.xlu0 %6197, %v633
      %v6199 = vpop.permute.xlu0 %6198
      %6201 = vset.pattern.permute.xlu0 16
      %6202 = vperm.xlu0 %6201, %v638
      %v6203 = vpop.permute.xlu0 %6202
      %6205 = vset.pattern.permute.xlu0 16
      %6206 = vperm.xlu0 %6205, %v641
      %v6207 = vpop.permute.xlu0 %6206
      %6209 = vset.pattern.permute.xlu0 16
      %6210 = vperm.xlu0 %6209, %v646
      %v6211 = vpop.permute.xlu0 %6210
      %6213 = vset.pattern.permute.xlu0 16
      %6214 = vperm.xlu0 %6213, %v649
      %v6215 = vpop.permute.xlu0 %6214
      %6217 = vset.pattern.permute.xlu0 16
      %6218 = vperm.xlu0 %6217, %v654
      %v6219 = vpop.permute.xlu0 %6218
      %6221 = vset.pattern.permute.xlu0 16
      %6222 = vperm.xlu0 %6221, %v657
      %v6223 = vpop.permute.xlu0 %6222
      %6225 = vset.pattern.permute.xlu0 16
      %6226 = vperm.xlu0 %6225, %v662
      %v6227 = vpop.permute.xlu0 %6226
      %6229 = vset.pattern.permute.xlu0 16
      %6230 = vperm.xlu0 %6229, %v665
      %v6231 = vpop.permute.xlu0 %6230
      %6233 = vset.pattern.permute.xlu0 16
      %6234 = vperm.xlu0 %6233, %v670
      %v6235 = vpop.permute.xlu0 %6234
      %6237 = vset.pattern.permute.xlu0 16
      %6238 = vperm.xlu0 %6237, %v673
      %v6239 = vpop.permute.xlu0 %6238
      %6241 = vset.pattern.permute.xlu0 16
      %6242 = vperm.xlu0 %6241, %v678
      %v6243 = vpop.permute.xlu0 %6242
      %6245 = vset.pattern.permute.xlu0 16
      %6246 = vperm.xlu0 %6245, %v681
      %v6247 = vpop.permute.xlu0 %6246
      %v6249 = vsel %vm793, %v6187, 0.0
      %v6250 = vsel %vm794, %v6191, 0.0
      %v6251 = vsel %vm795, %v6195, 0.0
      %v6252 = vsel %vm796, %v6199, 0.0
      %v6253 = vsel %vm797, %v6203, 0.0
      %v6254 = vsel %vm798, %v6207, 0.0
      %v6255 = vsel %vm799, %v6211, 0.0
      %v6256 = vsel %vm800, %v6215, 0.0
      %v6257 = vsel %vm801, %v6219, 0.0
      %v6258 = vsel %vm802, %v6223, 0.0
      %v6259 = vsel %vm803, %v6227, 0.0
      %v6260 = vsel %vm804, %v6231, 0.0
      %v6261 = vsel %vm805, %v6235, 0.0
      %v6262 = vsel %vm806, %v6239, 0.0
      %v6263 = vsel %vm807, %v6243, 0.0
      %v6264 = vsel %vm808, %v6247, 0.0
      %6265 = vset.pattern.permute.xlu0 17
      %6266 = vperm.xlu0 %6265, %v622
      %v6267 = vpop.permute.xlu0 %6266
      %6269 = vset.pattern.permute.xlu0 17
      %6270 = vperm.xlu0 %6269, %v625
      %v6271 = vpop.permute.xlu0 %6270
      %6273 = vset.pattern.permute.xlu0 17
      %6274 = vperm.xlu0 %6273, %v630
      %v6275 = vpop.permute.xlu0 %6274
      %6277 = vset.pattern.permute.xlu0 17
      %6278 = vperm.xlu0 %6277, %v633
      %v6279 = vpop.permute.xlu0 %6278
      %6281 = vset.pattern.permute.xlu0 17
      %6282 = vperm.xlu0 %6281, %v638
      %v6283 = vpop.permute.xlu0 %6282
      %6285 = vset.pattern.permute.xlu0 17
      %6286 = vperm.xlu0 %6285, %v641
      %v6287 = vpop.permute.xlu0 %6286
      %6289 = vset.pattern.permute.xlu0 17
      %6290 = vperm.xlu0 %6289, %v646
      %v6291 = vpop.permute.xlu0 %6290
      %6293 = vset.pattern.permute.xlu0 17
      %6294 = vperm.xlu0 %6293, %v649
      %v6295 = vpop.permute.xlu0 %6294
      %6297 = vset.pattern.permute.xlu0 17
      %6298 = vperm.xlu0 %6297, %v654
      %v6299 = vpop.permute.xlu0 %6298
      %6301 = vset.pattern.permute.xlu0 17
      %6302 = vperm.xlu0 %6301, %v657
      %v6303 = vpop.permute.xlu0 %6302
      %6305 = vset.pattern.permute.xlu0 17
      %6306 = vperm.xlu0 %6305, %v662
      %v6307 = vpop.permute.xlu0 %6306
      %6309 = vset.pattern.permute.xlu0 17
      %6310 = vperm.xlu0 %6309, %v665
      %v6311 = vpop.permute.xlu0 %6310
      %6313 = vset.pattern.permute.xlu0 17
      %6314 = vperm.xlu0 %6313, %v670
      %v6315 = vpop.permute.xlu0 %6314
      %6317 = vset.pattern.permute.xlu0 17
      %6318 = vperm.xlu0 %6317, %v673
      %v6319 = vpop.permute.xlu0 %6318
      %6321 = vset.pattern.permute.xlu0 17
      %6322 = vperm.xlu0 %6321, %v678
      %v6323 = vpop.permute.xlu0 %6322
      %6325 = vset.pattern.permute.xlu0 17
      %6326 = vperm.xlu0 %6325, %v681
      %v6327 = vpop.permute.xlu0 %6326
      %v6329 = vsel %vm809, %v6267, 0.0
      %v6330 = vsel %vm810, %v6271, 0.0
      %v6331 = vsel %vm811, %v6275, 0.0
      %v6332 = vsel %vm812, %v6279, 0.0
      %v6333 = vsel %vm813, %v6283, 0.0
      %v6334 = vsel %vm814, %v6287, 0.0
      %v6335 = vsel %vm815, %v6291, 0.0
      %v6336 = vsel %vm816, %v6295, 0.0
      %v6337 = vsel %vm817, %v6299, 0.0
      %v6338 = vsel %vm818, %v6303, 0.0
      %v6339 = vsel %vm819, %v6307, 0.0
      %v6340 = vsel %vm820, %v6311, 0.0
      %v6341 = vsel %vm821, %v6315, 0.0
      %v6342 = vsel %vm822, %v6319, 0.0
      %v6343 = vsel %vm823, %v6323, 0.0
      %v6344 = vsel %vm824, %v6327, 0.0
      %v6345 = vadd.f32 %v6249, %v6329
      %v6346 = vadd.f32 %v6250, %v6330
      %v6347 = vadd.f32 %v6251, %v6331
      %v6348 = vadd.f32 %v6252, %v6332
      %v6349 = vadd.f32 %v6253, %v6333
      %v6350 = vadd.f32 %v6254, %v6334
      %v6351 = vadd.f32 %v6255, %v6335
      %v6352 = vadd.f32 %v6256, %v6336
      %v6353 = vadd.f32 %v6257, %v6337
      %v6354 = vadd.f32 %v6258, %v6338
      %v6355 = vadd.f32 %v6259, %v6339
      %v6356 = vadd.f32 %v6260, %v6340
      %v6357 = vadd.f32 %v6261, %v6341
      %v6358 = vadd.f32 %v6262, %v6342
      %v6359 = vadd.f32 %v6263, %v6343
      %v6360 = vadd.f32 %v6264, %v6344
      %6361 = vset.pattern.permute.xlu0 18
      %6362 = vperm.xlu0 %6361, %v622
      %v6363 = vpop.permute.xlu0 %6362
      %6365 = vset.pattern.permute.xlu0 18
      %6366 = vperm.xlu0 %6365, %v625
      %v6367 = vpop.permute.xlu0 %6366
      %6369 = vset.pattern.permute.xlu0 18
      %6370 = vperm.xlu0 %6369, %v630
      %v6371 = vpop.permute.xlu0 %6370
      %6373 = vset.pattern.permute.xlu0 18
      %6374 = vperm.xlu0 %6373, %v633
      %v6375 = vpop.permute.xlu0 %6374
      %6377 = vset.pattern.permute.xlu0 18
      %6378 = vperm.xlu0 %6377, %v638
      %v6379 = vpop.permute.xlu0 %6378
      %6381 = vset.pattern.permute.xlu0 18
      %6382 = vperm.xlu0 %6381, %v641
      %v6383 = vpop.permute.xlu0 %6382
      %6385 = vset.pattern.permute.xlu0 18
      %6386 = vperm.xlu0 %6385, %v646
      %v6387 = vpop.permute.xlu0 %6386
      %6389 = vset.pattern.permute.xlu0 18
      %6390 = vperm.xlu0 %6389, %v649
      %v6391 = vpop.permute.xlu0 %6390
      %6393 = vset.pattern.permute.xlu0 18
      %6394 = vperm.xlu0 %6393, %v654
      %v6395 = vpop.permute.xlu0 %6394
      %6397 = vset.pattern.permute.xlu0 18
      %6398 = vperm.xlu0 %6397, %v657
      %v6399 = vpop.permute.xlu0 %6398
      %6401 = vset.pattern.permute.xlu0 18
      %6402 = vperm.xlu0 %6401, %v662
      %v6403 = vpop.permute.xlu0 %6402
      %6405 = vset.pattern.permute.xlu0 18
      %6406 = vperm.xlu0 %6405, %v665
      %v6407 = vpop.permute.xlu0 %6406
      %6409 = vset.pattern.permute.xlu0 18
      %6410 = vperm.xlu0 %6409, %v670
      %v6411 = vpop.permute.xlu0 %6410
      %6413 = vset.pattern.permute.xlu0 18
      %6414 = vperm.xlu0 %6413, %v673
      %v6415 = vpop.permute.xlu0 %6414
      %6417 = vset.pattern.permute.xlu0 18
      %6418 = vperm.xlu0 %6417, %v678
      %v6419 = vpop.permute.xlu0 %6418
      %6421 = vset.pattern.permute.xlu0 18
      %6422 = vperm.xlu0 %6421, %v681
      %v6423 = vpop.permute.xlu0 %6422
      %v6425 = vsel %vm825, %v6363, 0.0
      %v6426 = vsel %vm826, %v6367, 0.0
      %v6427 = vsel %vm827, %v6371, 0.0
      %v6428 = vsel %vm828, %v6375, 0.0
      %v6429 = vsel %vm829, %v6379, 0.0
      %v6430 = vsel %vm830, %v6383, 0.0
      %v6431 = vsel %vm831, %v6387, 0.0
      %v6432 = vsel %vm832, %v6391, 0.0
      %v6433 = vsel %vm833, %v6395, 0.0
      %v6434 = vsel %vm834, %v6399, 0.0
      %v6435 = vsel %vm835, %v6403, 0.0
      %v6436 = vsel %vm836, %v6407, 0.0
      %v6437 = vsel %vm837, %v6411, 0.0
      %v6438 = vsel %vm838, %v6415, 0.0
      %v6439 = vsel %vm839, %v6419, 0.0
      %v6440 = vsel %vm840, %v6423, 0.0
      %v6441 = vadd.f32 %v6345, %v6425
      %v6442 = vadd.f32 %v6346, %v6426
      %v6443 = vadd.f32 %v6347, %v6427
      %v6444 = vadd.f32 %v6348, %v6428
      %v6445 = vadd.f32 %v6349, %v6429
      %v6446 = vadd.f32 %v6350, %v6430
      %v6447 = vadd.f32 %v6351, %v6431
      %v6448 = vadd.f32 %v6352, %v6432
      %v6449 = vadd.f32 %v6353, %v6433
      %v6450 = vadd.f32 %v6354, %v6434
      %v6451 = vadd.f32 %v6355, %v6435
      %v6452 = vadd.f32 %v6356, %v6436
      %v6453 = vadd.f32 %v6357, %v6437
      %v6454 = vadd.f32 %v6358, %v6438
      %v6455 = vadd.f32 %v6359, %v6439
      %v6456 = vadd.f32 %v6360, %v6440
      %6457 = vset.pattern.permute.xlu0 19
      %6458 = vperm.xlu0 %6457, %v622
      %v6459 = vpop.permute.xlu0 %6458
      %6461 = vset.pattern.permute.xlu0 19
      %6462 = vperm.xlu0 %6461, %v625
      %v6463 = vpop.permute.xlu0 %6462
      %6465 = vset.pattern.permute.xlu0 19
      %6466 = vperm.xlu0 %6465, %v630
      %v6467 = vpop.permute.xlu0 %6466
      %6469 = vset.pattern.permute.xlu0 19
      %6470 = vperm.xlu0 %6469, %v633
      %v6471 = vpop.permute.xlu0 %6470
      %6473 = vset.pattern.permute.xlu0 19
      %6474 = vperm.xlu0 %6473, %v638
      %v6475 = vpop.permute.xlu0 %6474
      %6477 = vset.pattern.permute.xlu0 19
      %6478 = vperm.xlu0 %6477, %v641
      %v6479 = vpop.permute.xlu0 %6478
      %6481 = vset.pattern.permute.xlu0 19
      %6482 = vperm.xlu0 %6481, %v646
      %v6483 = vpop.permute.xlu0 %6482
      %6485 = vset.pattern.permute.xlu0 19
      %6486 = vperm.xlu0 %6485, %v649
      %v6487 = vpop.permute.xlu0 %6486
      %6489 = vset.pattern.permute.xlu0 19
      %6490 = vperm.xlu0 %6489, %v654
      %v6491 = vpop.permute.xlu0 %6490
      %6493 = vset.pattern.permute.xlu0 19
      %6494 = vperm.xlu0 %6493, %v657
      %v6495 = vpop.permute.xlu0 %6494
      %6497 = vset.pattern.permute.xlu0 19
      %6498 = vperm.xlu0 %6497, %v662
      %v6499 = vpop.permute.xlu0 %6498
      %6501 = vset.pattern.permute.xlu0 19
      %6502 = vperm.xlu0 %6501, %v665
      %v6503 = vpop.permute.xlu0 %6502
      %6505 = vset.pattern.permute.xlu0 19
      %6506 = vperm.xlu0 %6505, %v670
      %v6507 = vpop.permute.xlu0 %6506
      %6509 = vset.pattern.permute.xlu0 19
      %6510 = vperm.xlu0 %6509, %v673
      %v6511 = vpop.permute.xlu0 %6510
      %6513 = vset.pattern.permute.xlu0 19
      %6514 = vperm.xlu0 %6513, %v678
      %v6515 = vpop.permute.xlu0 %6514
      %6517 = vset.pattern.permute.xlu0 19
      %6518 = vperm.xlu0 %6517, %v681
      %v6519 = vpop.permute.xlu0 %6518
      %v6521 = vsel %vm841, %v6459, 0.0
      %v6522 = vsel %vm842, %v6463, 0.0
      %v6523 = vsel %vm843, %v6467, 0.0
      %v6524 = vsel %vm844, %v6471, 0.0
      %v6525 = vsel %vm845, %v6475, 0.0
      %v6526 = vsel %vm846, %v6479, 0.0
      %v6527 = vsel %vm847, %v6483, 0.0
      %v6528 = vsel %vm848, %v6487, 0.0
      %v6529 = vsel %vm849, %v6491, 0.0
      %v6530 = vsel %vm850, %v6495, 0.0
      %v6531 = vsel %vm851, %v6499, 0.0
      %v6532 = vsel %vm852, %v6503, 0.0
      %v6533 = vsel %vm853, %v6507, 0.0
      %v6534 = vsel %vm854, %v6511, 0.0
      %v6535 = vsel %vm855, %v6515, 0.0
      %v6536 = vsel %vm856, %v6519, 0.0
      %v6537 = vadd.f32 %v6441, %v6521
      %v6538 = vadd.f32 %v6442, %v6522
      %v6539 = vadd.f32 %v6443, %v6523
      %v6540 = vadd.f32 %v6444, %v6524
      %v6541 = vadd.f32 %v6445, %v6525
      %v6542 = vadd.f32 %v6446, %v6526
      %v6543 = vadd.f32 %v6447, %v6527
      %v6544 = vadd.f32 %v6448, %v6528
      %v6545 = vadd.f32 %v6449, %v6529
      %v6546 = vadd.f32 %v6450, %v6530
      %v6547 = vadd.f32 %v6451, %v6531
      %v6548 = vadd.f32 %v6452, %v6532
      %v6549 = vadd.f32 %v6453, %v6533
      %v6550 = vadd.f32 %v6454, %v6534
      %v6551 = vadd.f32 %v6455, %v6535
      %v6552 = vadd.f32 %v6456, %v6536
      %6553 = vset.pattern.permute.xlu0 20
      %6554 = vperm.xlu0 %6553, %v622
      %v6555 = vpop.permute.xlu0 %6554
      %6557 = vset.pattern.permute.xlu0 20
      %6558 = vperm.xlu0 %6557, %v625
      %v6559 = vpop.permute.xlu0 %6558
      %6561 = vset.pattern.permute.xlu0 20
      %6562 = vperm.xlu0 %6561, %v630
      %v6563 = vpop.permute.xlu0 %6562
      %6565 = vset.pattern.permute.xlu0 20
      %6566 = vperm.xlu0 %6565, %v633
      %v6567 = vpop.permute.xlu0 %6566
      %6569 = vset.pattern.permute.xlu0 20
      %6570 = vperm.xlu0 %6569, %v638
      %v6571 = vpop.permute.xlu0 %6570
      %6573 = vset.pattern.permute.xlu0 20
      %6574 = vperm.xlu0 %6573, %v641
      %v6575 = vpop.permute.xlu0 %6574
      %6577 = vset.pattern.permute.xlu0 20
      %6578 = vperm.xlu0 %6577, %v646
      %v6579 = vpop.permute.xlu0 %6578
      %6581 = vset.pattern.permute.xlu0 20
      %6582 = vperm.xlu0 %6581, %v649
      %v6583 = vpop.permute.xlu0 %6582
      %6585 = vset.pattern.permute.xlu0 20
      %6586 = vperm.xlu0 %6585, %v654
      %v6587 = vpop.permute.xlu0 %6586
      %6589 = vset.pattern.permute.xlu0 20
      %6590 = vperm.xlu0 %6589, %v657
      %v6591 = vpop.permute.xlu0 %6590
      %6593 = vset.pattern.permute.xlu0 20
      %6594 = vperm.xlu0 %6593, %v662
      %v6595 = vpop.permute.xlu0 %6594
      %6597 = vset.pattern.permute.xlu0 20
      %6598 = vperm.xlu0 %6597, %v665
      %v6599 = vpop.permute.xlu0 %6598
      %6601 = vset.pattern.permute.xlu0 20
      %6602 = vperm.xlu0 %6601, %v670
      %v6603 = vpop.permute.xlu0 %6602
      %6605 = vset.pattern.permute.xlu0 20
      %6606 = vperm.xlu0 %6605, %v673
      %v6607 = vpop.permute.xlu0 %6606
      %6609 = vset.pattern.permute.xlu0 20
      %6610 = vperm.xlu0 %6609, %v678
      %v6611 = vpop.permute.xlu0 %6610
      %6613 = vset.pattern.permute.xlu0 20
      %6614 = vperm.xlu0 %6613, %v681
      %v6615 = vpop.permute.xlu0 %6614
      %v6617 = vsel %vm857, %v6555, 0.0
      %v6618 = vsel %vm858, %v6559, 0.0
      %v6619 = vsel %vm859, %v6563, 0.0
      %v6620 = vsel %vm860, %v6567, 0.0
      %v6621 = vsel %vm861, %v6571, 0.0
      %v6622 = vsel %vm862, %v6575, 0.0
      %v6623 = vsel %vm863, %v6579, 0.0
      %v6624 = vsel %vm864, %v6583, 0.0
      %v6625 = vsel %vm865, %v6587, 0.0
      %v6626 = vsel %vm866, %v6591, 0.0
      %v6627 = vsel %vm867, %v6595, 0.0
      %v6628 = vsel %vm868, %v6599, 0.0
      %v6629 = vsel %vm869, %v6603, 0.0
      %v6630 = vsel %vm870, %v6607, 0.0
      %v6631 = vsel %vm871, %v6611, 0.0
      %v6632 = vsel %vm872, %v6615, 0.0
      %v6633 = vadd.f32 %v6537, %v6617
      %v6634 = vadd.f32 %v6538, %v6618
      %v6635 = vadd.f32 %v6539, %v6619
      %v6636 = vadd.f32 %v6540, %v6620
      %v6637 = vadd.f32 %v6541, %v6621
      %v6638 = vadd.f32 %v6542, %v6622
      %v6639 = vadd.f32 %v6543, %v6623
      %v6640 = vadd.f32 %v6544, %v6624
      %v6641 = vadd.f32 %v6545, %v6625
      %v6642 = vadd.f32 %v6546, %v6626
      %v6643 = vadd.f32 %v6547, %v6627
      %v6644 = vadd.f32 %v6548, %v6628
      %v6645 = vadd.f32 %v6549, %v6629
      %v6646 = vadd.f32 %v6550, %v6630
      %v6647 = vadd.f32 %v6551, %v6631
      %v6648 = vadd.f32 %v6552, %v6632
      %6649 = vset.pattern.permute.xlu0 21
      %6650 = vperm.xlu0 %6649, %v622
      %v6651 = vpop.permute.xlu0 %6650
      %6653 = vset.pattern.permute.xlu0 21
      %6654 = vperm.xlu0 %6653, %v625
      %v6655 = vpop.permute.xlu0 %6654
      %6657 = vset.pattern.permute.xlu0 21
      %6658 = vperm.xlu0 %6657, %v630
      %v6659 = vpop.permute.xlu0 %6658
      %6661 = vset.pattern.permute.xlu0 21
      %6662 = vperm.xlu0 %6661, %v633
      %v6663 = vpop.permute.xlu0 %6662
      %6665 = vset.pattern.permute.xlu0 21
      %6666 = vperm.xlu0 %6665, %v638
      %v6667 = vpop.permute.xlu0 %6666
      %6669 = vset.pattern.permute.xlu0 21
      %6670 = vperm.xlu0 %6669, %v641
      %v6671 = vpop.permute.xlu0 %6670
      %6673 = vset.pattern.permute.xlu0 21
      %6674 = vperm.xlu0 %6673, %v646
      %v6675 = vpop.permute.xlu0 %6674
      %6677 = vset.pattern.permute.xlu0 21
      %6678 = vperm.xlu0 %6677, %v649
      %v6679 = vpop.permute.xlu0 %6678
      %6681 = vset.pattern.permute.xlu0 21
      %6682 = vperm.xlu0 %6681, %v654
      %v6683 = vpop.permute.xlu0 %6682
      %6685 = vset.pattern.permute.xlu0 21
      %6686 = vperm.xlu0 %6685, %v657
      %v6687 = vpop.permute.xlu0 %6686
      %6689 = vset.pattern.permute.xlu0 21
      %6690 = vperm.xlu0 %6689, %v662
      %v6691 = vpop.permute.xlu0 %6690
      %6693 = vset.pattern.permute.xlu0 21
      %6694 = vperm.xlu0 %6693, %v665
      %v6695 = vpop.permute.xlu0 %6694
      %6697 = vset.pattern.permute.xlu0 21
      %6698 = vperm.xlu0 %6697, %v670
      %v6699 = vpop.permute.xlu0 %6698
      %6701 = vset.pattern.permute.xlu0 21
      %6702 = vperm.xlu0 %6701, %v673
      %v6703 = vpop.permute.xlu0 %6702
      %6705 = vset.pattern.permute.xlu0 21
      %6706 = vperm.xlu0 %6705, %v678
      %v6707 = vpop.permute.xlu0 %6706
      %6709 = vset.pattern.permute.xlu0 21
      %6710 = vperm.xlu0 %6709, %v681
      %v6711 = vpop.permute.xlu0 %6710
      %v6713 = vsel %vm873, %v6651, 0.0
      %v6714 = vsel %vm874, %v6655, 0.0
      %v6715 = vsel %vm875, %v6659, 0.0
      %v6716 = vsel %vm876, %v6663, 0.0
      %v6717 = vsel %vm877, %v6667, 0.0
      %v6718 = vsel %vm878, %v6671, 0.0
      %v6719 = vsel %vm879, %v6675, 0.0
      %v6720 = vsel %vm880, %v6679, 0.0
      %v6721 = vsel %vm881, %v6683, 0.0
      %v6722 = vsel %vm882, %v6687, 0.0
      %v6723 = vsel %vm883, %v6691, 0.0
      %v6724 = vsel %vm884, %v6695, 0.0
      %v6725 = vsel %vm885, %v6699, 0.0
      %v6726 = vsel %vm886, %v6703, 0.0
      %v6727 = vsel %vm887, %v6707, 0.0
      %v6728 = vsel %vm888, %v6711, 0.0
      %v6729 = vadd.f32 %v6633, %v6713
      %v6730 = vadd.f32 %v6634, %v6714
      %v6731 = vadd.f32 %v6635, %v6715
      %v6732 = vadd.f32 %v6636, %v6716
      %v6733 = vadd.f32 %v6637, %v6717
      %v6734 = vadd.f32 %v6638, %v6718
      %v6735 = vadd.f32 %v6639, %v6719
      %v6736 = vadd.f32 %v6640, %v6720
      %v6737 = vadd.f32 %v6641, %v6721
      %v6738 = vadd.f32 %v6642, %v6722
      %v6739 = vadd.f32 %v6643, %v6723
      %v6740 = vadd.f32 %v6644, %v6724
      %v6741 = vadd.f32 %v6645, %v6725
      %v6742 = vadd.f32 %v6646, %v6726
      %v6743 = vadd.f32 %v6647, %v6727
      %v6744 = vadd.f32 %v6648, %v6728
      %6745 = vset.pattern.permute.xlu0 22
      %6746 = vperm.xlu0 %6745, %v622
      %v6747 = vpop.permute.xlu0 %6746
      %6749 = vset.pattern.permute.xlu0 22
      %6750 = vperm.xlu0 %6749, %v625
      %v6751 = vpop.permute.xlu0 %6750
      %6753 = vset.pattern.permute.xlu0 22
      %6754 = vperm.xlu0 %6753, %v630
      %v6755 = vpop.permute.xlu0 %6754
      %6757 = vset.pattern.permute.xlu0 22
      %6758 = vperm.xlu0 %6757, %v633
      %v6759 = vpop.permute.xlu0 %6758
      %6761 = vset.pattern.permute.xlu0 22
      %6762 = vperm.xlu0 %6761, %v638
      %v6763 = vpop.permute.xlu0 %6762
      %6765 = vset.pattern.permute.xlu0 22
      %6766 = vperm.xlu0 %6765, %v641
      %v6767 = vpop.permute.xlu0 %6766
      %6769 = vset.pattern.permute.xlu0 22
      %6770 = vperm.xlu0 %6769, %v646
      %v6771 = vpop.permute.xlu0 %6770
      %6773 = vset.pattern.permute.xlu0 22
      %6774 = vperm.xlu0 %6773, %v649
      %v6775 = vpop.permute.xlu0 %6774
      %6777 = vset.pattern.permute.xlu0 22
      %6778 = vperm.xlu0 %6777, %v654
      %v6779 = vpop.permute.xlu0 %6778
      %6781 = vset.pattern.permute.xlu0 22
      %6782 = vperm.xlu0 %6781, %v657
      %v6783 = vpop.permute.xlu0 %6782
      %6785 = vset.pattern.permute.xlu0 22
      %6786 = vperm.xlu0 %6785, %v662
      %v6787 = vpop.permute.xlu0 %6786
      %6789 = vset.pattern.permute.xlu0 22
      %6790 = vperm.xlu0 %6789, %v665
      %v6791 = vpop.permute.xlu0 %6790
      %6793 = vset.pattern.permute.xlu0 22
      %6794 = vperm.xlu0 %6793, %v670
      %v6795 = vpop.permute.xlu0 %6794
      %6797 = vset.pattern.permute.xlu0 22
      %6798 = vperm.xlu0 %6797, %v673
      %v6799 = vpop.permute.xlu0 %6798
      %6801 = vset.pattern.permute.xlu0 22
      %6802 = vperm.xlu0 %6801, %v678
      %v6803 = vpop.permute.xlu0 %6802
      %6805 = vset.pattern.permute.xlu0 22
      %6806 = vperm.xlu0 %6805, %v681
      %v6807 = vpop.permute.xlu0 %6806
      %v6809 = vsel %vm889, %v6747, 0.0
      %v6810 = vsel %vm890, %v6751, 0.0
      %v6811 = vsel %vm891, %v6755, 0.0
      %v6812 = vsel %vm892, %v6759, 0.0
      %v6813 = vsel %vm893, %v6763, 0.0
      %v6814 = vsel %vm894, %v6767, 0.0
      %v6815 = vsel %vm895, %v6771, 0.0
      %v6816 = vsel %vm896, %v6775, 0.0
      %v6817 = vsel %vm897, %v6779, 0.0
      %v6818 = vsel %vm898, %v6783, 0.0
      %v6819 = vsel %vm899, %v6787, 0.0
      %v6820 = vsel %vm900, %v6791, 0.0
      %v6821 = vsel %vm901, %v6795, 0.0
      %v6822 = vsel %vm902, %v6799, 0.0
      %v6823 = vsel %vm903, %v6803, 0.0
      %v6824 = vsel %vm904, %v6807, 0.0
      %v6825 = vadd.f32 %v6729, %v6809
      %v6826 = vadd.f32 %v6730, %v6810
      %v6827 = vadd.f32 %v6731, %v6811
      %v6828 = vadd.f32 %v6732, %v6812
      %v6829 = vadd.f32 %v6733, %v6813
      %v6830 = vadd.f32 %v6734, %v6814
      %v6831 = vadd.f32 %v6735, %v6815
      %v6832 = vadd.f32 %v6736, %v6816
      %v6833 = vadd.f32 %v6737, %v6817
      %v6834 = vadd.f32 %v6738, %v6818
      %v6835 = vadd.f32 %v6739, %v6819
      %v6836 = vadd.f32 %v6740, %v6820
      %v6837 = vadd.f32 %v6741, %v6821
      %v6838 = vadd.f32 %v6742, %v6822
      %v6839 = vadd.f32 %v6743, %v6823
      %v6840 = vadd.f32 %v6744, %v6824
      %6841 = vset.pattern.permute.xlu0 23
      %6842 = vperm.xlu0 %6841, %v622
      %v6843 = vpop.permute.xlu0 %6842
      %6845 = vset.pattern.permute.xlu0 23
      %6846 = vperm.xlu0 %6845, %v625
      %v6847 = vpop.permute.xlu0 %6846
      %6849 = vset.pattern.permute.xlu0 23
      %6850 = vperm.xlu0 %6849, %v630
      %v6851 = vpop.permute.xlu0 %6850
      %6853 = vset.pattern.permute.xlu0 23
      %6854 = vperm.xlu0 %6853, %v633
      %v6855 = vpop.permute.xlu0 %6854
      %6857 = vset.pattern.permute.xlu0 23
      %6858 = vperm.xlu0 %6857, %v638
      %v6859 = vpop.permute.xlu0 %6858
      %6861 = vset.pattern.permute.xlu0 23
      %6862 = vperm.xlu0 %6861, %v641
      %v6863 = vpop.permute.xlu0 %6862
      %6865 = vset.pattern.permute.xlu0 23
      %6866 = vperm.xlu0 %6865, %v646
      %v6867 = vpop.permute.xlu0 %6866
      %6869 = vset.pattern.permute.xlu0 23
      %6870 = vperm.xlu0 %6869, %v649
      %v6871 = vpop.permute.xlu0 %6870
      %6873 = vset.pattern.permute.xlu0 23
      %6874 = vperm.xlu0 %6873, %v654
      %v6875 = vpop.permute.xlu0 %6874
      %6877 = vset.pattern.permute.xlu0 23
      %6878 = vperm.xlu0 %6877, %v657
      %v6879 = vpop.permute.xlu0 %6878
      %6881 = vset.pattern.permute.xlu0 23
      %6882 = vperm.xlu0 %6881, %v662
      %v6883 = vpop.permute.xlu0 %6882
      %6885 = vset.pattern.permute.xlu0 23
      %6886 = vperm.xlu0 %6885, %v665
      %v6887 = vpop.permute.xlu0 %6886
      %6889 = vset.pattern.permute.xlu0 23
      %6890 = vperm.xlu0 %6889, %v670
      %v6891 = vpop.permute.xlu0 %6890
      %6893 = vset.pattern.permute.xlu0 23
      %6894 = vperm.xlu0 %6893, %v673
      %v6895 = vpop.permute.xlu0 %6894
      %6897 = vset.pattern.permute.xlu0 23
      %6898 = vperm.xlu0 %6897, %v678
      %v6899 = vpop.permute.xlu0 %6898
      %6901 = vset.pattern.permute.xlu0 23
      %6902 = vperm.xlu0 %6901, %v681
      %v6903 = vpop.permute.xlu0 %6902
      %v6905 = vsel %vm905, %v6843, 0.0
      %v6906 = vsel %vm906, %v6847, 0.0
      %v6907 = vsel %vm907, %v6851, 0.0
      %v6908 = vsel %vm908, %v6855, 0.0
      %v6909 = vsel %vm909, %v6859, 0.0
      %v6910 = vsel %vm910, %v6863, 0.0
      %v6911 = vsel %vm911, %v6867, 0.0
      %v6912 = vsel %vm912, %v6871, 0.0
      %v6913 = vsel %vm913, %v6875, 0.0
      %v6914 = vsel %vm914, %v6879, 0.0
      %v6915 = vsel %vm915, %v6883, 0.0
      %v6916 = vsel %vm916, %v6887, 0.0
      %v6917 = vsel %vm917, %v6891, 0.0
      %v6918 = vsel %vm918, %v6895, 0.0
      %v6919 = vsel %vm919, %v6899, 0.0
      %v6920 = vsel %vm920, %v6903, 0.0
      %v6921 = vadd.f32 %v6825, %v6905
      %v6922 = vadd.f32 %v6826, %v6906
      %v6923 = vadd.f32 %v6827, %v6907
      %v6924 = vadd.f32 %v6828, %v6908
      %v6925 = vadd.f32 %v6829, %v6909
      %v6926 = vadd.f32 %v6830, %v6910
      %v6927 = vadd.f32 %v6831, %v6911
      %v6928 = vadd.f32 %v6832, %v6912
      %v6929 = vadd.f32 %v6833, %v6913
      %v6930 = vadd.f32 %v6834, %v6914
      %v6931 = vadd.f32 %v6835, %v6915
      %v6932 = vadd.f32 %v6836, %v6916
      %v6933 = vadd.f32 %v6837, %v6917
      %v6934 = vadd.f32 %v6838, %v6918
      %v6935 = vadd.f32 %v6839, %v6919
      %v6936 = vadd.f32 %v6840, %v6920
      %6937 = vset.pattern.permute.xlu0 16
      %6938 = vperm.xlu0 %6937, %v731
      %v6939 = vpop.permute.xlu0 %6938
      %6941 = vset.pattern.permute.xlu0 16
      %6942 = vperm.xlu0 %6941, %v734
      %v6943 = vpop.permute.xlu0 %6942
      %6945 = vset.pattern.permute.xlu0 16
      %6946 = vperm.xlu0 %6945, %v739
      %v6947 = vpop.permute.xlu0 %6946
      %6949 = vset.pattern.permute.xlu0 16
      %6950 = vperm.xlu0 %6949, %v742
      %v6951 = vpop.permute.xlu0 %6950
      %6953 = vset.pattern.permute.xlu0 16
      %6954 = vperm.xlu0 %6953, %v747
      %v6955 = vpop.permute.xlu0 %6954
      %6957 = vset.pattern.permute.xlu0 16
      %6958 = vperm.xlu0 %6957, %v750
      %v6959 = vpop.permute.xlu0 %6958
      %6961 = vset.pattern.permute.xlu0 16
      %6962 = vperm.xlu0 %6961, %v755
      %v6963 = vpop.permute.xlu0 %6962
      %6965 = vset.pattern.permute.xlu0 16
      %6966 = vperm.xlu0 %6965, %v758
      %v6967 = vpop.permute.xlu0 %6966
      %6969 = vset.pattern.permute.xlu0 16
      %6970 = vperm.xlu0 %6969, %v763
      %v6971 = vpop.permute.xlu0 %6970
      %6973 = vset.pattern.permute.xlu0 16
      %6974 = vperm.xlu0 %6973, %v766
      %v6975 = vpop.permute.xlu0 %6974
      %6977 = vset.pattern.permute.xlu0 16
      %6978 = vperm.xlu0 %6977, %v771
      %v6979 = vpop.permute.xlu0 %6978
      %6981 = vset.pattern.permute.xlu0 16
      %6982 = vperm.xlu0 %6981, %v774
      %v6983 = vpop.permute.xlu0 %6982
      %6985 = vset.pattern.permute.xlu0 16
      %6986 = vperm.xlu0 %6985, %v779
      %v6987 = vpop.permute.xlu0 %6986
      %6989 = vset.pattern.permute.xlu0 16
      %6990 = vperm.xlu0 %6989, %v782
      %v6991 = vpop.permute.xlu0 %6990
      %6993 = vset.pattern.permute.xlu0 16
      %6994 = vperm.xlu0 %6993, %v787
      %v6995 = vpop.permute.xlu0 %6994
      %6997 = vset.pattern.permute.xlu0 16
      %6998 = vperm.xlu0 %6997, %v790
      %v6999 = vpop.permute.xlu0 %6998
      %v7001 = vsel %vm921, %v6939, 0.0
      %v7002 = vsel %vm922, %v6943, 0.0
      %v7003 = vsel %vm923, %v6947, 0.0
      %v7004 = vsel %vm924, %v6951, 0.0
      %v7005 = vsel %vm925, %v6955, 0.0
      %v7006 = vsel %vm926, %v6959, 0.0
      %v7007 = vsel %vm927, %v6963, 0.0
      %v7008 = vsel %vm928, %v6967, 0.0
      %v7009 = vsel %vm929, %v6971, 0.0
      %v7010 = vsel %vm930, %v6975, 0.0
      %v7011 = vsel %vm931, %v6979, 0.0
      %v7012 = vsel %vm932, %v6983, 0.0
      %v7013 = vsel %vm933, %v6987, 0.0
      %v7014 = vsel %vm934, %v6991, 0.0
      %v7015 = vsel %vm935, %v6995, 0.0
      %v7016 = vsel %vm936, %v6999, 0.0
      %7017 = vset.pattern.permute.xlu0 17
      %7018 = vperm.xlu0 %7017, %v731
      %v7019 = vpop.permute.xlu0 %7018
      %7021 = vset.pattern.permute.xlu0 17
      %7022 = vperm.xlu0 %7021, %v734
      %v7023 = vpop.permute.xlu0 %7022
      %7025 = vset.pattern.permute.xlu0 17
      %7026 = vperm.xlu0 %7025, %v739
      %v7027 = vpop.permute.xlu0 %7026
      %7029 = vset.pattern.permute.xlu0 17
      %7030 = vperm.xlu0 %7029, %v742
      %v7031 = vpop.permute.xlu0 %7030
      %7033 = vset.pattern.permute.xlu0 17
      %7034 = vperm.xlu0 %7033, %v747
      %v7035 = vpop.permute.xlu0 %7034
      %7037 = vset.pattern.permute.xlu0 17
      %7038 = vperm.xlu0 %7037, %v750
      %v7039 = vpop.permute.xlu0 %7038
      %7041 = vset.pattern.permute.xlu0 17
      %7042 = vperm.xlu0 %7041, %v755
      %v7043 = vpop.permute.xlu0 %7042
      %7045 = vset.pattern.permute.xlu0 17
      %7046 = vperm.xlu0 %7045, %v758
      %v7047 = vpop.permute.xlu0 %7046
      %7049 = vset.pattern.permute.xlu0 17
      %7050 = vperm.xlu0 %7049, %v763
      %v7051 = vpop.permute.xlu0 %7050
      %7053 = vset.pattern.permute.xlu0 17
      %7054 = vperm.xlu0 %7053, %v766
      %v7055 = vpop.permute.xlu0 %7054
      %7057 = vset.pattern.permute.xlu0 17
      %7058 = vperm.xlu0 %7057, %v771
      %v7059 = vpop.permute.xlu0 %7058
      %7061 = vset.pattern.permute.xlu0 17
      %7062 = vperm.xlu0 %7061, %v774
      %v7063 = vpop.permute.xlu0 %7062
      %7065 = vset.pattern.permute.xlu0 17
      %7066 = vperm.xlu0 %7065, %v779
      %v7067 = vpop.permute.xlu0 %7066
      %7069 = vset.pattern.permute.xlu0 17
      %7070 = vperm.xlu0 %7069, %v782
      %v7071 = vpop.permute.xlu0 %7070
      %7073 = vset.pattern.permute.xlu0 17
      %7074 = vperm.xlu0 %7073, %v787
      %v7075 = vpop.permute.xlu0 %7074
      %7077 = vset.pattern.permute.xlu0 17
      %7078 = vperm.xlu0 %7077, %v790
      %v7079 = vpop.permute.xlu0 %7078
      %v7081 = vsel %vm937, %v7019, 0.0
      %v7082 = vsel %vm938, %v7023, 0.0
      %v7083 = vsel %vm939, %v7027, 0.0
      %v7084 = vsel %vm940, %v7031, 0.0
      %v7085 = vsel %vm941, %v7035, 0.0
      %v7086 = vsel %vm942, %v7039, 0.0
      %v7087 = vsel %vm943, %v7043, 0.0
      %v7088 = vsel %vm944, %v7047, 0.0
      %v7089 = vsel %vm945, %v7051, 0.0
      %v7090 = vsel %vm946, %v7055, 0.0
      %v7091 = vsel %vm947, %v7059, 0.0
      %v7092 = vsel %vm948, %v7063, 0.0
      %v7093 = vsel %vm949, %v7067, 0.0
      %v7094 = vsel %vm950, %v7071, 0.0
      %v7095 = vsel %vm951, %v7075, 0.0
      %v7096 = vsel %vm952, %v7079, 0.0
      %v7097 = vadd.f32 %v7001, %v7081
      %v7098 = vadd.f32 %v7002, %v7082
      %v7099 = vadd.f32 %v7003, %v7083
      %v7100 = vadd.f32 %v7004, %v7084
      %v7101 = vadd.f32 %v7005, %v7085
      %v7102 = vadd.f32 %v7006, %v7086
      %v7103 = vadd.f32 %v7007, %v7087
      %v7104 = vadd.f32 %v7008, %v7088
      %v7105 = vadd.f32 %v7009, %v7089
      %v7106 = vadd.f32 %v7010, %v7090
      %v7107 = vadd.f32 %v7011, %v7091
      %v7108 = vadd.f32 %v7012, %v7092
      %v7109 = vadd.f32 %v7013, %v7093
      %v7110 = vadd.f32 %v7014, %v7094
      %v7111 = vadd.f32 %v7015, %v7095
      %v7112 = vadd.f32 %v7016, %v7096
      %7113 = vset.pattern.permute.xlu0 18
      %7114 = vperm.xlu0 %7113, %v731
      %v7115 = vpop.permute.xlu0 %7114
      %7117 = vset.pattern.permute.xlu0 18
      %7118 = vperm.xlu0 %7117, %v734
      %v7119 = vpop.permute.xlu0 %7118
      %7121 = vset.pattern.permute.xlu0 18
      %7122 = vperm.xlu0 %7121, %v739
      %v7123 = vpop.permute.xlu0 %7122
      %7125 = vset.pattern.permute.xlu0 18
      %7126 = vperm.xlu0 %7125, %v742
      %v7127 = vpop.permute.xlu0 %7126
      %7129 = vset.pattern.permute.xlu0 18
      %7130 = vperm.xlu0 %7129, %v747
      %v7131 = vpop.permute.xlu0 %7130
      %7133 = vset.pattern.permute.xlu0 18
      %7134 = vperm.xlu0 %7133, %v750
      %v7135 = vpop.permute.xlu0 %7134
      %7137 = vset.pattern.permute.xlu0 18
      %7138 = vperm.xlu0 %7137, %v755
      %v7139 = vpop.permute.xlu0 %7138
      %7141 = vset.pattern.permute.xlu0 18
      %7142 = vperm.xlu0 %7141, %v758
      %v7143 = vpop.permute.xlu0 %7142
      %7145 = vset.pattern.permute.xlu0 18
      %7146 = vperm.xlu0 %7145, %v763
      %v7147 = vpop.permute.xlu0 %7146
      %7149 = vset.pattern.permute.xlu0 18
      %7150 = vperm.xlu0 %7149, %v766
      %v7151 = vpop.permute.xlu0 %7150
      %7153 = vset.pattern.permute.xlu0 18
      %7154 = vperm.xlu0 %7153, %v771
      %v7155 = vpop.permute.xlu0 %7154
      %7157 = vset.pattern.permute.xlu0 18
      %7158 = vperm.xlu0 %7157, %v774
      %v7159 = vpop.permute.xlu0 %7158
      %7161 = vset.pattern.permute.xlu0 18
      %7162 = vperm.xlu0 %7161, %v779
      %v7163 = vpop.permute.xlu0 %7162
      %7165 = vset.pattern.permute.xlu0 18
      %7166 = vperm.xlu0 %7165, %v782
      %v7167 = vpop.permute.xlu0 %7166
      %7169 = vset.pattern.permute.xlu0 18
      %7170 = vperm.xlu0 %7169, %v787
      %v7171 = vpop.permute.xlu0 %7170
      %7173 = vset.pattern.permute.xlu0 18
      %7174 = vperm.xlu0 %7173, %v790
      %v7175 = vpop.permute.xlu0 %7174
      %v7177 = vsel %vm953, %v7115, 0.0
      %v7178 = vsel %vm954, %v7119, 0.0
      %v7179 = vsel %vm955, %v7123, 0.0
      %v7180 = vsel %vm956, %v7127, 0.0
      %v7181 = vsel %vm957, %v7131, 0.0
      %v7182 = vsel %vm958, %v7135, 0.0
      %v7183 = vsel %vm959, %v7139, 0.0
      %v7184 = vsel %vm960, %v7143, 0.0
      %v7185 = vsel %vm961, %v7147, 0.0
      %v7186 = vsel %vm962, %v7151, 0.0
      %v7187 = vsel %vm963, %v7155, 0.0
      %v7188 = vsel %vm964, %v7159, 0.0
      %v7189 = vsel %vm965, %v7163, 0.0
      %v7190 = vsel %vm966, %v7167, 0.0
      %v7191 = vsel %vm967, %v7171, 0.0
      %v7192 = vsel %vm968, %v7175, 0.0
      %v7193 = vadd.f32 %v7097, %v7177
      %v7194 = vadd.f32 %v7098, %v7178
      %v7195 = vadd.f32 %v7099, %v7179
      %v7196 = vadd.f32 %v7100, %v7180
      %v7197 = vadd.f32 %v7101, %v7181
      %v7198 = vadd.f32 %v7102, %v7182
      %v7199 = vadd.f32 %v7103, %v7183
      %v7200 = vadd.f32 %v7104, %v7184
      %v7201 = vadd.f32 %v7105, %v7185
      %v7202 = vadd.f32 %v7106, %v7186
      %v7203 = vadd.f32 %v7107, %v7187
      %v7204 = vadd.f32 %v7108, %v7188
      %v7205 = vadd.f32 %v7109, %v7189
      %v7206 = vadd.f32 %v7110, %v7190
      %v7207 = vadd.f32 %v7111, %v7191
      %v7208 = vadd.f32 %v7112, %v7192
      %7209 = vset.pattern.permute.xlu0 19
      %7210 = vperm.xlu0 %7209, %v731
      %v7211 = vpop.permute.xlu0 %7210
      %7213 = vset.pattern.permute.xlu0 19
      %7214 = vperm.xlu0 %7213, %v734
      %v7215 = vpop.permute.xlu0 %7214
      %7217 = vset.pattern.permute.xlu0 19
      %7218 = vperm.xlu0 %7217, %v739
      %v7219 = vpop.permute.xlu0 %7218
      %7221 = vset.pattern.permute.xlu0 19
      %7222 = vperm.xlu0 %7221, %v742
      %v7223 = vpop.permute.xlu0 %7222
      %7225 = vset.pattern.permute.xlu0 19
      %7226 = vperm.xlu0 %7225, %v747
      %v7227 = vpop.permute.xlu0 %7226
      %7229 = vset.pattern.permute.xlu0 19
      %7230 = vperm.xlu0 %7229, %v750
      %v7231 = vpop.permute.xlu0 %7230
      %7233 = vset.pattern.permute.xlu0 19
      %7234 = vperm.xlu0 %7233, %v755
      %v7235 = vpop.permute.xlu0 %7234
      %7237 = vset.pattern.permute.xlu0 19
      %7238 = vperm.xlu0 %7237, %v758
      %v7239 = vpop.permute.xlu0 %7238
      %7241 = vset.pattern.permute.xlu0 19
      %7242 = vperm.xlu0 %7241, %v763
      %v7243 = vpop.permute.xlu0 %7242
      %7245 = vset.pattern.permute.xlu0 19
      %7246 = vperm.xlu0 %7245, %v766
      %v7247 = vpop.permute.xlu0 %7246
      %7249 = vset.pattern.permute.xlu0 19
      %7250 = vperm.xlu0 %7249, %v771
      %v7251 = vpop.permute.xlu0 %7250
      %7253 = vset.pattern.permute.xlu0 19
      %7254 = vperm.xlu0 %7253, %v774
      %v7255 = vpop.permute.xlu0 %7254
      %7257 = vset.pattern.permute.xlu0 19
      %7258 = vperm.xlu0 %7257, %v779
      %v7259 = vpop.permute.xlu0 %7258
      %7261 = vset.pattern.permute.xlu0 19
      %7262 = vperm.xlu0 %7261, %v782
      %v7263 = vpop.permute.xlu0 %7262
      %7265 = vset.pattern.permute.xlu0 19
      %7266 = vperm.xlu0 %7265, %v787
      %v7267 = vpop.permute.xlu0 %7266
      %7269 = vset.pattern.permute.xlu0 19
      %7270 = vperm.xlu0 %7269, %v790
      %v7271 = vpop.permute.xlu0 %7270
      %v7273 = vsel %vm969, %v7211, 0.0
      %v7274 = vsel %vm970, %v7215, 0.0
      %v7275 = vsel %vm971, %v7219, 0.0
      %v7276 = vsel %vm972, %v7223, 0.0
      %v7277 = vsel %vm973, %v7227, 0.0
      %v7278 = vsel %vm974, %v7231, 0.0
      %v7279 = vsel %vm975, %v7235, 0.0
      %v7280 = vsel %vm976, %v7239, 0.0
      %v7281 = vsel %vm977, %v7243, 0.0
      %v7282 = vsel %vm978, %v7247, 0.0
      %v7283 = vsel %vm979, %v7251, 0.0
      %v7284 = vsel %vm980, %v7255, 0.0
      %v7285 = vsel %vm981, %v7259, 0.0
      %v7286 = vsel %vm982, %v7263, 0.0
      %v7287 = vsel %vm983, %v7267, 0.0
      %v7288 = vsel %vm984, %v7271, 0.0
      %v7289 = vadd.f32 %v7193, %v7273
      %v7290 = vadd.f32 %v7194, %v7274
      %v7291 = vadd.f32 %v7195, %v7275
      %v7292 = vadd.f32 %v7196, %v7276
      %v7293 = vadd.f32 %v7197, %v7277
      %v7294 = vadd.f32 %v7198, %v7278
      %v7295 = vadd.f32 %v7199, %v7279
      %v7296 = vadd.f32 %v7200, %v7280
      %v7297 = vadd.f32 %v7201, %v7281
      %v7298 = vadd.f32 %v7202, %v7282
      %v7299 = vadd.f32 %v7203, %v7283
      %v7300 = vadd.f32 %v7204, %v7284
      %v7301 = vadd.f32 %v7205, %v7285
      %v7302 = vadd.f32 %v7206, %v7286
      %v7303 = vadd.f32 %v7207, %v7287
      %v7304 = vadd.f32 %v7208, %v7288
      %7305 = vset.pattern.permute.xlu0 20
      %7306 = vperm.xlu0 %7305, %v731
      %v7307 = vpop.permute.xlu0 %7306
      %7309 = vset.pattern.permute.xlu0 20
      %7310 = vperm.xlu0 %7309, %v734
      %v7311 = vpop.permute.xlu0 %7310
      %7313 = vset.pattern.permute.xlu0 20
      %7314 = vperm.xlu0 %7313, %v739
      %v7315 = vpop.permute.xlu0 %7314
      %7317 = vset.pattern.permute.xlu0 20
      %7318 = vperm.xlu0 %7317, %v742
      %v7319 = vpop.permute.xlu0 %7318
      %7321 = vset.pattern.permute.xlu0 20
      %7322 = vperm.xlu0 %7321, %v747
      %v7323 = vpop.permute.xlu0 %7322
      %7325 = vset.pattern.permute.xlu0 20
      %7326 = vperm.xlu0 %7325, %v750
      %v7327 = vpop.permute.xlu0 %7326
      %7329 = vset.pattern.permute.xlu0 20
      %7330 = vperm.xlu0 %7329, %v755
      %v7331 = vpop.permute.xlu0 %7330
      %7333 = vset.pattern.permute.xlu0 20
      %7334 = vperm.xlu0 %7333, %v758
      %v7335 = vpop.permute.xlu0 %7334
      %7337 = vset.pattern.permute.xlu0 20
      %7338 = vperm.xlu0 %7337, %v763
      %v7339 = vpop.permute.xlu0 %7338
      %7341 = vset.pattern.permute.xlu0 20
      %7342 = vperm.xlu0 %7341, %v766
      %v7343 = vpop.permute.xlu0 %7342
      %7345 = vset.pattern.permute.xlu0 20
      %7346 = vperm.xlu0 %7345, %v771
      %v7347 = vpop.permute.xlu0 %7346
      %7349 = vset.pattern.permute.xlu0 20
      %7350 = vperm.xlu0 %7349, %v774
      %v7351 = vpop.permute.xlu0 %7350
      %7353 = vset.pattern.permute.xlu0 20
      %7354 = vperm.xlu0 %7353, %v779
      %v7355 = vpop.permute.xlu0 %7354
      %7357 = vset.pattern.permute.xlu0 20
      %7358 = vperm.xlu0 %7357, %v782
      %v7359 = vpop.permute.xlu0 %7358
      %7361 = vset.pattern.permute.xlu0 20
      %7362 = vperm.xlu0 %7361, %v787
      %v7363 = vpop.permute.xlu0 %7362
      %7365 = vset.pattern.permute.xlu0 20
      %7366 = vperm.xlu0 %7365, %v790
      %v7367 = vpop.permute.xlu0 %7366
      %v7369 = vsel %vm985, %v7307, 0.0
      %v7370 = vsel %vm986, %v7311, 0.0
      %v7371 = vsel %vm987, %v7315, 0.0
      %v7372 = vsel %vm988, %v7319, 0.0
      %v7373 = vsel %vm989, %v7323, 0.0
      %v7374 = vsel %vm990, %v7327, 0.0
      %v7375 = vsel %vm991, %v7331, 0.0
      %v7376 = vsel %vm992, %v7335, 0.0
      %v7377 = vsel %vm993, %v7339, 0.0
      %v7378 = vsel %vm994, %v7343, 0.0
      %v7379 = vsel %vm995, %v7347, 0.0
      %v7380 = vsel %vm996, %v7351, 0.0
      %v7381 = vsel %vm997, %v7355, 0.0
      %v7382 = vsel %vm998, %v7359, 0.0
      %v7383 = vsel %vm999, %v7363, 0.0
      %v7384 = vsel %vm1000, %v7367, 0.0
      %v7385 = vadd.f32 %v7289, %v7369
      %v7386 = vadd.f32 %v7290, %v7370
      %v7387 = vadd.f32 %v7291, %v7371
      %v7388 = vadd.f32 %v7292, %v7372
      %v7389 = vadd.f32 %v7293, %v7373
      %v7390 = vadd.f32 %v7294, %v7374
      %v7391 = vadd.f32 %v7295, %v7375
      %v7392 = vadd.f32 %v7296, %v7376
      %v7393 = vadd.f32 %v7297, %v7377
      %v7394 = vadd.f32 %v7298, %v7378
      %v7395 = vadd.f32 %v7299, %v7379
      %v7396 = vadd.f32 %v7300, %v7380
      %v7397 = vadd.f32 %v7301, %v7381
      %v7398 = vadd.f32 %v7302, %v7382
      %v7399 = vadd.f32 %v7303, %v7383
      %v7400 = vadd.f32 %v7304, %v7384
      %7401 = vset.pattern.permute.xlu0 21
      %7402 = vperm.xlu0 %7401, %v731
      %v7403 = vpop.permute.xlu0 %7402
      %7405 = vset.pattern.permute.xlu0 21
      %7406 = vperm.xlu0 %7405, %v734
      %v7407 = vpop.permute.xlu0 %7406
      %7409 = vset.pattern.permute.xlu0 21
      %7410 = vperm.xlu0 %7409, %v739
      %v7411 = vpop.permute.xlu0 %7410
      %7413 = vset.pattern.permute.xlu0 21
      %7414 = vperm.xlu0 %7413, %v742
      %v7415 = vpop.permute.xlu0 %7414
      %7417 = vset.pattern.permute.xlu0 21
      %7418 = vperm.xlu0 %7417, %v747
      %v7419 = vpop.permute.xlu0 %7418
      %7421 = vset.pattern.permute.xlu0 21
      %7422 = vperm.xlu0 %7421, %v750
      %v7423 = vpop.permute.xlu0 %7422
      %7425 = vset.pattern.permute.xlu0 21
      %7426 = vperm.xlu0 %7425, %v755
      %v7427 = vpop.permute.xlu0 %7426
      %7429 = vset.pattern.permute.xlu0 21
      %7430 = vperm.xlu0 %7429, %v758
      %v7431 = vpop.permute.xlu0 %7430
      %7433 = vset.pattern.permute.xlu0 21
      %7434 = vperm.xlu0 %7433, %v763
      %v7435 = vpop.permute.xlu0 %7434
      %7437 = vset.pattern.permute.xlu0 21
      %7438 = vperm.xlu0 %7437, %v766
      %v7439 = vpop.permute.xlu0 %7438
      %7441 = vset.pattern.permute.xlu0 21
      %7442 = vperm.xlu0 %7441, %v771
      %v7443 = vpop.permute.xlu0 %7442
      %7445 = vset.pattern.permute.xlu0 21
      %7446 = vperm.xlu0 %7445, %v774
      %v7447 = vpop.permute.xlu0 %7446
      %7449 = vset.pattern.permute.xlu0 21
      %7450 = vperm.xlu0 %7449, %v779
      %v7451 = vpop.permute.xlu0 %7450
      %7453 = vset.pattern.permute.xlu0 21
      %7454 = vperm.xlu0 %7453, %v782
      %v7455 = vpop.permute.xlu0 %7454
      %7457 = vset.pattern.permute.xlu0 21
      %7458 = vperm.xlu0 %7457, %v787
      %v7459 = vpop.permute.xlu0 %7458
      %7461 = vset.pattern.permute.xlu0 21
      %7462 = vperm.xlu0 %7461, %v790
      %v7463 = vpop.permute.xlu0 %7462
      %v7465 = vsel %vm1001, %v7403, 0.0
      %v7466 = vsel %vm1002, %v7407, 0.0
      %v7467 = vsel %vm1003, %v7411, 0.0
      %v7468 = vsel %vm1004, %v7415, 0.0
      %v7469 = vsel %vm1005, %v7419, 0.0
      %v7470 = vsel %vm1006, %v7423, 0.0
      %v7471 = vsel %vm1007, %v7427, 0.0
      %v7472 = vsel %vm1008, %v7431, 0.0
      %v7473 = vsel %vm1009, %v7435, 0.0
      %v7474 = vsel %vm1010, %v7439, 0.0
      %v7475 = vsel %vm1011, %v7443, 0.0
      %v7476 = vsel %vm1012, %v7447, 0.0
      %v7477 = vsel %vm1013, %v7451, 0.0
      %v7478 = vsel %vm1014, %v7455, 0.0
      %v7479 = vsel %vm1015, %v7459, 0.0
      %v7480 = vsel %vm1016, %v7463, 0.0
      %v7481 = vadd.f32 %v7385, %v7465
      %v7482 = vadd.f32 %v7386, %v7466
      %v7483 = vadd.f32 %v7387, %v7467
      %v7484 = vadd.f32 %v7388, %v7468
      %v7485 = vadd.f32 %v7389, %v7469
      %v7486 = vadd.f32 %v7390, %v7470
      %v7487 = vadd.f32 %v7391, %v7471
      %v7488 = vadd.f32 %v7392, %v7472
      %v7489 = vadd.f32 %v7393, %v7473
      %v7490 = vadd.f32 %v7394, %v7474
      %v7491 = vadd.f32 %v7395, %v7475
      %v7492 = vadd.f32 %v7396, %v7476
      %v7493 = vadd.f32 %v7397, %v7477
      %v7494 = vadd.f32 %v7398, %v7478
      %v7495 = vadd.f32 %v7399, %v7479
      %v7496 = vadd.f32 %v7400, %v7480
      %7497 = vset.pattern.permute.xlu0 22
      %7498 = vperm.xlu0 %7497, %v731
      %v7499 = vpop.permute.xlu0 %7498
      %7501 = vset.pattern.permute.xlu0 22
      %7502 = vperm.xlu0 %7501, %v734
      %v7503 = vpop.permute.xlu0 %7502
      %7505 = vset.pattern.permute.xlu0 22
      %7506 = vperm.xlu0 %7505, %v739
      %v7507 = vpop.permute.xlu0 %7506
      %7509 = vset.pattern.permute.xlu0 22
      %7510 = vperm.xlu0 %7509, %v742
      %v7511 = vpop.permute.xlu0 %7510
      %7513 = vset.pattern.permute.xlu0 22
      %7514 = vperm.xlu0 %7513, %v747
      %v7515 = vpop.permute.xlu0 %7514
      %7517 = vset.pattern.permute.xlu0 22
      %7518 = vperm.xlu0 %7517, %v750
      %v7519 = vpop.permute.xlu0 %7518
      %7521 = vset.pattern.permute.xlu0 22
      %7522 = vperm.xlu0 %7521, %v755
      %v7523 = vpop.permute.xlu0 %7522
      %7525 = vset.pattern.permute.xlu0 22
      %7526 = vperm.xlu0 %7525, %v758
      %v7527 = vpop.permute.xlu0 %7526
      %7529 = vset.pattern.permute.xlu0 22
      %7530 = vperm.xlu0 %7529, %v763
      %v7531 = vpop.permute.xlu0 %7530
      %7533 = vset.pattern.permute.xlu0 22
      %7534 = vperm.xlu0 %7533, %v766
      %v7535 = vpop.permute.xlu0 %7534
      %7537 = vset.pattern.permute.xlu0 22
      %7538 = vperm.xlu0 %7537, %v771
      %v7539 = vpop.permute.xlu0 %7538
      %7541 = vset.pattern.permute.xlu0 22
      %7542 = vperm.xlu0 %7541, %v774
      %v7543 = vpop.permute.xlu0 %7542
      %7545 = vset.pattern.permute.xlu0 22
      %7546 = vperm.xlu0 %7545, %v779
      %v7547 = vpop.permute.xlu0 %7546
      %7549 = vset.pattern.permute.xlu0 22
      %7550 = vperm.xlu0 %7549, %v782
      %v7551 = vpop.permute.xlu0 %7550
      %7553 = vset.pattern.permute.xlu0 22
      %7554 = vperm.xlu0 %7553, %v787
      %v7555 = vpop.permute.xlu0 %7554
      %7557 = vset.pattern.permute.xlu0 22
      %7558 = vperm.xlu0 %7557, %v790
      %v7559 = vpop.permute.xlu0 %7558
      %v7561 = vsel %vm1017, %v7499, 0.0
      %v7562 = vsel %vm1018, %v7503, 0.0
      %v7563 = vsel %vm1019, %v7507, 0.0
      %v7564 = vsel %vm1020, %v7511, 0.0
      %v7565 = vsel %vm1021, %v7515, 0.0
      %v7566 = vsel %vm1022, %v7519, 0.0
      %v7567 = vsel %vm1023, %v7523, 0.0
      %v7568 = vsel %vm1024, %v7527, 0.0
      %v7569 = vsel %vm1025, %v7531, 0.0
      %v7570 = vsel %vm1026, %v7535, 0.0
      %v7571 = vsel %vm1027, %v7539, 0.0
      %v7572 = vsel %vm1028, %v7543, 0.0
      %v7573 = vsel %vm1029, %v7547, 0.0
      %v7574 = vsel %vm1030, %v7551, 0.0
      %v7575 = vsel %vm1031, %v7555, 0.0
      %v7576 = vsel %vm1032, %v7559, 0.0
      %v7577 = vadd.f32 %v7481, %v7561
      %v7578 = vadd.f32 %v7482, %v7562
      %v7579 = vadd.f32 %v7483, %v7563
      %v7580 = vadd.f32 %v7484, %v7564
      %v7581 = vadd.f32 %v7485, %v7565
      %v7582 = vadd.f32 %v7486, %v7566
      %v7583 = vadd.f32 %v7487, %v7567
      %v7584 = vadd.f32 %v7488, %v7568
      %v7585 = vadd.f32 %v7489, %v7569
      %v7586 = vadd.f32 %v7490, %v7570
      %v7587 = vadd.f32 %v7491, %v7571
      %v7588 = vadd.f32 %v7492, %v7572
      %v7589 = vadd.f32 %v7493, %v7573
      %v7590 = vadd.f32 %v7494, %v7574
      %v7591 = vadd.f32 %v7495, %v7575
      %v7592 = vadd.f32 %v7496, %v7576
      %7593 = vset.pattern.permute.xlu0 23
      %7594 = vperm.xlu0 %7593, %v731
      %v7595 = vpop.permute.xlu0 %7594
      %7597 = vset.pattern.permute.xlu0 23
      %7598 = vperm.xlu0 %7597, %v734
      %v7599 = vpop.permute.xlu0 %7598
      %7601 = vset.pattern.permute.xlu0 23
      %7602 = vperm.xlu0 %7601, %v739
      %v7603 = vpop.permute.xlu0 %7602
      %7605 = vset.pattern.permute.xlu0 23
      %7606 = vperm.xlu0 %7605, %v742
      %v7607 = vpop.permute.xlu0 %7606
      %7609 = vset.pattern.permute.xlu0 23
      %7610 = vperm.xlu0 %7609, %v747
      %v7611 = vpop.permute.xlu0 %7610
      %7613 = vset.pattern.permute.xlu0 23
      %7614 = vperm.xlu0 %7613, %v750
      %v7615 = vpop.permute.xlu0 %7614
      %7617 = vset.pattern.permute.xlu0 23
      %7618 = vperm.xlu0 %7617, %v755
      %v7619 = vpop.permute.xlu0 %7618
      %7621 = vset.pattern.permute.xlu0 23
      %7622 = vperm.xlu0 %7621, %v758
      %v7623 = vpop.permute.xlu0 %7622
      %7625 = vset.pattern.permute.xlu0 23
      %7626 = vperm.xlu0 %7625, %v763
      %v7627 = vpop.permute.xlu0 %7626
      %7629 = vset.pattern.permute.xlu0 23
      %7630 = vperm.xlu0 %7629, %v766
      %v7631 = vpop.permute.xlu0 %7630
      %7633 = vset.pattern.permute.xlu0 23
      %7634 = vperm.xlu0 %7633, %v771
      %v7635 = vpop.permute.xlu0 %7634
      %7637 = vset.pattern.permute.xlu0 23
      %7638 = vperm.xlu0 %7637, %v774
      %v7639 = vpop.permute.xlu0 %7638
      %7641 = vset.pattern.permute.xlu0 23
      %7642 = vperm.xlu0 %7641, %v779
      %v7643 = vpop.permute.xlu0 %7642
      %7645 = vset.pattern.permute.xlu0 23
      %7646 = vperm.xlu0 %7645, %v782
      %v7647 = vpop.permute.xlu0 %7646
      %7649 = vset.pattern.permute.xlu0 23
      %7650 = vperm.xlu0 %7649, %v787
      %v7651 = vpop.permute.xlu0 %7650
      %7653 = vset.pattern.permute.xlu0 23
      %7654 = vperm.xlu0 %7653, %v790
      %v7655 = vpop.permute.xlu0 %7654
      %v7657 = vsel %vm1033, %v7595, 0.0
      %v7658 = vsel %vm1034, %v7599, 0.0
      %v7659 = vsel %vm1035, %v7603, 0.0
      %v7660 = vsel %vm1036, %v7607, 0.0
      %v7661 = vsel %vm1037, %v7611, 0.0
      %v7662 = vsel %vm1038, %v7615, 0.0
      %v7663 = vsel %vm1039, %v7619, 0.0
      %v7664 = vsel %vm1040, %v7623, 0.0
      %v7665 = vsel %vm1041, %v7627, 0.0
      %v7666 = vsel %vm1042, %v7631, 0.0
      %v7667 = vsel %vm1043, %v7635, 0.0
      %v7668 = vsel %vm1044, %v7639, 0.0
      %v7669 = vsel %vm1045, %v7643, 0.0
      %v7670 = vsel %vm1046, %v7647, 0.0
      %v7671 = vsel %vm1047, %v7651, 0.0
      %v7672 = vsel %vm1048, %v7655, 0.0
      %v7673 = vadd.f32 %v7577, %v7657
      %v7674 = vadd.f32 %v7578, %v7658
      %v7675 = vadd.f32 %v7579, %v7659
      %v7676 = vadd.f32 %v7580, %v7660
      %v7677 = vadd.f32 %v7581, %v7661
      %v7678 = vadd.f32 %v7582, %v7662
      %v7679 = vadd.f32 %v7583, %v7663
      %v7680 = vadd.f32 %v7584, %v7664
      %v7681 = vadd.f32 %v7585, %v7665
      %v7682 = vadd.f32 %v7586, %v7666
      %v7683 = vadd.f32 %v7587, %v7667
      %v7684 = vadd.f32 %v7588, %v7668
      %v7685 = vadd.f32 %v7589, %v7669
      %v7686 = vadd.f32 %v7590, %v7670
      %v7687 = vadd.f32 %v7591, %v7671
      %v7688 = vadd.f32 %v7592, %v7672
      %v7690 = vsel %vm2585, %v7673, 0
      %v7693 = vsel %vm2585, %v7674, 0
      %v7696 = vsel %vm2585, %v7675, 0
      %v7699 = vsel %vm2585, %v7676, 0
      %v7702 = vsel %vm2585, %v7677, 0
      %v7705 = vsel %vm2585, %v7678, 0
      %v7708 = vsel %vm2585, %v7679, 0
      %v7711 = vsel %vm2585, %v7680, 0
      %v7714 = vsel %vm2585, %v7681, 0
      %v7717 = vsel %vm2585, %v7682, 0
      %v7720 = vsel %vm2585, %v7683, 0
      %v7723 = vsel %vm2585, %v7684, 0
      %v7726 = vsel %vm2585, %v7685, 0
      %v7729 = vsel %vm2585, %v7686, 0
      %v7732 = vsel %vm2585, %v7687, 0
      %v7735 = vsel %vm2585, %v7688, 0
      %7737 = vmatprep.subr.mxu0 0.0
      %7738 = vmatpush1.msra.mxu0 0.0
      %7739 = vmatprep.subr.mxu0 0.0
      %7740 = vmatpush1.msra.mxu0 0.0
      %7741 = vmatprep.subr.mxu0 0.0
      %7742 = vmatpush1.msra.mxu0 0.0
      %7743 = vmatprep.subr.mxu0 0.0
      %7744 = vmatpush1.msra.mxu0 0.0
      %7745 = vmatprep.subr.mxu0 0.0
      %7746 = vmatpush1.msra.mxu0 0.0
      %7747 = vmatprep.subr.mxu0 0.0
      %7748 = vmatpush1.msra.mxu0 0.0
      %7749 = vmatprep.subr.mxu0 0.0
      %7750 = vmatpush1.msra.mxu0 0.0
      %7751 = vmatprep.subr.mxu0 0.0
      %7752 = vmatpush1.msra.mxu0 0.0
      %7753 = vmatprep.subr.mxu0 0.0
      %7754 = vmatpush1.msra.mxu0 0.0
      %7755 = vmatprep.subr.mxu0 0.0
      %7756 = vmatpush1.msra.mxu0 0.0
      %7757 = vmatprep.subr.mxu0 0.0
      %7758 = vmatpush1.msra.mxu0 0.0
      %7759 = vmatprep.subr.mxu0 0.0
      %7760 = vmatpush1.msra.mxu0 0.0
      %7761 = vmatprep.subr.mxu0 0.0
      %7762 = vmatpush1.msra.mxu0 0.0
      %7763 = vmatprep.subr.mxu0 0.0
      %7764 = vmatpush1.msra.mxu0 0.0
      %7765 = vmatprep.subr.mxu0 0.0
      %7766 = vmatpush1.msra.mxu0 0.0
      %7767 = vmatprep.subr.mxu0 0.0
      %7768 = vmatpush1.msra.mxu0 %v368
      %7769 = vmatprep.subr.mxu0 0.0
      %7770 = vmatpush2.msra.mxu0 0.0
      %7771 = vmatprep.subr.mxu0 0.0
      %7772 = vmatpush2.msra.mxu0 0.0
      %7773 = vmatprep.subr.mxu0 0.0
      %7774 = vmatpush2.msra.mxu0 0.0
      %7775 = vmatprep.subr.mxu0 0.0
      %7776 = vmatpush2.msra.mxu0 0.0
      %7777 = vmatprep.subr.mxu0 0.0
      %7778 = vmatpush2.msra.mxu0 0.0
      %7779 = vmatprep.subr.mxu0 0.0
      %7780 = vmatpush2.msra.mxu0 0.0
      %7781 = vmatprep.subr.mxu0 0.0
      %7782 = vmatpush2.msra.mxu0 0.0
      %7783 = vmatprep.subr.mxu0 0.0
      %7784 = vmatpush2.msra.mxu0 0.0
      %7785 = vmatprep.subr.mxu0 0.0
      %7786 = vmatpush2.msra.mxu0 0.0
      %7787 = vmatprep.subr.mxu0 0.0
      %7788 = vmatpush2.msra.mxu0 0.0
      %7789 = vmatprep.subr.mxu0 0.0
      %7790 = vmatpush2.msra.mxu0 0.0
      %7791 = vmatprep.subr.mxu0 0.0
      %7792 = vmatpush2.msra.mxu0 0.0
      %7793 = vmatprep.subr.mxu0 0.0
      %7794 = vmatpush2.msra.mxu0 0.0
      %7795 = vmatprep.subr.mxu0 0.0
      %7796 = vmatpush2.msra.mxu0 0.0
      %7797 = vmatprep.subr.mxu0 0.0
      %7798 = vmatpush2.msra.mxu0 0.0
      %7799 = vmatprep.subr.mxu0 0.0
      %7800 = vmatpush2.msra.mxu0 0.0
      %7801 = vmatprep.mubr.f32.mxu0 0.0
      %7802 = vmatmul.mubr.f32.gmra.mxu0 %v7690
      %v7803 = vpop.f32.mrf.mxu0
      %v7804 = vadd.f32 0.0, %v7803
      %v7805 = vpop.f32.mrf.mxu0
      %7806 = vmatprep.mubr.f32.mxu0 0.0
      %7807 = vmatmul.mubr.f32.gmra.mxu0 %v7693
      %v7808 = vpop.f32.mrf.mxu0
      %v7809 = vadd.f32 0.0, %v7808
      %v7810 = vpop.f32.mrf.mxu0
      %7811 = vmatprep.mubr.f32.mxu0 0.0
      %7812 = vmatmul.mubr.f32.gmra.mxu0 %v7696
      %v7813 = vpop.f32.mrf.mxu0
      %v7814 = vadd.f32 0.0, %v7813
      %v7815 = vpop.f32.mrf.mxu0
      %7816 = vmatprep.mubr.f32.mxu0 0.0
      %7817 = vmatmul.mubr.f32.gmra.mxu0 %v7699
      %v7818 = vpop.f32.mrf.mxu0
      %v7819 = vadd.f32 0.0, %v7818
      %v7820 = vpop.f32.mrf.mxu0
      %7821 = vmatprep.mubr.f32.mxu0 0.0
      %7822 = vmatmul.mubr.f32.gmra.mxu0 %v7702
      %v7823 = vpop.f32.mrf.mxu0
      %v7824 = vadd.f32 0.0, %v7823
      %v7825 = vpop.f32.mrf.mxu0
      %7826 = vmatprep.mubr.f32.mxu0 0.0
      %7827 = vmatmul.mubr.f32.gmra.mxu0 %v7705
      %v7828 = vpop.f32.mrf.mxu0
      %v7829 = vadd.f32 0.0, %v7828
      %v7830 = vpop.f32.mrf.mxu0
      %7831 = vmatprep.mubr.f32.mxu0 0.0
      %7832 = vmatmul.mubr.f32.gmra.mxu0 %v7708
      %v7833 = vpop.f32.mrf.mxu0
      %v7834 = vadd.f32 0.0, %v7833
      %v7835 = vpop.f32.mrf.mxu0
      %7836 = vmatprep.mubr.f32.mxu0 0.0
      %7837 = vmatmul.mubr.f32.gmra.mxu0 %v7711
      %v7838 = vpop.f32.mrf.mxu0
      %v7839 = vadd.f32 0.0, %v7838
      %v7840 = vpop.f32.mrf.mxu0
      %7841 = vmatprep.mubr.f32.mxu0 0.0
      %7842 = vmatmul.mubr.f32.gmra.mxu0 %v7714
      %v7843 = vpop.f32.mrf.mxu0
      %v7844 = vadd.f32 0.0, %v7843
      %v7845 = vpop.f32.mrf.mxu0
      %7846 = vmatprep.mubr.f32.mxu0 0.0
      %7847 = vmatmul.mubr.f32.gmra.mxu0 %v7717
      %v7848 = vpop.f32.mrf.mxu0
      %v7849 = vadd.f32 0.0, %v7848
      %v7850 = vpop.f32.mrf.mxu0
      %7851 = vmatprep.mubr.f32.mxu0 0.0
      %7852 = vmatmul.mubr.f32.gmra.mxu0 %v7720
      %v7853 = vpop.f32.mrf.mxu0
      %v7854 = vadd.f32 0.0, %v7853
      %v7855 = vpop.f32.mrf.mxu0
      %7856 = vmatprep.mubr.f32.mxu0 0.0
      %7857 = vmatmul.mubr.f32.gmra.mxu0 %v7723
      %v7858 = vpop.f32.mrf.mxu0
      %v7859 = vadd.f32 0.0, %v7858
      %v7860 = vpop.f32.mrf.mxu0
      %7861 = vmatprep.mubr.f32.mxu0 0.0
      %7862 = vmatmul.mubr.f32.gmra.mxu0 %v7726
      %v7863 = vpop.f32.mrf.mxu0
      %v7864 = vadd.f32 0.0, %v7863
      %v7865 = vpop.f32.mrf.mxu0
      %7866 = vmatprep.mubr.f32.mxu0 0.0
      %7867 = vmatmul.mubr.f32.gmra.mxu0 %v7729
      %v7868 = vpop.f32.mrf.mxu0
      %v7869 = vadd.f32 0.0, %v7868
      %v7870 = vpop.f32.mrf.mxu0
      %7871 = vmatprep.mubr.f32.mxu0 0.0
      %7872 = vmatmul.mubr.f32.gmra.mxu0 %v7732
      %v7873 = vpop.f32.mrf.mxu0
      %v7874 = vadd.f32 0.0, %v7873
      %v7875 = vpop.f32.mrf.mxu0
      %7876 = vmatprep.mubr.f32.mxu0 0.0
      %7877 = vmatmul.mubr.f32.gmra.mxu0 %v7735
      %v7878 = vpop.f32.mrf.mxu0
      %v7879 = vadd.f32 0.0, %v7878
      %v7880 = vpop.f32.mrf.mxu0
      %7881 = vdwg.mxu0
      %v7883 = vsel %vm2585, %v6921, 0
      %v7886 = vsel %vm2585, %v6922, 0
      %v7889 = vsel %vm2585, %v6923, 0
      %v7892 = vsel %vm2585, %v6924, 0
      %v7895 = vsel %vm2585, %v6925, 0
      %v7898 = vsel %vm2585, %v6926, 0
      %v7901 = vsel %vm2585, %v6927, 0
      %v7904 = vsel %vm2585, %v6928, 0
      %v7907 = vsel %vm2585, %v6929, 0
      %v7910 = vsel %vm2585, %v6930, 0
      %v7913 = vsel %vm2585, %v6931, 0
      %v7916 = vsel %vm2585, %v6932, 0
      %v7919 = vsel %vm2585, %v6933, 0
      %v7922 = vsel %vm2585, %v6934, 0
      %v7925 = vsel %vm2585, %v6935, 0
      %v7928 = vsel %vm2585, %v6936, 0
      %7930 = vmatprep.subr.mxu0 0.0
      %7931 = vmatpush1.msra.mxu0 0.0
      %7932 = vmatprep.subr.mxu0 0.0
      %7933 = vmatpush1.msra.mxu0 0.0
      %7934 = vmatprep.subr.mxu0 0.0
      %7935 = vmatpush1.msra.mxu0 0.0
      %7936 = vmatprep.subr.mxu0 0.0
      %7937 = vmatpush1.msra.mxu0 0.0
      %7938 = vmatprep.subr.mxu0 0.0
      %7939 = vmatpush1.msra.mxu0 0.0
      %7940 = vmatprep.subr.mxu0 0.0
      %7941 = vmatpush1.msra.mxu0 0.0
      %7942 = vmatprep.subr.mxu0 0.0
      %7943 = vmatpush1.msra.mxu0 0.0
      %7944 = vmatprep.subr.mxu0 0.0
      %7945 = vmatpush1.msra.mxu0 0.0
      %7946 = vmatprep.subr.mxu0 0.0
      %7947 = vmatpush1.msra.mxu0 0.0
      %7948 = vmatprep.subr.mxu0 0.0
      %7949 = vmatpush1.msra.mxu0 0.0
      %7950 = vmatprep.subr.mxu0 0.0
      %7951 = vmatpush1.msra.mxu0 0.0
      %7952 = vmatprep.subr.mxu0 0.0
      %7953 = vmatpush1.msra.mxu0 0.0
      %7954 = vmatprep.subr.mxu0 0.0
      %7955 = vmatpush1.msra.mxu0 0.0
      %7956 = vmatprep.subr.mxu0 0.0
      %7957 = vmatpush1.msra.mxu0 0.0
      %7958 = vmatprep.subr.mxu0 0.0
      %7959 = vmatpush1.msra.mxu0 0.0
      %7960 = vmatprep.subr.mxu0 0.0
      %7961 = vmatpush1.msra.mxu0 %v367
      %7962 = vmatprep.subr.mxu0 0.0
      %7963 = vmatpush2.msra.mxu0 0.0
      %7964 = vmatprep.subr.mxu0 0.0
      %7965 = vmatpush2.msra.mxu0 0.0
      %7966 = vmatprep.subr.mxu0 0.0
      %7967 = vmatpush2.msra.mxu0 0.0
      %7968 = vmatprep.subr.mxu0 0.0
      %7969 = vmatpush2.msra.mxu0 0.0
      %7970 = vmatprep.subr.mxu0 0.0
      %7971 = vmatpush2.msra.mxu0 0.0
      %7972 = vmatprep.subr.mxu0 0.0
      %7973 = vmatpush2.msra.mxu0 0.0
      %7974 = vmatprep.subr.mxu0 0.0
      %7975 = vmatpush2.msra.mxu0 0.0
      %7976 = vmatprep.subr.mxu0 0.0
      %7977 = vmatpush2.msra.mxu0 0.0
      %7978 = vmatprep.subr.mxu0 0.0
      %7979 = vmatpush2.msra.mxu0 0.0
      %7980 = vmatprep.subr.mxu0 0.0
      %7981 = vmatpush2.msra.mxu0 0.0
      %7982 = vmatprep.subr.mxu0 0.0
      %7983 = vmatpush2.msra.mxu0 0.0
      %7984 = vmatprep.subr.mxu0 0.0
      %7985 = vmatpush2.msra.mxu0 0.0
      %7986 = vmatprep.subr.mxu0 0.0
      %7987 = vmatpush2.msra.mxu0 0.0
      %7988 = vmatprep.subr.mxu0 0.0
      %7989 = vmatpush2.msra.mxu0 0.0
      %7990 = vmatprep.subr.mxu0 0.0
      %7991 = vmatpush2.msra.mxu0 0.0
      %7992 = vmatprep.subr.mxu0 0.0
      %7993 = vmatpush2.msra.mxu0 0.0
      %7994 = vmatprep.mubr.f32.mxu0 0.0
      %7995 = vmatmul.mubr.f32.gmra.mxu0 %v7883
      %v7996 = vpop.f32.mrf.mxu0
      %v7997 = vadd.f32 %v7804, %v7996
      %v7998 = vpop.f32.mrf.mxu0
      %7999 = vmatprep.mubr.f32.mxu0 0.0
      %8000 = vmatmul.mubr.f32.gmra.mxu0 %v7886
      %v8001 = vpop.f32.mrf.mxu0
      %v8002 = vadd.f32 %v7809, %v8001
      %v8003 = vpop.f32.mrf.mxu0
      %8004 = vmatprep.mubr.f32.mxu0 0.0
      %8005 = vmatmul.mubr.f32.gmra.mxu0 %v7889
      %v8006 = vpop.f32.mrf.mxu0
      %v8007 = vadd.f32 %v7814, %v8006
      %v8008 = vpop.f32.mrf.mxu0
      %8009 = vmatprep.mubr.f32.mxu0 0.0
      %8010 = vmatmul.mubr.f32.gmra.mxu0 %v7892
      %v8011 = vpop.f32.mrf.mxu0
      %v8012 = vadd.f32 %v7819, %v8011
      %v8013 = vpop.f32.mrf.mxu0
      %8014 = vmatprep.mubr.f32.mxu0 0.0
      %8015 = vmatmul.mubr.f32.gmra.mxu0 %v7895
      %v8016 = vpop.f32.mrf.mxu0
      %v8017 = vadd.f32 %v7824, %v8016
      %v8018 = vpop.f32.mrf.mxu0
      %8019 = vmatprep.mubr.f32.mxu0 0.0
      %8020 = vmatmul.mubr.f32.gmra.mxu0 %v7898
      %v8021 = vpop.f32.mrf.mxu0
      %v8022 = vadd.f32 %v7829, %v8021
      %v8023 = vpop.f32.mrf.mxu0
      %8024 = vmatprep.mubr.f32.mxu0 0.0
      %8025 = vmatmul.mubr.f32.gmra.mxu0 %v7901
      %v8026 = vpop.f32.mrf.mxu0
      %v8027 = vadd.f32 %v7834, %v8026
      %v8028 = vpop.f32.mrf.mxu0
      %8029 = vmatprep.mubr.f32.mxu0 0.0
      %8030 = vmatmul.mubr.f32.gmra.mxu0 %v7904
      %v8031 = vpop.f32.mrf.mxu0
      %v8032 = vadd.f32 %v7839, %v8031
      %v8033 = vpop.f32.mrf.mxu0
      %8034 = vmatprep.mubr.f32.mxu0 0.0
      %8035 = vmatmul.mubr.f32.gmra.mxu0 %v7907
      %v8036 = vpop.f32.mrf.mxu0
      %v8037 = vadd.f32 %v7844, %v8036
      %v8038 = vpop.f32.mrf.mxu0
      %8039 = vmatprep.mubr.f32.mxu0 0.0
      %8040 = vmatmul.mubr.f32.gmra.mxu0 %v7910
      %v8041 = vpop.f32.mrf.mxu0
      %v8042 = vadd.f32 %v7849, %v8041
      %v8043 = vpop.f32.mrf.mxu0
      %8044 = vmatprep.mubr.f32.mxu0 0.0
      %8045 = vmatmul.mubr.f32.gmra.mxu0 %v7913
      %v8046 = vpop.f32.mrf.mxu0
      %v8047 = vadd.f32 %v7854, %v8046
      %v8048 = vpop.f32.mrf.mxu0
      %8049 = vmatprep.mubr.f32.mxu0 0.0
      %8050 = vmatmul.mubr.f32.gmra.mxu0 %v7916
      %v8051 = vpop.f32.mrf.mxu0
      %v8052 = vadd.f32 %v7859, %v8051
      %v8053 = vpop.f32.mrf.mxu0
      %8054 = vmatprep.mubr.f32.mxu0 0.0
      %8055 = vmatmul.mubr.f32.gmra.mxu0 %v7919
      %v8056 = vpop.f32.mrf.mxu0
      %v8057 = vadd.f32 %v7864, %v8056
      %v8058 = vpop.f32.mrf.mxu0
      %8059 = vmatprep.mubr.f32.mxu0 0.0
      %8060 = vmatmul.mubr.f32.gmra.mxu0 %v7922
      %v8061 = vpop.f32.mrf.mxu0
      %v8062 = vadd.f32 %v7869, %v8061
      %v8063 = vpop.f32.mrf.mxu0
      %8064 = vmatprep.mubr.f32.mxu0 0.0
      %8065 = vmatmul.mubr.f32.gmra.mxu0 %v7925
      %v8066 = vpop.f32.mrf.mxu0
      %v8067 = vadd.f32 %v7874, %v8066
      %v8068 = vpop.f32.mrf.mxu0
      %8069 = vmatprep.mubr.f32.mxu0 0.0
      %8070 = vmatmul.mubr.f32.gmra.mxu0 %v7928
      %v8071 = vpop.f32.mrf.mxu0
      %v8072 = vadd.f32 %v7879, %v8071
      %v8073 = vpop.f32.mrf.mxu0
      %8074 = vdwg.mxu0
      %8075 = vrot.lane.b32.xlu0 %v543, 112
      %v8076 = vpop.permute.xlu0 %8075
      %8077 = vrot.lane.b32.xlu0 %v544, 112
      %v8078 = vpop.permute.xlu0 %8077
      %8079 = vrot.lane.b32.xlu0 %v545, 112
      %v8080 = vpop.permute.xlu0 %8079
      %8081 = vrot.lane.b32.xlu0 %v546, 112
      %v8082 = vpop.permute.xlu0 %8081
      %8083 = vrot.lane.b32.xlu0 %v543, 80
      %v8084 = vpop.permute.xlu0 %8083
      %8085 = vrot.lane.b32.xlu0 %v544, 80
      %v8086 = vpop.permute.xlu0 %8085
      %8087 = vrot.lane.b32.xlu0 %v545, 80
      %v8088 = vpop.permute.xlu0 %8087
      %8089 = vrot.lane.b32.xlu0 %v546, 80
      %v8090 = vpop.permute.xlu0 %8089
      %v8092 = vsel %vm2585, %v8076, 0
      %v8095 = vsel %vm2585, %v8078, 0
      %v8098 = vsel %vm2585, %v8080, 0
      %v8101 = vsel %vm2585, %v8082, 0
      %v8104 = vsel %vm2585, %v8084, 0
      %v8107 = vsel %vm2585, %v8086, 0
      %v8110 = vsel %vm2585, %v8088, 0
      %v8113 = vsel %vm2585, %v8090, 0
      %8115 = vmatprep.subr.bf16.mxu0 0
      %8116 = vmatpush1.bf16.xpose.msra.mxu0 0
      %8117 = vmatprep.subr.bf16.mxu0 0
      %8118 = vmatpush1.bf16.xpose.msra.mxu0 0
      %8119 = vmatprep.subr.bf16.mxu0 0
      %8120 = vmatpush1.bf16.xpose.msra.mxu0 0
      %8121 = vmatprep.subr.bf16.mxu0 0
      %8122 = vmatpush1.bf16.xpose.msra.mxu0 0
      %8123 = vmatprep.subr.bf16.mxu0 0
      %8124 = vmatpush1.bf16.xpose.msra.mxu0 %v8113
      %8125 = vmatprep.subr.bf16.mxu0 0
      %8126 = vmatpush1.bf16.xpose.msra.mxu0 %v8110
      %8127 = vmatprep.subr.bf16.mxu0 0
      %8128 = vmatpush1.bf16.xpose.msra.mxu0 %v8107
      %8129 = vmatprep.subr.bf16.mxu0 0
      %8130 = vmatpush1.bf16.xpose.msra.mxu0 %v8104
      %8131 = vmatprep.subr.bf16.mxu0 0
      %8132 = vmatpush2.bf16.xpose.msra.mxu0 0
      %8133 = vmatprep.subr.bf16.mxu0 0
      %8134 = vmatpush2.bf16.xpose.msra.mxu0 0
      %8135 = vmatprep.subr.bf16.mxu0 0
      %8136 = vmatpush2.bf16.xpose.msra.mxu0 0
      %8137 = vmatprep.subr.bf16.mxu0 0
      %8138 = vmatpush2.bf16.xpose.msra.mxu0 0
      %8139 = vmatprep.subr.bf16.mxu0 0
      %8140 = vmatpush2.bf16.xpose.msra.mxu0 0
      %8141 = vmatprep.subr.bf16.mxu0 0
      %8142 = vmatpush2.bf16.xpose.msra.mxu0 0
      %8143 = vmatprep.subr.bf16.mxu0 0
      %8144 = vmatpush2.bf16.xpose.msra.mxu0 0
      %8145 = vmatprep.subr.bf16.mxu0 0
      %8146 = vmatpush2.bf16.xpose.msra.mxu0 0
      %8147 = vmatprep.mubr.bf16.mxu0 0
      %8148 = vmatmul.mubr.bf16.gmra.mxu0 %v8092
      %v8149 = vpop.f32.mrf.mxu0
      %v8150 = vadd.f32 %v7997, %v8149
      %v8151 = vpop.f32.mrf.mxu0
      %v8152 = vpop.f32.mrf.mxu0
      %v8153 = vadd.f32 %v8002, %v8152
      %v8154 = vpop.f32.mrf.mxu0
      %8155 = vmatprep.mubr.bf16.mxu0 0
      %8156 = vmatmul.mubr.bf16.gmra.mxu0 %v8095
      %v8157 = vpop.f32.mrf.mxu0
      %v8158 = vadd.f32 %v8007, %v8157
      %v8159 = vpop.f32.mrf.mxu0
      %v8160 = vpop.f32.mrf.mxu0
      %v8161 = vadd.f32 %v8012, %v8160
      %v8162 = vpop.f32.mrf.mxu0
      %8163 = vmatprep.mubr.bf16.mxu0 0
      %8164 = vmatmul.mubr.bf16.gmra.mxu0 %v8098
      %v8165 = vpop.f32.mrf.mxu0
      %v8166 = vadd.f32 %v8017, %v8165
      %v8167 = vpop.f32.mrf.mxu0
      %v8168 = vpop.f32.mrf.mxu0
      %v8169 = vadd.f32 %v8022, %v8168
      %v8170 = vpop.f32.mrf.mxu0
      %8171 = vmatprep.mubr.bf16.mxu0 0
      %8172 = vmatmul.mubr.bf16.gmra.mxu0 %v8101
      %v8173 = vpop.f32.mrf.mxu0
      %v8174 = vadd.f32 %v8027, %v8173
      %v8175 = vpop.f32.mrf.mxu0
      %v8176 = vpop.f32.mrf.mxu0
      %v8177 = vadd.f32 %v8032, %v8176
      %v8178 = vpop.f32.mrf.mxu0
      %8179 = vdwg.mxu0
      %v8180 = vsel %vm3069, %v8150, -inf
      %8181 = vmax.xlane.f32.xlu0 %v8180
      %v8182 = vpop.xlane.xlu0 %8181
      %v8183 = vsel %vm3069, %v8153, -inf
      %8184 = vmax.xlane.f32.xlu0 %v8183
      %v8185 = vpop.xlane.xlu0 %8184
      %v8186 = vsel %vm3069, %v8158, -inf
      %8187 = vmax.xlane.f32.xlu0 %v8186
      %v8188 = vpop.xlane.xlu0 %8187
      %v8189 = vsel %vm3069, %v8161, -inf
      %8190 = vmax.xlane.f32.xlu0 %v8189
      %v8191 = vpop.xlane.xlu0 %8190
      %v8192 = vsel %vm3069, %v8166, -inf
      %8193 = vmax.xlane.f32.xlu0 %v8192
      %v8194 = vpop.xlane.xlu0 %8193
      %v8195 = vsel %vm3069, %v8169, -inf
      %8196 = vmax.xlane.f32.xlu0 %v8195
      %v8197 = vpop.xlane.xlu0 %8196
      %v8198 = vsel %vm3069, %v8174, -inf
      %8199 = vmax.xlane.f32.xlu0 %v8198
      %v8200 = vpop.xlane.xlu0 %8199
      %v8201 = vsel %vm3069, %v8177, -inf
      %8202 = vmax.xlane.f32.xlu0 %v8201
      %v8203 = vpop.xlane.xlu0 %8202
      %v8204 = vsub.f32 %v8150, %v8182
      %v8205 = vsub.f32 %v8153, %v8185
      %v8206 = vsub.f32 %v8158, %v8188
      %v8207 = vsub.f32 %v8161, %v8191
      %v8208 = vsub.f32 %v8166, %v8194
      %v8209 = vsub.f32 %v8169, %v8197
      %v8210 = vsub.f32 %v8174, %v8200
      %v8211 = vsub.f32 %v8177, %v8203
      %v8212 = vmul.f32 %v8204, 1.442695
      %v8213 = vpow.pop %v8212
      %v8214 = vmul.f32 %v8205, 1.442695
      %v8215 = vpow.pop %v8214
      %v8216 = vmul.f32 %v8206, 1.442695
      %v8217 = vpow.pop %v8216
      %v8218 = vmul.f32 %v8207, 1.442695
      %v8219 = vpow.pop %v8218
      %v8220 = vmul.f32 %v8208, 1.442695
      %v8221 = vpow.pop %v8220
      %v8222 = vmul.f32 %v8209, 1.442695
      %v8223 = vpow.pop %v8222
      %v8224 = vmul.f32 %v8210, 1.442695
      %v8225 = vpow.pop %v8224
      %v8226 = vmul.f32 %v8211, 1.442695
      %v8227 = vpow.pop %v8226
      %v8228 = vsel %vm3069, %v8213, 0.0
      %8229 = vadd.xlane.f32.xlu0 %v8228
      %v8230 = vpop.xlane.xlu0 %8229
      %v8231 = vsel %vm3069, %v8215, 0.0
      %8232 = vadd.xlane.f32.xlu0 %v8231
      %v8233 = vpop.xlane.xlu0 %8232
      %v8234 = vsel %vm3069, %v8217, 0.0
      %8235 = vadd.xlane.f32.xlu0 %v8234
      %v8236 = vpop.xlane.xlu0 %8235
      %v8237 = vsel %vm3069, %v8219, 0.0
      %8238 = vadd.xlane.f32.xlu0 %v8237
      %v8239 = vpop.xlane.xlu0 %8238
      %v8240 = vsel %vm3069, %v8221, 0.0
      %8241 = vadd.xlane.f32.xlu0 %v8240
      %v8242 = vpop.xlane.xlu0 %8241
      %v8243 = vsel %vm3069, %v8223, 0.0
      %8244 = vadd.xlane.f32.xlu0 %v8243
      %v8245 = vpop.xlane.xlu0 %8244
      %v8246 = vsel %vm3069, %v8225, 0.0
      %8247 = vadd.xlane.f32.xlu0 %v8246
      %v8248 = vpop.xlane.xlu0 %8247
      %v8249 = vsel %vm3069, %v8227, 0.0
      %8250 = vadd.xlane.f32.xlu0 %v8249
      %v8251 = vpop.xlane.xlu0 %8250
      %v8252 = vrcp.pop %v8230
      %v8253 = vrcp.pop %v8233
      %v8254 = vrcp.pop %v8236
      %v8255 = vrcp.pop %v8239
      %v8256 = vrcp.pop %v8242
      %v8257 = vrcp.pop %v8245
      %v8258 = vrcp.pop %v8248
      %v8259 = vrcp.pop %v8251
      %v8260 = vmul.f32 %v8213, %v8252
      %v8261 = vmul.f32 %v8215, %v8253
      %v8262 = vmul.f32 %v8217, %v8254
      %v8263 = vmul.f32 %v8219, %v8255
      %v8264 = vmul.f32 %v8221, %v8256
      %v8265 = vmul.f32 %v8223, %v8257
      %v8266 = vmul.f32 %v8225, %v8258
      %v8267 = vmul.f32 %v8227, %v8259
      %v8268 = vpack.c.bf16 %v8261, %v8260
      %v8269 = vpack.c.bf16 %v8263, %v8262
      %v8270 = vpack.c.bf16 %v8265, %v8264
      %v8271 = vpack.c.bf16 %v8267, %v8266
      %8272 = vrot.lane.b32.xlu0 %v543, 48
      %v8273 = vpop.permute.xlu0 %8272
      %8274 = vrot.lane.b32.xlu0 %v544, 48
      %v8275 = vpop.permute.xlu0 %8274
      %8276 = vrot.lane.b32.xlu0 %v545, 48
      %v8277 = vpop.permute.xlu0 %8276
      %8278 = vrot.lane.b32.xlu0 %v546, 48
      %v8279 = vpop.permute.xlu0 %8278
      %v8285 = vsel %vm3069, %v8268, 0
      %v8288 = vsel %vm3069, %v8269, 0
      %v8291 = vsel %vm3069, %v8270, 0
      %v8294 = vsel %vm3069, %v8271, 0
      %8296 = vmatprep.subr.bf16.mxu0 0
      %8297 = vmatpush1.bf16.msra.mxu0 0
      %8298 = vmatprep.subr.bf16.mxu0 0
      %8299 = vmatpush1.bf16.msra.mxu0 0
      %8300 = vmatprep.subr.bf16.mxu0 0
      %8301 = vmatpush1.bf16.msra.mxu0 0
      %8302 = vmatprep.subr.bf16.mxu0 0
      %8303 = vmatpush1.bf16.msra.mxu0 0
      %8304 = vmatprep.subr.bf16.mxu0 0
      %8305 = vmatpush1.bf16.msra.mxu0 %v8279
      %8306 = vmatprep.subr.bf16.mxu0 0
      %8307 = vmatpush1.bf16.msra.mxu0 %v8277
      %8308 = vmatprep.subr.bf16.mxu0 0
      %8309 = vmatpush1.bf16.msra.mxu0 %v8275
      %8310 = vmatprep.subr.bf16.mxu0 0
      %8311 = vmatpush1.bf16.msra.mxu0 %v8273
      %8312 = vmatprep.subr.bf16.mxu0 0
      %8313 = vmatpush2.bf16.msra.mxu0 0
      %8314 = vmatprep.subr.bf16.mxu0 0
      %8315 = vmatpush2.bf16.msra.mxu0 0
      %8316 = vmatprep.subr.bf16.mxu0 0
      %8317 = vmatpush2.bf16.msra.mxu0 0
      %8318 = vmatprep.subr.bf16.mxu0 0
      %8319 = vmatpush2.bf16.msra.mxu0 0
      %8320 = vmatprep.subr.bf16.mxu0 0
      %8321 = vmatpush2.bf16.msra.mxu0 0
      %8322 = vmatprep.subr.bf16.mxu0 0
      %8323 = vmatpush2.bf16.msra.mxu0 0
      %8324 = vmatprep.subr.bf16.mxu0 0
      %8325 = vmatpush2.bf16.msra.mxu0 0
      %8326 = vmatprep.subr.bf16.mxu0 0
      %8327 = vmatpush2.bf16.msra.mxu0 0
      %8328 = vmatprep.mubr.bf16.mxu0 0
      %8329 = vmatmul.mubr.bf16.gmra.mxu0 %v8285
      %v8330 = vpop.f32.mrf.mxu0
      %v8331 = vadd.f32 0.0, %v8330
      %v8332 = vpop.f32.mrf.mxu0
      %v8333 = vpop.f32.mrf.mxu0
      %v8334 = vadd.f32 0.0, %v8333
      %v8335 = vpop.f32.mrf.mxu0
      %8336 = vmatprep.mubr.bf16.mxu0 0
      %8337 = vmatmul.mubr.bf16.gmra.mxu0 %v8288
      %v8338 = vpop.f32.mrf.mxu0
      %v8339 = vadd.f32 0.0, %v8338
      %v8340 = vpop.f32.mrf.mxu0
      %v8341 = vpop.f32.mrf.mxu0
      %v8342 = vadd.f32 0.0, %v8341
      %v8343 = vpop.f32.mrf.mxu0
      %8344 = vmatprep.mubr.bf16.mxu0 0
      %8345 = vmatmul.mubr.bf16.gmra.mxu0 %v8291
      %v8346 = vpop.f32.mrf.mxu0
      %v8347 = vadd.f32 0.0, %v8346
      %v8348 = vpop.f32.mrf.mxu0
      %v8349 = vpop.f32.mrf.mxu0
      %v8350 = vadd.f32 0.0, %v8349
      %v8351 = vpop.f32.mrf.mxu0
      %8352 = vmatprep.mubr.bf16.mxu0 0
      %8353 = vmatmul.mubr.bf16.gmra.mxu0 %v8294
      %v8354 = vpop.f32.mrf.mxu0
      %v8355 = vadd.f32 0.0, %v8354
      %v8356 = vpop.f32.mrf.mxu0
      %v8357 = vpop.f32.mrf.mxu0
      %v8358 = vadd.f32 0.0, %v8357
      %v8359 = vpop.f32.mrf.mxu0
      %8360 = vdwg.mxu0
      %v8361 = vpack.c.bf16 %v8334, %v8331
      %v8362 = vpack.c.bf16 %v8342, %v8339
      %v8363 = vpack.c.bf16 %v8350, %v8347
      %v8364 = vpack.c.bf16 %v8358, %v8355
      %v8369 = vunpack.c.l.b16 %v8361
      %v8370 = vunpack.c.h.b16 %v8361
      %v8371 = vunpack.c.l.b16 %v8362
      %v8372 = vunpack.c.h.b16 %v8362
      %v8373 = vunpack.c.l.b16 %v8363
      %v8374 = vunpack.c.h.b16 %v8363
      %v8375 = vunpack.c.l.b16 %v8364
      %v8376 = vunpack.c.h.b16 %v8364
      %v8377 = vpack.c.b16 %v8369, %v8369
      %v8378 = vpack.c.b16 %v8370, %v8370
      %v8379 = vpack.c.b16 %v8371, %v8371
      %v8380 = vpack.c.b16 %v8372, %v8372
      %v8381 = vpack.c.b16 %v8373, %v8373
      %v8382 = vpack.c.b16 %v8374, %v8374
      %v8383 = vpack.c.b16 %v8375, %v8375
      %v8384 = vpack.c.b16 %v8376, %v8376
      %8385 = vrot.lane.b32.xlu0 %v8377, 16
      %v8386 = vpop.permute.xlu0 %8385
      %8387 = vrot.lane.b32.xlu0 %v8378, 16
      %v8388 = vpop.permute.xlu0 %8387
      %8389 = vrot.lane.b32.xlu0 %v8379, 16
      %v8390 = vpop.permute.xlu0 %8389
      %8391 = vrot.lane.b32.xlu0 %v8380, 16
      %v8392 = vpop.permute.xlu0 %8391
      %8393 = vrot.lane.b32.xlu0 %v8381, 16
      %v8394 = vpop.permute.xlu0 %8393
      %8395 = vrot.lane.b32.xlu0 %v8382, 16
      %v8396 = vpop.permute.xlu0 %8395
      %8397 = vrot.lane.b32.xlu0 %v8383, 16
      %v8398 = vpop.permute.xlu0 %8397
      %8399 = vrot.lane.b32.xlu0 %v8384, 16
      %v8400 = vpop.permute.xlu0 %8399
      %vm8409 = vcmask 191616
      %8410 = vst.msk [vmem:[%s305] sm:$0xf] %vm8409, %v8386
      %8411 = vst.msk [vmem:[%s305 + $0x4] sm:$0xf] %vm8409, %v8388
      %8412 = vst.msk [vmem:[%s305 + $0x8] sm:$0xf] %vm8409, %v8390
      %8413 = vst.msk [vmem:[%s305 + $0xc] sm:$0xf] %vm8409, %v8392
      %8414 = vst.msk [vmem:[%s305 + $0x10] sm:$0xf] %vm8409, %v8394
      %8415 = vst.msk [vmem:[%s305 + $0x14] sm:$0xf] %vm8409, %v8396
      %8416 = vst.msk [vmem:[%s305 + $0x18] sm:$0xf] %vm8409, %v8398
      %8417 = vst.msk [vmem:[%s305 + $0x1c] sm:$0xf] %vm8409, %v8400
      %8418 = vrot.lane.b32.xlu0 %v547, 112
      %v8419 = vpop.permute.xlu0 %8418
      %8420 = vrot.lane.b32.xlu0 %v548, 112
      %v8421 = vpop.permute.xlu0 %8420
      %8422 = vrot.lane.b32.xlu0 %v549, 112
      %v8423 = vpop.permute.xlu0 %8422
      %8424 = vrot.lane.b32.xlu0 %v550, 112
      %v8425 = vpop.permute.xlu0 %8424
      %8426 = vrot.lane.b32.xlu0 %v547, 80
      %v8427 = vpop.permute.xlu0 %8426
      %8428 = vrot.lane.b32.xlu0 %v548, 80
      %v8429 = vpop.permute.xlu0 %8428
      %8430 = vrot.lane.b32.xlu0 %v549, 80
      %v8431 = vpop.permute.xlu0 %8430
      %8432 = vrot.lane.b32.xlu0 %v550, 80
      %v8433 = vpop.permute.xlu0 %8432
      %v8435 = vsel %vm2585, %v8419, 0
      %v8438 = vsel %vm2585, %v8421, 0
      %v8441 = vsel %vm2585, %v8423, 0
      %v8444 = vsel %vm2585, %v8425, 0
      %v8447 = vsel %vm2585, %v8427, 0
      %v8450 = vsel %vm2585, %v8429, 0
      %v8453 = vsel %vm2585, %v8431, 0
      %v8456 = vsel %vm2585, %v8433, 0
      %8458 = vmatprep.subr.bf16.mxu0 0
      %8459 = vmatpush1.bf16.xpose.msra.mxu0 0
      %8460 = vmatprep.subr.bf16.mxu0 0
      %8461 = vmatpush1.bf16.xpose.msra.mxu0 0
      %8462 = vmatprep.subr.bf16.mxu0 0
      %8463 = vmatpush1.bf16.xpose.msra.mxu0 0
      %8464 = vmatprep.subr.bf16.mxu0 0
      %8465 = vmatpush1.bf16.xpose.msra.mxu0 0
      %8466 = vmatprep.subr.bf16.mxu0 0
      %8467 = vmatpush1.bf16.xpose.msra.mxu0 %v8456
      %8468 = vmatprep.subr.bf16.mxu0 0
      %8469 = vmatpush1.bf16.xpose.msra.mxu0 %v8453
      %8470 = vmatprep.subr.bf16.mxu0 0
      %8471 = vmatpush1.bf16.xpose.msra.mxu0 %v8450
      %8472 = vmatprep.subr.bf16.mxu0 0
      %8473 = vmatpush1.bf16.xpose.msra.mxu0 %v8447
      %8474 = vmatprep.subr.bf16.mxu0 0
      %8475 = vmatpush2.bf16.xpose.msra.mxu0 0
      %8476 = vmatprep.subr.bf16.mxu0 0
      %8477 = vmatpush2.bf16.xpose.msra.mxu0 0
      %8478 = vmatprep.subr.bf16.mxu0 0
      %8479 = vmatpush2.bf16.xpose.msra.mxu0 0
      %8480 = vmatprep.subr.bf16.mxu0 0
      %8481 = vmatpush2.bf16.xpose.msra.mxu0 0
      %8482 = vmatprep.subr.bf16.mxu0 0
      %8483 = vmatpush2.bf16.xpose.msra.mxu0 0
      %8484 = vmatprep.subr.bf16.mxu0 0
      %8485 = vmatpush2.bf16.xpose.msra.mxu0 0
      %8486 = vmatprep.subr.bf16.mxu0 0
      %8487 = vmatpush2.bf16.xpose.msra.mxu0 0
      %8488 = vmatprep.subr.bf16.mxu0 0
      %8489 = vmatpush2.bf16.xpose.msra.mxu0 0
      %8490 = vmatprep.mubr.bf16.mxu0 0
      %8491 = vmatmul.mubr.bf16.gmra.mxu0 %v8435
      %v8492 = vpop.f32.mrf.mxu0
      %v8493 = vadd.f32 %v8037, %v8492
      %v8494 = vpop.f32.mrf.mxu0
      %v8495 = vpop.f32.mrf.mxu0
      %v8496 = vadd.f32 %v8042, %v8495
      %v8497 = vpop.f32.mrf.mxu0
      %8498 = vmatprep.mubr.bf16.mxu0 0
      %8499 = vmatmul.mubr.bf16.gmra.mxu0 %v8438
      %v8500 = vpop.f32.mrf.mxu0
      %v8501 = vadd.f32 %v8047, %v8500
      %v8502 = vpop.f32.mrf.mxu0
      %v8503 = vpop.f32.mrf.mxu0
      %v8504 = vadd.f32 %v8052, %v8503
      %v8505 = vpop.f32.mrf.mxu0
      %8506 = vmatprep.mubr.bf16.mxu0 0
      %8507 = vmatmul.mubr.bf16.gmra.mxu0 %v8441
      %v8508 = vpop.f32.mrf.mxu0
      %v8509 = vadd.f32 %v8057, %v8508
      %v8510 = vpop.f32.mrf.mxu0
      %v8511 = vpop.f32.mrf.mxu0
      %v8512 = vadd.f32 %v8062, %v8511
      %v8513 = vpop.f32.mrf.mxu0
      %8514 = vmatprep.mubr.bf16.mxu0 0
      %8515 = vmatmul.mubr.bf16.gmra.mxu0 %v8444
      %v8516 = vpop.f32.mrf.mxu0
      %v8517 = vadd.f32 %v8067, %v8516
      %v8518 = vpop.f32.mrf.mxu0
      %v8519 = vpop.f32.mrf.mxu0
      %v8520 = vadd.f32 %v8072, %v8519
      %v8521 = vpop.f32.mrf.mxu0
      %8522 = vdwg.mxu0
      %v8523 = vsel %vm3069, %v8493, -inf
      %8524 = vmax.xlane.f32.xlu0 %v8523
      %v8525 = vpop.xlane.xlu0 %8524
      %v8526 = vsel %vm3069, %v8496, -inf
      %8527 = vmax.xlane.f32.xlu0 %v8526
      %v8528 = vpop.xlane.xlu0 %8527
      %v8529 = vsel %vm3069, %v8501, -inf
      %8530 = vmax.xlane.f32.xlu0 %v8529
      %v8531 = vpop.xlane.xlu0 %8530
      %v8532 = vsel %vm3069, %v8504, -inf
      %8533 = vmax.xlane.f32.xlu0 %v8532
      %v8534 = vpop.xlane.xlu0 %8533
      %v8535 = vsel %vm3069, %v8509, -inf
      %8536 = vmax.xlane.f32.xlu0 %v8535
      %v8537 = vpop.xlane.xlu0 %8536
      %v8538 = vsel %vm3069, %v8512, -inf
      %8539 = vmax.xlane.f32.xlu0 %v8538
      %v8540 = vpop.xlane.xlu0 %8539
      %v8541 = vsel %vm3069, %v8517, -inf
      %8542 = vmax.xlane.f32.xlu0 %v8541
      %v8543 = vpop.xlane.xlu0 %8542
      %v8544 = vsel %vm3069, %v8520, -inf
      %8545 = vmax.xlane.f32.xlu0 %v8544
      %v8546 = vpop.xlane.xlu0 %8545
      %v8547 = vsub.f32 %v8493, %v8525
      %v8548 = vsub.f32 %v8496, %v8528
      %v8549 = vsub.f32 %v8501, %v8531
      %v8550 = vsub.f32 %v8504, %v8534
      %v8551 = vsub.f32 %v8509, %v8537
      %v8552 = vsub.f32 %v8512, %v8540
      %v8553 = vsub.f32 %v8517, %v8543
      %v8554 = vsub.f32 %v8520, %v8546
      %v8555 = vmul.f32 %v8547, 1.442695
      %v8556 = vpow.pop %v8555
      %v8557 = vmul.f32 %v8548, 1.442695
      %v8558 = vpow.pop %v8557
      %v8559 = vmul.f32 %v8549, 1.442695
      %v8560 = vpow.pop %v8559
      %v8561 = vmul.f32 %v8550, 1.442695
      %v8562 = vpow.pop %v8561
      %v8563 = vmul.f32 %v8551, 1.442695
      %v8564 = vpow.pop %v8563
      %v8565 = vmul.f32 %v8552, 1.442695
      %v8566 = vpow.pop %v8565
      %v8567 = vmul.f32 %v8553, 1.442695
      %v8568 = vpow.pop %v8567
      %v8569 = vmul.f32 %v8554, 1.442695
      %v8570 = vpow.pop %v8569
      %v8571 = vsel %vm3069, %v8556, 0.0
      %8572 = vadd.xlane.f32.xlu0 %v8571
      %v8573 = vpop.xlane.xlu0 %8572
      %v8574 = vsel %vm3069, %v8558, 0.0
      %8575 = vadd.xlane.f32.xlu0 %v8574
      %v8576 = vpop.xlane.xlu0 %8575
      %v8577 = vsel %vm3069, %v8560, 0.0
      %8578 = vadd.xlane.f32.xlu0 %v8577
      %v8579 = vpop.xlane.xlu0 %8578
      %v8580 = vsel %vm3069, %v8562, 0.0
      %8581 = vadd.xlane.f32.xlu0 %v8580
      %v8582 = vpop.xlane.xlu0 %8581
      %v8583 = vsel %vm3069, %v8564, 0.0
      %8584 = vadd.xlane.f32.xlu0 %v8583
      %v8585 = vpop.xlane.xlu0 %8584
      %v8586 = vsel %vm3069, %v8566, 0.0
      %8587 = vadd.xlane.f32.xlu0 %v8586
      %v8588 = vpop.xlane.xlu0 %8587
      %v8589 = vsel %vm3069, %v8568, 0.0
      %8590 = vadd.xlane.f32.xlu0 %v8589
      %v8591 = vpop.xlane.xlu0 %8590
      %v8592 = vsel %vm3069, %v8570, 0.0
      %8593 = vadd.xlane.f32.xlu0 %v8592
      %v8594 = vpop.xlane.xlu0 %8593
      %v8595 = vrcp.pop %v8573
      %v8596 = vrcp.pop %v8576
      %v8597 = vrcp.pop %v8579
      %v8598 = vrcp.pop %v8582
      %v8599 = vrcp.pop %v8585
      %v8600 = vrcp.pop %v8588
      %v8601 = vrcp.pop %v8591
      %v8602 = vrcp.pop %v8594
      %v8603 = vmul.f32 %v8556, %v8595
      %v8604 = vmul.f32 %v8558, %v8596
      %v8605 = vmul.f32 %v8560, %v8597
      %v8606 = vmul.f32 %v8562, %v8598
      %v8607 = vmul.f32 %v8564, %v8599
      %v8608 = vmul.f32 %v8566, %v8600
      %v8609 = vmul.f32 %v8568, %v8601
      %v8610 = vmul.f32 %v8570, %v8602
      %v8611 = vpack.c.bf16 %v8604, %v8603
      %v8612 = vpack.c.bf16 %v8606, %v8605
      %v8613 = vpack.c.bf16 %v8608, %v8607
      %v8614 = vpack.c.bf16 %v8610, %v8609
      %8615 = vrot.lane.b32.xlu0 %v547, 48
      %v8616 = vpop.permute.xlu0 %8615
      %8617 = vrot.lane.b32.xlu0 %v548, 48
      %v8618 = vpop.permute.xlu0 %8617
      %8619 = vrot.lane.b32.xlu0 %v549, 48
      %v8620 = vpop.permute.xlu0 %8619
      %8621 = vrot.lane.b32.xlu0 %v550, 48
      %v8622 = vpop.permute.xlu0 %8621
      %v8628 = vsel %vm3069, %v8611, 0
      %v8631 = vsel %vm3069, %v8612, 0
      %v8634 = vsel %vm3069, %v8613, 0
      %v8637 = vsel %vm3069, %v8614, 0
      %8639 = vmatprep.subr.bf16.mxu0 0
      %8640 = vmatpush1.bf16.msra.mxu0 0
      %8641 = vmatprep.subr.bf16.mxu0 0
      %8642 = vmatpush1.bf16.msra.mxu0 0
      %8643 = vmatprep.subr.bf16.mxu0 0
      %8644 = vmatpush1.bf16.msra.mxu0 0
      %8645 = vmatprep.subr.bf16.mxu0 0
      %8646 = vmatpush1.bf16.msra.mxu0 0
      %8647 = vmatprep.subr.bf16.mxu0 0
      %8648 = vmatpush1.bf16.msra.mxu0 %v8622
      %8649 = vmatprep.subr.bf16.mxu0 0
      %8650 = vmatpush1.bf16.msra.mxu0 %v8620
      %8651 = vmatprep.subr.bf16.mxu0 0
      %8652 = vmatpush1.bf16.msra.mxu0 %v8618
      %8653 = vmatprep.subr.bf16.mxu0 0
      %8654 = vmatpush1.bf16.msra.mxu0 %v8616
      %8655 = vmatprep.subr.bf16.mxu0 0
      %8656 = vmatpush2.bf16.msra.mxu0 0
      %8657 = vmatprep.subr.bf16.mxu0 0
      %8658 = vmatpush2.bf16.msra.mxu0 0
      %8659 = vmatprep.subr.bf16.mxu0 0
      %8660 = vmatpush2.bf16.msra.mxu0 0
      %8661 = vmatprep.subr.bf16.mxu0 0
      %8662 = vmatpush2.bf16.msra.mxu0 0
      %8663 = vmatprep.subr.bf16.mxu0 0
      %8664 = vmatpush2.bf16.msra.mxu0 0
      %8665 = vmatprep.subr.bf16.mxu0 0
      %8666 = vmatpush2.bf16.msra.mxu0 0
      %8667 = vmatprep.subr.bf16.mxu0 0
      %8668 = vmatpush2.bf16.msra.mxu0 0
      %8669 = vmatprep.subr.bf16.mxu0 0
      %8670 = vmatpush2.bf16.msra.mxu0 0
      %8671 = vmatprep.mubr.bf16.mxu0 0
      %8672 = vmatmul.mubr.bf16.gmra.mxu0 %v8628
      %v8673 = vpop.f32.mrf.mxu0
      %v8674 = vadd.f32 0.0, %v8673
      %v8675 = vpop.f32.mrf.mxu0
      %v8676 = vpop.f32.mrf.mxu0
      %v8677 = vadd.f32 0.0, %v8676
      %v8678 = vpop.f32.mrf.mxu0
      %8679 = vmatprep.mubr.bf16.mxu0 0
      %8680 = vmatmul.mubr.bf16.gmra.mxu0 %v8631
      %v8681 = vpop.f32.mrf.mxu0
      %v8682 = vadd.f32 0.0, %v8681
      %v8683 = vpop.f32.mrf.mxu0
      %v8684 = vpop.f32.mrf.mxu0
      %v8685 = vadd.f32 0.0, %v8684
      %v8686 = vpop.f32.mrf.mxu0
      %8687 = vmatprep.mubr.bf16.mxu0 0
      %8688 = vmatmul.mubr.bf16.gmra.mxu0 %v8634
      %v8689 = vpop.f32.mrf.mxu0
      %v8690 = vadd.f32 0.0, %v8689
      %v8691 = vpop.f32.mrf.mxu0
      %v8692 = vpop.f32.mrf.mxu0
      %v8693 = vadd.f32 0.0, %v8692
      %v8694 = vpop.f32.mrf.mxu0
      %8695 = vmatprep.mubr.bf16.mxu0 0
      %8696 = vmatmul.mubr.bf16.gmra.mxu0 %v8637
      %v8697 = vpop.f32.mrf.mxu0
      %v8698 = vadd.f32 0.0, %v8697
      %v8699 = vpop.f32.mrf.mxu0
      %v8700 = vpop.f32.mrf.mxu0
      %v8701 = vadd.f32 0.0, %v8700
      %v8702 = vpop.f32.mrf.mxu0
      %8703 = vdwg.mxu0
      %v8704 = vpack.c.bf16 %v8677, %v8674
      %v8705 = vpack.c.bf16 %v8685, %v8682
      %v8706 = vpack.c.bf16 %v8693, %v8690
      %v8707 = vpack.c.bf16 %v8701, %v8698
      %v8712 = vunpack.c.l.b16 %v8704
      %v8713 = vunpack.c.h.b16 %v8704
      %v8714 = vunpack.c.l.b16 %v8705
      %v8715 = vunpack.c.h.b16 %v8705
      %v8716 = vunpack.c.l.b16 %v8706
      %v8717 = vunpack.c.h.b16 %v8706
      %v8718 = vunpack.c.l.b16 %v8707
      %v8719 = vunpack.c.h.b16 %v8707
      %v8720 = vpack.c.b16 %v8712, %v8712
      %v8721 = vpack.c.b16 %v8713, %v8713
      %v8722 = vpack.c.b16 %v8714, %v8714
      %v8723 = vpack.c.b16 %v8715, %v8715
      %v8724 = vpack.c.b16 %v8716, %v8716
      %v8725 = vpack.c.b16 %v8717, %v8717
      %v8726 = vpack.c.b16 %v8718, %v8718
      %v8727 = vpack.c.b16 %v8719, %v8719
      %8728 = vrot.lane.b32.xlu0 %v8720, 16
      %v8729 = vpop.permute.xlu0 %8728
      %8730 = vrot.lane.b32.xlu0 %v8721, 16
      %v8731 = vpop.permute.xlu0 %8730
      %8732 = vrot.lane.b32.xlu0 %v8722, 16
      %v8733 = vpop.permute.xlu0 %8732
      %8734 = vrot.lane.b32.xlu0 %v8723, 16
      %v8735 = vpop.permute.xlu0 %8734
      %8736 = vrot.lane.b32.xlu0 %v8724, 16
      %v8737 = vpop.permute.xlu0 %8736
      %8738 = vrot.lane.b32.xlu0 %v8725, 16
      %v8739 = vpop.permute.xlu0 %8738
      %8740 = vrot.lane.b32.xlu0 %v8726, 16
      %v8741 = vpop.permute.xlu0 %8740
      %8742 = vrot.lane.b32.xlu0 %v8727, 16
      %v8743 = vpop.permute.xlu0 %8742
      %8752 = vst.msk [vmem:[%s305 + $0x20] sm:$0xf] %vm8409, %v8729
      %8753 = vst.msk [vmem:[%s305 + $0x24] sm:$0xf] %vm8409, %v8731
      %8754 = vst.msk [vmem:[%s305 + $0x28] sm:$0xf] %vm8409, %v8733
      %8755 = vst.msk [vmem:[%s305 + $0x2c] sm:$0xf] %vm8409, %v8735
      %8756 = vst.msk [vmem:[%s305 + $0x30] sm:$0xf] %vm8409, %v8737
      %8757 = vst.msk [vmem:[%s305 + $0x34] sm:$0xf] %vm8409, %v8739
      %8758 = vst.msk [vmem:[%s305 + $0x38] sm:$0xf] %vm8409, %v8741
      %8759 = vst.msk [vmem:[%s305 + $0x3c] sm:$0xf] %vm8409, %v8743
      %8760 = vset.pattern.permute.xlu0 24
      %8761 = vperm.xlu0 %8760, %v622
      %v8762 = vpop.permute.xlu0 %8761
      %8764 = vset.pattern.permute.xlu0 24
      %8765 = vperm.xlu0 %8764, %v625
      %v8766 = vpop.permute.xlu0 %8765
      %8768 = vset.pattern.permute.xlu0 24
      %8769 = vperm.xlu0 %8768, %v630
      %v8770 = vpop.permute.xlu0 %8769
      %8772 = vset.pattern.permute.xlu0 24
      %8773 = vperm.xlu0 %8772, %v633
      %v8774 = vpop.permute.xlu0 %8773
      %8776 = vset.pattern.permute.xlu0 24
      %8777 = vperm.xlu0 %8776, %v638
      %v8778 = vpop.permute.xlu0 %8777
      %8780 = vset.pattern.permute.xlu0 24
      %8781 = vperm.xlu0 %8780, %v641
      %v8782 = vpop.permute.xlu0 %8781
      %8784 = vset.pattern.permute.xlu0 24
      %8785 = vperm.xlu0 %8784, %v646
      %v8786 = vpop.permute.xlu0 %8785
      %8788 = vset.pattern.permute.xlu0 24
      %8789 = vperm.xlu0 %8788, %v649
      %v8790 = vpop.permute.xlu0 %8789
      %8792 = vset.pattern.permute.xlu0 24
      %8793 = vperm.xlu0 %8792, %v654
      %v8794 = vpop.permute.xlu0 %8793
      %8796 = vset.pattern.permute.xlu0 24
      %8797 = vperm.xlu0 %8796, %v657
      %v8798 = vpop.permute.xlu0 %8797
      %8800 = vset.pattern.permute.xlu0 24
      %8801 = vperm.xlu0 %8800, %v662
      %v8802 = vpop.permute.xlu0 %8801
      %8804 = vset.pattern.permute.xlu0 24
      %8805 = vperm.xlu0 %8804, %v665
      %v8806 = vpop.permute.xlu0 %8805
      %8808 = vset.pattern.permute.xlu0 24
      %8809 = vperm.xlu0 %8808, %v670
      %v8810 = vpop.permute.xlu0 %8809
      %8812 = vset.pattern.permute.xlu0 24
      %8813 = vperm.xlu0 %8812, %v673
      %v8814 = vpop.permute.xlu0 %8813
      %8816 = vset.pattern.permute.xlu0 24
      %8817 = vperm.xlu0 %8816, %v678
      %v8818 = vpop.permute.xlu0 %8817
      %8820 = vset.pattern.permute.xlu0 24
      %8821 = vperm.xlu0 %8820, %v681
      %v8822 = vpop.permute.xlu0 %8821
      %v8824 = vsel %vm793, %v8762, 0.0
      %v8825 = vsel %vm794, %v8766, 0.0
      %v8826 = vsel %vm795, %v8770, 0.0
      %v8827 = vsel %vm796, %v8774, 0.0
      %v8828 = vsel %vm797, %v8778, 0.0
      %v8829 = vsel %vm798, %v8782, 0.0
      %v8830 = vsel %vm799, %v8786, 0.0
      %v8831 = vsel %vm800, %v8790, 0.0
      %v8832 = vsel %vm801, %v8794, 0.0
      %v8833 = vsel %vm802, %v8798, 0.0
      %v8834 = vsel %vm803, %v8802, 0.0
      %v8835 = vsel %vm804, %v8806, 0.0
      %v8836 = vsel %vm805, %v8810, 0.0
      %v8837 = vsel %vm806, %v8814, 0.0
      %v8838 = vsel %vm807, %v8818, 0.0
      %v8839 = vsel %vm808, %v8822, 0.0
      %8840 = vset.pattern.permute.xlu0 25
      %8841 = vperm.xlu0 %8840, %v622
      %v8842 = vpop.permute.xlu0 %8841
      %8844 = vset.pattern.permute.xlu0 25
      %8845 = vperm.xlu0 %8844, %v625
      %v8846 = vpop.permute.xlu0 %8845
      %8848 = vset.pattern.permute.xlu0 25
      %8849 = vperm.xlu0 %8848, %v630
      %v8850 = vpop.permute.xlu0 %8849
      %8852 = vset.pattern.permute.xlu0 25
      %8853 = vperm.xlu0 %8852, %v633
      %v8854 = vpop.permute.xlu0 %8853
      %8856 = vset.pattern.permute.xlu0 25
      %8857 = vperm.xlu0 %8856, %v638
      %v8858 = vpop.permute.xlu0 %8857
      %8860 = vset.pattern.permute.xlu0 25
      %8861 = vperm.xlu0 %8860, %v641
      %v8862 = vpop.permute.xlu0 %8861
      %8864 = vset.pattern.permute.xlu0 25
      %8865 = vperm.xlu0 %8864, %v646
      %v8866 = vpop.permute.xlu0 %8865
      %8868 = vset.pattern.permute.xlu0 25
      %8869 = vperm.xlu0 %8868, %v649
      %v8870 = vpop.permute.xlu0 %8869
      %8872 = vset.pattern.permute.xlu0 25
      %8873 = vperm.xlu0 %8872, %v654
      %v8874 = vpop.permute.xlu0 %8873
      %8876 = vset.pattern.permute.xlu0 25
      %8877 = vperm.xlu0 %8876, %v657
      %v8878 = vpop.permute.xlu0 %8877
      %8880 = vset.pattern.permute.xlu0 25
      %8881 = vperm.xlu0 %8880, %v662
      %v8882 = vpop.permute.xlu0 %8881
      %8884 = vset.pattern.permute.xlu0 25
      %8885 = vperm.xlu0 %8884, %v665
      %v8886 = vpop.permute.xlu0 %8885
      %8888 = vset.pattern.permute.xlu0 25
      %8889 = vperm.xlu0 %8888, %v670
      %v8890 = vpop.permute.xlu0 %8889
      %8892 = vset.pattern.permute.xlu0 25
      %8893 = vperm.xlu0 %8892, %v673
      %v8894 = vpop.permute.xlu0 %8893
      %8896 = vset.pattern.permute.xlu0 25
      %8897 = vperm.xlu0 %8896, %v678
      %v8898 = vpop.permute.xlu0 %8897
      %8900 = vset.pattern.permute.xlu0 25
      %8901 = vperm.xlu0 %8900, %v681
      %v8902 = vpop.permute.xlu0 %8901
      %v8904 = vsel %vm809, %v8842, 0.0
      %v8905 = vsel %vm810, %v8846, 0.0
      %v8906 = vsel %vm811, %v8850, 0.0
      %v8907 = vsel %vm812, %v8854, 0.0
      %v8908 = vsel %vm813, %v8858, 0.0
      %v8909 = vsel %vm814, %v8862, 0.0
      %v8910 = vsel %vm815, %v8866, 0.0
      %v8911 = vsel %vm816, %v8870, 0.0
      %v8912 = vsel %vm817, %v8874, 0.0
      %v8913 = vsel %vm818, %v8878, 0.0
      %v8914 = vsel %vm819, %v8882, 0.0
      %v8915 = vsel %vm820, %v8886, 0.0
      %v8916 = vsel %vm821, %v8890, 0.0
      %v8917 = vsel %vm822, %v8894, 0.0
      %v8918 = vsel %vm823, %v8898, 0.0
      %v8919 = vsel %vm824, %v8902, 0.0
      %v8920 = vadd.f32 %v8824, %v8904
      %v8921 = vadd.f32 %v8825, %v8905
      %v8922 = vadd.f32 %v8826, %v8906
      %v8923 = vadd.f32 %v8827, %v8907
      %v8924 = vadd.f32 %v8828, %v8908
      %v8925 = vadd.f32 %v8829, %v8909
      %v8926 = vadd.f32 %v8830, %v8910
      %v8927 = vadd.f32 %v8831, %v8911
      %v8928 = vadd.f32 %v8832, %v8912
      %v8929 = vadd.f32 %v8833, %v8913
      %v8930 = vadd.f32 %v8834, %v8914
      %v8931 = vadd.f32 %v8835, %v8915
      %v8932 = vadd.f32 %v8836, %v8916
      %v8933 = vadd.f32 %v8837, %v8917
      %v8934 = vadd.f32 %v8838, %v8918
      %v8935 = vadd.f32 %v8839, %v8919
      %8936 = vset.pattern.permute.xlu0 26
      %8937 = vperm.xlu0 %8936, %v622
      %v8938 = vpop.permute.xlu0 %8937
      %8940 = vset.pattern.permute.xlu0 26
      %8941 = vperm.xlu0 %8940, %v625
      %v8942 = vpop.permute.xlu0 %8941
      %8944 = vset.pattern.permute.xlu0 26
      %8945 = vperm.xlu0 %8944, %v630
      %v8946 = vpop.permute.xlu0 %8945
      %8948 = vset.pattern.permute.xlu0 26
      %8949 = vperm.xlu0 %8948, %v633
      %v8950 = vpop.permute.xlu0 %8949
      %8952 = vset.pattern.permute.xlu0 26
      %8953 = vperm.xlu0 %8952, %v638
      %v8954 = vpop.permute.xlu0 %8953
      %8956 = vset.pattern.permute.xlu0 26
      %8957 = vperm.xlu0 %8956, %v641
      %v8958 = vpop.permute.xlu0 %8957
      %8960 = vset.pattern.permute.xlu0 26
      %8961 = vperm.xlu0 %8960, %v646
      %v8962 = vpop.permute.xlu0 %8961
      %8964 = vset.pattern.permute.xlu0 26
      %8965 = vperm.xlu0 %8964, %v649
      %v8966 = vpop.permute.xlu0 %8965
      %8968 = vset.pattern.permute.xlu0 26
      %8969 = vperm.xlu0 %8968, %v654
      %v8970 = vpop.permute.xlu0 %8969
      %8972 = vset.pattern.permute.xlu0 26
      %8973 = vperm.xlu0 %8972, %v657
      %v8974 = vpop.permute.xlu0 %8973
      %8976 = vset.pattern.permute.xlu0 26
      %8977 = vperm.xlu0 %8976, %v662
      %v8978 = vpop.permute.xlu0 %8977
      %8980 = vset.pattern.permute.xlu0 26
      %8981 = vperm.xlu0 %8980, %v665
      %v8982 = vpop.permute.xlu0 %8981
      %8984 = vset.pattern.permute.xlu0 26
      %8985 = vperm.xlu0 %8984, %v670
      %v8986 = vpop.permute.xlu0 %8985
      %8988 = vset.pattern.permute.xlu0 26
      %8989 = vperm.xlu0 %8988, %v673
      %v8990 = vpop.permute.xlu0 %8989
      %8992 = vset.pattern.permute.xlu0 26
      %8993 = vperm.xlu0 %8992, %v678
      %v8994 = vpop.permute.xlu0 %8993
      %8996 = vset.pattern.permute.xlu0 26
      %8997 = vperm.xlu0 %8996, %v681
      %v8998 = vpop.permute.xlu0 %8997
      %v9000 = vsel %vm825, %v8938, 0.0
      %v9001 = vsel %vm826, %v8942, 0.0
      %v9002 = vsel %vm827, %v8946, 0.0
      %v9003 = vsel %vm828, %v8950, 0.0
      %v9004 = vsel %vm829, %v8954, 0.0
      %v9005 = vsel %vm830, %v8958, 0.0
      %v9006 = vsel %vm831, %v8962, 0.0
      %v9007 = vsel %vm832, %v8966, 0.0
      %v9008 = vsel %vm833, %v8970, 0.0
      %v9009 = vsel %vm834, %v8974, 0.0
      %v9010 = vsel %vm835, %v8978, 0.0
      %v9011 = vsel %vm836, %v8982, 0.0
      %v9012 = vsel %vm837, %v8986, 0.0
      %v9013 = vsel %vm838, %v8990, 0.0
      %v9014 = vsel %vm839, %v8994, 0.0
      %v9015 = vsel %vm840, %v8998, 0.0
      %v9016 = vadd.f32 %v8920, %v9000
      %v9017 = vadd.f32 %v8921, %v9001
      %v9018 = vadd.f32 %v8922, %v9002
      %v9019 = vadd.f32 %v8923, %v9003
      %v9020 = vadd.f32 %v8924, %v9004
      %v9021 = vadd.f32 %v8925, %v9005
      %v9022 = vadd.f32 %v8926, %v9006
      %v9023 = vadd.f32 %v8927, %v9007
      %v9024 = vadd.f32 %v8928, %v9008
      %v9025 = vadd.f32 %v8929, %v9009
      %v9026 = vadd.f32 %v8930, %v9010
      %v9027 = vadd.f32 %v8931, %v9011
      %v9028 = vadd.f32 %v8932, %v9012
      %v9029 = vadd.f32 %v8933, %v9013
      %v9030 = vadd.f32 %v8934, %v9014
      %v9031 = vadd.f32 %v8935, %v9015
      %9032 = vset.pattern.permute.xlu0 27
      %9033 = vperm.xlu0 %9032, %v622
      %v9034 = vpop.permute.xlu0 %9033
      %9036 = vset.pattern.permute.xlu0 27
      %9037 = vperm.xlu0 %9036, %v625
      %v9038 = vpop.permute.xlu0 %9037
      %9040 = vset.pattern.permute.xlu0 27
      %9041 = vperm.xlu0 %9040, %v630
      %v9042 = vpop.permute.xlu0 %9041
      %9044 = vset.pattern.permute.xlu0 27
      %9045 = vperm.xlu0 %9044, %v633
      %v9046 = vpop.permute.xlu0 %9045
      %9048 = vset.pattern.permute.xlu0 27
      %9049 = vperm.xlu0 %9048, %v638
      %v9050 = vpop.permute.xlu0 %9049
      %9052 = vset.pattern.permute.xlu0 27
      %9053 = vperm.xlu0 %9052, %v641
      %v9054 = vpop.permute.xlu0 %9053
      %9056 = vset.pattern.permute.xlu0 27
      %9057 = vperm.xlu0 %9056, %v646
      %v9058 = vpop.permute.xlu0 %9057
      %9060 = vset.pattern.permute.xlu0 27
      %9061 = vperm.xlu0 %9060, %v649
      %v9062 = vpop.permute.xlu0 %9061
      %9064 = vset.pattern.permute.xlu0 27
      %9065 = vperm.xlu0 %9064, %v654
      %v9066 = vpop.permute.xlu0 %9065
      %9068 = vset.pattern.permute.xlu0 27
      %9069 = vperm.xlu0 %9068, %v657
      %v9070 = vpop.permute.xlu0 %9069
      %9072 = vset.pattern.permute.xlu0 27
      %9073 = vperm.xlu0 %9072, %v662
      %v9074 = vpop.permute.xlu0 %9073
      %9076 = vset.pattern.permute.xlu0 27
      %9077 = vperm.xlu0 %9076, %v665
      %v9078 = vpop.permute.xlu0 %9077
      %9080 = vset.pattern.permute.xlu0 27
      %9081 = vperm.xlu0 %9080, %v670
      %v9082 = vpop.permute.xlu0 %9081
      %9084 = vset.pattern.permute.xlu0 27
      %9085 = vperm.xlu0 %9084, %v673
      %v9086 = vpop.permute.xlu0 %9085
      %9088 = vset.pattern.permute.xlu0 27
      %9089 = vperm.xlu0 %9088, %v678
      %v9090 = vpop.permute.xlu0 %9089
      %9092 = vset.pattern.permute.xlu0 27
      %9093 = vperm.xlu0 %9092, %v681
      %v9094 = vpop.permute.xlu0 %9093
      %v9096 = vsel %vm841, %v9034, 0.0
      %v9097 = vsel %vm842, %v9038, 0.0
      %v9098 = vsel %vm843, %v9042, 0.0
      %v9099 = vsel %vm844, %v9046, 0.0
      %v9100 = vsel %vm845, %v9050, 0.0
      %v9101 = vsel %vm846, %v9054, 0.0
      %v9102 = vsel %vm847, %v9058, 0.0
      %v9103 = vsel %vm848, %v9062, 0.0
      %v9104 = vsel %vm849, %v9066, 0.0
      %v9105 = vsel %vm850, %v9070, 0.0
      %v9106 = vsel %vm851, %v9074, 0.0
      %v9107 = vsel %vm852, %v9078, 0.0
      %v9108 = vsel %vm853, %v9082, 0.0
      %v9109 = vsel %vm854, %v9086, 0.0
      %v9110 = vsel %vm855, %v9090, 0.0
      %v9111 = vsel %vm856, %v9094, 0.0
      %v9112 = vadd.f32 %v9016, %v9096
      %v9113 = vadd.f32 %v9017, %v9097
      %v9114 = vadd.f32 %v9018, %v9098
      %v9115 = vadd.f32 %v9019, %v9099
      %v9116 = vadd.f32 %v9020, %v9100
      %v9117 = vadd.f32 %v9021, %v9101
      %v9118 = vadd.f32 %v9022, %v9102
      %v9119 = vadd.f32 %v9023, %v9103
      %v9120 = vadd.f32 %v9024, %v9104
      %v9121 = vadd.f32 %v9025, %v9105
      %v9122 = vadd.f32 %v9026, %v9106
      %v9123 = vadd.f32 %v9027, %v9107
      %v9124 = vadd.f32 %v9028, %v9108
      %v9125 = vadd.f32 %v9029, %v9109
      %v9126 = vadd.f32 %v9030, %v9110
      %v9127 = vadd.f32 %v9031, %v9111
      %9128 = vset.pattern.permute.xlu0 28
      %9129 = vperm.xlu0 %9128, %v622
      %v9130 = vpop.permute.xlu0 %9129
      %9132 = vset.pattern.permute.xlu0 28
      %9133 = vperm.xlu0 %9132, %v625
      %v9134 = vpop.permute.xlu0 %9133
      %9136 = vset.pattern.permute.xlu0 28
      %9137 = vperm.xlu0 %9136, %v630
      %v9138 = vpop.permute.xlu0 %9137
      %9140 = vset.pattern.permute.xlu0 28
      %9141 = vperm.xlu0 %9140, %v633
      %v9142 = vpop.permute.xlu0 %9141
      %9144 = vset.pattern.permute.xlu0 28
      %9145 = vperm.xlu0 %9144, %v638
      %v9146 = vpop.permute.xlu0 %9145
      %9148 = vset.pattern.permute.xlu0 28
      %9149 = vperm.xlu0 %9148, %v641
      %v9150 = vpop.permute.xlu0 %9149
      %9152 = vset.pattern.permute.xlu0 28
      %9153 = vperm.xlu0 %9152, %v646
      %v9154 = vpop.permute.xlu0 %9153
      %9156 = vset.pattern.permute.xlu0 28
      %9157 = vperm.xlu0 %9156, %v649
      %v9158 = vpop.permute.xlu0 %9157
      %9160 = vset.pattern.permute.xlu0 28
      %9161 = vperm.xlu0 %9160, %v654
      %v9162 = vpop.permute.xlu0 %9161
      %9164 = vset.pattern.permute.xlu0 28
      %9165 = vperm.xlu0 %9164, %v657
      %v9166 = vpop.permute.xlu0 %9165
      %9168 = vset.pattern.permute.xlu0 28
      %9169 = vperm.xlu0 %9168, %v662
      %v9170 = vpop.permute.xlu0 %9169
      %9172 = vset.pattern.permute.xlu0 28
      %9173 = vperm.xlu0 %9172, %v665
      %v9174 = vpop.permute.xlu0 %9173
      %9176 = vset.pattern.permute.xlu0 28
      %9177 = vperm.xlu0 %9176, %v670
      %v9178 = vpop.permute.xlu0 %9177
      %9180 = vset.pattern.permute.xlu0 28
      %9181 = vperm.xlu0 %9180, %v673
      %v9182 = vpop.permute.xlu0 %9181
      %9184 = vset.pattern.permute.xlu0 28
      %9185 = vperm.xlu0 %9184, %v678
      %v9186 = vpop.permute.xlu0 %9185
      %9188 = vset.pattern.permute.xlu0 28
      %9189 = vperm.xlu0 %9188, %v681
      %v9190 = vpop.permute.xlu0 %9189
      %v9192 = vsel %vm857, %v9130, 0.0
      %v9193 = vsel %vm858, %v9134, 0.0
      %v9194 = vsel %vm859, %v9138, 0.0
      %v9195 = vsel %vm860, %v9142, 0.0
      %v9196 = vsel %vm861, %v9146, 0.0
      %v9197 = vsel %vm862, %v9150, 0.0
      %v9198 = vsel %vm863, %v9154, 0.0
      %v9199 = vsel %vm864, %v9158, 0.0
      %v9200 = vsel %vm865, %v9162, 0.0
      %v9201 = vsel %vm866, %v9166, 0.0
      %v9202 = vsel %vm867, %v9170, 0.0
      %v9203 = vsel %vm868, %v9174, 0.0
      %v9204 = vsel %vm869, %v9178, 0.0
      %v9205 = vsel %vm870, %v9182, 0.0
      %v9206 = vsel %vm871, %v9186, 0.0
      %v9207 = vsel %vm872, %v9190, 0.0
      %v9208 = vadd.f32 %v9112, %v9192
      %v9209 = vadd.f32 %v9113, %v9193
      %v9210 = vadd.f32 %v9114, %v9194
      %v9211 = vadd.f32 %v9115, %v9195
      %v9212 = vadd.f32 %v9116, %v9196
      %v9213 = vadd.f32 %v9117, %v9197
      %v9214 = vadd.f32 %v9118, %v9198
      %v9215 = vadd.f32 %v9119, %v9199
      %v9216 = vadd.f32 %v9120, %v9200
      %v9217 = vadd.f32 %v9121, %v9201
      %v9218 = vadd.f32 %v9122, %v9202
      %v9219 = vadd.f32 %v9123, %v9203
      %v9220 = vadd.f32 %v9124, %v9204
      %v9221 = vadd.f32 %v9125, %v9205
      %v9222 = vadd.f32 %v9126, %v9206
      %v9223 = vadd.f32 %v9127, %v9207
      %9224 = vset.pattern.permute.xlu0 29
      %9225 = vperm.xlu0 %9224, %v622
      %v9226 = vpop.permute.xlu0 %9225
      %9228 = vset.pattern.permute.xlu0 29
      %9229 = vperm.xlu0 %9228, %v625
      %v9230 = vpop.permute.xlu0 %9229
      %9232 = vset.pattern.permute.xlu0 29
      %9233 = vperm.xlu0 %9232, %v630
      %v9234 = vpop.permute.xlu0 %9233
      %9236 = vset.pattern.permute.xlu0 29
      %9237 = vperm.xlu0 %9236, %v633
      %v9238 = vpop.permute.xlu0 %9237
      %9240 = vset.pattern.permute.xlu0 29
      %9241 = vperm.xlu0 %9240, %v638
      %v9242 = vpop.permute.xlu0 %9241
      %9244 = vset.pattern.permute.xlu0 29
      %9245 = vperm.xlu0 %9244, %v641
      %v9246 = vpop.permute.xlu0 %9245
      %9248 = vset.pattern.permute.xlu0 29
      %9249 = vperm.xlu0 %9248, %v646
      %v9250 = vpop.permute.xlu0 %9249
      %9252 = vset.pattern.permute.xlu0 29
      %9253 = vperm.xlu0 %9252, %v649
      %v9254 = vpop.permute.xlu0 %9253
      %9256 = vset.pattern.permute.xlu0 29
      %9257 = vperm.xlu0 %9256, %v654
      %v9258 = vpop.permute.xlu0 %9257
      %9260 = vset.pattern.permute.xlu0 29
      %9261 = vperm.xlu0 %9260, %v657
      %v9262 = vpop.permute.xlu0 %9261
      %9264 = vset.pattern.permute.xlu0 29
      %9265 = vperm.xlu0 %9264, %v662
      %v9266 = vpop.permute.xlu0 %9265
      %9268 = vset.pattern.permute.xlu0 29
      %9269 = vperm.xlu0 %9268, %v665
      %v9270 = vpop.permute.xlu0 %9269
      %9272 = vset.pattern.permute.xlu0 29
      %9273 = vperm.xlu0 %9272, %v670
      %v9274 = vpop.permute.xlu0 %9273
      %9276 = vset.pattern.permute.xlu0 29
      %9277 = vperm.xlu0 %9276, %v673
      %v9278 = vpop.permute.xlu0 %9277
      %9280 = vset.pattern.permute.xlu0 29
      %9281 = vperm.xlu0 %9280, %v678
      %v9282 = vpop.permute.xlu0 %9281
      %9284 = vset.pattern.permute.xlu0 29
      %9285 = vperm.xlu0 %9284, %v681
      %v9286 = vpop.permute.xlu0 %9285
      %v9288 = vsel %vm873, %v9226, 0.0
      %v9289 = vsel %vm874, %v9230, 0.0
      %v9290 = vsel %vm875, %v9234, 0.0
      %v9291 = vsel %vm876, %v9238, 0.0
      %v9292 = vsel %vm877, %v9242, 0.0
      %v9293 = vsel %vm878, %v9246, 0.0
      %v9294 = vsel %vm879, %v9250, 0.0
      %v9295 = vsel %vm880, %v9254, 0.0
      %v9296 = vsel %vm881, %v9258, 0.0
      %v9297 = vsel %vm882, %v9262, 0.0
      %v9298 = vsel %vm883, %v9266, 0.0
      %v9299 = vsel %vm884, %v9270, 0.0
      %v9300 = vsel %vm885, %v9274, 0.0
      %v9301 = vsel %vm886, %v9278, 0.0
      %v9302 = vsel %vm887, %v9282, 0.0
      %v9303 = vsel %vm888, %v9286, 0.0
      %v9304 = vadd.f32 %v9208, %v9288
      %v9305 = vadd.f32 %v9209, %v9289
      %v9306 = vadd.f32 %v9210, %v9290
      %v9307 = vadd.f32 %v9211, %v9291
      %v9308 = vadd.f32 %v9212, %v9292
      %v9309 = vadd.f32 %v9213, %v9293
      %v9310 = vadd.f32 %v9214, %v9294
      %v9311 = vadd.f32 %v9215, %v9295
      %v9312 = vadd.f32 %v9216, %v9296
      %v9313 = vadd.f32 %v9217, %v9297
      %v9314 = vadd.f32 %v9218, %v9298
      %v9315 = vadd.f32 %v9219, %v9299
      %v9316 = vadd.f32 %v9220, %v9300
      %v9317 = vadd.f32 %v9221, %v9301
      %v9318 = vadd.f32 %v9222, %v9302
      %v9319 = vadd.f32 %v9223, %v9303
      %9320 = vset.pattern.permute.xlu0 30
      %9321 = vperm.xlu0 %9320, %v622
      %v9322 = vpop.permute.xlu0 %9321
      %9324 = vset.pattern.permute.xlu0 30
      %9325 = vperm.xlu0 %9324, %v625
      %v9326 = vpop.permute.xlu0 %9325
      %9328 = vset.pattern.permute.xlu0 30
      %9329 = vperm.xlu0 %9328, %v630
      %v9330 = vpop.permute.xlu0 %9329
      %9332 = vset.pattern.permute.xlu0 30
      %9333 = vperm.xlu0 %9332, %v633
      %v9334 = vpop.permute.xlu0 %9333
      %9336 = vset.pattern.permute.xlu0 30
      %9337 = vperm.xlu0 %9336, %v638
      %v9338 = vpop.permute.xlu0 %9337
      %9340 = vset.pattern.permute.xlu0 30
      %9341 = vperm.xlu0 %9340, %v641
      %v9342 = vpop.permute.xlu0 %9341
      %9344 = vset.pattern.permute.xlu0 30
      %9345 = vperm.xlu0 %9344, %v646
      %v9346 = vpop.permute.xlu0 %9345
      %9348 = vset.pattern.permute.xlu0 30
      %9349 = vperm.xlu0 %9348, %v649
      %v9350 = vpop.permute.xlu0 %9349
      %9352 = vset.pattern.permute.xlu0 30
      %9353 = vperm.xlu0 %9352, %v654
      %v9354 = vpop.permute.xlu0 %9353
      %9356 = vset.pattern.permute.xlu0 30
      %9357 = vperm.xlu0 %9356, %v657
      %v9358 = vpop.permute.xlu0 %9357
      %9360 = vset.pattern.permute.xlu0 30
      %9361 = vperm.xlu0 %9360, %v662
      %v9362 = vpop.permute.xlu0 %9361
      %9364 = vset.pattern.permute.xlu0 30
      %9365 = vperm.xlu0 %9364, %v665
      %v9366 = vpop.permute.xlu0 %9365
      %9368 = vset.pattern.permute.xlu0 30
      %9369 = vperm.xlu0 %9368, %v670
      %v9370 = vpop.permute.xlu0 %9369
      %9372 = vset.pattern.permute.xlu0 30
      %9373 = vperm.xlu0 %9372, %v673
      %v9374 = vpop.permute.xlu0 %9373
      %9376 = vset.pattern.permute.xlu0 30
      %9377 = vperm.xlu0 %9376, %v678
      %v9378 = vpop.permute.xlu0 %9377
      %9380 = vset.pattern.permute.xlu0 30
      %9381 = vperm.xlu0 %9380, %v681
      %v9382 = vpop.permute.xlu0 %9381
      %v9384 = vsel %vm889, %v9322, 0.0
      %v9385 = vsel %vm890, %v9326, 0.0
      %v9386 = vsel %vm891, %v9330, 0.0
      %v9387 = vsel %vm892, %v9334, 0.0
      %v9388 = vsel %vm893, %v9338, 0.0
      %v9389 = vsel %vm894, %v9342, 0.0
      %v9390 = vsel %vm895, %v9346, 0.0
      %v9391 = vsel %vm896, %v9350, 0.0
      %v9392 = vsel %vm897, %v9354, 0.0
      %v9393 = vsel %vm898, %v9358, 0.0
      %v9394 = vsel %vm899, %v9362, 0.0
      %v9395 = vsel %vm900, %v9366, 0.0
      %v9396 = vsel %vm901, %v9370, 0.0
      %v9397 = vsel %vm902, %v9374, 0.0
      %v9398 = vsel %vm903, %v9378, 0.0
      %v9399 = vsel %vm904, %v9382, 0.0
      %v9400 = vadd.f32 %v9304, %v9384
      %v9401 = vadd.f32 %v9305, %v9385
      %v9402 = vadd.f32 %v9306, %v9386
      %v9403 = vadd.f32 %v9307, %v9387
      %v9404 = vadd.f32 %v9308, %v9388
      %v9405 = vadd.f32 %v9309, %v9389
      %v9406 = vadd.f32 %v9310, %v9390
      %v9407 = vadd.f32 %v9311, %v9391
      %v9408 = vadd.f32 %v9312, %v9392
      %v9409 = vadd.f32 %v9313, %v9393
      %v9410 = vadd.f32 %v9314, %v9394
      %v9411 = vadd.f32 %v9315, %v9395
      %v9412 = vadd.f32 %v9316, %v9396
      %v9413 = vadd.f32 %v9317, %v9397
      %v9414 = vadd.f32 %v9318, %v9398
      %v9415 = vadd.f32 %v9319, %v9399
      %9416 = vset.pattern.permute.xlu0 31
      %9417 = vperm.xlu0 %9416, %v622
      %v9418 = vpop.permute.xlu0 %9417
      %9420 = vset.pattern.permute.xlu0 31
      %9421 = vperm.xlu0 %9420, %v625
      %v9422 = vpop.permute.xlu0 %9421
      %9424 = vset.pattern.permute.xlu0 31
      %9425 = vperm.xlu0 %9424, %v630
      %v9426 = vpop.permute.xlu0 %9425
      %9428 = vset.pattern.permute.xlu0 31
      %9429 = vperm.xlu0 %9428, %v633
      %v9430 = vpop.permute.xlu0 %9429
      %9432 = vset.pattern.permute.xlu0 31
      %9433 = vperm.xlu0 %9432, %v638
      %v9434 = vpop.permute.xlu0 %9433
      %9436 = vset.pattern.permute.xlu0 31
      %9437 = vperm.xlu0 %9436, %v641
      %v9438 = vpop.permute.xlu0 %9437
      %9440 = vset.pattern.permute.xlu0 31
      %9441 = vperm.xlu0 %9440, %v646
      %v9442 = vpop.permute.xlu0 %9441
      %9444 = vset.pattern.permute.xlu0 31
      %9445 = vperm.xlu0 %9444, %v649
      %v9446 = vpop.permute.xlu0 %9445
      %9448 = vset.pattern.permute.xlu0 31
      %9449 = vperm.xlu0 %9448, %v654
      %v9450 = vpop.permute.xlu0 %9449
      %9452 = vset.pattern.permute.xlu0 31
      %9453 = vperm.xlu0 %9452, %v657
      %v9454 = vpop.permute.xlu0 %9453
      %9456 = vset.pattern.permute.xlu0 31
      %9457 = vperm.xlu0 %9456, %v662
      %v9458 = vpop.permute.xlu0 %9457
      %9460 = vset.pattern.permute.xlu0 31
      %9461 = vperm.xlu0 %9460, %v665
      %v9462 = vpop.permute.xlu0 %9461
      %9464 = vset.pattern.permute.xlu0 31
      %9465 = vperm.xlu0 %9464, %v670
      %v9466 = vpop.permute.xlu0 %9465
      %9468 = vset.pattern.permute.xlu0 31
      %9469 = vperm.xlu0 %9468, %v673
      %v9470 = vpop.permute.xlu0 %9469
      %9472 = vset.pattern.permute.xlu0 31
      %9473 = vperm.xlu0 %9472, %v678
      %v9474 = vpop.permute.xlu0 %9473
      %9476 = vset.pattern.permute.xlu0 31
      %9477 = vperm.xlu0 %9476, %v681
      %v9478 = vpop.permute.xlu0 %9477
      %v9480 = vsel %vm905, %v9418, 0.0
      %v9481 = vsel %vm906, %v9422, 0.0
      %v9482 = vsel %vm907, %v9426, 0.0
      %v9483 = vsel %vm908, %v9430, 0.0
      %v9484 = vsel %vm909, %v9434, 0.0
      %v9485 = vsel %vm910, %v9438, 0.0
      %v9486 = vsel %vm911, %v9442, 0.0
      %v9487 = vsel %vm912, %v9446, 0.0
      %v9488 = vsel %vm913, %v9450, 0.0
      %v9489 = vsel %vm914, %v9454, 0.0
      %v9490 = vsel %vm915, %v9458, 0.0
      %v9491 = vsel %vm916, %v9462, 0.0
      %v9492 = vsel %vm917, %v9466, 0.0
      %v9493 = vsel %vm918, %v9470, 0.0
      %v9494 = vsel %vm919, %v9474, 0.0
      %v9495 = vsel %vm920, %v9478, 0.0
      %v9496 = vadd.f32 %v9400, %v9480
      %v9497 = vadd.f32 %v9401, %v9481
      %v9498 = vadd.f32 %v9402, %v9482
      %v9499 = vadd.f32 %v9403, %v9483
      %v9500 = vadd.f32 %v9404, %v9484
      %v9501 = vadd.f32 %v9405, %v9485
      %v9502 = vadd.f32 %v9406, %v9486
      %v9503 = vadd.f32 %v9407, %v9487
      %v9504 = vadd.f32 %v9408, %v9488
      %v9505 = vadd.f32 %v9409, %v9489
      %v9506 = vadd.f32 %v9410, %v9490
      %v9507 = vadd.f32 %v9411, %v9491
      %v9508 = vadd.f32 %v9412, %v9492
      %v9509 = vadd.f32 %v9413, %v9493
      %v9510 = vadd.f32 %v9414, %v9494
      %v9511 = vadd.f32 %v9415, %v9495
      %9512 = vset.pattern.permute.xlu0 24
      %9513 = vperm.xlu0 %9512, %v731
      %v9514 = vpop.permute.xlu0 %9513
      %9516 = vset.pattern.permute.xlu0 24
      %9517 = vperm.xlu0 %9516, %v734
      %v9518 = vpop.permute.xlu0 %9517
      %9520 = vset.pattern.permute.xlu0 24
      %9521 = vperm.xlu0 %9520, %v739
      %v9522 = vpop.permute.xlu0 %9521
      %9524 = vset.pattern.permute.xlu0 24
      %9525 = vperm.xlu0 %9524, %v742
      %v9526 = vpop.permute.xlu0 %9525
      %9528 = vset.pattern.permute.xlu0 24
      %9529 = vperm.xlu0 %9528, %v747
      %v9530 = vpop.permute.xlu0 %9529
      %9532 = vset.pattern.permute.xlu0 24
      %9533 = vperm.xlu0 %9532, %v750
      %v9534 = vpop.permute.xlu0 %9533
      %9536 = vset.pattern.permute.xlu0 24
      %9537 = vperm.xlu0 %9536, %v755
      %v9538 = vpop.permute.xlu0 %9537
      %9540 = vset.pattern.permute.xlu0 24
      %9541 = vperm.xlu0 %9540, %v758
      %v9542 = vpop.permute.xlu0 %9541
      %9544 = vset.pattern.permute.xlu0 24
      %9545 = vperm.xlu0 %9544, %v763
      %v9546 = vpop.permute.xlu0 %9545
      %9548 = vset.pattern.permute.xlu0 24
      %9549 = vperm.xlu0 %9548, %v766
      %v9550 = vpop.permute.xlu0 %9549
      %9552 = vset.pattern.permute.xlu0 24
      %9553 = vperm.xlu0 %9552, %v771
      %v9554 = vpop.permute.xlu0 %9553
      %9556 = vset.pattern.permute.xlu0 24
      %9557 = vperm.xlu0 %9556, %v774
      %v9558 = vpop.permute.xlu0 %9557
      %9560 = vset.pattern.permute.xlu0 24
      %9561 = vperm.xlu0 %9560, %v779
      %v9562 = vpop.permute.xlu0 %9561
      %9564 = vset.pattern.permute.xlu0 24
      %9565 = vperm.xlu0 %9564, %v782
      %v9566 = vpop.permute.xlu0 %9565
      %9568 = vset.pattern.permute.xlu0 24
      %9569 = vperm.xlu0 %9568, %v787
      %v9570 = vpop.permute.xlu0 %9569
      %9572 = vset.pattern.permute.xlu0 24
      %9573 = vperm.xlu0 %9572, %v790
      %v9574 = vpop.permute.xlu0 %9573
      %v9576 = vsel %vm921, %v9514, 0.0
      %v9577 = vsel %vm922, %v9518, 0.0
      %v9578 = vsel %vm923, %v9522, 0.0
      %v9579 = vsel %vm924, %v9526, 0.0
      %v9580 = vsel %vm925, %v9530, 0.0
      %v9581 = vsel %vm926, %v9534, 0.0
      %v9582 = vsel %vm927, %v9538, 0.0
      %v9583 = vsel %vm928, %v9542, 0.0
      %v9584 = vsel %vm929, %v9546, 0.0
      %v9585 = vsel %vm930, %v9550, 0.0
      %v9586 = vsel %vm931, %v9554, 0.0
      %v9587 = vsel %vm932, %v9558, 0.0
      %v9588 = vsel %vm933, %v9562, 0.0
      %v9589 = vsel %vm934, %v9566, 0.0
      %v9590 = vsel %vm935, %v9570, 0.0
      %v9591 = vsel %vm936, %v9574, 0.0
      %9592 = vset.pattern.permute.xlu0 25
      %9593 = vperm.xlu0 %9592, %v731
      %v9594 = vpop.permute.xlu0 %9593
      %9596 = vset.pattern.permute.xlu0 25
      %9597 = vperm.xlu0 %9596, %v734
      %v9598 = vpop.permute.xlu0 %9597
      %9600 = vset.pattern.permute.xlu0 25
      %9601 = vperm.xlu0 %9600, %v739
      %v9602 = vpop.permute.xlu0 %9601
      %9604 = vset.pattern.permute.xlu0 25
      %9605 = vperm.xlu0 %9604, %v742
      %v9606 = vpop.permute.xlu0 %9605
      %9608 = vset.pattern.permute.xlu0 25
      %9609 = vperm.xlu0 %9608, %v747
      %v9610 = vpop.permute.xlu0 %9609
      %9612 = vset.pattern.permute.xlu0 25
      %9613 = vperm.xlu0 %9612, %v750
      %v9614 = vpop.permute.xlu0 %9613
      %9616 = vset.pattern.permute.xlu0 25
      %9617 = vperm.xlu0 %9616, %v755
      %v9618 = vpop.permute.xlu0 %9617
      %9620 = vset.pattern.permute.xlu0 25
      %9621 = vperm.xlu0 %9620, %v758
      %v9622 = vpop.permute.xlu0 %9621
      %9624 = vset.pattern.permute.xlu0 25
      %9625 = vperm.xlu0 %9624, %v763
      %v9626 = vpop.permute.xlu0 %9625
      %9628 = vset.pattern.permute.xlu0 25
      %9629 = vperm.xlu0 %9628, %v766
      %v9630 = vpop.permute.xlu0 %9629
      %9632 = vset.pattern.permute.xlu0 25
      %9633 = vperm.xlu0 %9632, %v771
      %v9634 = vpop.permute.xlu0 %9633
      %9636 = vset.pattern.permute.xlu0 25
      %9637 = vperm.xlu0 %9636, %v774
      %v9638 = vpop.permute.xlu0 %9637
      %9640 = vset.pattern.permute.xlu0 25
      %9641 = vperm.xlu0 %9640, %v779
      %v9642 = vpop.permute.xlu0 %9641
      %9644 = vset.pattern.permute.xlu0 25
      %9645 = vperm.xlu0 %9644, %v782
      %v9646 = vpop.permute.xlu0 %9645
      %9648 = vset.pattern.permute.xlu0 25
      %9649 = vperm.xlu0 %9648, %v787
      %v9650 = vpop.permute.xlu0 %9649
      %9652 = vset.pattern.permute.xlu0 25
      %9653 = vperm.xlu0 %9652, %v790
      %v9654 = vpop.permute.xlu0 %9653
      %v9656 = vsel %vm937, %v9594, 0.0
      %v9657 = vsel %vm938, %v9598, 0.0
      %v9658 = vsel %vm939, %v9602, 0.0
      %v9659 = vsel %vm940, %v9606, 0.0
      %v9660 = vsel %vm941, %v9610, 0.0
      %v9661 = vsel %vm942, %v9614, 0.0
      %v9662 = vsel %vm943, %v9618, 0.0
      %v9663 = vsel %vm944, %v9622, 0.0
      %v9664 = vsel %vm945, %v9626, 0.0
      %v9665 = vsel %vm946, %v9630, 0.0
      %v9666 = vsel %vm947, %v9634, 0.0
      %v9667 = vsel %vm948, %v9638, 0.0
      %v9668 = vsel %vm949, %v9642, 0.0
      %v9669 = vsel %vm950, %v9646, 0.0
      %v9670 = vsel %vm951, %v9650, 0.0
      %v9671 = vsel %vm952, %v9654, 0.0
      %v9672 = vadd.f32 %v9576, %v9656
      %v9673 = vadd.f32 %v9577, %v9657
      %v9674 = vadd.f32 %v9578, %v9658
      %v9675 = vadd.f32 %v9579, %v9659
      %v9676 = vadd.f32 %v9580, %v9660
      %v9677 = vadd.f32 %v9581, %v9661
      %v9678 = vadd.f32 %v9582, %v9662
      %v9679 = vadd.f32 %v9583, %v9663
      %v9680 = vadd.f32 %v9584, %v9664
      %v9681 = vadd.f32 %v9585, %v9665
      %v9682 = vadd.f32 %v9586, %v9666
      %v9683 = vadd.f32 %v9587, %v9667
      %v9684 = vadd.f32 %v9588, %v9668
      %v9685 = vadd.f32 %v9589, %v9669
      %v9686 = vadd.f32 %v9590, %v9670
      %v9687 = vadd.f32 %v9591, %v9671
      %9688 = vset.pattern.permute.xlu0 26
      %9689 = vperm.xlu0 %9688, %v731
      %v9690 = vpop.permute.xlu0 %9689
      %9692 = vset.pattern.permute.xlu0 26
      %9693 = vperm.xlu0 %9692, %v734
      %v9694 = vpop.permute.xlu0 %9693
      %9696 = vset.pattern.permute.xlu0 26
      %9697 = vperm.xlu0 %9696, %v739
      %v9698 = vpop.permute.xlu0 %9697
      %9700 = vset.pattern.permute.xlu0 26
      %9701 = vperm.xlu0 %9700, %v742
      %v9702 = vpop.permute.xlu0 %9701
      %9704 = vset.pattern.permute.xlu0 26
      %9705 = vperm.xlu0 %9704, %v747
      %v9706 = vpop.permute.xlu0 %9705
      %9708 = vset.pattern.permute.xlu0 26
      %9709 = vperm.xlu0 %9708, %v750
      %v9710 = vpop.permute.xlu0 %9709
      %9712 = vset.pattern.permute.xlu0 26
      %9713 = vperm.xlu0 %9712, %v755
      %v9714 = vpop.permute.xlu0 %9713
      %9716 = vset.pattern.permute.xlu0 26
      %9717 = vperm.xlu0 %9716, %v758
      %v9718 = vpop.permute.xlu0 %9717
      %9720 = vset.pattern.permute.xlu0 26
      %9721 = vperm.xlu0 %9720, %v763
      %v9722 = vpop.permute.xlu0 %9721
      %9724 = vset.pattern.permute.xlu0 26
      %9725 = vperm.xlu0 %9724, %v766
      %v9726 = vpop.permute.xlu0 %9725
      %9728 = vset.pattern.permute.xlu0 26
      %9729 = vperm.xlu0 %9728, %v771
      %v9730 = vpop.permute.xlu0 %9729
      %9732 = vset.pattern.permute.xlu0 26
      %9733 = vperm.xlu0 %9732, %v774
      %v9734 = vpop.permute.xlu0 %9733
      %9736 = vset.pattern.permute.xlu0 26
      %9737 = vperm.xlu0 %9736, %v779
      %v9738 = vpop.permute.xlu0 %9737
      %9740 = vset.pattern.permute.xlu0 26
      %9741 = vperm.xlu0 %9740, %v782
      %v9742 = vpop.permute.xlu0 %9741
      %9744 = vset.pattern.permute.xlu0 26
      %9745 = vperm.xlu0 %9744, %v787
      %v9746 = vpop.permute.xlu0 %9745
      %9748 = vset.pattern.permute.xlu0 26
      %9749 = vperm.xlu0 %9748, %v790
      %v9750 = vpop.permute.xlu0 %9749
      %v9752 = vsel %vm953, %v9690, 0.0
      %v9753 = vsel %vm954, %v9694, 0.0
      %v9754 = vsel %vm955, %v9698, 0.0
      %v9755 = vsel %vm956, %v9702, 0.0
      %v9756 = vsel %vm957, %v9706, 0.0
      %v9757 = vsel %vm958, %v9710, 0.0
      %v9758 = vsel %vm959, %v9714, 0.0
      %v9759 = vsel %vm960, %v9718, 0.0
      %v9760 = vsel %vm961, %v9722, 0.0
      %v9761 = vsel %vm962, %v9726, 0.0
      %v9762 = vsel %vm963, %v9730, 0.0
      %v9763 = vsel %vm964, %v9734, 0.0
      %v9764 = vsel %vm965, %v9738, 0.0
      %v9765 = vsel %vm966, %v9742, 0.0
      %v9766 = vsel %vm967, %v9746, 0.0
      %v9767 = vsel %vm968, %v9750, 0.0
      %v9768 = vadd.f32 %v9672, %v9752
      %v9769 = vadd.f32 %v9673, %v9753
      %v9770 = vadd.f32 %v9674, %v9754
      %v9771 = vadd.f32 %v9675, %v9755
      %v9772 = vadd.f32 %v9676, %v9756
      %v9773 = vadd.f32 %v9677, %v9757
      %v9774 = vadd.f32 %v9678, %v9758
      %v9775 = vadd.f32 %v9679, %v9759
      %v9776 = vadd.f32 %v9680, %v9760
      %v9777 = vadd.f32 %v9681, %v9761
      %v9778 = vadd.f32 %v9682, %v9762
      %v9779 = vadd.f32 %v9683, %v9763
      %v9780 = vadd.f32 %v9684, %v9764
      %v9781 = vadd.f32 %v9685, %v9765
      %v9782 = vadd.f32 %v9686, %v9766
      %v9783 = vadd.f32 %v9687, %v9767
      %9784 = vset.pattern.permute.xlu0 27
      %9785 = vperm.xlu0 %9784, %v731
      %v9786 = vpop.permute.xlu0 %9785
      %9788 = vset.pattern.permute.xlu0 27
      %9789 = vperm.xlu0 %9788, %v734
      %v9790 = vpop.permute.xlu0 %9789
      %9792 = vset.pattern.permute.xlu0 27
      %9793 = vperm.xlu0 %9792, %v739
      %v9794 = vpop.permute.xlu0 %9793
      %9796 = vset.pattern.permute.xlu0 27
      %9797 = vperm.xlu0 %9796, %v742
      %v9798 = vpop.permute.xlu0 %9797
      %9800 = vset.pattern.permute.xlu0 27
      %9801 = vperm.xlu0 %9800, %v747
      %v9802 = vpop.permute.xlu0 %9801
      %9804 = vset.pattern.permute.xlu0 27
      %9805 = vperm.xlu0 %9804, %v750
      %v9806 = vpop.permute.xlu0 %9805
      %9808 = vset.pattern.permute.xlu0 27
      %9809 = vperm.xlu0 %9808, %v755
      %v9810 = vpop.permute.xlu0 %9809
      %9812 = vset.pattern.permute.xlu0 27
      %9813 = vperm.xlu0 %9812, %v758
      %v9814 = vpop.permute.xlu0 %9813
      %9816 = vset.pattern.permute.xlu0 27
      %9817 = vperm.xlu0 %9816, %v763
      %v9818 = vpop.permute.xlu0 %9817
      %9820 = vset.pattern.permute.xlu0 27
      %9821 = vperm.xlu0 %9820, %v766
      %v9822 = vpop.permute.xlu0 %9821
      %9824 = vset.pattern.permute.xlu0 27
      %9825 = vperm.xlu0 %9824, %v771
      %v9826 = vpop.permute.xlu0 %9825
      %9828 = vset.pattern.permute.xlu0 27
      %9829 = vperm.xlu0 %9828, %v774
      %v9830 = vpop.permute.xlu0 %9829
      %9832 = vset.pattern.permute.xlu0 27
      %9833 = vperm.xlu0 %9832, %v779
      %v9834 = vpop.permute.xlu0 %9833
      %9836 = vset.pattern.permute.xlu0 27
      %9837 = vperm.xlu0 %9836, %v782
      %v9838 = vpop.permute.xlu0 %9837
      %9840 = vset.pattern.permute.xlu0 27
      %9841 = vperm.xlu0 %9840, %v787
      %v9842 = vpop.permute.xlu0 %9841
      %9844 = vset.pattern.permute.xlu0 27
      %9845 = vperm.xlu0 %9844, %v790
      %v9846 = vpop.permute.xlu0 %9845
      %v9848 = vsel %vm969, %v9786, 0.0
      %v9849 = vsel %vm970, %v9790, 0.0
      %v9850 = vsel %vm971, %v9794, 0.0
      %v9851 = vsel %vm972, %v9798, 0.0
      %v9852 = vsel %vm973, %v9802, 0.0
      %v9853 = vsel %vm974, %v9806, 0.0
      %v9854 = vsel %vm975, %v9810, 0.0
      %v9855 = vsel %vm976, %v9814, 0.0
      %v9856 = vsel %vm977, %v9818, 0.0
      %v9857 = vsel %vm978, %v9822, 0.0
      %v9858 = vsel %vm979, %v9826, 0.0
      %v9859 = vsel %vm980, %v9830, 0.0
      %v9860 = vsel %vm981, %v9834, 0.0
      %v9861 = vsel %vm982, %v9838, 0.0
      %v9862 = vsel %vm983, %v9842, 0.0
      %v9863 = vsel %vm984, %v9846, 0.0
      %v9864 = vadd.f32 %v9768, %v9848
      %v9865 = vadd.f32 %v9769, %v9849
      %v9866 = vadd.f32 %v9770, %v9850
      %v9867 = vadd.f32 %v9771, %v9851
      %v9868 = vadd.f32 %v9772, %v9852
      %v9869 = vadd.f32 %v9773, %v9853
      %v9870 = vadd.f32 %v9774, %v9854
      %v9871 = vadd.f32 %v9775, %v9855
      %v9872 = vadd.f32 %v9776, %v9856
      %v9873 = vadd.f32 %v9777, %v9857
      %v9874 = vadd.f32 %v9778, %v9858
      %v9875 = vadd.f32 %v9779, %v9859
      %v9876 = vadd.f32 %v9780, %v9860
      %v9877 = vadd.f32 %v9781, %v9861
      %v9878 = vadd.f32 %v9782, %v9862
      %v9879 = vadd.f32 %v9783, %v9863
      %9880 = vset.pattern.permute.xlu0 28
      %9881 = vperm.xlu0 %9880, %v731
      %v9882 = vpop.permute.xlu0 %9881
      %9884 = vset.pattern.permute.xlu0 28
      %9885 = vperm.xlu0 %9884, %v734
      %v9886 = vpop.permute.xlu0 %9885
      %9888 = vset.pattern.permute.xlu0 28
      %9889 = vperm.xlu0 %9888, %v739
      %v9890 = vpop.permute.xlu0 %9889
      %9892 = vset.pattern.permute.xlu0 28
      %9893 = vperm.xlu0 %9892, %v742
      %v9894 = vpop.permute.xlu0 %9893
      %9896 = vset.pattern.permute.xlu0 28
      %9897 = vperm.xlu0 %9896, %v747
      %v9898 = vpop.permute.xlu0 %9897
      %9900 = vset.pattern.permute.xlu0 28
      %9901 = vperm.xlu0 %9900, %v750
      %v9902 = vpop.permute.xlu0 %9901
      %9904 = vset.pattern.permute.xlu0 28
      %9905 = vperm.xlu0 %9904, %v755
      %v9906 = vpop.permute.xlu0 %9905
      %9908 = vset.pattern.permute.xlu0 28
      %9909 = vperm.xlu0 %9908, %v758
      %v9910 = vpop.permute.xlu0 %9909
      %9912 = vset.pattern.permute.xlu0 28
      %9913 = vperm.xlu0 %9912, %v763
      %v9914 = vpop.permute.xlu0 %9913
      %9916 = vset.pattern.permute.xlu0 28
      %9917 = vperm.xlu0 %9916, %v766
      %v9918 = vpop.permute.xlu0 %9917
      %9920 = vset.pattern.permute.xlu0 28
      %9921 = vperm.xlu0 %9920, %v771
      %v9922 = vpop.permute.xlu0 %9921
      %9924 = vset.pattern.permute.xlu0 28
      %9925 = vperm.xlu0 %9924, %v774
      %v9926 = vpop.permute.xlu0 %9925
      %9928 = vset.pattern.permute.xlu0 28
      %9929 = vperm.xlu0 %9928, %v779
      %v9930 = vpop.permute.xlu0 %9929
      %9932 = vset.pattern.permute.xlu0 28
      %9933 = vperm.xlu0 %9932, %v782
      %v9934 = vpop.permute.xlu0 %9933
      %9936 = vset.pattern.permute.xlu0 28
      %9937 = vperm.xlu0 %9936, %v787
      %v9938 = vpop.permute.xlu0 %9937
      %9940 = vset.pattern.permute.xlu0 28
      %9941 = vperm.xlu0 %9940, %v790
      %v9942 = vpop.permute.xlu0 %9941
      %v9944 = vsel %vm985, %v9882, 0.0
      %v9945 = vsel %vm986, %v9886, 0.0
      %v9946 = vsel %vm987, %v9890, 0.0
      %v9947 = vsel %vm988, %v9894, 0.0
      %v9948 = vsel %vm989, %v9898, 0.0
      %v9949 = vsel %vm990, %v9902, 0.0
      %v9950 = vsel %vm991, %v9906, 0.0
      %v9951 = vsel %vm992, %v9910, 0.0
      %v9952 = vsel %vm993, %v9914, 0.0
      %v9953 = vsel %vm994, %v9918, 0.0
      %v9954 = vsel %vm995, %v9922, 0.0
      %v9955 = vsel %vm996, %v9926, 0.0
      %v9956 = vsel %vm997, %v9930, 0.0
      %v9957 = vsel %vm998, %v9934, 0.0
      %v9958 = vsel %vm999, %v9938, 0.0
      %v9959 = vsel %vm1000, %v9942, 0.0
      %v9960 = vadd.f32 %v9864, %v9944
      %v9961 = vadd.f32 %v9865, %v9945
      %v9962 = vadd.f32 %v9866, %v9946
      %v9963 = vadd.f32 %v9867, %v9947
      %v9964 = vadd.f32 %v9868, %v9948
      %v9965 = vadd.f32 %v9869, %v9949
      %v9966 = vadd.f32 %v9870, %v9950
      %v9967 = vadd.f32 %v9871, %v9951
      %v9968 = vadd.f32 %v9872, %v9952
      %v9969 = vadd.f32 %v9873, %v9953
      %v9970 = vadd.f32 %v9874, %v9954
      %v9971 = vadd.f32 %v9875, %v9955
      %v9972 = vadd.f32 %v9876, %v9956
      %v9973 = vadd.f32 %v9877, %v9957
      %v9974 = vadd.f32 %v9878, %v9958
      %v9975 = vadd.f32 %v9879, %v9959
      %9976 = vset.pattern.permute.xlu0 29
      %9977 = vperm.xlu0 %9976, %v731
      %v9978 = vpop.permute.xlu0 %9977
      %9980 = vset.pattern.permute.xlu0 29
      %9981 = vperm.xlu0 %9980, %v734
      %v9982 = vpop.permute.xlu0 %9981
      %9984 = vset.pattern.permute.xlu0 29
      %9985 = vperm.xlu0 %9984, %v739
      %v9986 = vpop.permute.xlu0 %9985
      %9988 = vset.pattern.permute.xlu0 29
      %9989 = vperm.xlu0 %9988, %v742
      %v9990 = vpop.permute.xlu0 %9989
      %9992 = vset.pattern.permute.xlu0 29
      %9993 = vperm.xlu0 %9992, %v747
      %v9994 = vpop.permute.xlu0 %9993
      %9996 = vset.pattern.permute.xlu0 29
      %9997 = vperm.xlu0 %9996, %v750
      %v9998 = vpop.permute.xlu0 %9997
      %10000 = vset.pattern.permute.xlu0 29
      %10001 = vperm.xlu0 %10000, %v755
      %v10002 = vpop.permute.xlu0 %10001
      %10004 = vset.pattern.permute.xlu0 29
      %10005 = vperm.xlu0 %10004, %v758
      %v10006 = vpop.permute.xlu0 %10005
      %10008 = vset.pattern.permute.xlu0 29
      %10009 = vperm.xlu0 %10008, %v763
      %v10010 = vpop.permute.xlu0 %10009
      %10012 = vset.pattern.permute.xlu0 29
      %10013 = vperm.xlu0 %10012, %v766
      %v10014 = vpop.permute.xlu0 %10013
      %10016 = vset.pattern.permute.xlu0 29
      %10017 = vperm.xlu0 %10016, %v771
      %v10018 = vpop.permute.xlu0 %10017
      %10020 = vset.pattern.permute.xlu0 29
      %10021 = vperm.xlu0 %10020, %v774
      %v10022 = vpop.permute.xlu0 %10021
      %10024 = vset.pattern.permute.xlu0 29
      %10025 = vperm.xlu0 %10024, %v779
      %v10026 = vpop.permute.xlu0 %10025
      %10028 = vset.pattern.permute.xlu0 29
      %10029 = vperm.xlu0 %10028, %v782
      %v10030 = vpop.permute.xlu0 %10029
      %10032 = vset.pattern.permute.xlu0 29
      %10033 = vperm.xlu0 %10032, %v787
      %v10034 = vpop.permute.xlu0 %10033
      %10036 = vset.pattern.permute.xlu0 29
      %10037 = vperm.xlu0 %10036, %v790
      %v10038 = vpop.permute.xlu0 %10037
      %v10040 = vsel %vm1001, %v9978, 0.0
      %v10041 = vsel %vm1002, %v9982, 0.0
      %v10042 = vsel %vm1003, %v9986, 0.0
      %v10043 = vsel %vm1004, %v9990, 0.0
      %v10044 = vsel %vm1005, %v9994, 0.0
      %v10045 = vsel %vm1006, %v9998, 0.0
      %v10046 = vsel %vm1007, %v10002, 0.0
      %v10047 = vsel %vm1008, %v10006, 0.0
      %v10048 = vsel %vm1009, %v10010, 0.0
      %v10049 = vsel %vm1010, %v10014, 0.0
      %v10050 = vsel %vm1011, %v10018, 0.0
      %v10051 = vsel %vm1012, %v10022, 0.0
      %v10052 = vsel %vm1013, %v10026, 0.0
      %v10053 = vsel %vm1014, %v10030, 0.0
      %v10054 = vsel %vm1015, %v10034, 0.0
      %v10055 = vsel %vm1016, %v10038, 0.0
      %v10056 = vadd.f32 %v9960, %v10040
      %v10057 = vadd.f32 %v9961, %v10041
      %v10058 = vadd.f32 %v9962, %v10042
      %v10059 = vadd.f32 %v9963, %v10043
      %v10060 = vadd.f32 %v9964, %v10044
      %v10061 = vadd.f32 %v9965, %v10045
      %v10062 = vadd.f32 %v9966, %v10046
      %v10063 = vadd.f32 %v9967, %v10047
      %v10064 = vadd.f32 %v9968, %v10048
      %v10065 = vadd.f32 %v9969, %v10049
      %v10066 = vadd.f32 %v9970, %v10050
      %v10067 = vadd.f32 %v9971, %v10051
      %v10068 = vadd.f32 %v9972, %v10052
      %v10069 = vadd.f32 %v9973, %v10053
      %v10070 = vadd.f32 %v9974, %v10054
      %v10071 = vadd.f32 %v9975, %v10055
      %10072 = vset.pattern.permute.xlu0 30
      %10073 = vperm.xlu0 %10072, %v731
      %v10074 = vpop.permute.xlu0 %10073
      %10076 = vset.pattern.permute.xlu0 30
      %10077 = vperm.xlu0 %10076, %v734
      %v10078 = vpop.permute.xlu0 %10077
      %10080 = vset.pattern.permute.xlu0 30
      %10081 = vperm.xlu0 %10080, %v739
      %v10082 = vpop.permute.xlu0 %10081
      %10084 = vset.pattern.permute.xlu0 30
      %10085 = vperm.xlu0 %10084, %v742
      %v10086 = vpop.permute.xlu0 %10085
      %10088 = vset.pattern.permute.xlu0 30
      %10089 = vperm.xlu0 %10088, %v747
      %v10090 = vpop.permute.xlu0 %10089
      %10092 = vset.pattern.permute.xlu0 30
      %10093 = vperm.xlu0 %10092, %v750
      %v10094 = vpop.permute.xlu0 %10093
      %10096 = vset.pattern.permute.xlu0 30
      %10097 = vperm.xlu0 %10096, %v755
      %v10098 = vpop.permute.xlu0 %10097
      %10100 = vset.pattern.permute.xlu0 30
      %10101 = vperm.xlu0 %10100, %v758
      %v10102 = vpop.permute.xlu0 %10101
      %10104 = vset.pattern.permute.xlu0 30
      %10105 = vperm.xlu0 %10104, %v763
      %v10106 = vpop.permute.xlu0 %10105
      %10108 = vset.pattern.permute.xlu0 30
      %10109 = vperm.xlu0 %10108, %v766
      %v10110 = vpop.permute.xlu0 %10109
      %10112 = vset.pattern.permute.xlu0 30
      %10113 = vperm.xlu0 %10112, %v771
      %v10114 = vpop.permute.xlu0 %10113
      %10116 = vset.pattern.permute.xlu0 30
      %10117 = vperm.xlu0 %10116, %v774
      %v10118 = vpop.permute.xlu0 %10117
      %10120 = vset.pattern.permute.xlu0 30
      %10121 = vperm.xlu0 %10120, %v779
      %v10122 = vpop.permute.xlu0 %10121
      %10124 = vset.pattern.permute.xlu0 30
      %10125 = vperm.xlu0 %10124, %v782
      %v10126 = vpop.permute.xlu0 %10125
      %10128 = vset.pattern.permute.xlu0 30
      %10129 = vperm.xlu0 %10128, %v787
      %v10130 = vpop.permute.xlu0 %10129
      %10132 = vset.pattern.permute.xlu0 30
      %10133 = vperm.xlu0 %10132, %v790
      %v10134 = vpop.permute.xlu0 %10133
      %v10136 = vsel %vm1017, %v10074, 0.0
      %v10137 = vsel %vm1018, %v10078, 0.0
      %v10138 = vsel %vm1019, %v10082, 0.0
      %v10139 = vsel %vm1020, %v10086, 0.0
      %v10140 = vsel %vm1021, %v10090, 0.0
      %v10141 = vsel %vm1022, %v10094, 0.0
      %v10142 = vsel %vm1023, %v10098, 0.0
      %v10143 = vsel %vm1024, %v10102, 0.0
      %v10144 = vsel %vm1025, %v10106, 0.0
      %v10145 = vsel %vm1026, %v10110, 0.0
      %v10146 = vsel %vm1027, %v10114, 0.0
      %v10147 = vsel %vm1028, %v10118, 0.0
      %v10148 = vsel %vm1029, %v10122, 0.0
      %v10149 = vsel %vm1030, %v10126, 0.0
      %v10150 = vsel %vm1031, %v10130, 0.0
      %v10151 = vsel %vm1032, %v10134, 0.0
      %v10152 = vadd.f32 %v10056, %v10136
      %v10153 = vadd.f32 %v10057, %v10137
      %v10154 = vadd.f32 %v10058, %v10138
      %v10155 = vadd.f32 %v10059, %v10139
      %v10156 = vadd.f32 %v10060, %v10140
      %v10157 = vadd.f32 %v10061, %v10141
      %v10158 = vadd.f32 %v10062, %v10142
      %v10159 = vadd.f32 %v10063, %v10143
      %v10160 = vadd.f32 %v10064, %v10144
      %v10161 = vadd.f32 %v10065, %v10145
      %v10162 = vadd.f32 %v10066, %v10146
      %v10163 = vadd.f32 %v10067, %v10147
      %v10164 = vadd.f32 %v10068, %v10148
      %v10165 = vadd.f32 %v10069, %v10149
      %v10166 = vadd.f32 %v10070, %v10150
      %v10167 = vadd.f32 %v10071, %v10151
      %10168 = vset.pattern.permute.xlu0 31
      %10169 = vperm.xlu0 %10168, %v731
      %v10170 = vpop.permute.xlu0 %10169
      %10172 = vset.pattern.permute.xlu0 31
      %10173 = vperm.xlu0 %10172, %v734
      %v10174 = vpop.permute.xlu0 %10173
      %10176 = vset.pattern.permute.xlu0 31
      %10177 = vperm.xlu0 %10176, %v739
      %v10178 = vpop.permute.xlu0 %10177
      %10180 = vset.pattern.permute.xlu0 31
      %10181 = vperm.xlu0 %10180, %v742
      %v10182 = vpop.permute.xlu0 %10181
      %10184 = vset.pattern.permute.xlu0 31
      %10185 = vperm.xlu0 %10184, %v747
      %v10186 = vpop.permute.xlu0 %10185
      %10188 = vset.pattern.permute.xlu0 31
      %10189 = vperm.xlu0 %10188, %v750
      %v10190 = vpop.permute.xlu0 %10189
      %10192 = vset.pattern.permute.xlu0 31
      %10193 = vperm.xlu0 %10192, %v755
      %v10194 = vpop.permute.xlu0 %10193
      %10196 = vset.pattern.permute.xlu0 31
      %10197 = vperm.xlu0 %10196, %v758
      %v10198 = vpop.permute.xlu0 %10197
      %10200 = vset.pattern.permute.xlu0 31
      %10201 = vperm.xlu0 %10200, %v763
      %v10202 = vpop.permute.xlu0 %10201
      %10204 = vset.pattern.permute.xlu0 31
      %10205 = vperm.xlu0 %10204, %v766
      %v10206 = vpop.permute.xlu0 %10205
      %10208 = vset.pattern.permute.xlu0 31
      %10209 = vperm.xlu0 %10208, %v771
      %v10210 = vpop.permute.xlu0 %10209
      %10212 = vset.pattern.permute.xlu0 31
      %10213 = vperm.xlu0 %10212, %v774
      %v10214 = vpop.permute.xlu0 %10213
      %10216 = vset.pattern.permute.xlu0 31
      %10217 = vperm.xlu0 %10216, %v779
      %v10218 = vpop.permute.xlu0 %10217
      %10220 = vset.pattern.permute.xlu0 31
      %10221 = vperm.xlu0 %10220, %v782
      %v10222 = vpop.permute.xlu0 %10221
      %10224 = vset.pattern.permute.xlu0 31
      %10225 = vperm.xlu0 %10224, %v787
      %v10226 = vpop.permute.xlu0 %10225
      %10228 = vset.pattern.permute.xlu0 31
      %10229 = vperm.xlu0 %10228, %v790
      %v10230 = vpop.permute.xlu0 %10229
      %v10232 = vsel %vm1033, %v10170, 0.0
      %v10233 = vsel %vm1034, %v10174, 0.0
      %v10234 = vsel %vm1035, %v10178, 0.0
      %v10235 = vsel %vm1036, %v10182, 0.0
      %v10236 = vsel %vm1037, %v10186, 0.0
      %v10237 = vsel %vm1038, %v10190, 0.0
      %v10238 = vsel %vm1039, %v10194, 0.0
      %v10239 = vsel %vm1040, %v10198, 0.0
      %v10240 = vsel %vm1041, %v10202, 0.0
      %v10241 = vsel %vm1042, %v10206, 0.0
      %v10242 = vsel %vm1043, %v10210, 0.0
      %v10243 = vsel %vm1044, %v10214, 0.0
      %v10244 = vsel %vm1045, %v10218, 0.0
      %v10245 = vsel %vm1046, %v10222, 0.0
      %v10246 = vsel %vm1047, %v10226, 0.0
      %v10247 = vsel %vm1048, %v10230, 0.0
      %v10248 = vadd.f32 %v10152, %v10232
      %v10249 = vadd.f32 %v10153, %v10233
      %v10250 = vadd.f32 %v10154, %v10234
      %v10251 = vadd.f32 %v10155, %v10235
      %v10252 = vadd.f32 %v10156, %v10236
      %v10253 = vadd.f32 %v10157, %v10237
      %v10254 = vadd.f32 %v10158, %v10238
      %v10255 = vadd.f32 %v10159, %v10239
      %v10256 = vadd.f32 %v10160, %v10240
      %v10257 = vadd.f32 %v10161, %v10241
      %v10258 = vadd.f32 %v10162, %v10242
      %v10259 = vadd.f32 %v10163, %v10243
      %v10260 = vadd.f32 %v10164, %v10244
      %v10261 = vadd.f32 %v10165, %v10245
      %v10262 = vadd.f32 %v10166, %v10246
      %v10263 = vadd.f32 %v10167, %v10247
      %v10265 = vsel %vm2585, %v10248, 0
      %v10268 = vsel %vm2585, %v10249, 0
      %v10271 = vsel %vm2585, %v10250, 0
      %v10274 = vsel %vm2585, %v10251, 0
      %v10277 = vsel %vm2585, %v10252, 0
      %v10280 = vsel %vm2585, %v10253, 0
      %v10283 = vsel %vm2585, %v10254, 0
      %v10286 = vsel %vm2585, %v10255, 0
      %v10289 = vsel %vm2585, %v10256, 0
      %v10292 = vsel %vm2585, %v10257, 0
      %v10295 = vsel %vm2585, %v10258, 0
      %v10298 = vsel %vm2585, %v10259, 0
      %v10301 = vsel %vm2585, %v10260, 0
      %v10304 = vsel %vm2585, %v10261, 0
      %v10307 = vsel %vm2585, %v10262, 0
      %v10310 = vsel %vm2585, %v10263, 0
      %10312 = vmatprep.subr.mxu0 0.0
      %10313 = vmatpush1.msra.mxu0 0.0
      %10314 = vmatprep.subr.mxu0 0.0
      %10315 = vmatpush1.msra.mxu0 0.0
      %10316 = vmatprep.subr.mxu0 0.0
      %10317 = vmatpush1.msra.mxu0 0.0
      %10318 = vmatprep.subr.mxu0 0.0
      %10319 = vmatpush1.msra.mxu0 0.0
      %10320 = vmatprep.subr.mxu0 0.0
      %10321 = vmatpush1.msra.mxu0 0.0
      %10322 = vmatprep.subr.mxu0 0.0
      %10323 = vmatpush1.msra.mxu0 0.0
      %10324 = vmatprep.subr.mxu0 0.0
      %10325 = vmatpush1.msra.mxu0 0.0
      %10326 = vmatprep.subr.mxu0 0.0
      %10327 = vmatpush1.msra.mxu0 0.0
      %10328 = vmatprep.subr.mxu0 0.0
      %10329 = vmatpush1.msra.mxu0 0.0
      %10330 = vmatprep.subr.mxu0 0.0
      %10331 = vmatpush1.msra.mxu0 0.0
      %10332 = vmatprep.subr.mxu0 0.0
      %10333 = vmatpush1.msra.mxu0 0.0
      %10334 = vmatprep.subr.mxu0 0.0
      %10335 = vmatpush1.msra.mxu0 0.0
      %10336 = vmatprep.subr.mxu0 0.0
      %10337 = vmatpush1.msra.mxu0 0.0
      %10338 = vmatprep.subr.mxu0 0.0
      %10339 = vmatpush1.msra.mxu0 0.0
      %10340 = vmatprep.subr.mxu0 0.0
      %10341 = vmatpush1.msra.mxu0 0.0
      %10342 = vmatprep.subr.mxu0 0.0
      %10343 = vmatpush1.msra.mxu0 %v368
      %10344 = vmatprep.subr.mxu0 0.0
      %10345 = vmatpush2.msra.mxu0 0.0
      %10346 = vmatprep.subr.mxu0 0.0
      %10347 = vmatpush2.msra.mxu0 0.0
      %10348 = vmatprep.subr.mxu0 0.0
      %10349 = vmatpush2.msra.mxu0 0.0
      %10350 = vmatprep.subr.mxu0 0.0
      %10351 = vmatpush2.msra.mxu0 0.0
      %10352 = vmatprep.subr.mxu0 0.0
      %10353 = vmatpush2.msra.mxu0 0.0
      %10354 = vmatprep.subr.mxu0 0.0
      %10355 = vmatpush2.msra.mxu0 0.0
      %10356 = vmatprep.subr.mxu0 0.0
      %10357 = vmatpush2.msra.mxu0 0.0
      %10358 = vmatprep.subr.mxu0 0.0
      %10359 = vmatpush2.msra.mxu0 0.0
      %10360 = vmatprep.subr.mxu0 0.0
      %10361 = vmatpush2.msra.mxu0 0.0
      %10362 = vmatprep.subr.mxu0 0.0
      %10363 = vmatpush2.msra.mxu0 0.0
      %10364 = vmatprep.subr.mxu0 0.0
      %10365 = vmatpush2.msra.mxu0 0.0
      %10366 = vmatprep.subr.mxu0 0.0
      %10367 = vmatpush2.msra.mxu0 0.0
      %10368 = vmatprep.subr.mxu0 0.0
      %10369 = vmatpush2.msra.mxu0 0.0
      %10370 = vmatprep.subr.mxu0 0.0
      %10371 = vmatpush2.msra.mxu0 0.0
      %10372 = vmatprep.subr.mxu0 0.0
      %10373 = vmatpush2.msra.mxu0 0.0
      %10374 = vmatprep.subr.mxu0 0.0
      %10375 = vmatpush2.msra.mxu0 0.0
      %10376 = vmatprep.mubr.f32.mxu0 0.0
      %10377 = vmatmul.mubr.f32.gmra.mxu0 %v10265
      %v10378 = vpop.f32.mrf.mxu0
      %v10379 = vadd.f32 0.0, %v10378
      %v10380 = vpop.f32.mrf.mxu0
      %10381 = vmatprep.mubr.f32.mxu0 0.0
      %10382 = vmatmul.mubr.f32.gmra.mxu0 %v10268
      %v10383 = vpop.f32.mrf.mxu0
      %v10384 = vadd.f32 0.0, %v10383
      %v10385 = vpop.f32.mrf.mxu0
      %10386 = vmatprep.mubr.f32.mxu0 0.0
      %10387 = vmatmul.mubr.f32.gmra.mxu0 %v10271
      %v10388 = vpop.f32.mrf.mxu0
      %v10389 = vadd.f32 0.0, %v10388
      %v10390 = vpop.f32.mrf.mxu0
      %10391 = vmatprep.mubr.f32.mxu0 0.0
      %10392 = vmatmul.mubr.f32.gmra.mxu0 %v10274
      %v10393 = vpop.f32.mrf.mxu0
      %v10394 = vadd.f32 0.0, %v10393
      %v10395 = vpop.f32.mrf.mxu0
      %10396 = vmatprep.mubr.f32.mxu0 0.0
      %10397 = vmatmul.mubr.f32.gmra.mxu0 %v10277
      %v10398 = vpop.f32.mrf.mxu0
      %v10399 = vadd.f32 0.0, %v10398
      %v10400 = vpop.f32.mrf.mxu0
      %10401 = vmatprep.mubr.f32.mxu0 0.0
      %10402 = vmatmul.mubr.f32.gmra.mxu0 %v10280
      %v10403 = vpop.f32.mrf.mxu0
      %v10404 = vadd.f32 0.0, %v10403
      %v10405 = vpop.f32.mrf.mxu0
      %10406 = vmatprep.mubr.f32.mxu0 0.0
      %10407 = vmatmul.mubr.f32.gmra.mxu0 %v10283
      %v10408 = vpop.f32.mrf.mxu0
      %v10409 = vadd.f32 0.0, %v10408
      %v10410 = vpop.f32.mrf.mxu0
      %10411 = vmatprep.mubr.f32.mxu0 0.0
      %10412 = vmatmul.mubr.f32.gmra.mxu0 %v10286
      %v10413 = vpop.f32.mrf.mxu0
      %v10414 = vadd.f32 0.0, %v10413
      %v10415 = vpop.f32.mrf.mxu0
      %10416 = vmatprep.mubr.f32.mxu0 0.0
      %10417 = vmatmul.mubr.f32.gmra.mxu0 %v10289
      %v10418 = vpop.f32.mrf.mxu0
      %v10419 = vadd.f32 0.0, %v10418
      %v10420 = vpop.f32.mrf.mxu0
      %10421 = vmatprep.mubr.f32.mxu0 0.0
      %10422 = vmatmul.mubr.f32.gmra.mxu0 %v10292
      %v10423 = vpop.f32.mrf.mxu0
      %v10424 = vadd.f32 0.0, %v10423
      %v10425 = vpop.f32.mrf.mxu0
      %10426 = vmatprep.mubr.f32.mxu0 0.0
      %10427 = vmatmul.mubr.f32.gmra.mxu0 %v10295
      %v10428 = vpop.f32.mrf.mxu0
      %v10429 = vadd.f32 0.0, %v10428
      %v10430 = vpop.f32.mrf.mxu0
      %10431 = vmatprep.mubr.f32.mxu0 0.0
      %10432 = vmatmul.mubr.f32.gmra.mxu0 %v10298
      %v10433 = vpop.f32.mrf.mxu0
      %v10434 = vadd.f32 0.0, %v10433
      %v10435 = vpop.f32.mrf.mxu0
      %10436 = vmatprep.mubr.f32.mxu0 0.0
      %10437 = vmatmul.mubr.f32.gmra.mxu0 %v10301
      %v10438 = vpop.f32.mrf.mxu0
      %v10439 = vadd.f32 0.0, %v10438
      %v10440 = vpop.f32.mrf.mxu0
      %10441 = vmatprep.mubr.f32.mxu0 0.0
      %10442 = vmatmul.mubr.f32.gmra.mxu0 %v10304
      %v10443 = vpop.f32.mrf.mxu0
      %v10444 = vadd.f32 0.0, %v10443
      %v10445 = vpop.f32.mrf.mxu0
      %10446 = vmatprep.mubr.f32.mxu0 0.0
      %10447 = vmatmul.mubr.f32.gmra.mxu0 %v10307
      %v10448 = vpop.f32.mrf.mxu0
      %v10449 = vadd.f32 0.0, %v10448
      %v10450 = vpop.f32.mrf.mxu0
      %10451 = vmatprep.mubr.f32.mxu0 0.0
      %10452 = vmatmul.mubr.f32.gmra.mxu0 %v10310
      %v10453 = vpop.f32.mrf.mxu0
      %v10454 = vadd.f32 0.0, %v10453
      %v10455 = vpop.f32.mrf.mxu0
      %10456 = vdwg.mxu0
      %v10458 = vsel %vm2585, %v9496, 0
      %v10461 = vsel %vm2585, %v9497, 0
      %v10464 = vsel %vm2585, %v9498, 0
      %v10467 = vsel %vm2585, %v9499, 0
      %v10470 = vsel %vm2585, %v9500, 0
      %v10473 = vsel %vm2585, %v9501, 0
      %v10476 = vsel %vm2585, %v9502, 0
      %v10479 = vsel %vm2585, %v9503, 0
      %v10482 = vsel %vm2585, %v9504, 0
      %v10485 = vsel %vm2585, %v9505, 0
      %v10488 = vsel %vm2585, %v9506, 0
      %v10491 = vsel %vm2585, %v9507, 0
      %v10494 = vsel %vm2585, %v9508, 0
      %v10497 = vsel %vm2585, %v9509, 0
      %v10500 = vsel %vm2585, %v9510, 0
      %v10503 = vsel %vm2585, %v9511, 0
      %10505 = vmatprep.subr.mxu0 0.0
      %10506 = vmatpush1.msra.mxu0 0.0
      %10507 = vmatprep.subr.mxu0 0.0
      %10508 = vmatpush1.msra.mxu0 0.0
      %10509 = vmatprep.subr.mxu0 0.0
      %10510 = vmatpush1.msra.mxu0 0.0
      %10511 = vmatprep.subr.mxu0 0.0
      %10512 = vmatpush1.msra.mxu0 0.0
      %10513 = vmatprep.subr.mxu0 0.0
      %10514 = vmatpush1.msra.mxu0 0.0
      %10515 = vmatprep.subr.mxu0 0.0
      %10516 = vmatpush1.msra.mxu0 0.0
      %10517 = vmatprep.subr.mxu0 0.0
      %10518 = vmatpush1.msra.mxu0 0.0
      %10519 = vmatprep.subr.mxu0 0.0
      %10520 = vmatpush1.msra.mxu0 0.0
      %10521 = vmatprep.subr.mxu0 0.0
      %10522 = vmatpush1.msra.mxu0 0.0
      %10523 = vmatprep.subr.mxu0 0.0
      %10524 = vmatpush1.msra.mxu0 0.0
      %10525 = vmatprep.subr.mxu0 0.0
      %10526 = vmatpush1.msra.mxu0 0.0
      %10527 = vmatprep.subr.mxu0 0.0
      %10528 = vmatpush1.msra.mxu0 0.0
      %10529 = vmatprep.subr.mxu0 0.0
      %10530 = vmatpush1.msra.mxu0 0.0
      %10531 = vmatprep.subr.mxu0 0.0
      %10532 = vmatpush1.msra.mxu0 0.0
      %10533 = vmatprep.subr.mxu0 0.0
      %10534 = vmatpush1.msra.mxu0 0.0
      %10535 = vmatprep.subr.mxu0 0.0
      %10536 = vmatpush1.msra.mxu0 %v367
      %10537 = vmatprep.subr.mxu0 0.0
      %10538 = vmatpush2.msra.mxu0 0.0
      %10539 = vmatprep.subr.mxu0 0.0
      %10540 = vmatpush2.msra.mxu0 0.0
      %10541 = vmatprep.subr.mxu0 0.0
      %10542 = vmatpush2.msra.mxu0 0.0
      %10543 = vmatprep.subr.mxu0 0.0
      %10544 = vmatpush2.msra.mxu0 0.0
      %10545 = vmatprep.subr.mxu0 0.0
      %10546 = vmatpush2.msra.mxu0 0.0
      %10547 = vmatprep.subr.mxu0 0.0
      %10548 = vmatpush2.msra.mxu0 0.0
      %10549 = vmatprep.subr.mxu0 0.0
      %10550 = vmatpush2.msra.mxu0 0.0
      %10551 = vmatprep.subr.mxu0 0.0
      %10552 = vmatpush2.msra.mxu0 0.0
      %10553 = vmatprep.subr.mxu0 0.0
      %10554 = vmatpush2.msra.mxu0 0.0
      %10555 = vmatprep.subr.mxu0 0.0
      %10556 = vmatpush2.msra.mxu0 0.0
      %10557 = vmatprep.subr.mxu0 0.0
      %10558 = vmatpush2.msra.mxu0 0.0
      %10559 = vmatprep.subr.mxu0 0.0
      %10560 = vmatpush2.msra.mxu0 0.0
      %10561 = vmatprep.subr.mxu0 0.0
      %10562 = vmatpush2.msra.mxu0 0.0
      %10563 = vmatprep.subr.mxu0 0.0
      %10564 = vmatpush2.msra.mxu0 0.0
      %10565 = vmatprep.subr.mxu0 0.0
      %10566 = vmatpush2.msra.mxu0 0.0
      %10567 = vmatprep.subr.mxu0 0.0
      %10568 = vmatpush2.msra.mxu0 0.0
      %10569 = vmatprep.mubr.f32.mxu0 0.0
      %10570 = vmatmul.mubr.f32.gmra.mxu0 %v10458
      %v10571 = vpop.f32.mrf.mxu0
      %v10572 = vadd.f32 %v10379, %v10571
      %v10573 = vpop.f32.mrf.mxu0
      %10574 = vmatprep.mubr.f32.mxu0 0.0
      %10575 = vmatmul.mubr.f32.gmra.mxu0 %v10461
      %v10576 = vpop.f32.mrf.mxu0
      %v10577 = vadd.f32 %v10384, %v10576
      %v10578 = vpop.f32.mrf.mxu0
      %10579 = vmatprep.mubr.f32.mxu0 0.0
      %10580 = vmatmul.mubr.f32.gmra.mxu0 %v10464
      %v10581 = vpop.f32.mrf.mxu0
      %v10582 = vadd.f32 %v10389, %v10581
      %v10583 = vpop.f32.mrf.mxu0
      %10584 = vmatprep.mubr.f32.mxu0 0.0
      %10585 = vmatmul.mubr.f32.gmra.mxu0 %v10467
      %v10586 = vpop.f32.mrf.mxu0
      %v10587 = vadd.f32 %v10394, %v10586
      %v10588 = vpop.f32.mrf.mxu0
      %10589 = vmatprep.mubr.f32.mxu0 0.0
      %10590 = vmatmul.mubr.f32.gmra.mxu0 %v10470
      %v10591 = vpop.f32.mrf.mxu0
      %v10592 = vadd.f32 %v10399, %v10591
      %v10593 = vpop.f32.mrf.mxu0
      %10594 = vmatprep.mubr.f32.mxu0 0.0
      %10595 = vmatmul.mubr.f32.gmra.mxu0 %v10473
      %v10596 = vpop.f32.mrf.mxu0
      %v10597 = vadd.f32 %v10404, %v10596
      %v10598 = vpop.f32.mrf.mxu0
      %10599 = vmatprep.mubr.f32.mxu0 0.0
      %10600 = vmatmul.mubr.f32.gmra.mxu0 %v10476
      %v10601 = vpop.f32.mrf.mxu0
      %v10602 = vadd.f32 %v10409, %v10601
      %v10603 = vpop.f32.mrf.mxu0
      %10604 = vmatprep.mubr.f32.mxu0 0.0
      %10605 = vmatmul.mubr.f32.gmra.mxu0 %v10479
      %v10606 = vpop.f32.mrf.mxu0
      %v10607 = vadd.f32 %v10414, %v10606
      %v10608 = vpop.f32.mrf.mxu0
      %10609 = vmatprep.mubr.f32.mxu0 0.0
      %10610 = vmatmul.mubr.f32.gmra.mxu0 %v10482
      %v10611 = vpop.f32.mrf.mxu0
      %v10612 = vadd.f32 %v10419, %v10611
      %v10613 = vpop.f32.mrf.mxu0
      %10614 = vmatprep.mubr.f32.mxu0 0.0
      %10615 = vmatmul.mubr.f32.gmra.mxu0 %v10485
      %v10616 = vpop.f32.mrf.mxu0
      %v10617 = vadd.f32 %v10424, %v10616
      %v10618 = vpop.f32.mrf.mxu0
      %10619 = vmatprep.mubr.f32.mxu0 0.0
      %10620 = vmatmul.mubr.f32.gmra.mxu0 %v10488
      %v10621 = vpop.f32.mrf.mxu0
      %v10622 = vadd.f32 %v10429, %v10621
      %v10623 = vpop.f32.mrf.mxu0
      %10624 = vmatprep.mubr.f32.mxu0 0.0
      %10625 = vmatmul.mubr.f32.gmra.mxu0 %v10491
      %v10626 = vpop.f32.mrf.mxu0
      %v10627 = vadd.f32 %v10434, %v10626
      %v10628 = vpop.f32.mrf.mxu0
      %10629 = vmatprep.mubr.f32.mxu0 0.0
      %10630 = vmatmul.mubr.f32.gmra.mxu0 %v10494
      %v10631 = vpop.f32.mrf.mxu0
      %v10632 = vadd.f32 %v10439, %v10631
      %v10633 = vpop.f32.mrf.mxu0
      %10634 = vmatprep.mubr.f32.mxu0 0.0
      %10635 = vmatmul.mubr.f32.gmra.mxu0 %v10497
      %v10636 = vpop.f32.mrf.mxu0
      %v10637 = vadd.f32 %v10444, %v10636
      %v10638 = vpop.f32.mrf.mxu0
      %10639 = vmatprep.mubr.f32.mxu0 0.0
      %10640 = vmatmul.mubr.f32.gmra.mxu0 %v10500
      %v10641 = vpop.f32.mrf.mxu0
      %v10642 = vadd.f32 %v10449, %v10641
      %v10643 = vpop.f32.mrf.mxu0
      %10644 = vmatprep.mubr.f32.mxu0 0.0
      %10645 = vmatmul.mubr.f32.gmra.mxu0 %v10503
      %v10646 = vpop.f32.mrf.mxu0
      %v10647 = vadd.f32 %v10454, %v10646
      %v10648 = vpop.f32.mrf.mxu0
      %10649 = vdwg.mxu0
      %10650 = vrot.lane.b32.xlu0 %v543, 104
      %v10651 = vpop.permute.xlu0 %10650
      %10652 = vrot.lane.b32.xlu0 %v544, 104
      %v10653 = vpop.permute.xlu0 %10652
      %10654 = vrot.lane.b32.xlu0 %v545, 104
      %v10655 = vpop.permute.xlu0 %10654
      %10656 = vrot.lane.b32.xlu0 %v546, 104
      %v10657 = vpop.permute.xlu0 %10656
      %10658 = vrot.lane.b32.xlu0 %v543, 72
      %v10659 = vpop.permute.xlu0 %10658
      %10660 = vrot.lane.b32.xlu0 %v544, 72
      %v10661 = vpop.permute.xlu0 %10660
      %10662 = vrot.lane.b32.xlu0 %v545, 72
      %v10663 = vpop.permute.xlu0 %10662
      %10664 = vrot.lane.b32.xlu0 %v546, 72
      %v10665 = vpop.permute.xlu0 %10664
      %v10667 = vsel %vm2585, %v10651, 0
      %v10670 = vsel %vm2585, %v10653, 0
      %v10673 = vsel %vm2585, %v10655, 0
      %v10676 = vsel %vm2585, %v10657, 0
      %v10679 = vsel %vm2585, %v10659, 0
      %v10682 = vsel %vm2585, %v10661, 0
      %v10685 = vsel %vm2585, %v10663, 0
      %v10688 = vsel %vm2585, %v10665, 0
      %10690 = vmatprep.subr.bf16.mxu0 0
      %10691 = vmatpush1.bf16.xpose.msra.mxu0 0
      %10692 = vmatprep.subr.bf16.mxu0 0
      %10693 = vmatpush1.bf16.xpose.msra.mxu0 0
      %10694 = vmatprep.subr.bf16.mxu0 0
      %10695 = vmatpush1.bf16.xpose.msra.mxu0 0
      %10696 = vmatprep.subr.bf16.mxu0 0
      %10697 = vmatpush1.bf16.xpose.msra.mxu0 0
      %10698 = vmatprep.subr.bf16.mxu0 0
      %10699 = vmatpush1.bf16.xpose.msra.mxu0 %v10688
      %10700 = vmatprep.subr.bf16.mxu0 0
      %10701 = vmatpush1.bf16.xpose.msra.mxu0 %v10685
      %10702 = vmatprep.subr.bf16.mxu0 0
      %10703 = vmatpush1.bf16.xpose.msra.mxu0 %v10682
      %10704 = vmatprep.subr.bf16.mxu0 0
      %10705 = vmatpush1.bf16.xpose.msra.mxu0 %v10679
      %10706 = vmatprep.subr.bf16.mxu0 0
      %10707 = vmatpush2.bf16.xpose.msra.mxu0 0
      %10708 = vmatprep.subr.bf16.mxu0 0
      %10709 = vmatpush2.bf16.xpose.msra.mxu0 0
      %10710 = vmatprep.subr.bf16.mxu0 0
      %10711 = vmatpush2.bf16.xpose.msra.mxu0 0
      %10712 = vmatprep.subr.bf16.mxu0 0
      %10713 = vmatpush2.bf16.xpose.msra.mxu0 0
      %10714 = vmatprep.subr.bf16.mxu0 0
      %10715 = vmatpush2.bf16.xpose.msra.mxu0 0
      %10716 = vmatprep.subr.bf16.mxu0 0
      %10717 = vmatpush2.bf16.xpose.msra.mxu0 0
      %10718 = vmatprep.subr.bf16.mxu0 0
      %10719 = vmatpush2.bf16.xpose.msra.mxu0 0
      %10720 = vmatprep.subr.bf16.mxu0 0
      %10721 = vmatpush2.bf16.xpose.msra.mxu0 0
      %10722 = vmatprep.mubr.bf16.mxu0 0
      %10723 = vmatmul.mubr.bf16.gmra.mxu0 %v10667
      %v10724 = vpop.f32.mrf.mxu0
      %v10725 = vadd.f32 %v10572, %v10724
      %v10726 = vpop.f32.mrf.mxu0
      %v10727 = vpop.f32.mrf.mxu0
      %v10728 = vadd.f32 %v10577, %v10727
      %v10729 = vpop.f32.mrf.mxu0
      %10730 = vmatprep.mubr.bf16.mxu0 0
      %10731 = vmatmul.mubr.bf16.gmra.mxu0 %v10670
      %v10732 = vpop.f32.mrf.mxu0
      %v10733 = vadd.f32 %v10582, %v10732
      %v10734 = vpop.f32.mrf.mxu0
      %v10735 = vpop.f32.mrf.mxu0
      %v10736 = vadd.f32 %v10587, %v10735
      %v10737 = vpop.f32.mrf.mxu0
      %10738 = vmatprep.mubr.bf16.mxu0 0
      %10739 = vmatmul.mubr.bf16.gmra.mxu0 %v10673
      %v10740 = vpop.f32.mrf.mxu0
      %v10741 = vadd.f32 %v10592, %v10740
      %v10742 = vpop.f32.mrf.mxu0
      %v10743 = vpop.f32.mrf.mxu0
      %v10744 = vadd.f32 %v10597, %v10743
      %v10745 = vpop.f32.mrf.mxu0
      %10746 = vmatprep.mubr.bf16.mxu0 0
      %10747 = vmatmul.mubr.bf16.gmra.mxu0 %v10676
      %v10748 = vpop.f32.mrf.mxu0
      %v10749 = vadd.f32 %v10602, %v10748
      %v10750 = vpop.f32.mrf.mxu0
      %v10751 = vpop.f32.mrf.mxu0
      %v10752 = vadd.f32 %v10607, %v10751
      %v10753 = vpop.f32.mrf.mxu0
      %10754 = vdwg.mxu0
      %v10755 = vsel %vm3069, %v10725, -inf
      %10756 = vmax.xlane.f32.xlu0 %v10755
      %v10757 = vpop.xlane.xlu0 %10756
      %v10758 = vsel %vm3069, %v10728, -inf
      %10759 = vmax.xlane.f32.xlu0 %v10758
      %v10760 = vpop.xlane.xlu0 %10759
      %v10761 = vsel %vm3069, %v10733, -inf
      %10762 = vmax.xlane.f32.xlu0 %v10761
      %v10763 = vpop.xlane.xlu0 %10762
      %v10764 = vsel %vm3069, %v10736, -inf
      %10765 = vmax.xlane.f32.xlu0 %v10764
      %v10766 = vpop.xlane.xlu0 %10765
      %v10767 = vsel %vm3069, %v10741, -inf
      %10768 = vmax.xlane.f32.xlu0 %v10767
      %v10769 = vpop.xlane.xlu0 %10768
      %v10770 = vsel %vm3069, %v10744, -inf
      %10771 = vmax.xlane.f32.xlu0 %v10770
      %v10772 = vpop.xlane.xlu0 %10771
      %v10773 = vsel %vm3069, %v10749, -inf
      %10774 = vmax.xlane.f32.xlu0 %v10773
      %v10775 = vpop.xlane.xlu0 %10774
      %v10776 = vsel %vm3069, %v10752, -inf
      %10777 = vmax.xlane.f32.xlu0 %v10776
      %v10778 = vpop.xlane.xlu0 %10777
      %v10779 = vsub.f32 %v10725, %v10757
      %v10780 = vsub.f32 %v10728, %v10760
      %v10781 = vsub.f32 %v10733, %v10763
      %v10782 = vsub.f32 %v10736, %v10766
      %v10783 = vsub.f32 %v10741, %v10769
      %v10784 = vsub.f32 %v10744, %v10772
      %v10785 = vsub.f32 %v10749, %v10775
      %v10786 = vsub.f32 %v10752, %v10778
      %v10787 = vmul.f32 %v10779, 1.442695
      %v10788 = vpow.pop %v10787
      %v10789 = vmul.f32 %v10780, 1.442695
      %v10790 = vpow.pop %v10789
      %v10791 = vmul.f32 %v10781, 1.442695
      %v10792 = vpow.pop %v10791
      %v10793 = vmul.f32 %v10782, 1.442695
      %v10794 = vpow.pop %v10793
      %v10795 = vmul.f32 %v10783, 1.442695
      %v10796 = vpow.pop %v10795
      %v10797 = vmul.f32 %v10784, 1.442695
      %v10798 = vpow.pop %v10797
      %v10799 = vmul.f32 %v10785, 1.442695
      %v10800 = vpow.pop %v10799
      %v10801 = vmul.f32 %v10786, 1.442695
      %v10802 = vpow.pop %v10801
      %v10803 = vsel %vm3069, %v10788, 0.0
      %10804 = vadd.xlane.f32.xlu0 %v10803
      %v10805 = vpop.xlane.xlu0 %10804
      %v10806 = vsel %vm3069, %v10790, 0.0
      %10807 = vadd.xlane.f32.xlu0 %v10806
      %v10808 = vpop.xlane.xlu0 %10807
      %v10809 = vsel %vm3069, %v10792, 0.0
      %10810 = vadd.xlane.f32.xlu0 %v10809
      %v10811 = vpop.xlane.xlu0 %10810
      %v10812 = vsel %vm3069, %v10794, 0.0
      %10813 = vadd.xlane.f32.xlu0 %v10812
      %v10814 = vpop.xlane.xlu0 %10813
      %v10815 = vsel %vm3069, %v10796, 0.0
      %10816 = vadd.xlane.f32.xlu0 %v10815
      %v10817 = vpop.xlane.xlu0 %10816
      %v10818 = vsel %vm3069, %v10798, 0.0
      %10819 = vadd.xlane.f32.xlu0 %v10818
      %v10820 = vpop.xlane.xlu0 %10819
      %v10821 = vsel %vm3069, %v10800, 0.0
      %10822 = vadd.xlane.f32.xlu0 %v10821
      %v10823 = vpop.xlane.xlu0 %10822
      %v10824 = vsel %vm3069, %v10802, 0.0
      %10825 = vadd.xlane.f32.xlu0 %v10824
      %v10826 = vpop.xlane.xlu0 %10825
      %v10827 = vrcp.pop %v10805
      %v10828 = vrcp.pop %v10808
      %v10829 = vrcp.pop %v10811
      %v10830 = vrcp.pop %v10814
      %v10831 = vrcp.pop %v10817
      %v10832 = vrcp.pop %v10820
      %v10833 = vrcp.pop %v10823
      %v10834 = vrcp.pop %v10826
      %v10835 = vmul.f32 %v10788, %v10827
      %v10836 = vmul.f32 %v10790, %v10828
      %v10837 = vmul.f32 %v10792, %v10829
      %v10838 = vmul.f32 %v10794, %v10830
      %v10839 = vmul.f32 %v10796, %v10831
      %v10840 = vmul.f32 %v10798, %v10832
      %v10841 = vmul.f32 %v10800, %v10833
      %v10842 = vmul.f32 %v10802, %v10834
      %v10843 = vpack.c.bf16 %v10836, %v10835
      %v10844 = vpack.c.bf16 %v10838, %v10837
      %v10845 = vpack.c.bf16 %v10840, %v10839
      %v10846 = vpack.c.bf16 %v10842, %v10841
      %10847 = vrot.lane.b32.xlu0 %v543, 40
      %v10848 = vpop.permute.xlu0 %10847
      %10849 = vrot.lane.b32.xlu0 %v544, 40
      %v10850 = vpop.permute.xlu0 %10849
      %10851 = vrot.lane.b32.xlu0 %v545, 40
      %v10852 = vpop.permute.xlu0 %10851
      %10853 = vrot.lane.b32.xlu0 %v546, 40
      %v10854 = vpop.permute.xlu0 %10853
      %v10860 = vsel %vm3069, %v10843, 0
      %v10863 = vsel %vm3069, %v10844, 0
      %v10866 = vsel %vm3069, %v10845, 0
      %v10869 = vsel %vm3069, %v10846, 0
      %10871 = vmatprep.subr.bf16.mxu0 0
      %10872 = vmatpush1.bf16.msra.mxu0 0
      %10873 = vmatprep.subr.bf16.mxu0 0
      %10874 = vmatpush1.bf16.msra.mxu0 0
      %10875 = vmatprep.subr.bf16.mxu0 0
      %10876 = vmatpush1.bf16.msra.mxu0 0
      %10877 = vmatprep.subr.bf16.mxu0 0
      %10878 = vmatpush1.bf16.msra.mxu0 0
      %10879 = vmatprep.subr.bf16.mxu0 0
      %10880 = vmatpush1.bf16.msra.mxu0 %v10854
      %10881 = vmatprep.subr.bf16.mxu0 0
      %10882 = vmatpush1.bf16.msra.mxu0 %v10852
      %10883 = vmatprep.subr.bf16.mxu0 0
      %10884 = vmatpush1.bf16.msra.mxu0 %v10850
      %10885 = vmatprep.subr.bf16.mxu0 0
      %10886 = vmatpush1.bf16.msra.mxu0 %v10848
      %10887 = vmatprep.subr.bf16.mxu0 0
      %10888 = vmatpush2.bf16.msra.mxu0 0
      %10889 = vmatprep.subr.bf16.mxu0 0
      %10890 = vmatpush2.bf16.msra.mxu0 0
      %10891 = vmatprep.subr.bf16.mxu0 0
      %10892 = vmatpush2.bf16.msra.mxu0 0
      %10893 = vmatprep.subr.bf16.mxu0 0
      %10894 = vmatpush2.bf16.msra.mxu0 0
      %10895 = vmatprep.subr.bf16.mxu0 0
      %10896 = vmatpush2.bf16.msra.mxu0 0
      %10897 = vmatprep.subr.bf16.mxu0 0
      %10898 = vmatpush2.bf16.msra.mxu0 0
      %10899 = vmatprep.subr.bf16.mxu0 0
      %10900 = vmatpush2.bf16.msra.mxu0 0
      %10901 = vmatprep.subr.bf16.mxu0 0
      %10902 = vmatpush2.bf16.msra.mxu0 0
      %10903 = vmatprep.mubr.bf16.mxu0 0
      %10904 = vmatmul.mubr.bf16.gmra.mxu0 %v10860
      %v10905 = vpop.f32.mrf.mxu0
      %v10906 = vadd.f32 0.0, %v10905
      %v10907 = vpop.f32.mrf.mxu0
      %v10908 = vpop.f32.mrf.mxu0
      %v10909 = vadd.f32 0.0, %v10908
      %v10910 = vpop.f32.mrf.mxu0
      %10911 = vmatprep.mubr.bf16.mxu0 0
      %10912 = vmatmul.mubr.bf16.gmra.mxu0 %v10863
      %v10913 = vpop.f32.mrf.mxu0
      %v10914 = vadd.f32 0.0, %v10913
      %v10915 = vpop.f32.mrf.mxu0
      %v10916 = vpop.f32.mrf.mxu0
      %v10917 = vadd.f32 0.0, %v10916
      %v10918 = vpop.f32.mrf.mxu0
      %10919 = vmatprep.mubr.bf16.mxu0 0
      %10920 = vmatmul.mubr.bf16.gmra.mxu0 %v10866
      %v10921 = vpop.f32.mrf.mxu0
      %v10922 = vadd.f32 0.0, %v10921
      %v10923 = vpop.f32.mrf.mxu0
      %v10924 = vpop.f32.mrf.mxu0
      %v10925 = vadd.f32 0.0, %v10924
      %v10926 = vpop.f32.mrf.mxu0
      %10927 = vmatprep.mubr.bf16.mxu0 0
      %10928 = vmatmul.mubr.bf16.gmra.mxu0 %v10869
      %v10929 = vpop.f32.mrf.mxu0
      %v10930 = vadd.f32 0.0, %v10929
      %v10931 = vpop.f32.mrf.mxu0
      %v10932 = vpop.f32.mrf.mxu0
      %v10933 = vadd.f32 0.0, %v10932
      %v10934 = vpop.f32.mrf.mxu0
      %10935 = vdwg.mxu0
      %v10936 = vpack.c.bf16 %v10909, %v10906
      %v10937 = vpack.c.bf16 %v10917, %v10914
      %v10938 = vpack.c.bf16 %v10925, %v10922
      %v10939 = vpack.c.bf16 %v10933, %v10930
      %v10944 = vunpack.c.l.b16 %v10936
      %v10945 = vunpack.c.h.b16 %v10936
      %v10946 = vunpack.c.l.b16 %v10937
      %v10947 = vunpack.c.h.b16 %v10937
      %v10948 = vunpack.c.l.b16 %v10938
      %v10949 = vunpack.c.h.b16 %v10938
      %v10950 = vunpack.c.l.b16 %v10939
      %v10951 = vunpack.c.h.b16 %v10939
      %v10952 = vpack.c.b16 %v10944, %v10944
      %v10953 = vpack.c.b16 %v10945, %v10945
      %v10954 = vpack.c.b16 %v10946, %v10946
      %v10955 = vpack.c.b16 %v10947, %v10947
      %v10956 = vpack.c.b16 %v10948, %v10948
      %v10957 = vpack.c.b16 %v10949, %v10949
      %v10958 = vpack.c.b16 %v10950, %v10950
      %v10959 = vpack.c.b16 %v10951, %v10951
      %10960 = vrot.lane.b32.xlu0 %v10952, 24
      %v10961 = vpop.permute.xlu0 %10960
      %10962 = vrot.lane.b32.xlu0 %v10953, 24
      %v10963 = vpop.permute.xlu0 %10962
      %10964 = vrot.lane.b32.xlu0 %v10954, 24
      %v10965 = vpop.permute.xlu0 %10964
      %10966 = vrot.lane.b32.xlu0 %v10955, 24
      %v10967 = vpop.permute.xlu0 %10966
      %10968 = vrot.lane.b32.xlu0 %v10956, 24
      %v10969 = vpop.permute.xlu0 %10968
      %10970 = vrot.lane.b32.xlu0 %v10957, 24
      %v10971 = vpop.permute.xlu0 %10970
      %10972 = vrot.lane.b32.xlu0 %v10958, 24
      %v10973 = vpop.permute.xlu0 %10972
      %10974 = vrot.lane.b32.xlu0 %v10959, 24
      %v10975 = vpop.permute.xlu0 %10974
      %vm10984 = vcmask 257216
      %10985 = vst.msk [vmem:[%s305] sm:$0xf] %vm10984, %v10961
      %10986 = vst.msk [vmem:[%s305 + $0x4] sm:$0xf] %vm10984, %v10963
      %10987 = vst.msk [vmem:[%s305 + $0x8] sm:$0xf] %vm10984, %v10965
      %10988 = vst.msk [vmem:[%s305 + $0xc] sm:$0xf] %vm10984, %v10967
      %10989 = vst.msk [vmem:[%s305 + $0x10] sm:$0xf] %vm10984, %v10969
      %10990 = vst.msk [vmem:[%s305 + $0x14] sm:$0xf] %vm10984, %v10971
      %10991 = vst.msk [vmem:[%s305 + $0x18] sm:$0xf] %vm10984, %v10973
      %10992 = vst.msk [vmem:[%s305 + $0x1c] sm:$0xf] %vm10984, %v10975
      %10993 = vrot.lane.b32.xlu0 %v547, 104
      %v10994 = vpop.permute.xlu0 %10993
      %10995 = vrot.lane.b32.xlu0 %v548, 104
      %v10996 = vpop.permute.xlu0 %10995
      %10997 = vrot.lane.b32.xlu0 %v549, 104
      %v10998 = vpop.permute.xlu0 %10997
      %10999 = vrot.lane.b32.xlu0 %v550, 104
      %v11000 = vpop.permute.xlu0 %10999
      %11001 = vrot.lane.b32.xlu0 %v547, 72
      %v11002 = vpop.permute.xlu0 %11001
      %11003 = vrot.lane.b32.xlu0 %v548, 72
      %v11004 = vpop.permute.xlu0 %11003
      %11005 = vrot.lane.b32.xlu0 %v549, 72
      %v11006 = vpop.permute.xlu0 %11005
      %11007 = vrot.lane.b32.xlu0 %v550, 72
      %v11008 = vpop.permute.xlu0 %11007
      %v11010 = vsel %vm2585, %v10994, 0
      %v11013 = vsel %vm2585, %v10996, 0
      %v11016 = vsel %vm2585, %v10998, 0
      %v11019 = vsel %vm2585, %v11000, 0
      %v11022 = vsel %vm2585, %v11002, 0
      %v11025 = vsel %vm2585, %v11004, 0
      %v11028 = vsel %vm2585, %v11006, 0
      %v11031 = vsel %vm2585, %v11008, 0
      %11033 = vmatprep.subr.bf16.mxu0 0
      %11034 = vmatpush1.bf16.xpose.msra.mxu0 0
      %11035 = vmatprep.subr.bf16.mxu0 0
      %11036 = vmatpush1.bf16.xpose.msra.mxu0 0
      %11037 = vmatprep.subr.bf16.mxu0 0
      %11038 = vmatpush1.bf16.xpose.msra.mxu0 0
      %11039 = vmatprep.subr.bf16.mxu0 0
      %11040 = vmatpush1.bf16.xpose.msra.mxu0 0
      %11041 = vmatprep.subr.bf16.mxu0 0
      %11042 = vmatpush1.bf16.xpose.msra.mxu0 %v11031
      %11043 = vmatprep.subr.bf16.mxu0 0
      %11044 = vmatpush1.bf16.xpose.msra.mxu0 %v11028
      %11045 = vmatprep.subr.bf16.mxu0 0
      %11046 = vmatpush1.bf16.xpose.msra.mxu0 %v11025
      %11047 = vmatprep.subr.bf16.mxu0 0
      %11048 = vmatpush1.bf16.xpose.msra.mxu0 %v11022
      %11049 = vmatprep.subr.bf16.mxu0 0
      %11050 = vmatpush2.bf16.xpose.msra.mxu0 0
      %11051 = vmatprep.subr.bf16.mxu0 0
      %11052 = vmatpush2.bf16.xpose.msra.mxu0 0
      %11053 = vmatprep.subr.bf16.mxu0 0
      %11054 = vmatpush2.bf16.xpose.msra.mxu0 0
      %11055 = vmatprep.subr.bf16.mxu0 0
      %11056 = vmatpush2.bf16.xpose.msra.mxu0 0
      %11057 = vmatprep.subr.bf16.mxu0 0
      %11058 = vmatpush2.bf16.xpose.msra.mxu0 0
      %11059 = vmatprep.subr.bf16.mxu0 0
      %11060 = vmatpush2.bf16.xpose.msra.mxu0 0
      %11061 = vmatprep.subr.bf16.mxu0 0
      %11062 = vmatpush2.bf16.xpose.msra.mxu0 0
      %11063 = vmatprep.subr.bf16.mxu0 0
      %11064 = vmatpush2.bf16.xpose.msra.mxu0 0
      %11065 = vmatprep.mubr.bf16.mxu0 0
      %11066 = vmatmul.mubr.bf16.gmra.mxu0 %v11010
      %v11067 = vpop.f32.mrf.mxu0
      %v11068 = vadd.f32 %v10612, %v11067
      %v11069 = vpop.f32.mrf.mxu0
      %v11070 = vpop.f32.mrf.mxu0
      %v11071 = vadd.f32 %v10617, %v11070
      %v11072 = vpop.f32.mrf.mxu0
      %11073 = vmatprep.mubr.bf16.mxu0 0
      %11074 = vmatmul.mubr.bf16.gmra.mxu0 %v11013
      %v11075 = vpop.f32.mrf.mxu0
      %v11076 = vadd.f32 %v10622, %v11075
      %v11077 = vpop.f32.mrf.mxu0
      %v11078 = vpop.f32.mrf.mxu0
      %v11079 = vadd.f32 %v10627, %v11078
      %v11080 = vpop.f32.mrf.mxu0
      %11081 = vmatprep.mubr.bf16.mxu0 0
      %11082 = vmatmul.mubr.bf16.gmra.mxu0 %v11016
      %v11083 = vpop.f32.mrf.mxu0
      %v11084 = vadd.f32 %v10632, %v11083
      %v11085 = vpop.f32.mrf.mxu0
      %v11086 = vpop.f32.mrf.mxu0
      %v11087 = vadd.f32 %v10637, %v11086
      %v11088 = vpop.f32.mrf.mxu0
      %11089 = vmatprep.mubr.bf16.mxu0 0
      %11090 = vmatmul.mubr.bf16.gmra.mxu0 %v11019
      %v11091 = vpop.f32.mrf.mxu0
      %v11092 = vadd.f32 %v10642, %v11091
      %v11093 = vpop.f32.mrf.mxu0
      %v11094 = vpop.f32.mrf.mxu0
      %v11095 = vadd.f32 %v10647, %v11094
      %v11096 = vpop.f32.mrf.mxu0
      %11097 = vdwg.mxu0
      %v11098 = vsel %vm3069, %v11068, -inf
      %11099 = vmax.xlane.f32.xlu0 %v11098
      %v11100 = vpop.xlane.xlu0 %11099
      %v11101 = vsel %vm3069, %v11071, -inf
      %11102 = vmax.xlane.f32.xlu0 %v11101
      %v11103 = vpop.xlane.xlu0 %11102
      %v11104 = vsel %vm3069, %v11076, -inf
      %11105 = vmax.xlane.f32.xlu0 %v11104
      %v11106 = vpop.xlane.xlu0 %11105
      %v11107 = vsel %vm3069, %v11079, -inf
      %11108 = vmax.xlane.f32.xlu0 %v11107
      %v11109 = vpop.xlane.xlu0 %11108
      %v11110 = vsel %vm3069, %v11084, -inf
      %11111 = vmax.xlane.f32.xlu0 %v11110
      %v11112 = vpop.xlane.xlu0 %11111
      %v11113 = vsel %vm3069, %v11087, -inf
      %11114 = vmax.xlane.f32.xlu0 %v11113
      %v11115 = vpop.xlane.xlu0 %11114
      %v11116 = vsel %vm3069, %v11092, -inf
      %11117 = vmax.xlane.f32.xlu0 %v11116
      %v11118 = vpop.xlane.xlu0 %11117
      %v11119 = vsel %vm3069, %v11095, -inf
      %11120 = vmax.xlane.f32.xlu0 %v11119
      %v11121 = vpop.xlane.xlu0 %11120
      %v11122 = vsub.f32 %v11068, %v11100
      %v11123 = vsub.f32 %v11071, %v11103
      %v11124 = vsub.f32 %v11076, %v11106
      %v11125 = vsub.f32 %v11079, %v11109
      %v11126 = vsub.f32 %v11084, %v11112
      %v11127 = vsub.f32 %v11087, %v11115
      %v11128 = vsub.f32 %v11092, %v11118
      %v11129 = vsub.f32 %v11095, %v11121
      %v11130 = vmul.f32 %v11122, 1.442695
      %v11131 = vpow.pop %v11130
      %v11132 = vmul.f32 %v11123, 1.442695
      %v11133 = vpow.pop %v11132
      %v11134 = vmul.f32 %v11124, 1.442695
      %v11135 = vpow.pop %v11134
      %v11136 = vmul.f32 %v11125, 1.442695
      %v11137 = vpow.pop %v11136
      %v11138 = vmul.f32 %v11126, 1.442695
      %v11139 = vpow.pop %v11138
      %v11140 = vmul.f32 %v11127, 1.442695
      %v11141 = vpow.pop %v11140
      %v11142 = vmul.f32 %v11128, 1.442695
      %v11143 = vpow.pop %v11142
      %v11144 = vmul.f32 %v11129, 1.442695
      %v11145 = vpow.pop %v11144
      %v11146 = vsel %vm3069, %v11131, 0.0
      %11147 = vadd.xlane.f32.xlu0 %v11146
      %v11148 = vpop.xlane.xlu0 %11147
      %v11149 = vsel %vm3069, %v11133, 0.0
      %11150 = vadd.xlane.f32.xlu0 %v11149
      %v11151 = vpop.xlane.xlu0 %11150
      %v11152 = vsel %vm3069, %v11135, 0.0
      %11153 = vadd.xlane.f32.xlu0 %v11152
      %v11154 = vpop.xlane.xlu0 %11153
      %v11155 = vsel %vm3069, %v11137, 0.0
      %11156 = vadd.xlane.f32.xlu0 %v11155
      %v11157 = vpop.xlane.xlu0 %11156
      %v11158 = vsel %vm3069, %v11139, 0.0
      %11159 = vadd.xlane.f32.xlu0 %v11158
      %v11160 = vpop.xlane.xlu0 %11159
      %v11161 = vsel %vm3069, %v11141, 0.0
      %11162 = vadd.xlane.f32.xlu0 %v11161
      %v11163 = vpop.xlane.xlu0 %11162
      %v11164 = vsel %vm3069, %v11143, 0.0
      %11165 = vadd.xlane.f32.xlu0 %v11164
      %v11166 = vpop.xlane.xlu0 %11165
      %v11167 = vsel %vm3069, %v11145, 0.0
      %11168 = vadd.xlane.f32.xlu0 %v11167
      %v11169 = vpop.xlane.xlu0 %11168
      %v11170 = vrcp.pop %v11148
      %v11171 = vrcp.pop %v11151
      %v11172 = vrcp.pop %v11154
      %v11173 = vrcp.pop %v11157
      %v11174 = vrcp.pop %v11160
      %v11175 = vrcp.pop %v11163
      %v11176 = vrcp.pop %v11166
      %v11177 = vrcp.pop %v11169
      %v11178 = vmul.f32 %v11131, %v11170
      %v11179 = vmul.f32 %v11133, %v11171
      %v11180 = vmul.f32 %v11135, %v11172
      %v11181 = vmul.f32 %v11137, %v11173
      %v11182 = vmul.f32 %v11139, %v11174
      %v11183 = vmul.f32 %v11141, %v11175
      %v11184 = vmul.f32 %v11143, %v11176
      %v11185 = vmul.f32 %v11145, %v11177
      %v11186 = vpack.c.bf16 %v11179, %v11178
      %v11187 = vpack.c.bf16 %v11181, %v11180
      %v11188 = vpack.c.bf16 %v11183, %v11182
      %v11189 = vpack.c.bf16 %v11185, %v11184
      %11190 = vrot.lane.b32.xlu0 %v547, 40
      %v11191 = vpop.permute.xlu0 %11190
      %11192 = vrot.lane.b32.xlu0 %v548, 40
      %v11193 = vpop.permute.xlu0 %11192
      %11194 = vrot.lane.b32.xlu0 %v549, 40
      %v11195 = vpop.permute.xlu0 %11194
      %11196 = vrot.lane.b32.xlu0 %v550, 40
      %v11197 = vpop.permute.xlu0 %11196
      %v11203 = vsel %vm3069, %v11186, 0
      %v11206 = vsel %vm3069, %v11187, 0
      %v11209 = vsel %vm3069, %v11188, 0
      %v11212 = vsel %vm3069, %v11189, 0
      %11214 = vmatprep.subr.bf16.mxu0 0
      %11215 = vmatpush1.bf16.msra.mxu0 0
      %11216 = vmatprep.subr.bf16.mxu0 0
      %11217 = vmatpush1.bf16.msra.mxu0 0
      %11218 = vmatprep.subr.bf16.mxu0 0
      %11219 = vmatpush1.bf16.msra.mxu0 0
      %11220 = vmatprep.subr.bf16.mxu0 0
      %11221 = vmatpush1.bf16.msra.mxu0 0
      %11222 = vmatprep.subr.bf16.mxu0 0
      %11223 = vmatpush1.bf16.msra.mxu0 %v11197
      %11224 = vmatprep.subr.bf16.mxu0 0
      %11225 = vmatpush1.bf16.msra.mxu0 %v11195
      %11226 = vmatprep.subr.bf16.mxu0 0
      %11227 = vmatpush1.bf16.msra.mxu0 %v11193
      %11228 = vmatprep.subr.bf16.mxu0 0
      %11229 = vmatpush1.bf16.msra.mxu0 %v11191
      %11230 = vmatprep.subr.bf16.mxu0 0
      %11231 = vmatpush2.bf16.msra.mxu0 0
      %11232 = vmatprep.subr.bf16.mxu0 0
      %11233 = vmatpush2.bf16.msra.mxu0 0
      %11234 = vmatprep.subr.bf16.mxu0 0
      %11235 = vmatpush2.bf16.msra.mxu0 0
      %11236 = vmatprep.subr.bf16.mxu0 0
      %11237 = vmatpush2.bf16.msra.mxu0 0
      %11238 = vmatprep.subr.bf16.mxu0 0
      %11239 = vmatpush2.bf16.msra.mxu0 0
      %11240 = vmatprep.subr.bf16.mxu0 0
      %11241 = vmatpush2.bf16.msra.mxu0 0
      %11242 = vmatprep.subr.bf16.mxu0 0
      %11243 = vmatpush2.bf16.msra.mxu0 0
      %11244 = vmatprep.subr.bf16.mxu0 0
      %11245 = vmatpush2.bf16.msra.mxu0 0
      %11246 = vmatprep.mubr.bf16.mxu0 0
      %11247 = vmatmul.mubr.bf16.gmra.mxu0 %v11203
      %v11248 = vpop.f32.mrf.mxu0
      %v11249 = vadd.f32 0.0, %v11248
      %v11250 = vpop.f32.mrf.mxu0
      %v11251 = vpop.f32.mrf.mxu0
      %v11252 = vadd.f32 0.0, %v11251
      %v11253 = vpop.f32.mrf.mxu0
      %11254 = vmatprep.mubr.bf16.mxu0 0
      %11255 = vmatmul.mubr.bf16.gmra.mxu0 %v11206
      %v11256 = vpop.f32.mrf.mxu0
      %v11257 = vadd.f32 0.0, %v11256
      %v11258 = vpop.f32.mrf.mxu0
      %v11259 = vpop.f32.mrf.mxu0
      %v11260 = vadd.f32 0.0, %v11259
      %v11261 = vpop.f32.mrf.mxu0
      %11262 = vmatprep.mubr.bf16.mxu0 0
      %11263 = vmatmul.mubr.bf16.gmra.mxu0 %v11209
      %v11264 = vpop.f32.mrf.mxu0
      %v11265 = vadd.f32 0.0, %v11264
      %v11266 = vpop.f32.mrf.mxu0
      %v11267 = vpop.f32.mrf.mxu0
      %v11268 = vadd.f32 0.0, %v11267
      %v11269 = vpop.f32.mrf.mxu0
      %11270 = vmatprep.mubr.bf16.mxu0 0
      %11271 = vmatmul.mubr.bf16.gmra.mxu0 %v11212
      %v11272 = vpop.f32.mrf.mxu0
      %v11273 = vadd.f32 0.0, %v11272
      %v11274 = vpop.f32.mrf.mxu0
      %v11275 = vpop.f32.mrf.mxu0
      %v11276 = vadd.f32 0.0, %v11275
      %v11277 = vpop.f32.mrf.mxu0
      %11278 = vdwg.mxu0
      %v11279 = vpack.c.bf16 %v11252, %v11249
      %v11280 = vpack.c.bf16 %v11260, %v11257
      %v11281 = vpack.c.bf16 %v11268, %v11265
      %v11282 = vpack.c.bf16 %v11276, %v11273
      %v11287 = vunpack.c.l.b16 %v11279
      %v11288 = vunpack.c.h.b16 %v11279
      %v11289 = vunpack.c.l.b16 %v11280
      %v11290 = vunpack.c.h.b16 %v11280
      %v11291 = vunpack.c.l.b16 %v11281
      %v11292 = vunpack.c.h.b16 %v11281
      %v11293 = vunpack.c.l.b16 %v11282
      %v11294 = vunpack.c.h.b16 %v11282
      %v11295 = vpack.c.b16 %v11287, %v11287
      %v11296 = vpack.c.b16 %v11288, %v11288
      %v11297 = vpack.c.b16 %v11289, %v11289
      %v11298 = vpack.c.b16 %v11290, %v11290
      %v11299 = vpack.c.b16 %v11291, %v11291
      %v11300 = vpack.c.b16 %v11292, %v11292
      %v11301 = vpack.c.b16 %v11293, %v11293
      %v11302 = vpack.c.b16 %v11294, %v11294
      %11303 = vrot.lane.b32.xlu0 %v11295, 24
      %v11304 = vpop.permute.xlu0 %11303
      %11305 = vrot.lane.b32.xlu0 %v11296, 24
      %v11306 = vpop.permute.xlu0 %11305
      %11307 = vrot.lane.b32.xlu0 %v11297, 24
      %v11308 = vpop.permute.xlu0 %11307
      %11309 = vrot.lane.b32.xlu0 %v11298, 24
      %v11310 = vpop.permute.xlu0 %11309
      %11311 = vrot.lane.b32.xlu0 %v11299, 24
      %v11312 = vpop.permute.xlu0 %11311
      %11313 = vrot.lane.b32.xlu0 %v11300, 24
      %v11314 = vpop.permute.xlu0 %11313
      %11315 = vrot.lane.b32.xlu0 %v11301, 24
      %v11316 = vpop.permute.xlu0 %11315
      %11317 = vrot.lane.b32.xlu0 %v11302, 24
      %v11318 = vpop.permute.xlu0 %11317
      %11327 = vst.msk [vmem:[%s305 + $0x20] sm:$0xf] %vm10984, %v11304
      %11328 = vst.msk [vmem:[%s305 + $0x24] sm:$0xf] %vm10984, %v11306
      %11329 = vst.msk [vmem:[%s305 + $0x28] sm:$0xf] %vm10984, %v11308
      %11330 = vst.msk [vmem:[%s305 + $0x2c] sm:$0xf] %vm10984, %v11310
      %11331 = vst.msk [vmem:[%s305 + $0x30] sm:$0xf] %vm10984, %v11312
      %11332 = vst.msk [vmem:[%s305 + $0x34] sm:$0xf] %vm10984, %v11314
      %11333 = vst.msk [vmem:[%s305 + $0x38] sm:$0xf] %vm10984, %v11316
      %11334 = vst.msk [vmem:[%s305 + $0x3c] sm:$0xf] %vm10984, %v11318
      %p11335 = scmp.lt.s32.totalorder %s19, 1
      %s11336 = scalar_select %p11335, %s19, 1
      %s11337 = smul.addr %s11336, 16
      %s11338 = smul.addr %s11337, 4
      %s11339 = scalar_lea.vmem %s8, %s11338
      // Predicated region
      $region53: #{tpu_custom_call.1} parent=51 // pred_check
        %p11340 = pneg %p210
      $region54: #{tpu_custom_call.1} parent=51 // pred_check_branch
        %11342 = sbr.rel (%p11340) target = $region56
      $region55: #{tpu_custom_call.1} parent=51 // pred_region
        _
      $region56: #{tpu_custom_call.1} parent=51 // pred_fallthru
        _
    $region52: #{tpu_custom_call.1} parent=5 // pred_fallthru
      _
    %p11343 = scmp.le.s32.totalorder 2, %s14
    // Predicated region
    $region57: #{tpu_custom_call.1} parent=5 // pred_check
      %p11344 = pneg %p11343
    $region58: #{tpu_custom_call.1} parent=5 // pred_check_branch
      %11346 = sbr.rel (%p11344) target = $region60
    $region59: #{tpu_custom_call.1} parent=5 // pred_region
      %s11347 = ssub.s32 %s14, 2
      // Predicated region
      $region61: #{tpu_custom_call.1} parent=59 // pred_check
        %p11348 = pneg %p216
      $region62: #{tpu_custom_call.1} parent=59 // pred_check_branch
        %11350 = sbr.rel (%p11348) target = $region64
      $region63: #{tpu_custom_call.1} parent=59 // pred_region
        %p11351 = scmp.lt.s32.totalorder %s20, 1
        %s11352 = scalar_select %p11351, %s20, 1
        %s11353 = smul.addr %s11352, 16
        %s11354 = smul.addr %s11353, 4
        %s11355 = scalar_lea.vmem %s8, %s11354
      $region64: #{tpu_custom_call.1} parent=59 // pred_fallthru
        _
    $region60: #{tpu_custom_call.1} parent=5 // pred_fallthru
      _
  $region6: #{tpu_custom_call.1} parent=0 // loop_footer
    %s18 = sadd.s32 1, %s14
  $region7: #{tpu_custom_call.1} parent=0 // loop_footer_branch
    %13 = sbr.rel target = $region3
  $region8: #{tpu_custom_call.1} parent=0 // loop_exit
    _

</llo_original>
